<compile_context>
chip_gen: v7x
topology: tpu7x:2x2x1
jax: 0.10.0
libtpu: 0.0.40
codegen_flags: <defaults>
</compile_context>

<pallas_src>
import math

import jax
import jax.numpy as jnp
from jax.experimental import pallas as pl
from jax.experimental.pallas import tpu as pltpu

# ----------------------------- config ---------------------------------------
VOCAB = 64
HIDDEN = 32
N_LAYERS = 2
N_HEADS = 4
HEAD_DIM = HIDDEN // N_HEADS
INTERMEDIATE = 64
MAX_POS = 16
TYPE_VOCAB = 2
N_CLASSES = 2
LN_EPS = 1e-12

OUT_PAD = 128   # lane-dense padded classifier output width
SUB_PAD = 8     # sublane padding for the per-batch output block


# ----------------------------- fused kernel ----------------------------------
def _bert_fused_kernel(emb_ref, mask_ref,
                       embg_ref, embb_ref,
                       wq_ref, bq_ref, wk_ref, bk_ref, wv_ref, bv_ref,
                       wo_ref, bo_ref, ln1g_ref, ln1b_ref,
                       wi_ref, bi_ref, wo2_ref, bo2_ref, ln2g_ref, ln2b_ref,
                       poolw_ref, poolb_ref, clsw_ref, clsb_ref,
                       out_ref):
    """One batch element per grid step; everything VMEM resident.

    emb_ref : (1, S, H)     summed word+pos+type embeddings
    mask_ref: (1, 1, S)     attention mask (1 = keep, 0 = pad)
    out_ref : (1, SUB_PAD, OUT_PAD)  padded logits (real logits in [0, :N_CLASSES])
    """
    S = emb_ref.shape[1]

    def layernorm(x, g, b):
        mu = jnp.mean(x, axis=-1, keepdims=True)
        xc = x - mu
        var = jnp.mean(xc * xc, axis=-1, keepdims=True)
        return xc * jax.lax.rsqrt(var + LN_EPS) * g + b

    # Embedding LayerNorm (no residual).
    h = layernorm(emb_ref[0], embg_ref[...], embb_ref[...])          # (S, H)

    # Additive attention bias built in-kernel from the raw (1, S) mask.
    bias = (mask_ref[0] - 1.0) * 10000.0                              # (1, S)
    scale = 1.0 / math.sqrt(HEAD_DIM)

    for l in range(N_LAYERS):
        # ---- multi-head self-attention ----
        attn = jnp.zeros((S, HIDDEN), jnp.float32)
        for hd in range(N_HEADS):
            q = (jnp.dot(h, wq_ref[l, hd], preferred_element_type=jnp.float32)
                 + bq_ref[l, hd]) * scale                             # (S, Dh)
            k = jnp.dot(h, wk_ref[l, hd], preferred_element_type=jnp.float32) + bk_ref[l, hd]
            v = jnp.dot(h, wv_ref[l, hd], preferred_element_type=jnp.float32) + bv_ref[l, hd]

            s = jnp.einsum("qd,kd->qk", q, k,
                           preferred_element_type=jnp.float32) + bias  # (S, S)
            mx = jnp.max(s, axis=-1, keepdims=True)
            p = jnp.exp(s - mx)
            p = p * pl.reciprocal(jnp.sum(p, axis=-1, keepdims=True), approx=True)

            ctx = jnp.dot(p, v, preferred_element_type=jnp.float32)   # (S, Dh)
            # output projection folded per head: sum_h ctx_h @ Wo[h]
            attn = attn + jnp.dot(ctx, wo_ref[l, hd], preferred_element_type=jnp.float32)
        attn = attn + bo_ref[l]

        h = layernorm(attn + h, ln1g_ref[l], ln1b_ref[l])

        # ---- feed-forward ----
        inter = jnp.dot(h, wi_ref[l], preferred_element_type=jnp.float32) + bi_ref[l]
        # tanh-approx GELU (Mosaic-safe); BERT reference uses erf-GELU.
        inter = 0.5 * inter * (1.0 + jnp.tanh(
            0.7978845608028654 * (inter + 0.044715 * inter * inter * inter)))
        ffn = jnp.dot(inter, wo2_ref[l], preferred_element_type=jnp.float32) + bo2_ref[l]

        h = layernorm(ffn + h, ln2g_ref[l], ln2b_ref[l])

    # ---- pooler (CLS token -> dense + tanh) ----
    cls = h[0:1, :]                                                   # (1, H)
    pooled = jnp.tanh(jnp.dot(cls, poolw_ref[...],
                              preferred_element_type=jnp.float32) + poolb_ref[...])

    # ---- dropout (inference identity) -> Linear(H, 2) padded to 128 lanes -> ReLU ----
    logits = jnp.maximum(
        jnp.dot(pooled, clsw_ref[...], preferred_element_type=jnp.float32) + clsb_ref[...],
        0.0)                                                          # (1, OUT_PAD)

    out_ref[...] = jnp.broadcast_to(logits, (1, SUB_PAD, OUT_PAD))


# ----------------------------- parameters -----------------------------------
def init_params(key):
    p = {}

    def nrm(k, shape):
        return 0.02 * jax.random.normal(k, shape, dtype=jnp.float32)

    keys = jax.random.split(key, 8 + N_LAYERS)
    p["word_emb"] = nrm(keys[0], (VOCAB, HIDDEN))
    p["pos_emb"] = nrm(keys[1], (MAX_POS, HIDDEN))
    p["type_emb"] = nrm(keys[2], (TYPE_VOCAB, HIDDEN))
    p["emb_ln_g"] = jnp.ones((HIDDEN,), jnp.float32)
    p["emb_ln_b"] = jnp.zeros((HIDDEN,), jnp.float32)

    layers = []
    for li in range(N_LAYERS):
        lk = jax.random.split(keys[3 + li], 6)
        layers.append({
            "wq": nrm(lk[0], (HIDDEN, HIDDEN)), "bq": jnp.zeros((HIDDEN,), jnp.float32),
            "wk": nrm(lk[1], (HIDDEN, HIDDEN)), "bk": jnp.zeros((HIDDEN,), jnp.float32),
            "wv": nrm(lk[2], (HIDDEN, HIDDEN)), "bv": jnp.zeros((HIDDEN,), jnp.float32),
            "wo": nrm(lk[3], (HIDDEN, HIDDEN)), "bo": jnp.zeros((HIDDEN,), jnp.float32),
            "ln1_g": jnp.ones((HIDDEN,), jnp.float32), "ln1_b": jnp.zeros((HIDDEN,), jnp.float32),
            "wi": nrm(lk[4], (HIDDEN, INTERMEDIATE)), "bi": jnp.zeros((INTERMEDIATE,), jnp.float32),
            "wo2": nrm(lk[5], (INTERMEDIATE, HIDDEN)), "bo2": jnp.zeros((HIDDEN,), jnp.float32),
            "ln2_g": jnp.ones((HIDDEN,), jnp.float32), "ln2_b": jnp.zeros((HIDDEN,), jnp.float32),
        })
    p["layers"] = layers

    p["pool_w"] = nrm(keys[3 + N_LAYERS], (HIDDEN, HIDDEN))
    p["pool_b"] = jnp.zeros((HIDDEN,), jnp.float32)
    p["cls_w"] = nrm(keys[4 + N_LAYERS], (HIDDEN, N_CLASSES))
    p["cls_b"] = jnp.zeros((N_CLASSES,), jnp.float32)
    return p


def pack_params(p):
    """Stack per-layer weights and re-lay Q/K/V/O per head for the fused kernel."""
    ls = p["layers"]

    def stack(fn):
        return jnp.stack([fn(lp) for lp in ls], axis=0)

    def per_head_in(w):   # (H, H) -> (nH, H, Dh): columns grouped head-major
        return w.reshape(HIDDEN, N_HEADS, HEAD_DIM).transpose(1, 0, 2)

    def per_head_bias(b):  # (H,) -> (nH, 1, Dh)
        return b.reshape(N_HEADS, 1, HEAD_DIM)

    def per_head_out(w):  # (H, H) -> (nH, Dh, H): rows grouped head-major
        return w.reshape(N_HEADS, HEAD_DIM, HIDDEN)

    cls_w = jnp.zeros((HIDDEN, OUT_PAD), jnp.float32).at[:, :N_CLASSES].set(p["cls_w"])
    cls_b = jnp.zeros((1, OUT_PAD), jnp.float32).at[0, :N_CLASSES].set(p["cls_b"])

    return dict(
        emb_ln_g=p["emb_ln_g"].reshape(1, HIDDEN),
        emb_ln_b=p["emb_ln_b"].reshape(1, HIDDEN),
        wq=stack(lambda lp: per_head_in(lp["wq"])),   bq=stack(lambda lp: per_head_bias(lp["bq"])),
        wk=stack(lambda lp: per_head_in(lp["wk"])),   bk=stack(lambda lp: per_head_bias(lp["bk"])),
        wv=stack(lambda lp: per_head_in(lp["wv"])),   bv=stack(lambda lp: per_head_bias(lp["bv"])),
        wo=stack(lambda lp: per_head_out(lp["wo"])),  bo=stack(lambda lp: lp["bo"].reshape(1, HIDDEN)),
        ln1_g=stack(lambda lp: lp["ln1_g"].reshape(1, HIDDEN)),
        ln1_b=stack(lambda lp: lp["ln1_b"].reshape(1, HIDDEN)),
        wi=stack(lambda lp: lp["wi"]),                bi=stack(lambda lp: lp["bi"].reshape(1, INTERMEDIATE)),
        wo2=stack(lambda lp: lp["wo2"]),              bo2=stack(lambda lp: lp["bo2"].reshape(1, HIDDEN)),
        ln2_g=stack(lambda lp: lp["ln2_g"].reshape(1, HIDDEN)),
        ln2_b=stack(lambda lp: lp["ln2_b"].reshape(1, HIDDEN)),
        pool_w=p["pool_w"], pool_b=p["pool_b"].reshape(1, HIDDEN),
        cls_w=cls_w, cls_b=cls_b,
    )


# ----------------------------- forward --------------------------------------
def bert_classifier_forward(params, input_id, mask):
    B, S = input_id.shape
    pk = pack_params(params)

    # Embedding gather is data-dependent: kept as JAX glue.
    # TODO(synk): at scale, replace with an in-kernel DMA gather via scalar prefetch.
    word = jnp.take(params["word_emb"], input_id, axis=0)             # (B,S,H)
    pos = params["pos_emb"][:S][None, :, :]                           # (1,S,H)
    tok = params["type_emb"][0][None, None, :]                        # (1,1,H)
    emb = (word + pos + tok).astype(jnp.float32)                      # (B,S,H)
    mask3 = mask.astype(jnp.float32).reshape(B, 1, S)                 # (B,1,S)

    inputs = [emb, mask3,
              pk["emb_ln_g"], pk["emb_ln_b"],
              pk["wq"], pk["bq"], pk["wk"], pk["bk"], pk["wv"], pk["bv"],
              pk["wo"], pk["bo"], pk["ln1_g"], pk["ln1_b"],
              pk["wi"], pk["bi"], pk["wo2"], pk["bo2"], pk["ln2_g"], pk["ln2_b"],
              pk["pool_w"], pk["pool_b"], pk["cls_w"], pk["cls_b"]]

    def batch_spec(a):
        nd = a.ndim
        return pl.BlockSpec((1,) + a.shape[1:],
                            lambda b, _nd=nd: (b,) + (0,) * (_nd - 1))

    def const_spec(a):
        nd = a.ndim
        return pl.BlockSpec(a.shape, lambda b, _nd=nd: (0,) * _nd)

    in_specs = [batch_spec(emb), batch_spec(mask3)] + [const_spec(a) for a in inputs[2:]]

    out = pl.pallas_call(
        _bert_fused_kernel,
        out_shape=jax.ShapeDtypeStruct((B, SUB_PAD, OUT_PAD), jnp.float32),
        grid=(B,),
        in_specs=in_specs,
        out_specs=pl.BlockSpec((1, SUB_PAD, OUT_PAD), lambda b: (b, 0, 0)),
        compiler_params=pltpu.CompilerParams(
            dimension_semantics=("parallel",),   # shards batch across 2 TCs on v7x
        ),
        # TODO(synk): at BERT-base sizes set vmem_limit_bytes and re-derive row
        # tiles for v7x's 64 MiB VMEM; use bf16 MXU inputs on v6e/v7x.
    )(*inputs)

    return out[:, 0, :N_CLASSES]                                      # (B, 2)


# ----------------------------- main ------------------------------------------
if __name__ == "__main__":
    key = jax.random.PRNGKey(0)
    pkey, dkey, mkey = jax.random.split(key, 3)

    params = init_params(pkey)

    B, S = 2, 8
    input_id = jax.random.randint(dkey, (B, S), 0, VOCAB, dtype=jnp.int32)
    # attention mask: ones with last two positions of sample 1 padded out
    mask = jnp.ones((B, S), jnp.float32).at[1, -2:].set(0.0)

    fwd = jax.jit(bert_classifier_forward)
    out = fwd(params, input_id, mask)
    out = jax.block_until_ready(out)

    assert out.shape == (B, N_CLASSES) and out.dtype == jnp.float32
    assert bool(jnp.all(out >= 0.0))  # ReLU output
    print("KERNEL_OK")
</pallas_src>

<mosaic_0001>
module attributes {stable_mosaic.version = 11 : i64} {
  func.func @_bert_fused_kernel(%arg0: i32, %arg1: memref<1x8x32xf32, #tpu.memory_space<vmem>>, %arg2: memref<1x1x8xf32, #tpu.memory_space<vmem>>, %arg3: memref<1x32xf32, #tpu.memory_space<vmem>>, %arg4: memref<1x32xf32, #tpu.memory_space<vmem>>, %arg5: memref<2x4x32x8xf32, #tpu.memory_space<vmem>>, %arg6: memref<2x4x1x8xf32, #tpu.memory_space<vmem>>, %arg7: memref<2x4x32x8xf32, #tpu.memory_space<vmem>>, %arg8: memref<2x4x1x8xf32, #tpu.memory_space<vmem>>, %arg9: memref<2x4x32x8xf32, #tpu.memory_space<vmem>>, %arg10: memref<2x4x1x8xf32, #tpu.memory_space<vmem>>, %arg11: memref<2x4x8x32xf32, #tpu.memory_space<vmem>>, %arg12: memref<2x1x32xf32, #tpu.memory_space<vmem>>, %arg13: memref<2x1x32xf32, #tpu.memory_space<vmem>>, %arg14: memref<2x1x32xf32, #tpu.memory_space<vmem>>, %arg15: memref<2x32x64xf32, #tpu.memory_space<vmem>>, %arg16: memref<2x1x64xf32, #tpu.memory_space<vmem>>, %arg17: memref<2x64x32xf32, #tpu.memory_space<vmem>>, %arg18: memref<2x1x32xf32, #tpu.memory_space<vmem>>, %arg19: memref<2x1x32xf32, #tpu.memory_space<vmem>>, %arg20: memref<2x1x32xf32, #tpu.memory_space<vmem>>, %arg21: memref<32x32xf32, #tpu.memory_space<vmem>>, %arg22: memref<1x32xf32, #tpu.memory_space<vmem>>, %arg23: memref<32x128xf32, #tpu.memory_space<vmem>>, %arg24: memref<1x128xf32, #tpu.memory_space<vmem>>, %arg25: memref<1x8x128xf32, #tpu.memory_space<vmem>>) attributes {dimension_semantics = [#tpu.dimension_semantics<parallel>], iteration_bounds = array<i64: 2>, scalar_prefetch = 0 : i64, scratch_operands = 0 : i64, tpu.core_type = #tpu.core_type<tc>, window_params = [{transform_indices = @transform_0, window_bounds = array<i64: 1, 8, 32>}, {transform_indices = @transform_1, window_bounds = array<i64: 1, 1, 8>}, {pipeline_mode = #tpu.pipeline_mode<synchronous>, transform_indices = @transform_2, window_bounds = array<i64: 1, 32>}, {pipeline_mode = #tpu.pipeline_mode<synchronous>, transform_indices = @transform_3, window_bounds = array<i64: 1, 32>}, {pipeline_mode = #tpu.pipeline_mode<synchronous>, transform_indices = @transform_4, window_bounds = array<i64: 2, 4, 32, 8>}, {pipeline_mode = #tpu.pipeline_mode<synchronous>, transform_indices = @transform_5, window_bounds = array<i64: 2, 4, 1, 8>}, {pipeline_mode = #tpu.pipeline_mode<synchronous>, transform_indices = @transform_6, window_bounds = array<i64: 2, 4, 32, 8>}, {pipeline_mode = #tpu.pipeline_mode<synchronous>, transform_indices = @transform_7, window_bounds = array<i64: 2, 4, 1, 8>}, {pipeline_mode = #tpu.pipeline_mode<synchronous>, transform_indices = @transform_8, window_bounds = array<i64: 2, 4, 32, 8>}, {pipeline_mode = #tpu.pipeline_mode<synchronous>, transform_indices = @transform_9, window_bounds = array<i64: 2, 4, 1, 8>}, {pipeline_mode = #tpu.pipeline_mode<synchronous>, transform_indices = @transform_10, window_bounds = array<i64: 2, 4, 8, 32>}, {pipeline_mode = #tpu.pipeline_mode<synchronous>, transform_indices = @transform_11, window_bounds = array<i64: 2, 1, 32>}, {pipeline_mode = #tpu.pipeline_mode<synchronous>, transform_indices = @transform_12, window_bounds = array<i64: 2, 1, 32>}, {pipeline_mode = #tpu.pipeline_mode<synchronous>, transform_indices = @transform_13, window_bounds = array<i64: 2, 1, 32>}, {pipeline_mode = #tpu.pipeline_mode<synchronous>, transform_indices = @transform_14, window_bounds = array<i64: 2, 32, 64>}, {pipeline_mode = #tpu.pipeline_mode<synchronous>, transform_indices = @transform_15, window_bounds = array<i64: 2, 1, 64>}, {pipeline_mode = #tpu.pipeline_mode<synchronous>, transform_indices = @transform_16, window_bounds = array<i64: 2, 64, 32>}, {pipeline_mode = #tpu.pipeline_mode<synchronous>, transform_indices = @transform_17, window_bounds = array<i64: 2, 1, 32>}, {pipeline_mode = #tpu.pipeline_mode<synchronous>, transform_indices = @transform_18, window_bounds = array<i64: 2, 1, 32>}, {pipeline_mode = #tpu.pipeline_mode<synchronous>, transform_indices = @transform_19, window_bounds = array<i64: 2, 1, 32>}, {pipeline_mode = #tpu.pipeline_mode<synchronous>, transform_indices = @transform_20, window_bounds = array<i64: 32, 32>}, {pipeline_mode = #tpu.pipeline_mode<synchronous>, transform_indices = @transform_21, window_bounds = array<i64: 1, 32>}, {pipeline_mode = #tpu.pipeline_mode<synchronous>, transform_indices = @transform_22, window_bounds = array<i64: 32, 128>}, {pipeline_mode = #tpu.pipeline_mode<synchronous>, transform_indices = @transform_23, window_bounds = array<i64: 1, 128>}, {transform_indices = @transform_24, window_bounds = array<i64: 1, 8, 128>}]} {
    %c0 = arith.constant 0 : index
    %c0_0 = arith.constant 0 : index
    %c0_1 = arith.constant 0 : index
    %0 = vector.load %arg1[%c0, %c0_0, %c0_1] : memref<1x8x32xf32, #tpu.memory_space<vmem>>, vector<1x8x32xf32>
    %1 = vector.shape_cast %0 : vector<1x8x32xf32> to vector<8x32xf32>
    %c0_2 = arith.constant 0 : index
    %c0_3 = arith.constant 0 : index
    %2 = vector.load %arg3[%c0_2, %c0_3] : memref<1x32xf32, #tpu.memory_space<vmem>>, vector<1x32xf32>
    %c0_4 = arith.constant 0 : index
    %c0_5 = arith.constant 0 : index
    %3 = vector.load %arg4[%c0_4, %c0_5] : memref<1x32xf32, #tpu.memory_space<vmem>>, vector<1x32xf32>
    %cst = arith.constant dense<0.000000e+00> : vector<8xf32>
    %4 = vector.multi_reduction <add>, %1, %cst [1] : vector<8x32xf32> to vector<8xf32>
    %5 = vector.shape_cast %4 : vector<8xf32> to vector<8x1xf32>
    %cst_6 = arith.constant 3.200000e+01 : f32
    %6 = vector.broadcast %cst_6 : f32 to vector<8x1xf32>
    %7 = arith.divf %5, %6 : vector<8x1xf32>
    %8 = vector.broadcast %7 : vector<8x1xf32> to vector<8x32xf32>
    %9 = arith.subf %1, %8 : vector<8x32xf32>
    %10 = arith.mulf %9, %9 : vector<8x32xf32>
    %cst_7 = arith.constant dense<0.000000e+00> : vector<8xf32>
    %11 = vector.multi_reduction <add>, %10, %cst_7 [1] : vector<8x32xf32> to vector<8xf32>
    %12 = vector.shape_cast %11 : vector<8xf32> to vector<8x1xf32>
    %cst_8 = arith.constant 3.200000e+01 : f32
    %13 = vector.broadcast %cst_8 : f32 to vector<8x1xf32>
    %14 = arith.divf %12, %13 : vector<8x1xf32>
    %cst_9 = arith.constant 9.99999996E-13 : f32
    %15 = vector.broadcast %cst_9 : f32 to vector<8x1xf32>
    %16 = arith.addf %14, %15 : vector<8x1xf32>
    %17 = math.rsqrt %16 : vector<8x1xf32>
    %18 = vector.broadcast %17 : vector<8x1xf32> to vector<8x32xf32>
    %19 = arith.mulf %9, %18 : vector<8x32xf32>
    %20 = vector.broadcast %2 : vector<1x32xf32> to vector<8x32xf32>
    %21 = arith.mulf %19, %20 : vector<8x32xf32>
    %22 = vector.broadcast %3 : vector<1x32xf32> to vector<8x32xf32>
    %23 = arith.addf %21, %22 : vector<8x32xf32>
    %c0_10 = arith.constant 0 : index
    %c0_11 = arith.constant 0 : index
    %c0_12 = arith.constant 0 : index
    %24 = vector.load %arg2[%c0_10, %c0_11, %c0_12] : memref<1x1x8xf32, #tpu.memory_space<vmem>>, vector<1x1x8xf32>
    %25 = vector.shape_cast %24 : vector<1x1x8xf32> to vector<1x8xf32>
    %cst_13 = arith.constant 1.000000e+00 : f32
    %26 = vector.broadcast %cst_13 : f32 to vector<1x8xf32>
    %27 = arith.subf %25, %26 : vector<1x8xf32>
    %cst_14 = arith.constant 1.000000e+04 : f32
    %28 = vector.broadcast %cst_14 : f32 to vector<1x8xf32>
    %29 = arith.mulf %27, %28 : vector<1x8xf32>
    %cst_15 = arith.constant 0.000000e+00 : f32
    %30 = vector.broadcast %cst_15 : f32 to vector<8x32xf32>
    %c0_16 = arith.constant 0 : index
    %c0_17 = arith.constant 0 : index
    %c0_18 = arith.constant 0 : index
    %c0_19 = arith.constant 0 : index
    %31 = vector.load %arg5[%c0_16, %c0_17, %c0_18, %c0_19] : memref<2x4x32x8xf32, #tpu.memory_space<vmem>>, vector<1x1x32x8xf32>
    %32 = vector.shape_cast %31 : vector<1x1x32x8xf32> to vector<32x8xf32>
    %cst_20 = arith.constant dense<0.000000e+00> : vector<8x8xf32>
    %33 = tpu.matmul %23, %32, %cst_20 {dimension_numbers = #tpu.dot_dimension_numbers<[1], [0], [0], [1], [0, 0, 1, 1], [], []>} : vector<8x32xf32>, vector<32x8xf32>, vector<8x8xf32> -> vector<8x8xf32>
    %c0_21 = arith.constant 0 : index
    %c0_22 = arith.constant 0 : index
    %c0_23 = arith.constant 0 : index
    %c0_24 = arith.constant 0 : index
    %34 = vector.load %arg6[%c0_21, %c0_22, %c0_23, %c0_24] : memref<2x4x1x8xf32, #tpu.memory_space<vmem>>, vector<1x1x1x8xf32>
    %35 = vector.shape_cast %34 : vector<1x1x1x8xf32> to vector<1x8xf32>
    %36 = vector.broadcast %35 : vector<1x8xf32> to vector<8x8xf32>
    %37 = arith.addf %33, %36 : vector<8x8xf32>
    %cst_25 = arith.constant 0.353553385 : f32
    %38 = vector.broadcast %cst_25 : f32 to vector<8x8xf32>
    %39 = arith.mulf %37, %38 : vector<8x8xf32>
    %c0_26 = arith.constant 0 : index
    %c0_27 = arith.constant 0 : index
    %c0_28 = arith.constant 0 : index
    %c0_29 = arith.constant 0 : index
    %40 = vector.load %arg7[%c0_26, %c0_27, %c0_28, %c0_29] : memref<2x4x32x8xf32, #tpu.memory_space<vmem>>, vector<1x1x32x8xf32>
    %41 = vector.shape_cast %40 : vector<1x1x32x8xf32> to vector<32x8xf32>
    %cst_30 = arith.constant dense<0.000000e+00> : vector<8x8xf32>
    %42 = tpu.matmul %23, %41, %cst_30 {dimension_numbers = #tpu.dot_dimension_numbers<[1], [0], [0], [1], [0, 0, 1, 1], [], []>} : vector<8x32xf32>, vector<32x8xf32>, vector<8x8xf32> -> vector<8x8xf32>
    %c0_31 = arith.constant 0 : index
    %c0_32 = arith.constant 0 : index
    %c0_33 = arith.constant 0 : index
    %c0_34 = arith.constant 0 : index
    %43 = vector.load %arg8[%c0_31, %c0_32, %c0_33, %c0_34] : memref<2x4x1x8xf32, #tpu.memory_space<vmem>>, vector<1x1x1x8xf32>
    %44 = vector.shape_cast %43 : vector<1x1x1x8xf32> to vector<1x8xf32>
    %45 = vector.broadcast %44 : vector<1x8xf32> to vector<8x8xf32>
    %46 = arith.addf %42, %45 : vector<8x8xf32>
    %c0_35 = arith.constant 0 : index
    %c0_36 = arith.constant 0 : index
    %c0_37 = arith.constant 0 : index
    %c0_38 = arith.constant 0 : index
    %47 = vector.load %arg9[%c0_35, %c0_36, %c0_37, %c0_38] : memref<2x4x32x8xf32, #tpu.memory_space<vmem>>, vector<1x1x32x8xf32>
    %48 = vector.shape_cast %47 : vector<1x1x32x8xf32> to vector<32x8xf32>
    %cst_39 = arith.constant dense<0.000000e+00> : vector<8x8xf32>
    %49 = tpu.matmul %23, %48, %cst_39 {dimension_numbers = #tpu.dot_dimension_numbers<[1], [0], [0], [1], [0, 0, 1, 1], [], []>} : vector<8x32xf32>, vector<32x8xf32>, vector<8x8xf32> -> vector<8x8xf32>
    %c0_40 = arith.constant 0 : index
    %c0_41 = arith.constant 0 : index
    %c0_42 = arith.constant 0 : index
    %c0_43 = arith.constant 0 : index
    %50 = vector.load %arg10[%c0_40, %c0_41, %c0_42, %c0_43] : memref<2x4x1x8xf32, #tpu.memory_space<vmem>>, vector<1x1x1x8xf32>
    %51 = vector.shape_cast %50 : vector<1x1x1x8xf32> to vector<1x8xf32>
    %52 = vector.broadcast %51 : vector<1x8xf32> to vector<8x8xf32>
    %53 = arith.addf %49, %52 : vector<8x8xf32>
    "tpu.trace_start"() <{level = 10 : i32, message = "qd,kd->qk"}> : () -> ()
    %cst_44 = arith.constant dense<0.000000e+00> : vector<8x8xf32>
    %54 = tpu.matmul %39, %46, %cst_44 {dimension_numbers = #tpu.dot_dimension_numbers<[1], [1], [0], [0], [0, 0, 1, 0], [], []>} : vector<8x8xf32>, vector<8x8xf32>, vector<8x8xf32> -> vector<8x8xf32>
    "tpu.trace_stop"() : () -> ()
    %55 = vector.broadcast %29 : vector<1x8xf32> to vector<8x8xf32>
    %56 = arith.addf %54, %55 : vector<8x8xf32>
    %cst_45 = arith.constant dense<0xFF800000> : vector<8xf32>
    %57 = vector.multi_reduction <maximumf>, %56, %cst_45 [1] : vector<8x8xf32> to vector<8xf32>
    %58 = vector.shape_cast %57 : vector<8xf32> to vector<8x1xf32>
    %59 = vector.broadcast %58 : vector<8x1xf32> to vector<8x8xf32>
    %60 = arith.subf %56, %59 : vector<8x8xf32>
    %61 = math.exp %60 : vector<8x8xf32>
    %cst_46 = arith.constant dense<0.000000e+00> : vector<8xf32>
    %62 = vector.multi_reduction <add>, %61, %cst_46 [1] : vector<8x8xf32> to vector<8xf32>
    %63 = vector.shape_cast %62 : vector<8xf32> to vector<8x1xf32>
    %64 = tpu.reciprocal %63 {approx = true} : vector<8x1xf32> -> vector<8x1xf32>
    %65 = vector.broadcast %64 : vector<8x1xf32> to vector<8x8xf32>
    %66 = arith.mulf %61, %65 : vector<8x8xf32>
    %cst_47 = arith.constant dense<0.000000e+00> : vector<8x8xf32>
    %67 = tpu.matmul %66, %53, %cst_47 {dimension_numbers = #tpu.dot_dimension_numbers<[1], [0], [0], [1], [0, 0, 1, 1], [], []>} : vector<8x8xf32>, vector<8x8xf32>, vector<8x8xf32> -> vector<8x8xf32>
    %c0_48 = arith.constant 0 : index
    %c0_49 = arith.constant 0 : index
    %c0_50 = arith.constant 0 : index
    %c0_51 = arith.constant 0 : index
    %68 = vector.load %arg11[%c0_48, %c0_49, %c0_50, %c0_51] : memref<2x4x8x32xf32, #tpu.memory_space<vmem>>, vector<1x1x8x32xf32>
    %69 = vector.shape_cast %68 : vector<1x1x8x32xf32> to vector<8x32xf32>
    %cst_52 = arith.constant dense<0.000000e+00> : vector<8x32xf32>
    %70 = tpu.matmul %67, %69, %cst_52 {dimension_numbers = #tpu.dot_dimension_numbers<[1], [0], [0], [1], [0, 0, 1, 1], [], []>} : vector<8x8xf32>, vector<8x32xf32>, vector<8x32xf32> -> vector<8x32xf32>
    %71 = arith.addf %30, %70 : vector<8x32xf32>
    %c0_53 = arith.constant 0 : index
    %c1 = arith.constant 1 : index
    %c0_54 = arith.constant 0 : index
    %c0_55 = arith.constant 0 : index
    %72 = vector.load %arg5[%c0_53, %c1, %c0_54, %c0_55] : memref<2x4x32x8xf32, #tpu.memory_space<vmem>>, vector<1x1x32x8xf32>
    %73 = vector.shape_cast %72 : vector<1x1x32x8xf32> to vector<32x8xf32>
    %cst_56 = arith.constant dense<0.000000e+00> : vector<8x8xf32>
    %74 = tpu.matmul %23, %73, %cst_56 {dimension_numbers = #tpu.dot_dimension_numbers<[1], [0], [0], [1], [0, 0, 1, 1], [], []>} : vector<8x32xf32>, vector<32x8xf32>, vector<8x8xf32> -> vector<8x8xf32>
    %c0_57 = arith.constant 0 : index
    %c1_58 = arith.constant 1 : index
    %c0_59 = arith.constant 0 : index
    %c0_60 = arith.constant 0 : index
    %75 = vector.load %arg6[%c0_57, %c1_58, %c0_59, %c0_60] : memref<2x4x1x8xf32, #tpu.memory_space<vmem>>, vector<1x1x1x8xf32>
    %76 = vector.shape_cast %75 : vector<1x1x1x8xf32> to vector<1x8xf32>
    %77 = vector.broadcast %76 : vector<1x8xf32> to vector<8x8xf32>
    %78 = arith.addf %74, %77 : vector<8x8xf32>
    %cst_61 = arith.constant 0.353553385 : f32
    %79 = vector.broadcast %cst_61 : f32 to vector<8x8xf32>
    %80 = arith.mulf %78, %79 : vector<8x8xf32>
    %c0_62 = arith.constant 0 : index
    %c1_63 = arith.constant 1 : index
    %c0_64 = arith.constant 0 : index
    %c0_65 = arith.constant 0 : index
    %81 = vector.load %arg7[%c0_62, %c1_63, %c0_64, %c0_65] : memref<2x4x32x8xf32, #tpu.memory_space<vmem>>, vector<1x1x32x8xf32>
    %82 = vector.shape_cast %81 : vector<1x1x32x8xf32> to vector<32x8xf32>
    %cst_66 = arith.constant dense<0.000000e+00> : vector<8x8xf32>
    %83 = tpu.matmul %23, %82, %cst_66 {dimension_numbers = #tpu.dot_dimension_numbers<[1], [0], [0], [1], [0, 0, 1, 1], [], []>} : vector<8x32xf32>, vector<32x8xf32>, vector<8x8xf32> -> vector<8x8xf32>
    %c0_67 = arith.constant 0 : index
    %c1_68 = arith.constant 1 : index
    %c0_69 = arith.constant 0 : index
    %c0_70 = arith.constant 0 : index
    %84 = vector.load %arg8[%c0_67, %c1_68, %c0_69, %c0_70] : memref<2x4x1x8xf32, #tpu.memory_space<vmem>>, vector<1x1x1x8xf32>
    %85 = vector.shape_cast %84 : vector<1x1x1x8xf32> to vector<1x8xf32>
    %86 = vector.broadcast %85 : vector<1x8xf32> to vector<8x8xf32>
    %87 = arith.addf %83, %86 : vector<8x8xf32>
    %c0_71 = arith.constant 0 : index
    %c1_72 = arith.constant 1 : index
    %c0_73 = arith.constant 0 : index
    %c0_74 = arith.constant 0 : index
    %88 = vector.load %arg9[%c0_71, %c1_72, %c0_73, %c0_74] : memref<2x4x32x8xf32, #tpu.memory_space<vmem>>, vector<1x1x32x8xf32>
    %89 = vector.shape_cast %88 : vector<1x1x32x8xf32> to vector<32x8xf32>
    %cst_75 = arith.constant dense<0.000000e+00> : vector<8x8xf32>
    %90 = tpu.matmul %23, %89, %cst_75 {dimension_numbers = #tpu.dot_dimension_numbers<[1], [0], [0], [1], [0, 0, 1, 1], [], []>} : vector<8x32xf32>, vector<32x8xf32>, vector<8x8xf32> -> vector<8x8xf32>
    %c0_76 = arith.constant 0 : index
    %c1_77 = arith.constant 1 : index
    %c0_78 = arith.constant 0 : index
    %c0_79 = arith.constant 0 : index
    %91 = vector.load %arg10[%c0_76, %c1_77, %c0_78, %c0_79] : memref<2x4x1x8xf32, #tpu.memory_space<vmem>>, vector<1x1x1x8xf32>
    %92 = vector.shape_cast %91 : vector<1x1x1x8xf32> to vector<1x8xf32>
    %93 = vector.broadcast %92 : vector<1x8xf32> to vector<8x8xf32>
    %94 = arith.addf %90, %93 : vector<8x8xf32>
    "tpu.trace_start"() <{level = 10 : i32, message = "qd,kd->qk"}> : () -> ()
    %cst_80 = arith.constant dense<0.000000e+00> : vector<8x8xf32>
    %95 = tpu.matmul %80, %87, %cst_80 {dimension_numbers = #tpu.dot_dimension_numbers<[1], [1], [0], [0], [0, 0, 1, 0], [], []>} : vector<8x8xf32>, vector<8x8xf32>, vector<8x8xf32> -> vector<8x8xf32>
    "tpu.trace_stop"() : () -> ()
    %96 = vector.broadcast %29 : vector<1x8xf32> to vector<8x8xf32>
    %97 = arith.addf %95, %96 : vector<8x8xf32>
    %cst_81 = arith.constant dense<0xFF800000> : vector<8xf32>
    %98 = vector.multi_reduction <maximumf>, %97, %cst_81 [1] : vector<8x8xf32> to vector<8xf32>
    %99 = vector.shape_cast %98 : vector<8xf32> to vector<8x1xf32>
    %100 = vector.broadcast %99 : vector<8x1xf32> to vector<8x8xf32>
    %101 = arith.subf %97, %100 : vector<8x8xf32>
    %102 = math.exp %101 : vector<8x8xf32>
    %cst_82 = arith.constant dense<0.000000e+00> : vector<8xf32>
    %103 = vector.multi_reduction <add>, %102, %cst_82 [1] : vector<8x8xf32> to vector<8xf32>
    %104 = vector.shape_cast %103 : vector<8xf32> to vector<8x1xf32>
    %105 = tpu.reciprocal %104 {approx = true} : vector<8x1xf32> -> vector<8x1xf32>
    %106 = vector.broadcast %105 : vector<8x1xf32> to vector<8x8xf32>
    %107 = arith.mulf %102, %106 : vector<8x8xf32>
    %cst_83 = arith.constant dense<0.000000e+00> : vector<8x8xf32>
    %108 = tpu.matmul %107, %94, %cst_83 {dimension_numbers = #tpu.dot_dimension_numbers<[1], [0], [0], [1], [0, 0, 1, 1], [], []>} : vector<8x8xf32>, vector<8x8xf32>, vector<8x8xf32> -> vector<8x8xf32>
    %c0_84 = arith.constant 0 : index
    %c1_85 = arith.constant 1 : index
    %c0_86 = arith.constant 0 : index
    %c0_87 = arith.constant 0 : index
    %109 = vector.load %arg11[%c0_84, %c1_85, %c0_86, %c0_87] : memref<2x4x8x32xf32, #tpu.memory_space<vmem>>, vector<1x1x8x32xf32>
    %110 = vector.shape_cast %109 : vector<1x1x8x32xf32> to vector<8x32xf32>
    %cst_88 = arith.constant dense<0.000000e+00> : vector<8x32xf32>
    %111 = tpu.matmul %108, %110, %cst_88 {dimension_numbers = #tpu.dot_dimension_numbers<[1], [0], [0], [1], [0, 0, 1, 1], [], []>} : vector<8x8xf32>, vector<8x32xf32>, vector<8x32xf32> -> vector<8x32xf32>
    %112 = arith.addf %71, %111 : vector<8x32xf32>
    %c0_89 = arith.constant 0 : index
    %c2 = arith.constant 2 : index
    %c0_90 = arith.constant 0 : index
    %c0_91 = arith.constant 0 : index
    %113 = vector.load %arg5[%c0_89, %c2, %c0_90, %c0_91] : memref<2x4x32x8xf32, #tpu.memory_space<vmem>>, vector<1x1x32x8xf32>
    %114 = vector.shape_cast %113 : vector<1x1x32x8xf32> to vector<32x8xf32>
    %cst_92 = arith.constant dense<0.000000e+00> : vector<8x8xf32>
    %115 = tpu.matmul %23, %114, %cst_92 {dimension_numbers = #tpu.dot_dimension_numbers<[1], [0], [0], [1], [0, 0, 1, 1], [], []>} : vector<8x32xf32>, vector<32x8xf32>, vector<8x8xf32> -> vector<8x8xf32>
    %c0_93 = arith.constant 0 : index
    %c2_94 = arith.constant 2 : index
    %c0_95 = arith.constant 0 : index
    %c0_96 = arith.constant 0 : index
    %116 = vector.load %arg6[%c0_93, %c2_94, %c0_95, %c0_96] : memref<2x4x1x8xf32, #tpu.memory_space<vmem>>, vector<1x1x1x8xf32>
    %117 = vector.shape_cast %116 : vector<1x1x1x8xf32> to vector<1x8xf32>
    %118 = vector.broadcast %117 : vector<1x8xf32> to vector<8x8xf32>
    %119 = arith.addf %115, %118 : vector<8x8xf32>
    %cst_97 = arith.constant 0.353553385 : f32
    %120 = vector.broadcast %cst_97 : f32 to vector<8x8xf32>
    %121 = arith.mulf %119, %120 : vector<8x8xf32>
    %c0_98 = arith.constant 0 : index
    %c2_99 = arith.constant 2 : index
    %c0_100 = arith.constant 0 : index
    %c0_101 = arith.constant 0 : index
    %122 = vector.load %arg7[%c0_98, %c2_99, %c0_100, %c0_101] : memref<2x4x32x8xf32, #tpu.memory_space<vmem>>, vector<1x1x32x8xf32>
    %123 = vector.shape_cast %122 : vector<1x1x32x8xf32> to vector<32x8xf32>
    %cst_102 = arith.constant dense<0.000000e+00> : vector<8x8xf32>
    %124 = tpu.matmul %23, %123, %cst_102 {dimension_numbers = #tpu.dot_dimension_numbers<[1], [0], [0], [1], [0, 0, 1, 1], [], []>} : vector<8x32xf32>, vector<32x8xf32>, vector<8x8xf32> -> vector<8x8xf32>
    %c0_103 = arith.constant 0 : index
    %c2_104 = arith.constant 2 : index
    %c0_105 = arith.constant 0 : index
    %c0_106 = arith.constant 0 : index
    %125 = vector.load %arg8[%c0_103, %c2_104, %c0_105, %c0_106] : memref<2x4x1x8xf32, #tpu.memory_space<vmem>>, vector<1x1x1x8xf32>
    %126 = vector.shape_cast %125 : vector<1x1x1x8xf32> to vector<1x8xf32>
    %127 = vector.broadcast %126 : vector<1x8xf32> to vector<8x8xf32>
    %128 = arith.addf %124, %127 : vector<8x8xf32>
    %c0_107 = arith.constant 0 : index
    %c2_108 = arith.constant 2 : index
    %c0_109 = arith.constant 0 : index
    %c0_110 = arith.constant 0 : index
    %129 = vector.load %arg9[%c0_107, %c2_108, %c0_109, %c0_110] : memref<2x4x32x8xf32, #tpu.memory_space<vmem>>, vector<1x1x32x8xf32>
    %130 = vector.shape_cast %129 : vector<1x1x32x8xf32> to vector<32x8xf32>
    %cst_111 = arith.constant dense<0.000000e+00> : vector<8x8xf32>
    %131 = tpu.matmul %23, %130, %cst_111 {dimension_numbers = #tpu.dot_dimension_numbers<[1], [0], [0], [1], [0, 0, 1, 1], [], []>} : vector<8x32xf32>, vector<32x8xf32>, vector<8x8xf32> -> vector<8x8xf32>
    %c0_112 = arith.constant 0 : index
    %c2_113 = arith.constant 2 : index
    %c0_114 = arith.constant 0 : index
    %c0_115 = arith.constant 0 : index
    %132 = vector.load %arg10[%c0_112, %c2_113, %c0_114, %c0_115] : memref<2x4x1x8xf32, #tpu.memory_space<vmem>>, vector<1x1x1x8xf32>
    %133 = vector.shape_cast %132 : vector<1x1x1x8xf32> to vector<1x8xf32>
    %134 = vector.broadcast %133 : vector<1x8xf32> to vector<8x8xf32>
    %135 = arith.addf %131, %134 : vector<8x8xf32>
    "tpu.trace_start"() <{level = 10 : i32, message = "qd,kd->qk"}> : () -> ()
    %cst_116 = arith.constant dense<0.000000e+00> : vector<8x8xf32>
    %136 = tpu.matmul %121, %128, %cst_116 {dimension_numbers = #tpu.dot_dimension_numbers<[1], [1], [0], [0], [0, 0, 1, 0], [], []>} : vector<8x8xf32>, vector<8x8xf32>, vector<8x8xf32> -> vector<8x8xf32>
    "tpu.trace_stop"() : () -> ()
    %137 = vector.broadcast %29 : vector<1x8xf32> to vector<8x8xf32>
    %138 = arith.addf %136, %137 : vector<8x8xf32>
    %cst_117 = arith.constant dense<0xFF800000> : vector<8xf32>
    %139 = vector.multi_reduction <maximumf>, %138, %cst_117 [1] : vector<8x8xf32> to vector<8xf32>
    %140 = vector.shape_cast %139 : vector<8xf32> to vector<8x1xf32>
    %141 = vector.broadcast %140 : vector<8x1xf32> to vector<8x8xf32>
    %142 = arith.subf %138, %141 : vector<8x8xf32>
    %143 = math.exp %142 : vector<8x8xf32>
    %cst_118 = arith.constant dense<0.000000e+00> : vector<8xf32>
    %144 = vector.multi_reduction <add>, %143, %cst_118 [1] : vector<8x8xf32> to vector<8xf32>
    %145 = vector.shape_cast %144 : vector<8xf32> to vector<8x1xf32>
    %146 = tpu.reciprocal %145 {approx = true} : vector<8x1xf32> -> vector<8x1xf32>
    %147 = vector.broadcast %146 : vector<8x1xf32> to vector<8x8xf32>
    %148 = arith.mulf %143, %147 : vector<8x8xf32>
    %cst_119 = arith.constant dense<0.000000e+00> : vector<8x8xf32>
    %149 = tpu.matmul %148, %135, %cst_119 {dimension_numbers = #tpu.dot_dimension_numbers<[1], [0], [0], [1], [0, 0, 1, 1], [], []>} : vector<8x8xf32>, vector<8x8xf32>, vector<8x8xf32> -> vector<8x8xf32>
    %c0_120 = arith.constant 0 : index
    %c2_121 = arith.constant 2 : index
    %c0_122 = arith.constant 0 : index
    %c0_123 = arith.constant 0 : index
    %150 = vector.load %arg11[%c0_120, %c2_121, %c0_122, %c0_123] : memref<2x4x8x32xf32, #tpu.memory_space<vmem>>, vector<1x1x8x32xf32>
    %151 = vector.shape_cast %150 : vector<1x1x8x32xf32> to vector<8x32xf32>
    %cst_124 = arith.constant dense<0.000000e+00> : vector<8x32xf32>
    %152 = tpu.matmul %149, %151, %cst_124 {dimension_numbers = #tpu.dot_dimension_numbers<[1], [0], [0], [1], [0, 0, 1, 1], [], []>} : vector<8x8xf32>, vector<8x32xf32>, vector<8x32xf32> -> vector<8x32xf32>
    %153 = arith.addf %112, %152 : vector<8x32xf32>
    %c0_125 = arith.constant 0 : index
    %c3 = arith.constant 3 : index
    %c0_126 = arith.constant 0 : index
    %c0_127 = arith.constant 0 : index
    %154 = vector.load %arg5[%c0_125, %c3, %c0_126, %c0_127] : memref<2x4x32x8xf32, #tpu.memory_space<vmem>>, vector<1x1x32x8xf32>
    %155 = vector.shape_cast %154 : vector<1x1x32x8xf32> to vector<32x8xf32>
    %cst_128 = arith.constant dense<0.000000e+00> : vector<8x8xf32>
    %156 = tpu.matmul %23, %155, %cst_128 {dimension_numbers = #tpu.dot_dimension_numbers<[1], [0], [0], [1], [0, 0, 1, 1], [], []>} : vector<8x32xf32>, vector<32x8xf32>, vector<8x8xf32> -> vector<8x8xf32>
    %c0_129 = arith.constant 0 : index
    %c3_130 = arith.constant 3 : index
    %c0_131 = arith.constant 0 : index
    %c0_132 = arith.constant 0 : index
    %157 = vector.load %arg6[%c0_129, %c3_130, %c0_131, %c0_132] : memref<2x4x1x8xf32, #tpu.memory_space<vmem>>, vector<1x1x1x8xf32>
    %158 = vector.shape_cast %157 : vector<1x1x1x8xf32> to vector<1x8xf32>
    %159 = vector.broadcast %158 : vector<1x8xf32> to vector<8x8xf32>
    %160 = arith.addf %156, %159 : vector<8x8xf32>
    %cst_133 = arith.constant 0.353553385 : f32
    %161 = vector.broadcast %cst_133 : f32 to vector<8x8xf32>
    %162 = arith.mulf %160, %161 : vector<8x8xf32>
    %c0_134 = arith.constant 0 : index
    %c3_135 = arith.constant 3 : index
    %c0_136 = arith.constant 0 : index
    %c0_137 = arith.constant 0 : index
    %163 = vector.load %arg7[%c0_134, %c3_135, %c0_136, %c0_137] : memref<2x4x32x8xf32, #tpu.memory_space<vmem>>, vector<1x1x32x8xf32>
    %164 = vector.shape_cast %163 : vector<1x1x32x8xf32> to vector<32x8xf32>
    %cst_138 = arith.constant dense<0.000000e+00> : vector<8x8xf32>
    %165 = tpu.matmul %23, %164, %cst_138 {dimension_numbers = #tpu.dot_dimension_numbers<[1], [0], [0], [1], [0, 0, 1, 1], [], []>} : vector<8x32xf32>, vector<32x8xf32>, vector<8x8xf32> -> vector<8x8xf32>
    %c0_139 = arith.constant 0 : index
    %c3_140 = arith.constant 3 : index
    %c0_141 = arith.constant 0 : index
    %c0_142 = arith.constant 0 : index
    %166 = vector.load %arg8[%c0_139, %c3_140, %c0_141, %c0_142] : memref<2x4x1x8xf32, #tpu.memory_space<vmem>>, vector<1x1x1x8xf32>
    %167 = vector.shape_cast %166 : vector<1x1x1x8xf32> to vector<1x8xf32>
    %168 = vector.broadcast %167 : vector<1x8xf32> to vector<8x8xf32>
    %169 = arith.addf %165, %168 : vector<8x8xf32>
    %c0_143 = arith.constant 0 : index
    %c3_144 = arith.constant 3 : index
    %c0_145 = arith.constant 0 : index
    %c0_146 = arith.constant 0 : index
    %170 = vector.load %arg9[%c0_143, %c3_144, %c0_145, %c0_146] : memref<2x4x32x8xf32, #tpu.memory_space<vmem>>, vector<1x1x32x8xf32>
    %171 = vector.shape_cast %170 : vector<1x1x32x8xf32> to vector<32x8xf32>
    %cst_147 = arith.constant dense<0.000000e+00> : vector<8x8xf32>
    %172 = tpu.matmul %23, %171, %cst_147 {dimension_numbers = #tpu.dot_dimension_numbers<[1], [0], [0], [1], [0, 0, 1, 1], [], []>} : vector<8x32xf32>, vector<32x8xf32>, vector<8x8xf32> -> vector<8x8xf32>
    %c0_148 = arith.constant 0 : index
    %c3_149 = arith.constant 3 : index
    %c0_150 = arith.constant 0 : index
    %c0_151 = arith.constant 0 : index
    %173 = vector.load %arg10[%c0_148, %c3_149, %c0_150, %c0_151] : memref<2x4x1x8xf32, #tpu.memory_space<vmem>>, vector<1x1x1x8xf32>
    %174 = vector.shape_cast %173 : vector<1x1x1x8xf32> to vector<1x8xf32>
    %175 = vector.broadcast %174 : vector<1x8xf32> to vector<8x8xf32>
    %176 = arith.addf %172, %175 : vector<8x8xf32>
    "tpu.trace_start"() <{level = 10 : i32, message = "qd,kd->qk"}> : () -> ()
    %cst_152 = arith.constant dense<0.000000e+00> : vector<8x8xf32>
    %177 = tpu.matmul %162, %169, %cst_152 {dimension_numbers = #tpu.dot_dimension_numbers<[1], [1], [0], [0], [0, 0, 1, 0], [], []>} : vector<8x8xf32>, vector<8x8xf32>, vector<8x8xf32> -> vector<8x8xf32>
    "tpu.trace_stop"() : () -> ()
    %178 = vector.broadcast %29 : vector<1x8xf32> to vector<8x8xf32>
    %179 = arith.addf %177, %178 : vector<8x8xf32>
    %cst_153 = arith.constant dense<0xFF800000> : vector<8xf32>
    %180 = vector.multi_reduction <maximumf>, %179, %cst_153 [1] : vector<8x8xf32> to vector<8xf32>
    %181 = vector.shape_cast %180 : vector<8xf32> to vector<8x1xf32>
    %182 = vector.broadcast %181 : vector<8x1xf32> to vector<8x8xf32>
    %183 = arith.subf %179, %182 : vector<8x8xf32>
    %184 = math.exp %183 : vector<8x8xf32>
    %cst_154 = arith.constant dense<0.000000e+00> : vector<8xf32>
    %185 = vector.multi_reduction <add>, %184, %cst_154 [1] : vector<8x8xf32> to vector<8xf32>
    %186 = vector.shape_cast %185 : vector<8xf32> to vector<8x1xf32>
    %187 = tpu.reciprocal %186 {approx = true} : vector<8x1xf32> -> vector<8x1xf32>
    %188 = vector.broadcast %187 : vector<8x1xf32> to vector<8x8xf32>
    %189 = arith.mulf %184, %188 : vector<8x8xf32>
    %cst_155 = arith.constant dense<0.000000e+00> : vector<8x8xf32>
    %190 = tpu.matmul %189, %176, %cst_155 {dimension_numbers = #tpu.dot_dimension_numbers<[1], [0], [0], [1], [0, 0, 1, 1], [], []>} : vector<8x8xf32>, vector<8x8xf32>, vector<8x8xf32> -> vector<8x8xf32>
    %c0_156 = arith.constant 0 : index
    %c3_157 = arith.constant 3 : index
    %c0_158 = arith.constant 0 : index
    %c0_159 = arith.constant 0 : index
    %191 = vector.load %arg11[%c0_156, %c3_157, %c0_158, %c0_159] : memref<2x4x8x32xf32, #tpu.memory_space<vmem>>, vector<1x1x8x32xf32>
    %192 = vector.shape_cast %191 : vector<1x1x8x32xf32> to vector<8x32xf32>
    %cst_160 = arith.constant dense<0.000000e+00> : vector<8x32xf32>
    %193 = tpu.matmul %190, %192, %cst_160 {dimension_numbers = #tpu.dot_dimension_numbers<[1], [0], [0], [1], [0, 0, 1, 1], [], []>} : vector<8x8xf32>, vector<8x32xf32>, vector<8x32xf32> -> vector<8x32xf32>
    %194 = arith.addf %153, %193 : vector<8x32xf32>
    %c0_161 = arith.constant 0 : index
    %c0_162 = arith.constant 0 : index
    %c0_163 = arith.constant 0 : index
    %195 = vector.load %arg12[%c0_161, %c0_162, %c0_163] : memref<2x1x32xf32, #tpu.memory_space<vmem>>, vector<1x1x32xf32>
    %196 = vector.shape_cast %195 : vector<1x1x32xf32> to vector<1x32xf32>
    %197 = vector.broadcast %196 : vector<1x32xf32> to vector<8x32xf32>
    %198 = arith.addf %194, %197 : vector<8x32xf32>
    %199 = arith.addf %198, %23 : vector<8x32xf32>
    %c0_164 = arith.constant 0 : index
    %c0_165 = arith.constant 0 : index
    %c0_166 = arith.constant 0 : index
    %200 = vector.load %arg13[%c0_164, %c0_165, %c0_166] : memref<2x1x32xf32, #tpu.memory_space<vmem>>, vector<1x1x32xf32>
    %201 = vector.shape_cast %200 : vector<1x1x32xf32> to vector<1x32xf32>
    %c0_167 = arith.constant 0 : index
    %c0_168 = arith.constant 0 : index
    %c0_169 = arith.constant 0 : index
    %202 = vector.load %arg14[%c0_167, %c0_168, %c0_169] : memref<2x1x32xf32, #tpu.memory_space<vmem>>, vector<1x1x32xf32>
    %203 = vector.shape_cast %202 : vector<1x1x32xf32> to vector<1x32xf32>
    %cst_170 = arith.constant dense<0.000000e+00> : vector<8xf32>
    %204 = vector.multi_reduction <add>, %199, %cst_170 [1] : vector<8x32xf32> to vector<8xf32>
    %205 = vector.shape_cast %204 : vector<8xf32> to vector<8x1xf32>
    %cst_171 = arith.constant 3.200000e+01 : f32
    %206 = vector.broadcast %cst_171 : f32 to vector<8x1xf32>
    %207 = arith.divf %205, %206 : vector<8x1xf32>
    %208 = vector.broadcast %207 : vector<8x1xf32> to vector<8x32xf32>
    %209 = arith.subf %199, %208 : vector<8x32xf32>
    %210 = arith.mulf %209, %209 : vector<8x32xf32>
    %cst_172 = arith.constant dense<0.000000e+00> : vector<8xf32>
    %211 = vector.multi_reduction <add>, %210, %cst_172 [1] : vector<8x32xf32> to vector<8xf32>
    %212 = vector.shape_cast %211 : vector<8xf32> to vector<8x1xf32>
    %cst_173 = arith.constant 3.200000e+01 : f32
    %213 = vector.broadcast %cst_173 : f32 to vector<8x1xf32>
    %214 = arith.divf %212, %213 : vector<8x1xf32>
    %cst_174 = arith.constant 9.99999996E-13 : f32
    %215 = vector.broadcast %cst_174 : f32 to vector<8x1xf32>
    %216 = arith.addf %214, %215 : vector<8x1xf32>
    %217 = math.rsqrt %216 : vector<8x1xf32>
    %218 = vector.broadcast %217 : vector<8x1xf32> to vector<8x32xf32>
    %219 = arith.mulf %209, %218 : vector<8x32xf32>
    %220 = vector.broadcast %201 : vector<1x32xf32> to vector<8x32xf32>
    %221 = arith.mulf %219, %220 : vector<8x32xf32>
    %222 = vector.broadcast %203 : vector<1x32xf32> to vector<8x32xf32>
    %223 = arith.addf %221, %222 : vector<8x32xf32>
    %c0_175 = arith.constant 0 : index
    %c0_176 = arith.constant 0 : index
    %c0_177 = arith.constant 0 : index
    %224 = vector.load %arg15[%c0_175, %c0_176, %c0_177] : memref<2x32x64xf32, #tpu.memory_space<vmem>>, vector<1x32x64xf32>
    %225 = vector.shape_cast %224 : vector<1x32x64xf32> to vector<32x64xf32>
    %cst_178 = arith.constant dense<0.000000e+00> : vector<8x64xf32>
    %226 = tpu.matmul %223, %225, %cst_178 {dimension_numbers = #tpu.dot_dimension_numbers<[1], [0], [0], [1], [0, 0, 1, 1], [], []>} : vector<8x32xf32>, vector<32x64xf32>, vector<8x64xf32> -> vector<8x64xf32>
    %c0_179 = arith.constant 0 : index
    %c0_180 = arith.constant 0 : index
    %c0_181 = arith.constant 0 : index
    %227 = vector.load %arg16[%c0_179, %c0_180, %c0_181] : memref<2x1x64xf32, #tpu.memory_space<vmem>>, vector<1x1x64xf32>
    %228 = vector.shape_cast %227 : vector<1x1x64xf32> to vector<1x64xf32>
    %229 = vector.broadcast %228 : vector<1x64xf32> to vector<8x64xf32>
    %230 = arith.addf %226, %229 : vector<8x64xf32>
    %cst_182 = arith.constant 5.000000e-01 : f32
    %231 = vector.broadcast %cst_182 : f32 to vector<8x64xf32>
    %232 = arith.mulf %231, %230 : vector<8x64xf32>
    %cst_183 = arith.constant 4.471500e-02 : f32
    %233 = vector.broadcast %cst_183 : f32 to vector<8x64xf32>
    %234 = arith.mulf %233, %230 : vector<8x64xf32>
    %235 = arith.mulf %234, %230 : vector<8x64xf32>
    %236 = arith.mulf %235, %230 : vector<8x64xf32>
    %237 = arith.addf %230, %236 : vector<8x64xf32>
    %cst_184 = arith.constant 0.797884583 : f32
    %238 = vector.broadcast %cst_184 : f32 to vector<8x64xf32>
    %239 = arith.mulf %238, %237 : vector<8x64xf32>
    %240 = math.tanh %239 : vector<8x64xf32>
    %cst_185 = arith.constant 1.000000e+00 : f32
    %241 = vector.broadcast %cst_185 : f32 to vector<8x64xf32>
    %242 = arith.addf %241, %240 : vector<8x64xf32>
    %243 = arith.mulf %232, %242 : vector<8x64xf32>
    %c0_186 = arith.constant 0 : index
    %c0_187 = arith.constant 0 : index
    %c0_188 = arith.constant 0 : index
    %244 = vector.load %arg17[%c0_186, %c0_187, %c0_188] : memref<2x64x32xf32, #tpu.memory_space<vmem>>, vector<1x64x32xf32>
    %245 = vector.shape_cast %244 : vector<1x64x32xf32> to vector<64x32xf32>
    %cst_189 = arith.constant dense<0.000000e+00> : vector<8x32xf32>
    %246 = tpu.matmul %243, %245, %cst_189 {dimension_numbers = #tpu.dot_dimension_numbers<[1], [0], [0], [1], [0, 0, 1, 1], [], []>} : vector<8x64xf32>, vector<64x32xf32>, vector<8x32xf32> -> vector<8x32xf32>
    %c0_190 = arith.constant 0 : index
    %c0_191 = arith.constant 0 : index
    %c0_192 = arith.constant 0 : index
    %247 = vector.load %arg18[%c0_190, %c0_191, %c0_192] : memref<2x1x32xf32, #tpu.memory_space<vmem>>, vector<1x1x32xf32>
    %248 = vector.shape_cast %247 : vector<1x1x32xf32> to vector<1x32xf32>
    %249 = vector.broadcast %248 : vector<1x32xf32> to vector<8x32xf32>
    %250 = arith.addf %246, %249 : vector<8x32xf32>
    %251 = arith.addf %250, %223 : vector<8x32xf32>
    %c0_193 = arith.constant 0 : index
    %c0_194 = arith.constant 0 : index
    %c0_195 = arith.constant 0 : index
    %252 = vector.load %arg19[%c0_193, %c0_194, %c0_195] : memref<2x1x32xf32, #tpu.memory_space<vmem>>, vector<1x1x32xf32>
    %253 = vector.shape_cast %252 : vector<1x1x32xf32> to vector<1x32xf32>
    %c0_196 = arith.constant 0 : index
    %c0_197 = arith.constant 0 : index
    %c0_198 = arith.constant 0 : index
    %254 = vector.load %arg20[%c0_196, %c0_197, %c0_198] : memref<2x1x32xf32, #tpu.memory_space<vmem>>, vector<1x1x32xf32>
    %255 = vector.shape_cast %254 : vector<1x1x32xf32> to vector<1x32xf32>
    %cst_199 = arith.constant dense<0.000000e+00> : vector<8xf32>
    %256 = vector.multi_reduction <add>, %251, %cst_199 [1] : vector<8x32xf32> to vector<8xf32>
    %257 = vector.shape_cast %256 : vector<8xf32> to vector<8x1xf32>
    %cst_200 = arith.constant 3.200000e+01 : f32
    %258 = vector.broadcast %cst_200 : f32 to vector<8x1xf32>
    %259 = arith.divf %257, %258 : vector<8x1xf32>
    %260 = vector.broadcast %259 : vector<8x1xf32> to vector<8x32xf32>
    %261 = arith.subf %251, %260 : vector<8x32xf32>
    %262 = arith.mulf %261, %261 : vector<8x32xf32>
    %cst_201 = arith.constant dense<0.000000e+00> : vector<8xf32>
    %263 = vector.multi_reduction <add>, %262, %cst_201 [1] : vector<8x32xf32> to vector<8xf32>
    %264 = vector.shape_cast %263 : vector<8xf32> to vector<8x1xf32>
    %cst_202 = arith.constant 3.200000e+01 : f32
    %265 = vector.broadcast %cst_202 : f32 to vector<8x1xf32>
    %266 = arith.divf %264, %265 : vector<8x1xf32>
    %cst_203 = arith.constant 9.99999996E-13 : f32
    %267 = vector.broadcast %cst_203 : f32 to vector<8x1xf32>
    %268 = arith.addf %266, %267 : vector<8x1xf32>
    %269 = math.rsqrt %268 : vector<8x1xf32>
    %270 = vector.broadcast %269 : vector<8x1xf32> to vector<8x32xf32>
    %271 = arith.mulf %261, %270 : vector<8x32xf32>
    %272 = vector.broadcast %253 : vector<1x32xf32> to vector<8x32xf32>
    %273 = arith.mulf %271, %272 : vector<8x32xf32>
    %274 = vector.broadcast %255 : vector<1x32xf32> to vector<8x32xf32>
    %275 = arith.addf %273, %274 : vector<8x32xf32>
    %cst_204 = arith.constant 0.000000e+00 : f32
    %276 = vector.broadcast %cst_204 : f32 to vector<8x32xf32>
    %c1_205 = arith.constant 1 : index
    %c0_206 = arith.constant 0 : index
    %c0_207 = arith.constant 0 : index
    %c0_208 = arith.constant 0 : index
    %277 = vector.load %arg5[%c1_205, %c0_206, %c0_207, %c0_208] : memref<2x4x32x8xf32, #tpu.memory_space<vmem>>, vector<1x1x32x8xf32>
    %278 = vector.shape_cast %277 : vector<1x1x32x8xf32> to vector<32x8xf32>
    %cst_209 = arith.constant dense<0.000000e+00> : vector<8x8xf32>
    %279 = tpu.matmul %275, %278, %cst_209 {dimension_numbers = #tpu.dot_dimension_numbers<[1], [0], [0], [1], [0, 0, 1, 1], [], []>} : vector<8x32xf32>, vector<32x8xf32>, vector<8x8xf32> -> vector<8x8xf32>
    %c1_210 = arith.constant 1 : index
    %c0_211 = arith.constant 0 : index
    %c0_212 = arith.constant 0 : index
    %c0_213 = arith.constant 0 : index
    %280 = vector.load %arg6[%c1_210, %c0_211, %c0_212, %c0_213] : memref<2x4x1x8xf32, #tpu.memory_space<vmem>>, vector<1x1x1x8xf32>
    %281 = vector.shape_cast %280 : vector<1x1x1x8xf32> to vector<1x8xf32>
    %282 = vector.broadcast %281 : vector<1x8xf32> to vector<8x8xf32>
    %283 = arith.addf %279, %282 : vector<8x8xf32>
    %cst_214 = arith.constant 0.353553385 : f32
    %284 = vector.broadcast %cst_214 : f32 to vector<8x8xf32>
    %285 = arith.mulf %283, %284 : vector<8x8xf32>
    %c1_215 = arith.constant 1 : index
    %c0_216 = arith.constant 0 : index
    %c0_217 = arith.constant 0 : index
    %c0_218 = arith.constant 0 : index
    %286 = vector.load %arg7[%c1_215, %c0_216, %c0_217, %c0_218] : memref<2x4x32x8xf32, #tpu.memory_space<vmem>>, vector<1x1x32x8xf32>
    %287 = vector.shape_cast %286 : vector<1x1x32x8xf32> to vector<32x8xf32>
    %cst_219 = arith.constant dense<0.000000e+00> : vector<8x8xf32>
    %288 = tpu.matmul %275, %287, %cst_219 {dimension_numbers = #tpu.dot_dimension_numbers<[1], [0], [0], [1], [0, 0, 1, 1], [], []>} : vector<8x32xf32>, vector<32x8xf32>, vector<8x8xf32> -> vector<8x8xf32>
    %c1_220 = arith.constant 1 : index
    %c0_221 = arith.constant 0 : index
    %c0_222 = arith.constant 0 : index
    %c0_223 = arith.constant 0 : index
    %289 = vector.load %arg8[%c1_220, %c0_221, %c0_222, %c0_223] : memref<2x4x1x8xf32, #tpu.memory_space<vmem>>, vector<1x1x1x8xf32>
    %290 = vector.shape_cast %289 : vector<1x1x1x8xf32> to vector<1x8xf32>
    %291 = vector.broadcast %290 : vector<1x8xf32> to vector<8x8xf32>
    %292 = arith.addf %288, %291 : vector<8x8xf32>
    %c1_224 = arith.constant 1 : index
    %c0_225 = arith.constant 0 : index
    %c0_226 = arith.constant 0 : index
    %c0_227 = arith.constant 0 : index
    %293 = vector.load %arg9[%c1_224, %c0_225, %c0_226, %c0_227] : memref<2x4x32x8xf32, #tpu.memory_space<vmem>>, vector<1x1x32x8xf32>
    %294 = vector.shape_cast %293 : vector<1x1x32x8xf32> to vector<32x8xf32>
    %cst_228 = arith.constant dense<0.000000e+00> : vector<8x8xf32>
    %295 = tpu.matmul %275, %294, %cst_228 {dimension_numbers = #tpu.dot_dimension_numbers<[1], [0], [0], [1], [0, 0, 1, 1], [], []>} : vector<8x32xf32>, vector<32x8xf32>, vector<8x8xf32> -> vector<8x8xf32>
    %c1_229 = arith.constant 1 : index
    %c0_230 = arith.constant 0 : index
    %c0_231 = arith.constant 0 : index
    %c0_232 = arith.constant 0 : index
    %296 = vector.load %arg10[%c1_229, %c0_230, %c0_231, %c0_232] : memref<2x4x1x8xf32, #tpu.memory_space<vmem>>, vector<1x1x1x8xf32>
    %297 = vector.shape_cast %296 : vector<1x1x1x8xf32> to vector<1x8xf32>
    %298 = vector.broadcast %297 : vector<1x8xf32> to vector<8x8xf32>
    %299 = arith.addf %295, %298 : vector<8x8xf32>
    "tpu.trace_start"() <{level = 10 : i32, message = "qd,kd->qk"}> : () -> ()
    %cst_233 = arith.constant dense<0.000000e+00> : vector<8x8xf32>
    %300 = tpu.matmul %285, %292, %cst_233 {dimension_numbers = #tpu.dot_dimension_numbers<[1], [1], [0], [0], [0, 0, 1, 0], [], []>} : vector<8x8xf32>, vector<8x8xf32>, vector<8x8xf32> -> vector<8x8xf32>
    "tpu.trace_stop"() : () -> ()
    %301 = vector.broadcast %29 : vector<1x8xf32> to vector<8x8xf32>
    %302 = arith.addf %300, %301 : vector<8x8xf32>
    %cst_234 = arith.constant dense<0xFF800000> : vector<8xf32>
    %303 = vector.multi_reduction <maximumf>, %302, %cst_234 [1] : vector<8x8xf32> to vector<8xf32>
    %304 = vector.shape_cast %303 : vector<8xf32> to vector<8x1xf32>
    %305 = vector.broadcast %304 : vector<8x1xf32> to vector<8x8xf32>
    %306 = arith.subf %302, %305 : vector<8x8xf32>
    %307 = math.exp %306 : vector<8x8xf32>
    %cst_235 = arith.constant dense<0.000000e+00> : vector<8xf32>
    %308 = vector.multi_reduction <add>, %307, %cst_235 [1] : vector<8x8xf32> to vector<8xf32>
    %309 = vector.shape_cast %308 : vector<8xf32> to vector<8x1xf32>
    %310 = tpu.reciprocal %309 {approx = true} : vector<8x1xf32> -> vector<8x1xf32>
    %311 = vector.broadcast %310 : vector<8x1xf32> to vector<8x8xf32>
    %312 = arith.mulf %307, %311 : vector<8x8xf32>
    %cst_236 = arith.constant dense<0.000000e+00> : vector<8x8xf32>
    %313 = tpu.matmul %312, %299, %cst_236 {dimension_numbers = #tpu.dot_dimension_numbers<[1], [0], [0], [1], [0, 0, 1, 1], [], []>} : vector<8x8xf32>, vector<8x8xf32>, vector<8x8xf32> -> vector<8x8xf32>
    %c1_237 = arith.constant 1 : index
    %c0_238 = arith.constant 0 : index
    %c0_239 = arith.constant 0 : index
    %c0_240 = arith.constant 0 : index
    %314 = vector.load %arg11[%c1_237, %c0_238, %c0_239, %c0_240] : memref<2x4x8x32xf32, #tpu.memory_space<vmem>>, vector<1x1x8x32xf32>
    %315 = vector.shape_cast %314 : vector<1x1x8x32xf32> to vector<8x32xf32>
    %cst_241 = arith.constant dense<0.000000e+00> : vector<8x32xf32>
    %316 = tpu.matmul %313, %315, %cst_241 {dimension_numbers = #tpu.dot_dimension_numbers<[1], [0], [0], [1], [0, 0, 1, 1], [], []>} : vector<8x8xf32>, vector<8x32xf32>, vector<8x32xf32> -> vector<8x32xf32>
    %317 = arith.addf %276, %316 : vector<8x32xf32>
    %c1_242 = arith.constant 1 : index
    %c1_243 = arith.constant 1 : index
    %c0_244 = arith.constant 0 : index
    %c0_245 = arith.constant 0 : index
    %318 = vector.load %arg5[%c1_242, %c1_243, %c0_244, %c0_245] : memref<2x4x32x8xf32, #tpu.memory_space<vmem>>, vector<1x1x32x8xf32>
    %319 = vector.shape_cast %318 : vector<1x1x32x8xf32> to vector<32x8xf32>
    %cst_246 = arith.constant dense<0.000000e+00> : vector<8x8xf32>
    %320 = tpu.matmul %275, %319, %cst_246 {dimension_numbers = #tpu.dot_dimension_numbers<[1], [0], [0], [1], [0, 0, 1, 1], [], []>} : vector<8x32xf32>, vector<32x8xf32>, vector<8x8xf32> -> vector<8x8xf32>
    %c1_247 = arith.constant 1 : index
    %c1_248 = arith.constant 1 : index
    %c0_249 = arith.constant 0 : index
    %c0_250 = arith.constant 0 : index
    %321 = vector.load %arg6[%c1_247, %c1_248, %c0_249, %c0_250] : memref<2x4x1x8xf32, #tpu.memory_space<vmem>>, vector<1x1x1x8xf32>
    %322 = vector.shape_cast %321 : vector<1x1x1x8xf32> to vector<1x8xf32>
    %323 = vector.broadcast %322 : vector<1x8xf32> to vector<8x8xf32>
    %324 = arith.addf %320, %323 : vector<8x8xf32>
    %cst_251 = arith.constant 0.353553385 : f32
    %325 = vector.broadcast %cst_251 : f32 to vector<8x8xf32>
    %326 = arith.mulf %324, %325 : vector<8x8xf32>
    %c1_252 = arith.constant 1 : index
    %c1_253 = arith.constant 1 : index
    %c0_254 = arith.constant 0 : index
    %c0_255 = arith.constant 0 : index
    %327 = vector.load %arg7[%c1_252, %c1_253, %c0_254, %c0_255] : memref<2x4x32x8xf32, #tpu.memory_space<vmem>>, vector<1x1x32x8xf32>
    %328 = vector.shape_cast %327 : vector<1x1x32x8xf32> to vector<32x8xf32>
    %cst_256 = arith.constant dense<0.000000e+00> : vector<8x8xf32>
    %329 = tpu.matmul %275, %328, %cst_256 {dimension_numbers = #tpu.dot_dimension_numbers<[1], [0], [0], [1], [0, 0, 1, 1], [], []>} : vector<8x32xf32>, vector<32x8xf32>, vector<8x8xf32> -> vector<8x8xf32>
    %c1_257 = arith.constant 1 : index
    %c1_258 = arith.constant 1 : index
    %c0_259 = arith.constant 0 : index
    %c0_260 = arith.constant 0 : index
    %330 = vector.load %arg8[%c1_257, %c1_258, %c0_259, %c0_260] : memref<2x4x1x8xf32, #tpu.memory_space<vmem>>, vector<1x1x1x8xf32>
    %331 = vector.shape_cast %330 : vector<1x1x1x8xf32> to vector<1x8xf32>
    %332 = vector.broadcast %331 : vector<1x8xf32> to vector<8x8xf32>
    %333 = arith.addf %329, %332 : vector<8x8xf32>
    %c1_261 = arith.constant 1 : index
    %c1_262 = arith.constant 1 : index
    %c0_263 = arith.constant 0 : index
    %c0_264 = arith.constant 0 : index
    %334 = vector.load %arg9[%c1_261, %c1_262, %c0_263, %c0_264] : memref<2x4x32x8xf32, #tpu.memory_space<vmem>>, vector<1x1x32x8xf32>
    %335 = vector.shape_cast %334 : vector<1x1x32x8xf32> to vector<32x8xf32>
    %cst_265 = arith.constant dense<0.000000e+00> : vector<8x8xf32>
    %336 = tpu.matmul %275, %335, %cst_265 {dimension_numbers = #tpu.dot_dimension_numbers<[1], [0], [0], [1], [0, 0, 1, 1], [], []>} : vector<8x32xf32>, vector<32x8xf32>, vector<8x8xf32> -> vector<8x8xf32>
    %c1_266 = arith.constant 1 : index
    %c1_267 = arith.constant 1 : index
    %c0_268 = arith.constant 0 : index
    %c0_269 = arith.constant 0 : index
    %337 = vector.load %arg10[%c1_266, %c1_267, %c0_268, %c0_269] : memref<2x4x1x8xf32, #tpu.memory_space<vmem>>, vector<1x1x1x8xf32>
    %338 = vector.shape_cast %337 : vector<1x1x1x8xf32> to vector<1x8xf32>
    %339 = vector.broadcast %338 : vector<1x8xf32> to vector<8x8xf32>
    %340 = arith.addf %336, %339 : vector<8x8xf32>
    "tpu.trace_start"() <{level = 10 : i32, message = "qd,kd->qk"}> : () -> ()
    %cst_270 = arith.constant dense<0.000000e+00> : vector<8x8xf32>
    %341 = tpu.matmul %326, %333, %cst_270 {dimension_numbers = #tpu.dot_dimension_numbers<[1], [1], [0], [0], [0, 0, 1, 0], [], []>} : vector<8x8xf32>, vector<8x8xf32>, vector<8x8xf32> -> vector<8x8xf32>
    "tpu.trace_stop"() : () -> ()
    %342 = vector.broadcast %29 : vector<1x8xf32> to vector<8x8xf32>
    %343 = arith.addf %341, %342 : vector<8x8xf32>
    %cst_271 = arith.constant dense<0xFF800000> : vector<8xf32>
    %344 = vector.multi_reduction <maximumf>, %343, %cst_271 [1] : vector<8x8xf32> to vector<8xf32>
    %345 = vector.shape_cast %344 : vector<8xf32> to vector<8x1xf32>
    %346 = vector.broadcast %345 : vector<8x1xf32> to vector<8x8xf32>
    %347 = arith.subf %343, %346 : vector<8x8xf32>
    %348 = math.exp %347 : vector<8x8xf32>
    %cst_272 = arith.constant dense<0.000000e+00> : vector<8xf32>
    %349 = vector.multi_reduction <add>, %348, %cst_272 [1] : vector<8x8xf32> to vector<8xf32>
    %350 = vector.shape_cast %349 : vector<8xf32> to vector<8x1xf32>
    %351 = tpu.reciprocal %350 {approx = true} : vector<8x1xf32> -> vector<8x1xf32>
    %352 = vector.broadcast %351 : vector<8x1xf32> to vector<8x8xf32>
    %353 = arith.mulf %348, %352 : vector<8x8xf32>
    %cst_273 = arith.constant dense<0.000000e+00> : vector<8x8xf32>
    %354 = tpu.matmul %353, %340, %cst_273 {dimension_numbers = #tpu.dot_dimension_numbers<[1], [0], [0], [1], [0, 0, 1, 1], [], []>} : vector<8x8xf32>, vector<8x8xf32>, vector<8x8xf32> -> vector<8x8xf32>
    %c1_274 = arith.constant 1 : index
    %c1_275 = arith.constant 1 : index
    %c0_276 = arith.constant 0 : index
    %c0_277 = arith.constant 0 : index
    %355 = vector.load %arg11[%c1_274, %c1_275, %c0_276, %c0_277] : memref<2x4x8x32xf32, #tpu.memory_space<vmem>>, vector<1x1x8x32xf32>
    %356 = vector.shape_cast %355 : vector<1x1x8x32xf32> to vector<8x32xf32>
    %cst_278 = arith.constant dense<0.000000e+00> : vector<8x32xf32>
    %357 = tpu.matmul %354, %356, %cst_278 {dimension_numbers = #tpu.dot_dimension_numbers<[1], [0], [0], [1], [0, 0, 1, 1], [], []>} : vector<8x8xf32>, vector<8x32xf32>, vector<8x32xf32> -> vector<8x32xf32>
    %358 = arith.addf %317, %357 : vector<8x32xf32>
    %c1_279 = arith.constant 1 : index
    %c2_280 = arith.constant 2 : index
    %c0_281 = arith.constant 0 : index
    %c0_282 = arith.constant 0 : index
    %359 = vector.load %arg5[%c1_279, %c2_280, %c0_281, %c0_282] : memref<2x4x32x8xf32, #tpu.memory_space<vmem>>, vector<1x1x32x8xf32>
    %360 = vector.shape_cast %359 : vector<1x1x32x8xf32> to vector<32x8xf32>
    %cst_283 = arith.constant dense<0.000000e+00> : vector<8x8xf32>
    %361 = tpu.matmul %275, %360, %cst_283 {dimension_numbers = #tpu.dot_dimension_numbers<[1], [0], [0], [1], [0, 0, 1, 1], [], []>} : vector<8x32xf32>, vector<32x8xf32>, vector<8x8xf32> -> vector<8x8xf32>
    %c1_284 = arith.constant 1 : index
    %c2_285 = arith.constant 2 : index
    %c0_286 = arith.constant 0 : index
    %c0_287 = arith.constant 0 : index
    %362 = vector.load %arg6[%c1_284, %c2_285, %c0_286, %c0_287] : memref<2x4x1x8xf32, #tpu.memory_space<vmem>>, vector<1x1x1x8xf32>
    %363 = vector.shape_cast %362 : vector<1x1x1x8xf32> to vector<1x8xf32>
    %364 = vector.broadcast %363 : vector<1x8xf32> to vector<8x8xf32>
    %365 = arith.addf %361, %364 : vector<8x8xf32>
    %cst_288 = arith.constant 0.353553385 : f32
    %366 = vector.broadcast %cst_288 : f32 to vector<8x8xf32>
    %367 = arith.mulf %365, %366 : vector<8x8xf32>
    %c1_289 = arith.constant 1 : index
    %c2_290 = arith.constant 2 : index
    %c0_291 = arith.constant 0 : index
    %c0_292 = arith.constant 0 : index
    %368 = vector.load %arg7[%c1_289, %c2_290, %c0_291, %c0_292] : memref<2x4x32x8xf32, #tpu.memory_space<vmem>>, vector<1x1x32x8xf32>
    %369 = vector.shape_cast %368 : vector<1x1x32x8xf32> to vector<32x8xf32>
    %cst_293 = arith.constant dense<0.000000e+00> : vector<8x8xf32>
    %370 = tpu.matmul %275, %369, %cst_293 {dimension_numbers = #tpu.dot_dimension_numbers<[1], [0], [0], [1], [0, 0, 1, 1], [], []>} : vector<8x32xf32>, vector<32x8xf32>, vector<8x8xf32> -> vector<8x8xf32>
    %c1_294 = arith.constant 1 : index
    %c2_295 = arith.constant 2 : index
    %c0_296 = arith.constant 0 : index
    %c0_297 = arith.constant 0 : index
    %371 = vector.load %arg8[%c1_294, %c2_295, %c0_296, %c0_297] : memref<2x4x1x8xf32, #tpu.memory_space<vmem>>, vector<1x1x1x8xf32>
    %372 = vector.shape_cast %371 : vector<1x1x1x8xf32> to vector<1x8xf32>
    %373 = vector.broadcast %372 : vector<1x8xf32> to vector<8x8xf32>
    %374 = arith.addf %370, %373 : vector<8x8xf32>
    %c1_298 = arith.constant 1 : index
    %c2_299 = arith.constant 2 : index
    %c0_300 = arith.constant 0 : index
    %c0_301 = arith.constant 0 : index
    %375 = vector.load %arg9[%c1_298, %c2_299, %c0_300, %c0_301] : memref<2x4x32x8xf32, #tpu.memory_space<vmem>>, vector<1x1x32x8xf32>
    %376 = vector.shape_cast %375 : vector<1x1x32x8xf32> to vector<32x8xf32>
    %cst_302 = arith.constant dense<0.000000e+00> : vector<8x8xf32>
    %377 = tpu.matmul %275, %376, %cst_302 {dimension_numbers = #tpu.dot_dimension_numbers<[1], [0], [0], [1], [0, 0, 1, 1], [], []>} : vector<8x32xf32>, vector<32x8xf32>, vector<8x8xf32> -> vector<8x8xf32>
    %c1_303 = arith.constant 1 : index
    %c2_304 = arith.constant 2 : index
    %c0_305 = arith.constant 0 : index
    %c0_306 = arith.constant 0 : index
    %378 = vector.load %arg10[%c1_303, %c2_304, %c0_305, %c0_306] : memref<2x4x1x8xf32, #tpu.memory_space<vmem>>, vector<1x1x1x8xf32>
    %379 = vector.shape_cast %378 : vector<1x1x1x8xf32> to vector<1x8xf32>
    %380 = vector.broadcast %379 : vector<1x8xf32> to vector<8x8xf32>
    %381 = arith.addf %377, %380 : vector<8x8xf32>
    "tpu.trace_start"() <{level = 10 : i32, message = "qd,kd->qk"}> : () -> ()
    %cst_307 = arith.constant dense<0.000000e+00> : vector<8x8xf32>
    %382 = tpu.matmul %367, %374, %cst_307 {dimension_numbers = #tpu.dot_dimension_numbers<[1], [1], [0], [0], [0, 0, 1, 0], [], []>} : vector<8x8xf32>, vector<8x8xf32>, vector<8x8xf32> -> vector<8x8xf32>
    "tpu.trace_stop"() : () -> ()
    %383 = vector.broadcast %29 : vector<1x8xf32> to vector<8x8xf32>
    %384 = arith.addf %382, %383 : vector<8x8xf32>
    %cst_308 = arith.constant dense<0xFF800000> : vector<8xf32>
    %385 = vector.multi_reduction <maximumf>, %384, %cst_308 [1] : vector<8x8xf32> to vector<8xf32>
    %386 = vector.shape_cast %385 : vector<8xf32> to vector<8x1xf32>
    %387 = vector.broadcast %386 : vector<8x1xf32> to vector<8x8xf32>
    %388 = arith.subf %384, %387 : vector<8x8xf32>
    %389 = math.exp %388 : vector<8x8xf32>
    %cst_309 = arith.constant dense<0.000000e+00> : vector<8xf32>
    %390 = vector.multi_reduction <add>, %389, %cst_309 [1] : vector<8x8xf32> to vector<8xf32>
    %391 = vector.shape_cast %390 : vector<8xf32> to vector<8x1xf32>
    %392 = tpu.reciprocal %391 {approx = true} : vector<8x1xf32> -> vector<8x1xf32>
    %393 = vector.broadcast %392 : vector<8x1xf32> to vector<8x8xf32>
    %394 = arith.mulf %389, %393 : vector<8x8xf32>
    %cst_310 = arith.constant dense<0.000000e+00> : vector<8x8xf32>
    %395 = tpu.matmul %394, %381, %cst_310 {dimension_numbers = #tpu.dot_dimension_numbers<[1], [0], [0], [1], [0, 0, 1, 1], [], []>} : vector<8x8xf32>, vector<8x8xf32>, vector<8x8xf32> -> vector<8x8xf32>
    %c1_311 = arith.constant 1 : index
    %c2_312 = arith.constant 2 : index
    %c0_313 = arith.constant 0 : index
    %c0_314 = arith.constant 0 : index
    %396 = vector.load %arg11[%c1_311, %c2_312, %c0_313, %c0_314] : memref<2x4x8x32xf32, #tpu.memory_space<vmem>>, vector<1x1x8x32xf32>
    %397 = vector.shape_cast %396 : vector<1x1x8x32xf32> to vector<8x32xf32>
    %cst_315 = arith.constant dense<0.000000e+00> : vector<8x32xf32>
    %398 = tpu.matmul %395, %397, %cst_315 {dimension_numbers = #tpu.dot_dimension_numbers<[1], [0], [0], [1], [0, 0, 1, 1], [], []>} : vector<8x8xf32>, vector<8x32xf32>, vector<8x32xf32> -> vector<8x32xf32>
    %399 = arith.addf %358, %398 : vector<8x32xf32>
    %c1_316 = arith.constant 1 : index
    %c3_317 = arith.constant 3 : index
    %c0_318 = arith.constant 0 : index
    %c0_319 = arith.constant 0 : index
    %400 = vector.load %arg5[%c1_316, %c3_317, %c0_318, %c0_319] : memref<2x4x32x8xf32, #tpu.memory_space<vmem>>, vector<1x1x32x8xf32>
    %401 = vector.shape_cast %400 : vector<1x1x32x8xf32> to vector<32x8xf32>
    %cst_320 = arith.constant dense<0.000000e+00> : vector<8x8xf32>
    %402 = tpu.matmul %275, %401, %cst_320 {dimension_numbers = #tpu.dot_dimension_numbers<[1], [0], [0], [1], [0, 0, 1, 1], [], []>} : vector<8x32xf32>, vector<32x8xf32>, vector<8x8xf32> -> vector<8x8xf32>
    %c1_321 = arith.constant 1 : index
    %c3_322 = arith.constant 3 : index
    %c0_323 = arith.constant 0 : index
    %c0_324 = arith.constant 0 : index
    %403 = vector.load %arg6[%c1_321, %c3_322, %c0_323, %c0_324] : memref<2x4x1x8xf32, #tpu.memory_space<vmem>>, vector<1x1x1x8xf32>
    %404 = vector.shape_cast %403 : vector<1x1x1x8xf32> to vector<1x8xf32>
    %405 = vector.broadcast %404 : vector<1x8xf32> to vector<8x8xf32>
    %406 = arith.addf %402, %405 : vector<8x8xf32>
    %cst_325 = arith.constant 0.353553385 : f32
    %407 = vector.broadcast %cst_325 : f32 to vector<8x8xf32>
    %408 = arith.mulf %406, %407 : vector<8x8xf32>
    %c1_326 = arith.constant 1 : index
    %c3_327 = arith.constant 3 : index
    %c0_328 = arith.constant 0 : index
    %c0_329 = arith.constant 0 : index
    %409 = vector.load %arg7[%c1_326, %c3_327, %c0_328, %c0_329] : memref<2x4x32x8xf32, #tpu.memory_space<vmem>>, vector<1x1x32x8xf32>
    %410 = vector.shape_cast %409 : vector<1x1x32x8xf32> to vector<32x8xf32>
    %cst_330 = arith.constant dense<0.000000e+00> : vector<8x8xf32>
    %411 = tpu.matmul %275, %410, %cst_330 {dimension_numbers = #tpu.dot_dimension_numbers<[1], [0], [0], [1], [0, 0, 1, 1], [], []>} : vector<8x32xf32>, vector<32x8xf32>, vector<8x8xf32> -> vector<8x8xf32>
    %c1_331 = arith.constant 1 : index
    %c3_332 = arith.constant 3 : index
    %c0_333 = arith.constant 0 : index
    %c0_334 = arith.constant 0 : index
    %412 = vector.load %arg8[%c1_331, %c3_332, %c0_333, %c0_334] : memref<2x4x1x8xf32, #tpu.memory_space<vmem>>, vector<1x1x1x8xf32>
    %413 = vector.shape_cast %412 : vector<1x1x1x8xf32> to vector<1x8xf32>
    %414 = vector.broadcast %413 : vector<1x8xf32> to vector<8x8xf32>
    %415 = arith.addf %411, %414 : vector<8x8xf32>
    %c1_335 = arith.constant 1 : index
    %c3_336 = arith.constant 3 : index
    %c0_337 = arith.constant 0 : index
    %c0_338 = arith.constant 0 : index
    %416 = vector.load %arg9[%c1_335, %c3_336, %c0_337, %c0_338] : memref<2x4x32x8xf32, #tpu.memory_space<vmem>>, vector<1x1x32x8xf32>
    %417 = vector.shape_cast %416 : vector<1x1x32x8xf32> to vector<32x8xf32>
    %cst_339 = arith.constant dense<0.000000e+00> : vector<8x8xf32>
    %418 = tpu.matmul %275, %417, %cst_339 {dimension_numbers = #tpu.dot_dimension_numbers<[1], [0], [0], [1], [0, 0, 1, 1], [], []>} : vector<8x32xf32>, vector<32x8xf32>, vector<8x8xf32> -> vector<8x8xf32>
    %c1_340 = arith.constant 1 : index
    %c3_341 = arith.constant 3 : index
    %c0_342 = arith.constant 0 : index
    %c0_343 = arith.constant 0 : index
    %419 = vector.load %arg10[%c1_340, %c3_341, %c0_342, %c0_343] : memref<2x4x1x8xf32, #tpu.memory_space<vmem>>, vector<1x1x1x8xf32>
    %420 = vector.shape_cast %419 : vector<1x1x1x8xf32> to vector<1x8xf32>
    %421 = vector.broadcast %420 : vector<1x8xf32> to vector<8x8xf32>
    %422 = arith.addf %418, %421 : vector<8x8xf32>
    "tpu.trace_start"() <{level = 10 : i32, message = "qd,kd->qk"}> : () -> ()
    %cst_344 = arith.constant dense<0.000000e+00> : vector<8x8xf32>
    %423 = tpu.matmul %408, %415, %cst_344 {dimension_numbers = #tpu.dot_dimension_numbers<[1], [1], [0], [0], [0, 0, 1, 0], [], []>} : vector<8x8xf32>, vector<8x8xf32>, vector<8x8xf32> -> vector<8x8xf32>
    "tpu.trace_stop"() : () -> ()
    %424 = vector.broadcast %29 : vector<1x8xf32> to vector<8x8xf32>
    %425 = arith.addf %423, %424 : vector<8x8xf32>
    %cst_345 = arith.constant dense<0xFF800000> : vector<8xf32>
    %426 = vector.multi_reduction <maximumf>, %425, %cst_345 [1] : vector<8x8xf32> to vector<8xf32>
    %427 = vector.shape_cast %426 : vector<8xf32> to vector<8x1xf32>
    %428 = vector.broadcast %427 : vector<8x1xf32> to vector<8x8xf32>
    %429 = arith.subf %425, %428 : vector<8x8xf32>
    %430 = math.exp %429 : vector<8x8xf32>
    %cst_346 = arith.constant dense<0.000000e+00> : vector<8xf32>
    %431 = vector.multi_reduction <add>, %430, %cst_346 [1] : vector<8x8xf32> to vector<8xf32>
    %432 = vector.shape_cast %431 : vector<8xf32> to vector<8x1xf32>
    %433 = tpu.reciprocal %432 {approx = true} : vector<8x1xf32> -> vector<8x1xf32>
    %434 = vector.broadcast %433 : vector<8x1xf32> to vector<8x8xf32>
    %435 = arith.mulf %430, %434 : vector<8x8xf32>
    %cst_347 = arith.constant dense<0.000000e+00> : vector<8x8xf32>
    %436 = tpu.matmul %435, %422, %cst_347 {dimension_numbers = #tpu.dot_dimension_numbers<[1], [0], [0], [1], [0, 0, 1, 1], [], []>} : vector<8x8xf32>, vector<8x8xf32>, vector<8x8xf32> -> vector<8x8xf32>
    %c1_348 = arith.constant 1 : index
    %c3_349 = arith.constant 3 : index
    %c0_350 = arith.constant 0 : index
    %c0_351 = arith.constant 0 : index
    %437 = vector.load %arg11[%c1_348, %c3_349, %c0_350, %c0_351] : memref<2x4x8x32xf32, #tpu.memory_space<vmem>>, vector<1x1x8x32xf32>
    %438 = vector.shape_cast %437 : vector<1x1x8x32xf32> to vector<8x32xf32>
    %cst_352 = arith.constant dense<0.000000e+00> : vector<8x32xf32>
    %439 = tpu.matmul %436, %438, %cst_352 {dimension_numbers = #tpu.dot_dimension_numbers<[1], [0], [0], [1], [0, 0, 1, 1], [], []>} : vector<8x8xf32>, vector<8x32xf32>, vector<8x32xf32> -> vector<8x32xf32>
    %440 = arith.addf %399, %439 : vector<8x32xf32>
    %c1_353 = arith.constant 1 : index
    %c0_354 = arith.constant 0 : index
    %c0_355 = arith.constant 0 : index
    %441 = vector.load %arg12[%c1_353, %c0_354, %c0_355] : memref<2x1x32xf32, #tpu.memory_space<vmem>>, vector<1x1x32xf32>
    %442 = vector.shape_cast %441 : vector<1x1x32xf32> to vector<1x32xf32>
    %443 = vector.broadcast %442 : vector<1x32xf32> to vector<8x32xf32>
    %444 = arith.addf %440, %443 : vector<8x32xf32>
    %445 = arith.addf %444, %275 : vector<8x32xf32>
    %c1_356 = arith.constant 1 : index
    %c0_357 = arith.constant 0 : index
    %c0_358 = arith.constant 0 : index
    %446 = vector.load %arg13[%c1_356, %c0_357, %c0_358] : memref<2x1x32xf32, #tpu.memory_space<vmem>>, vector<1x1x32xf32>
    %447 = vector.shape_cast %446 : vector<1x1x32xf32> to vector<1x32xf32>
    %c1_359 = arith.constant 1 : index
    %c0_360 = arith.constant 0 : index
    %c0_361 = arith.constant 0 : index
    %448 = vector.load %arg14[%c1_359, %c0_360, %c0_361] : memref<2x1x32xf32, #tpu.memory_space<vmem>>, vector<1x1x32xf32>
    %449 = vector.shape_cast %448 : vector<1x1x32xf32> to vector<1x32xf32>
    %cst_362 = arith.constant dense<0.000000e+00> : vector<8xf32>
    %450 = vector.multi_reduction <add>, %445, %cst_362 [1] : vector<8x32xf32> to vector<8xf32>
    %451 = vector.shape_cast %450 : vector<8xf32> to vector<8x1xf32>
    %cst_363 = arith.constant 3.200000e+01 : f32
    %452 = vector.broadcast %cst_363 : f32 to vector<8x1xf32>
    %453 = arith.divf %451, %452 : vector<8x1xf32>
    %454 = vector.broadcast %453 : vector<8x1xf32> to vector<8x32xf32>
    %455 = arith.subf %445, %454 : vector<8x32xf32>
    %456 = arith.mulf %455, %455 : vector<8x32xf32>
    %cst_364 = arith.constant dense<0.000000e+00> : vector<8xf32>
    %457 = vector.multi_reduction <add>, %456, %cst_364 [1] : vector<8x32xf32> to vector<8xf32>
    %458 = vector.shape_cast %457 : vector<8xf32> to vector<8x1xf32>
    %cst_365 = arith.constant 3.200000e+01 : f32
    %459 = vector.broadcast %cst_365 : f32 to vector<8x1xf32>
    %460 = arith.divf %458, %459 : vector<8x1xf32>
    %cst_366 = arith.constant 9.99999996E-13 : f32
    %461 = vector.broadcast %cst_366 : f32 to vector<8x1xf32>
    %462 = arith.addf %460, %461 : vector<8x1xf32>
    %463 = math.rsqrt %462 : vector<8x1xf32>
    %464 = vector.broadcast %463 : vector<8x1xf32> to vector<8x32xf32>
    %465 = arith.mulf %455, %464 : vector<8x32xf32>
    %466 = vector.broadcast %447 : vector<1x32xf32> to vector<8x32xf32>
    %467 = arith.mulf %465, %466 : vector<8x32xf32>
    %468 = vector.broadcast %449 : vector<1x32xf32> to vector<8x32xf32>
    %469 = arith.addf %467, %468 : vector<8x32xf32>
    %c1_367 = arith.constant 1 : index
    %c0_368 = arith.constant 0 : index
    %c0_369 = arith.constant 0 : index
    %470 = vector.load %arg15[%c1_367, %c0_368, %c0_369] : memref<2x32x64xf32, #tpu.memory_space<vmem>>, vector<1x32x64xf32>
    %471 = vector.shape_cast %470 : vector<1x32x64xf32> to vector<32x64xf32>
    %cst_370 = arith.constant dense<0.000000e+00> : vector<8x64xf32>
    %472 = tpu.matmul %469, %471, %cst_370 {dimension_numbers = #tpu.dot_dimension_numbers<[1], [0], [0], [1], [0, 0, 1, 1], [], []>} : vector<8x32xf32>, vector<32x64xf32>, vector<8x64xf32> -> vector<8x64xf32>
    %c1_371 = arith.constant 1 : index
    %c0_372 = arith.constant 0 : index
    %c0_373 = arith.constant 0 : index
    %473 = vector.load %arg16[%c1_371, %c0_372, %c0_373] : memref<2x1x64xf32, #tpu.memory_space<vmem>>, vector<1x1x64xf32>
    %474 = vector.shape_cast %473 : vector<1x1x64xf32> to vector<1x64xf32>
    %475 = vector.broadcast %474 : vector<1x64xf32> to vector<8x64xf32>
    %476 = arith.addf %472, %475 : vector<8x64xf32>
    %cst_374 = arith.constant 5.000000e-01 : f32
    %477 = vector.broadcast %cst_374 : f32 to vector<8x64xf32>
    %478 = arith.mulf %477, %476 : vector<8x64xf32>
    %cst_375 = arith.constant 4.471500e-02 : f32
    %479 = vector.broadcast %cst_375 : f32 to vector<8x64xf32>
    %480 = arith.mulf %479, %476 : vector<8x64xf32>
    %481 = arith.mulf %480, %476 : vector<8x64xf32>
    %482 = arith.mulf %481, %476 : vector<8x64xf32>
    %483 = arith.addf %476, %482 : vector<8x64xf32>
    %cst_376 = arith.constant 0.797884583 : f32
    %484 = vector.broadcast %cst_376 : f32 to vector<8x64xf32>
    %485 = arith.mulf %484, %483 : vector<8x64xf32>
    %486 = math.tanh %485 : vector<8x64xf32>
    %cst_377 = arith.constant 1.000000e+00 : f32
    %487 = vector.broadcast %cst_377 : f32 to vector<8x64xf32>
    %488 = arith.addf %487, %486 : vector<8x64xf32>
    %489 = arith.mulf %478, %488 : vector<8x64xf32>
    %c1_378 = arith.constant 1 : index
    %c0_379 = arith.constant 0 : index
    %c0_380 = arith.constant 0 : index
    %490 = vector.load %arg17[%c1_378, %c0_379, %c0_380] : memref<2x64x32xf32, #tpu.memory_space<vmem>>, vector<1x64x32xf32>
    %491 = vector.shape_cast %490 : vector<1x64x32xf32> to vector<64x32xf32>
    %cst_381 = arith.constant dense<0.000000e+00> : vector<8x32xf32>
    %492 = tpu.matmul %489, %491, %cst_381 {dimension_numbers = #tpu.dot_dimension_numbers<[1], [0], [0], [1], [0, 0, 1, 1], [], []>} : vector<8x64xf32>, vector<64x32xf32>, vector<8x32xf32> -> vector<8x32xf32>
    %c1_382 = arith.constant 1 : index
    %c0_383 = arith.constant 0 : index
    %c0_384 = arith.constant 0 : index
    %493 = vector.load %arg18[%c1_382, %c0_383, %c0_384] : memref<2x1x32xf32, #tpu.memory_space<vmem>>, vector<1x1x32xf32>
    %494 = vector.shape_cast %493 : vector<1x1x32xf32> to vector<1x32xf32>
    %495 = vector.broadcast %494 : vector<1x32xf32> to vector<8x32xf32>
    %496 = arith.addf %492, %495 : vector<8x32xf32>
    %497 = arith.addf %496, %469 : vector<8x32xf32>
    %c1_385 = arith.constant 1 : index
    %c0_386 = arith.constant 0 : index
    %c0_387 = arith.constant 0 : index
    %498 = vector.load %arg19[%c1_385, %c0_386, %c0_387] : memref<2x1x32xf32, #tpu.memory_space<vmem>>, vector<1x1x32xf32>
    %499 = vector.shape_cast %498 : vector<1x1x32xf32> to vector<1x32xf32>
    %c1_388 = arith.constant 1 : index
    %c0_389 = arith.constant 0 : index
    %c0_390 = arith.constant 0 : index
    %500 = vector.load %arg20[%c1_388, %c0_389, %c0_390] : memref<2x1x32xf32, #tpu.memory_space<vmem>>, vector<1x1x32xf32>
    %501 = vector.shape_cast %500 : vector<1x1x32xf32> to vector<1x32xf32>
    %cst_391 = arith.constant dense<0.000000e+00> : vector<8xf32>
    %502 = vector.multi_reduction <add>, %497, %cst_391 [1] : vector<8x32xf32> to vector<8xf32>
    %503 = vector.shape_cast %502 : vector<8xf32> to vector<8x1xf32>
    %cst_392 = arith.constant 3.200000e+01 : f32
    %504 = vector.broadcast %cst_392 : f32 to vector<8x1xf32>
    %505 = arith.divf %503, %504 : vector<8x1xf32>
    %506 = vector.broadcast %505 : vector<8x1xf32> to vector<8x32xf32>
    %507 = arith.subf %497, %506 : vector<8x32xf32>
    %508 = arith.mulf %507, %507 : vector<8x32xf32>
    %cst_393 = arith.constant dense<0.000000e+00> : vector<8xf32>
    %509 = vector.multi_reduction <add>, %508, %cst_393 [1] : vector<8x32xf32> to vector<8xf32>
    %510 = vector.shape_cast %509 : vector<8xf32> to vector<8x1xf32>
    %cst_394 = arith.constant 3.200000e+01 : f32
    %511 = vector.broadcast %cst_394 : f32 to vector<8x1xf32>
    %512 = arith.divf %510, %511 : vector<8x1xf32>
    %cst_395 = arith.constant 9.99999996E-13 : f32
    %513 = vector.broadcast %cst_395 : f32 to vector<8x1xf32>
    %514 = arith.addf %512, %513 : vector<8x1xf32>
    %515 = math.rsqrt %514 : vector<8x1xf32>
    %516 = vector.broadcast %515 : vector<8x1xf32> to vector<8x32xf32>
    %517 = arith.mulf %507, %516 : vector<8x32xf32>
    %518 = vector.broadcast %499 : vector<1x32xf32> to vector<8x32xf32>
    %519 = arith.mulf %517, %518 : vector<8x32xf32>
    %520 = vector.broadcast %501 : vector<1x32xf32> to vector<8x32xf32>
    %521 = arith.addf %519, %520 : vector<8x32xf32>
    %522 = vector.extract_strided_slice %521 {offsets = [0, 0], sizes = [1, 32], strides = [1, 1]} : vector<8x32xf32> to vector<1x32xf32>
    %c0_396 = arith.constant 0 : index
    %c0_397 = arith.constant 0 : index
    %523 = vector.load %arg21[%c0_396, %c0_397] : memref<32x32xf32, #tpu.memory_space<vmem>>, vector<32x32xf32>
    %cst_398 = arith.constant dense<0.000000e+00> : vector<1x32xf32>
    %524 = tpu.matmul %522, %523, %cst_398 {dimension_numbers = #tpu.dot_dimension_numbers<[1], [0], [0], [1], [0, 0, 1, 1], [], []>} : vector<1x32xf32>, vector<32x32xf32>, vector<1x32xf32> -> vector<1x32xf32>
    %c0_399 = arith.constant 0 : index
    %c0_400 = arith.constant 0 : index
    %525 = vector.load %arg22[%c0_399, %c0_400] : memref<1x32xf32, #tpu.memory_space<vmem>>, vector<1x32xf32>
    %526 = arith.addf %524, %525 : vector<1x32xf32>
    %527 = math.tanh %526 : vector<1x32xf32>
    %c0_401 = arith.constant 0 : index
    %c0_402 = arith.constant 0 : index
    %528 = vector.load %arg23[%c0_401, %c0_402] : memref<32x128xf32, #tpu.memory_space<vmem>>, vector<32x128xf32>
    %cst_403 = arith.constant dense<0.000000e+00> : vector<1x128xf32>
    %529 = tpu.matmul %527, %528, %cst_403 {dimension_numbers = #tpu.dot_dimension_numbers<[1], [0], [0], [1], [0, 0, 1, 1], [], []>} : vector<1x32xf32>, vector<32x128xf32>, vector<1x128xf32> -> vector<1x128xf32>
    %c0_404 = arith.constant 0 : index
    %c0_405 = arith.constant 0 : index
    %530 = vector.load %arg24[%c0_404, %c0_405] : memref<1x128xf32, #tpu.memory_space<vmem>>, vector<1x128xf32>
    %531 = arith.addf %529, %530 : vector<1x128xf32>
    %cst_406 = arith.constant 0.000000e+00 : f32
    %532 = vector.broadcast %cst_406 : f32 to vector<1x128xf32>
    %533 = arith.maximumf %531, %532 : vector<1x128xf32>
    %534 = vector.shape_cast %533 : vector<1x128xf32> to vector<1x1x128xf32>
    %535 = vector.broadcast %534 : vector<1x1x128xf32> to vector<1x8x128xf32>
    %c0_407 = arith.constant 0 : index
    %c0_408 = arith.constant 0 : index
    %c0_409 = arith.constant 0 : index
    %536 = vector.load %arg25[%c0_407, %c0_408, %c0_409] : memref<1x8x128xf32, #tpu.memory_space<vmem>>, vector<1x8x128xf32>
    tpu.vector_store %arg25[%c0_407, %c0_408, %c0_409], %535 {strides = array<i32>} : memref<1x8x128xf32, #tpu.memory_space<vmem>>, vector<1x8x128xf32>,
    return
  }
  func.func @transform_0(%arg0: i32) -> (i32, i32, i32) {
    %c0_i32 = arith.constant 0 : i32
    %c0_i32_0 = arith.constant 0 : i32
    %c0_i32_1 = arith.constant 0 : i32
    return %arg0, %c0_i32, %c0_i32_0 : i32, i32, i32
  }
  func.func @transform_1(%arg0: i32) -> (i32, i32, i32) {
    %c0_i32 = arith.constant 0 : i32
    %c0_i32_0 = arith.constant 0 : i32
    %c0_i32_1 = arith.constant 0 : i32
    return %arg0, %c0_i32, %c0_i32_0 : i32, i32, i32
  }
  func.func @transform_2(%arg0: i32) -> (i32, i32) {
    %c0_i32 = arith.constant 0 : i32
    %c0_i32_0 = arith.constant 0 : i32
    %c0_i32_1 = arith.constant 0 : i32
    return %c0_i32, %c0_i32_0 : i32, i32
  }
  func.func @transform_3(%arg0: i32) -> (i32, i32) {
    %c0_i32 = arith.constant 0 : i32
    %c0_i32_0 = arith.constant 0 : i32
    %c0_i32_1 = arith.constant 0 : i32
    return %c0_i32, %c0_i32_0 : i32, i32
  }
  func.func @transform_4(%arg0: i32) -> (i32, i32, i32, i32) {
    %c0_i32 = arith.constant 0 : i32
    %c0_i32_0 = arith.constant 0 : i32
    %c0_i32_1 = arith.constant 0 : i32
    %c0_i32_2 = arith.constant 0 : i32
    %c0_i32_3 = arith.constant 0 : i32
    return %c0_i32, %c0_i32_0, %c0_i32_1, %c0_i32_2 : i32, i32, i32, i32
  }
  func.func @transform_5(%arg0: i32) -> (i32, i32, i32, i32) {
    %c0_i32 = arith.constant 0 : i32
    %c0_i32_0 = arith.constant 0 : i32
    %c0_i32_1 = arith.constant 0 : i32
    %c0_i32_2 = arith.constant 0 : i32
    %c0_i32_3 = arith.constant 0 : i32
    return %c0_i32, %c0_i32_0, %c0_i32_1, %c0_i32_2 : i32, i32, i32, i32
  }
  func.func @transform_6(%arg0: i32) -> (i32, i32, i32, i32) {
    %c0_i32 = arith.constant 0 : i32
    %c0_i32_0 = arith.constant 0 : i32
    %c0_i32_1 = arith.constant 0 : i32
    %c0_i32_2 = arith.constant 0 : i32
    %c0_i32_3 = arith.constant 0 : i32
    return %c0_i32, %c0_i32_0, %c0_i32_1, %c0_i32_2 : i32, i32, i32, i32
  }
  func.func @transform_7(%arg0: i32) -> (i32, i32, i32, i32) {
    %c0_i32 = arith.constant 0 : i32
    %c0_i32_0 = arith.constant 0 : i32
    %c0_i32_1 = arith.constant 0 : i32
    %c0_i32_2 = arith.constant 0 : i32
    %c0_i32_3 = arith.constant 0 : i32
    return %c0_i32, %c0_i32_0, %c0_i32_1, %c0_i32_2 : i32, i32, i32, i32
  }
  func.func @transform_8(%arg0: i32) -> (i32, i32, i32, i32) {
    %c0_i32 = arith.constant 0 : i32
    %c0_i32_0 = arith.constant 0 : i32
    %c0_i32_1 = arith.constant 0 : i32
    %c0_i32_2 = arith.constant 0 : i32
    %c0_i32_3 = arith.constant 0 : i32
    return %c0_i32, %c0_i32_0, %c0_i32_1, %c0_i32_2 : i32, i32, i32, i32
  }
  func.func @transform_9(%arg0: i32) -> (i32, i32, i32, i32) {
    %c0_i32 = arith.constant 0 : i32
    %c0_i32_0 = arith.constant 0 : i32
    %c0_i32_1 = arith.constant 0 : i32
    %c0_i32_2 = arith.constant 0 : i32
    %c0_i32_3 = arith.constant 0 : i32
    return %c0_i32, %c0_i32_0, %c0_i32_1, %c0_i32_2 : i32, i32, i32, i32
  }
  func.func @transform_10(%arg0: i32) -> (i32, i32, i32, i32) {
    %c0_i32 = arith.constant 0 : i32
    %c0_i32_0 = arith.constant 0 : i32
    %c0_i32_1 = arith.constant 0 : i32
    %c0_i32_2 = arith.constant 0 : i32
    %c0_i32_3 = arith.constant 0 : i32
    return %c0_i32, %c0_i32_0, %c0_i32_1, %c0_i32_2 : i32, i32, i32, i32
  }
  func.func @transform_11(%arg0: i32) -> (i32, i32, i32) {
    %c0_i32 = arith.constant 0 : i32
    %c0_i32_0 = arith.constant 0 : i32
    %c0_i32_1 = arith.constant 0 : i32
    %c0_i32_2 = arith.constant 0 : i32
    return %c0_i32, %c0_i32_0, %c0_i32_1 : i32, i32, i32
  }
  func.func @transform_12(%arg0: i32) -> (i32, i32, i32) {
    %c0_i32 = arith.constant 0 : i32
    %c0_i32_0 = arith.constant 0 : i32
    %c0_i32_1 = arith.constant 0 : i32
    %c0_i32_2 = arith.constant 0 : i32
    return %c0_i32, %c0_i32_0, %c0_i32_1 : i32, i32, i32
  }
  func.func @transform_13(%arg0: i32) -> (i32, i32, i32) {
    %c0_i32 = arith.constant 0 : i32
    %c0_i32_0 = arith.constant 0 : i32
    %c0_i32_1 = arith.constant 0 : i32
    %c0_i32_2 = arith.constant 0 : i32
    return %c0_i32, %c0_i32_0, %c0_i32_1 : i32, i32, i32
  }
  func.func @transform_14(%arg0: i32) -> (i32, i32, i32) {
    %c0_i32 = arith.constant 0 : i32
    %c0_i32_0 = arith.constant 0 : i32
    %c0_i32_1 = arith.constant 0 : i32
    %c0_i32_2 = arith.constant 0 : i32
    return %c0_i32, %c0_i32_0, %c0_i32_1 : i32, i32, i32
  }
  func.func @transform_15(%arg0: i32) -> (i32, i32, i32) {
    %c0_i32 = arith.constant 0 : i32
    %c0_i32_0 = arith.constant 0 : i32
    %c0_i32_1 = arith.constant 0 : i32
    %c0_i32_2 = arith.constant 0 : i32
    return %c0_i32, %c0_i32_0, %c0_i32_1 : i32, i32, i32
  }
  func.func @transform_16(%arg0: i32) -> (i32, i32, i32) {
    %c0_i32 = arith.constant 0 : i32
    %c0_i32_0 = arith.constant 0 : i32
    %c0_i32_1 = arith.constant 0 : i32
    %c0_i32_2 = arith.constant 0 : i32
    return %c0_i32, %c0_i32_0, %c0_i32_1 : i32, i32, i32
  }
  func.func @transform_17(%arg0: i32) -> (i32, i32, i32) {
    %c0_i32 = arith.constant 0 : i32
    %c0_i32_0 = arith.constant 0 : i32
    %c0_i32_1 = arith.constant 0 : i32
    %c0_i32_2 = arith.constant 0 : i32
    return %c0_i32, %c0_i32_0, %c0_i32_1 : i32, i32, i32
  }
  func.func @transform_18(%arg0: i32) -> (i32, i32, i32) {
    %c0_i32 = arith.constant 0 : i32
    %c0_i32_0 = arith.constant 0 : i32
    %c0_i32_1 = arith.constant 0 : i32
    %c0_i32_2 = arith.constant 0 : i32
    return %c0_i32, %c0_i32_0, %c0_i32_1 : i32, i32, i32
  }
  func.func @transform_19(%arg0: i32) -> (i32, i32, i32) {
    %c0_i32 = arith.constant 0 : i32
    %c0_i32_0 = arith.constant 0 : i32
    %c0_i32_1 = arith.constant 0 : i32
    %c0_i32_2 = arith.constant 0 : i32
    return %c0_i32, %c0_i32_0, %c0_i32_1 : i32, i32, i32
  }
  func.func @transform_20(%arg0: i32) -> (i32, i32) {
    %c0_i32 = arith.constant 0 : i32
    %c0_i32_0 = arith.constant 0 : i32
    %c0_i32_1 = arith.constant 0 : i32
    return %c0_i32, %c0_i32_0 : i32, i32
  }
  func.func @transform_21(%arg0: i32) -> (i32, i32) {
    %c0_i32 = arith.constant 0 : i32
    %c0_i32_0 = arith.constant 0 : i32
    %c0_i32_1 = arith.constant 0 : i32
    return %c0_i32, %c0_i32_0 : i32, i32
  }
  func.func @transform_22(%arg0: i32) -> (i32, i32) {
    %c0_i32 = arith.constant 0 : i32
    %c0_i32_0 = arith.constant 0 : i32
    %c0_i32_1 = arith.constant 0 : i32
    return %c0_i32, %c0_i32_0 : i32, i32
  }
  func.func @transform_23(%arg0: i32) -> (i32, i32) {
    %c0_i32 = arith.constant 0 : i32
    %c0_i32_0 = arith.constant 0 : i32
    %c0_i32_1 = arith.constant 0 : i32
    return %c0_i32, %c0_i32_0 : i32, i32
  }
  func.func @transform_24(%arg0: i32) -> (i32, i32, i32) {
    %c0_i32 = arith.constant 0 : i32
    %c0_i32_0 = arith.constant 0 : i32
    %c0_i32_1 = arith.constant 0 : i32
    return %arg0, %c0_i32, %c0_i32_0 : i32, i32, i32
  }
}

</mosaic_0001>

<llo_original>
// kernel: bert_classifier_forward.1
$region0: #{bert_classifier_forward.1}
  #allocation0 [shape = 'u32[]', space=smem, size = 0x4, offset = 0x4, fixed_abs, tag = 'smem constant byte address 0x4 - core index']
  #allocation1 [shape = 'u32[144,128]{1,0:T(1,128)}', space=vmem, size = 0x12000, scoped, tag = 'internal scratch']
  %s0 = inlined_call_operand.vmem [shape: f32[2,8,32], index: 0, kind: input, shape index: {}]
  %s1 = inlined_call_operand.vmem [shape: f32[2,1,8], index: 1, kind: input, shape index: {}]
  %s2 = inlined_call_operand.vmem [shape: f32[1,32], index: 2, kind: input, shape index: {}]
  %s3 = inlined_call_operand.vmem [shape: f32[1,32], index: 3, kind: input, shape index: {}]
  %s4 = inlined_call_operand.vmem [shape: f32[2,4,32,8], index: 4, kind: input, shape index: {}]
  %s5 = inlined_call_operand.vmem [shape: f32[2,4,1,8], index: 5, kind: input, shape index: {}]
  %s6 = inlined_call_operand.vmem [shape: f32[2,4,32,8], index: 6, kind: input, shape index: {}]
  %s7 = inlined_call_operand.vmem [shape: f32[2,4,1,8], index: 7, kind: input, shape index: {}]
  %s8 = inlined_call_operand.vmem [shape: f32[2,4,32,8], index: 8, kind: input, shape index: {}]
  %s9 = inlined_call_operand.vmem [shape: f32[2,4,1,8], index: 9, kind: input, shape index: {}]
  %s10 = inlined_call_operand.vmem [shape: f32[2,4,8,32], index: 10, kind: input, shape index: {}]
  %s11 = inlined_call_operand.vmem [shape: f32[2,1,32], index: 11, kind: input, shape index: {}]
  %s12 = inlined_call_operand.vmem [shape: f32[2,1,32], index: 12, kind: input, shape index: {}]
  %s13 = inlined_call_operand.vmem [shape: f32[2,1,32], index: 13, kind: input, shape index: {}]
  %s14 = inlined_call_operand.vmem [shape: f32[2,32,64], index: 14, kind: input, shape index: {}]
  %s15 = inlined_call_operand.vmem [shape: f32[2,1,64], index: 15, kind: input, shape index: {}]
  %s16 = inlined_call_operand.vmem [shape: f32[2,64,32], index: 16, kind: input, shape index: {}]
  %s17 = inlined_call_operand.vmem [shape: f32[2,1,32], index: 17, kind: input, shape index: {}]
  %s18 = inlined_call_operand.vmem [shape: f32[2,1,32], index: 18, kind: input, shape index: {}]
  %s19 = inlined_call_operand.vmem [shape: f32[2,1,32], index: 19, kind: input, shape index: {}]
  %s20 = inlined_call_operand.vmem [shape: f32[32,32], index: 20, kind: input, shape index: {}]
  %s21 = inlined_call_operand.vmem [shape: f32[1,32], index: 21, kind: input, shape index: {}]
  %s22 = inlined_call_operand.vmem [shape: f32[32,128], index: 22, kind: input, shape index: {}]
  %s23 = inlined_call_operand.vmem [shape: f32[1,128], index: 23, kind: input, shape index: {}]
  %s24 = inlined_call_operand.vmem [shape: f32[2,8,128], index: 24, kind: output, shape index: {}]
  %s25 = sld [smem:[#allocation0]]
  $region129: #{bert_classifier_forward.1} parent=0
    _
  %s27 = ssub.s32 1, %s25
  %s28 = scalar_select 0, %s27, %s25
  loop: start=0, step=1, limit=4
  $region2: #{bert_classifier_forward.1} parent=0 // loop_pre_header
    _
  $region3: #{bert_classifier_forward.1} parent=0 // loop_header
    %s30 = sphi 0, %s34
    %p31 = scmp.ge.s32.totalorder %s30, 4
    %s40 = sphi 0, %s42
    %s43 = sphi 0, %s40
    %s44 = sphi 0, %s43
    %s60 = sphi 0, %s44
    %s66 = sphi 0, %s68
    %s69 = sphi 0, %s66
    %s70 = sphi 0, %s69
    %s86 = sphi 0, %s70
    %s90 = sphi 0, %s90
    %s92 = sphi 0, %s90
    %s93 = sphi 0, %s92
    %s107 = sphi 0, %s93
    %s111 = sphi 0, %s111
    %s113 = sphi 0, %s111
    %s114 = sphi 0, %s113
    %s128 = sphi 0, %s114
    %s132 = sphi 0, %s132
    %s134 = sphi 0, %s132
    %s135 = sphi 0, %s134
    %s149 = sphi 0, %s135
    %s153 = sphi 0, %s153
    %s155 = sphi 0, %s153
    %s156 = sphi 0, %s155
    %s170 = sphi 0, %s156
    %s174 = sphi 0, %s174
    %s176 = sphi 0, %s174
    %s177 = sphi 0, %s176
    %s191 = sphi 0, %s177
    %s195 = sphi 0, %s195
    %s197 = sphi 0, %s195
    %s198 = sphi 0, %s197
    %s212 = sphi 0, %s198
    %s216 = sphi 0, %s216
    %s218 = sphi 0, %s216
    %s219 = sphi 0, %s218
    %s233 = sphi 0, %s219
    %s237 = sphi 0, %s237
    %s239 = sphi 0, %s237
    %s240 = sphi 0, %s239
    %s254 = sphi 0, %s240
    %s258 = sphi 0, %s258
    %s260 = sphi 0, %s258
    %s261 = sphi 0, %s260
    %s275 = sphi 0, %s261
    %s279 = sphi 0, %s279
    %s281 = sphi 0, %s279
    %s282 = sphi 0, %s281
    %s296 = sphi 0, %s282
    %s300 = sphi 0, %s300
    %s302 = sphi 0, %s300
    %s303 = sphi 0, %s302
    %s317 = sphi 0, %s303
    %s321 = sphi 0, %s321
    %s323 = sphi 0, %s321
    %s324 = sphi 0, %s323
    %s338 = sphi 0, %s324
    %s342 = sphi 0, %s342
    %s344 = sphi 0, %s342
    %s345 = sphi 0, %s344
    %s359 = sphi 0, %s345
    %s363 = sphi 0, %s363
    %s365 = sphi 0, %s363
    %s366 = sphi 0, %s365
    %s380 = sphi 0, %s366
    %s384 = sphi 0, %s384
    %s386 = sphi 0, %s384
    %s387 = sphi 0, %s386
    %s401 = sphi 0, %s387
    %s405 = sphi 0, %s405
    %s407 = sphi 0, %s405
    %s408 = sphi 0, %s407
    %s422 = sphi 0, %s408
    %s426 = sphi 0, %s426
    %s428 = sphi 0, %s426
    %s429 = sphi 0, %s428
    %s443 = sphi 0, %s429
    %s447 = sphi 0, %s447
    %s449 = sphi 0, %s447
    %s450 = sphi 0, %s449
    %s464 = sphi 0, %s450
    %s468 = sphi 0, %s468
    %s470 = sphi 0, %s468
    %s471 = sphi 0, %s470
    %s485 = sphi 0, %s471
    %s489 = sphi 0, %s489
    %s491 = sphi 0, %s489
    %s492 = sphi 0, %s491
    %s506 = sphi 0, %s492
    %s510 = sphi 0, %s510
    %s512 = sphi 0, %s510
    %s513 = sphi 0, %s512
    %s527 = sphi 0, %s513
    %s531 = sphi 0, %s531
    %s533 = sphi 0, %s531
    %s534 = sphi 0, %s533
    %s548 = sphi 0, %s534
    %s554 = sphi 0, %s556
    %s557 = sphi 0, %s554
    %s558 = sphi 0, %s557
    %s574 = sphi 0, %s558
  $region4: #{bert_classifier_forward.1} parent=0 // loop_header_branch
    %33 = sbr.rel (%p31) target = $region8
  $region5: #{bert_classifier_forward.1} parent=0 // loop_body
    %s35 = ssub.s32 %s30, 1
    %s36 = ssub.s32 %s30, 2
    %s37 = sadd.s32 %s30, 1
    %s38 = ssub.s32 %s30, %s37
    %p39 = scmp.eq.s32.totalorder %s38, 0
    %s41 = sadd.s32 %s40, 1
    %s42 = scalar_select %p39, %s40, %s41
    %p45 = pneg %p39
    %p46 = scmp.eq.s32.totalorder %s30, 1
    %p47 = por %p45, %p46
    %p48 = scmp.ne.s32.totalorder %s40, %s43
    %p49 = scmp.eq.s32.totalorder %s30, 0
    %p50 = por %p48, %p49
    %p51 = scmp.ne.s32.totalorder %s40, %s43
    %p52 = scmp.eq.s32.totalorder %s35, 1
    %p53 = por %p51, %p52
    %p54 = scmp.ne.s32.totalorder %s43, %s44
    %p55 = scmp.eq.s32.totalorder %s35, 0
    %p56 = por %p54, %p55
    %p57 = scmp.ne.s32.totalorder %s43, %s44
    %p58 = scmp.eq.s32.totalorder %s36, 1
    %p59 = por %p57, %p58
    %p61 = scmp.ne.s32.totalorder %s44, %s60
    %p62 = scmp.eq.s32.totalorder %s36, 0
    %p63 = por %p61, %p62
    %s64 = ssub.s32 %s30, %s37
    %p65 = scmp.eq.s32.totalorder %s64, 0
    %s67 = sadd.s32 %s66, 1
    %s68 = scalar_select %p65, %s66, %s67
    %p71 = pneg %p65
    %p72 = scmp.eq.s32.totalorder %s30, 1
    %p73 = por %p71, %p72
    %p74 = scmp.ne.s32.totalorder %s66, %s69
    %p75 = scmp.eq.s32.totalorder %s30, 0
    %p76 = por %p74, %p75
    %p77 = scmp.ne.s32.totalorder %s66, %s69
    %p78 = scmp.eq.s32.totalorder %s35, 1
    %p79 = por %p77, %p78
    %p80 = scmp.ne.s32.totalorder %s69, %s70
    %p81 = scmp.eq.s32.totalorder %s35, 0
    %p82 = por %p80, %p81
    %p83 = scmp.ne.s32.totalorder %s69, %s70
    %p84 = scmp.eq.s32.totalorder %s36, 1
    %p85 = por %p83, %p84
    %p87 = scmp.ne.s32.totalorder %s70, %s86
    %p88 = scmp.eq.s32.totalorder %s36, 0
    %p89 = por %p87, %p88
    %s91 = sadd.s32 %s90, 1
    %p94 = scmp.eq.s32.totalorder %s30, 1
    %p95 = scmp.ne.s32.totalorder %s90, %s92
    %p96 = scmp.eq.s32.totalorder %s30, 0
    %p97 = por %p95, %p96
    %p98 = scmp.ne.s32.totalorder %s90, %s92
    %p99 = scmp.eq.s32.totalorder %s35, 1
    %p100 = por %p98, %p99
    %p101 = scmp.ne.s32.totalorder %s92, %s93
    %p102 = scmp.eq.s32.totalorder %s35, 0
    %p103 = por %p101, %p102
    %p104 = scmp.ne.s32.totalorder %s92, %s93
    %p105 = scmp.eq.s32.totalorder %s36, 1
    %p106 = por %p104, %p105
    %p108 = scmp.ne.s32.totalorder %s93, %s107
    %p109 = scmp.eq.s32.totalorder %s36, 0
    %p110 = por %p108, %p109
    %s112 = sadd.s32 %s111, 1
    %p115 = scmp.eq.s32.totalorder %s30, 1
    %p116 = scmp.ne.s32.totalorder %s111, %s113
    %p117 = scmp.eq.s32.totalorder %s30, 0
    %p118 = por %p116, %p117
    %p119 = scmp.ne.s32.totalorder %s111, %s113
    %p120 = scmp.eq.s32.totalorder %s35, 1
    %p121 = por %p119, %p120
    %p122 = scmp.ne.s32.totalorder %s113, %s114
    %p123 = scmp.eq.s32.totalorder %s35, 0
    %p124 = por %p122, %p123
    %p125 = scmp.ne.s32.totalorder %s113, %s114
    %p126 = scmp.eq.s32.totalorder %s36, 1
    %p127 = por %p125, %p126
    %p129 = scmp.ne.s32.totalorder %s114, %s128
    %p130 = scmp.eq.s32.totalorder %s36, 0
    %p131 = por %p129, %p130
    %s133 = sadd.s32 %s132, 1
    %p136 = scmp.eq.s32.totalorder %s30, 1
    %p137 = scmp.ne.s32.totalorder %s132, %s134
    %p138 = scmp.eq.s32.totalorder %s30, 0
    %p139 = por %p137, %p138
    %p140 = scmp.ne.s32.totalorder %s132, %s134
    %p141 = scmp.eq.s32.totalorder %s35, 1
    %p142 = por %p140, %p141
    %p143 = scmp.ne.s32.totalorder %s134, %s135
    %p144 = scmp.eq.s32.totalorder %s35, 0
    %p145 = por %p143, %p144
    %p146 = scmp.ne.s32.totalorder %s134, %s135
    %p147 = scmp.eq.s32.totalorder %s36, 1
    %p148 = por %p146, %p147
    %p150 = scmp.ne.s32.totalorder %s135, %s149
    %p151 = scmp.eq.s32.totalorder %s36, 0
    %p152 = por %p150, %p151
    %s154 = sadd.s32 %s153, 1
    %p157 = scmp.eq.s32.totalorder %s30, 1
    %p158 = scmp.ne.s32.totalorder %s153, %s155
    %p159 = scmp.eq.s32.totalorder %s30, 0
    %p160 = por %p158, %p159
    %p161 = scmp.ne.s32.totalorder %s153, %s155
    %p162 = scmp.eq.s32.totalorder %s35, 1
    %p163 = por %p161, %p162
    %p164 = scmp.ne.s32.totalorder %s155, %s156
    %p165 = scmp.eq.s32.totalorder %s35, 0
    %p166 = por %p164, %p165
    %p167 = scmp.ne.s32.totalorder %s155, %s156
    %p168 = scmp.eq.s32.totalorder %s36, 1
    %p169 = por %p167, %p168
    %p171 = scmp.ne.s32.totalorder %s156, %s170
    %p172 = scmp.eq.s32.totalorder %s36, 0
    %p173 = por %p171, %p172
    %s175 = sadd.s32 %s174, 1
    %p178 = scmp.eq.s32.totalorder %s30, 1
    %p179 = scmp.ne.s32.totalorder %s174, %s176
    %p180 = scmp.eq.s32.totalorder %s30, 0
    %p181 = por %p179, %p180
    %p182 = scmp.ne.s32.totalorder %s174, %s176
    %p183 = scmp.eq.s32.totalorder %s35, 1
    %p184 = por %p182, %p183
    %p185 = scmp.ne.s32.totalorder %s176, %s177
    %p186 = scmp.eq.s32.totalorder %s35, 0
    %p187 = por %p185, %p186
    %p188 = scmp.ne.s32.totalorder %s176, %s177
    %p189 = scmp.eq.s32.totalorder %s36, 1
    %p190 = por %p188, %p189
    %p192 = scmp.ne.s32.totalorder %s177, %s191
    %p193 = scmp.eq.s32.totalorder %s36, 0
    %p194 = por %p192, %p193
    %s196 = sadd.s32 %s195, 1
    %p199 = scmp.eq.s32.totalorder %s30, 1
    %p200 = scmp.ne.s32.totalorder %s195, %s197
    %p201 = scmp.eq.s32.totalorder %s30, 0
    %p202 = por %p200, %p201
    %p203 = scmp.ne.s32.totalorder %s195, %s197
    %p204 = scmp.eq.s32.totalorder %s35, 1
    %p205 = por %p203, %p204
    %p206 = scmp.ne.s32.totalorder %s197, %s198
    %p207 = scmp.eq.s32.totalorder %s35, 0
    %p208 = por %p206, %p207
    %p209 = scmp.ne.s32.totalorder %s197, %s198
    %p210 = scmp.eq.s32.totalorder %s36, 1
    %p211 = por %p209, %p210
    %p213 = scmp.ne.s32.totalorder %s198, %s212
    %p214 = scmp.eq.s32.totalorder %s36, 0
    %p215 = por %p213, %p214
    %s217 = sadd.s32 %s216, 1
    %p220 = scmp.eq.s32.totalorder %s30, 1
    %p221 = scmp.ne.s32.totalorder %s216, %s218
    %p222 = scmp.eq.s32.totalorder %s30, 0
    %p223 = por %p221, %p222
    %p224 = scmp.ne.s32.totalorder %s216, %s218
    %p225 = scmp.eq.s32.totalorder %s35, 1
    %p226 = por %p224, %p225
    %p227 = scmp.ne.s32.totalorder %s218, %s219
    %p228 = scmp.eq.s32.totalorder %s35, 0
    %p229 = por %p227, %p228
    %p230 = scmp.ne.s32.totalorder %s218, %s219
    %p231 = scmp.eq.s32.totalorder %s36, 1
    %p232 = por %p230, %p231
    %p234 = scmp.ne.s32.totalorder %s219, %s233
    %p235 = scmp.eq.s32.totalorder %s36, 0
    %p236 = por %p234, %p235
    %s238 = sadd.s32 %s237, 1
    %p241 = scmp.eq.s32.totalorder %s30, 1
    %p242 = scmp.ne.s32.totalorder %s237, %s239
    %p243 = scmp.eq.s32.totalorder %s30, 0
    %p244 = por %p242, %p243
    %p245 = scmp.ne.s32.totalorder %s237, %s239
    %p246 = scmp.eq.s32.totalorder %s35, 1
    %p247 = por %p245, %p246
    %p248 = scmp.ne.s32.totalorder %s239, %s240
    %p249 = scmp.eq.s32.totalorder %s35, 0
    %p250 = por %p248, %p249
    %p251 = scmp.ne.s32.totalorder %s239, %s240
    %p252 = scmp.eq.s32.totalorder %s36, 1
    %p253 = por %p251, %p252
    %p255 = scmp.ne.s32.totalorder %s240, %s254
    %p256 = scmp.eq.s32.totalorder %s36, 0
    %p257 = por %p255, %p256
    %s259 = sadd.s32 %s258, 1
    %p262 = scmp.eq.s32.totalorder %s30, 1
    %p263 = scmp.ne.s32.totalorder %s258, %s260
    %p264 = scmp.eq.s32.totalorder %s30, 0
    %p265 = por %p263, %p264
    %p266 = scmp.ne.s32.totalorder %s258, %s260
    %p267 = scmp.eq.s32.totalorder %s35, 1
    %p268 = por %p266, %p267
    %p269 = scmp.ne.s32.totalorder %s260, %s261
    %p270 = scmp.eq.s32.totalorder %s35, 0
    %p271 = por %p269, %p270
    %p272 = scmp.ne.s32.totalorder %s260, %s261
    %p273 = scmp.eq.s32.totalorder %s36, 1
    %p274 = por %p272, %p273
    %p276 = scmp.ne.s32.totalorder %s261, %s275
    %p277 = scmp.eq.s32.totalorder %s36, 0
    %p278 = por %p276, %p277
    %s280 = sadd.s32 %s279, 1
    %p283 = scmp.eq.s32.totalorder %s30, 1
    %p284 = scmp.ne.s32.totalorder %s279, %s281
    %p285 = scmp.eq.s32.totalorder %s30, 0
    %p286 = por %p284, %p285
    %p287 = scmp.ne.s32.totalorder %s279, %s281
    %p288 = scmp.eq.s32.totalorder %s35, 1
    %p289 = por %p287, %p288
    %p290 = scmp.ne.s32.totalorder %s281, %s282
    %p291 = scmp.eq.s32.totalorder %s35, 0
    %p292 = por %p290, %p291
    %p293 = scmp.ne.s32.totalorder %s281, %s282
    %p294 = scmp.eq.s32.totalorder %s36, 1
    %p295 = por %p293, %p294
    %p297 = scmp.ne.s32.totalorder %s282, %s296
    %p298 = scmp.eq.s32.totalorder %s36, 0
    %p299 = por %p297, %p298
    %s301 = sadd.s32 %s300, 1
    %p304 = scmp.eq.s32.totalorder %s30, 1
    %p305 = scmp.ne.s32.totalorder %s300, %s302
    %p306 = scmp.eq.s32.totalorder %s30, 0
    %p307 = por %p305, %p306
    %p308 = scmp.ne.s32.totalorder %s300, %s302
    %p309 = scmp.eq.s32.totalorder %s35, 1
    %p310 = por %p308, %p309
    %p311 = scmp.ne.s32.totalorder %s302, %s303
    %p312 = scmp.eq.s32.totalorder %s35, 0
    %p313 = por %p311, %p312
    %p314 = scmp.ne.s32.totalorder %s302, %s303
    %p315 = scmp.eq.s32.totalorder %s36, 1
    %p316 = por %p314, %p315
    %p318 = scmp.ne.s32.totalorder %s303, %s317
    %p319 = scmp.eq.s32.totalorder %s36, 0
    %p320 = por %p318, %p319
    %s322 = sadd.s32 %s321, 1
    %p325 = scmp.eq.s32.totalorder %s30, 1
    %p326 = scmp.ne.s32.totalorder %s321, %s323
    %p327 = scmp.eq.s32.totalorder %s30, 0
    %p328 = por %p326, %p327
    %p329 = scmp.ne.s32.totalorder %s321, %s323
    %p330 = scmp.eq.s32.totalorder %s35, 1
    %p331 = por %p329, %p330
    %p332 = scmp.ne.s32.totalorder %s323, %s324
    %p333 = scmp.eq.s32.totalorder %s35, 0
    %p334 = por %p332, %p333
    %p335 = scmp.ne.s32.totalorder %s323, %s324
    %p336 = scmp.eq.s32.totalorder %s36, 1
    %p337 = por %p335, %p336
    %p339 = scmp.ne.s32.totalorder %s324, %s338
    %p340 = scmp.eq.s32.totalorder %s36, 0
    %p341 = por %p339, %p340
    %s343 = sadd.s32 %s342, 1
    %p346 = scmp.eq.s32.totalorder %s30, 1
    %p347 = scmp.ne.s32.totalorder %s342, %s344
    %p348 = scmp.eq.s32.totalorder %s30, 0
    %p349 = por %p347, %p348
    %p350 = scmp.ne.s32.totalorder %s342, %s344
    %p351 = scmp.eq.s32.totalorder %s35, 1
    %p352 = por %p350, %p351
    %p353 = scmp.ne.s32.totalorder %s344, %s345
    %p354 = scmp.eq.s32.totalorder %s35, 0
    %p355 = por %p353, %p354
    %p356 = scmp.ne.s32.totalorder %s344, %s345
    %p357 = scmp.eq.s32.totalorder %s36, 1
    %p358 = por %p356, %p357
    %p360 = scmp.ne.s32.totalorder %s345, %s359
    %p361 = scmp.eq.s32.totalorder %s36, 0
    %p362 = por %p360, %p361
    %s364 = sadd.s32 %s363, 1
    %p367 = scmp.eq.s32.totalorder %s30, 1
    %p368 = scmp.ne.s32.totalorder %s363, %s365
    %p369 = scmp.eq.s32.totalorder %s30, 0
    %p370 = por %p368, %p369
    %p371 = scmp.ne.s32.totalorder %s363, %s365
    %p372 = scmp.eq.s32.totalorder %s35, 1
    %p373 = por %p371, %p372
    %p374 = scmp.ne.s32.totalorder %s365, %s366
    %p375 = scmp.eq.s32.totalorder %s35, 0
    %p376 = por %p374, %p375
    %p377 = scmp.ne.s32.totalorder %s365, %s366
    %p378 = scmp.eq.s32.totalorder %s36, 1
    %p379 = por %p377, %p378
    %p381 = scmp.ne.s32.totalorder %s366, %s380
    %p382 = scmp.eq.s32.totalorder %s36, 0
    %p383 = por %p381, %p382
    %s385 = sadd.s32 %s384, 1
    %p388 = scmp.eq.s32.totalorder %s30, 1
    %p389 = scmp.ne.s32.totalorder %s384, %s386
    %p390 = scmp.eq.s32.totalorder %s30, 0
    %p391 = por %p389, %p390
    %p392 = scmp.ne.s32.totalorder %s384, %s386
    %p393 = scmp.eq.s32.totalorder %s35, 1
    %p394 = por %p392, %p393
    %p395 = scmp.ne.s32.totalorder %s386, %s387
    %p396 = scmp.eq.s32.totalorder %s35, 0
    %p397 = por %p395, %p396
    %p398 = scmp.ne.s32.totalorder %s386, %s387
    %p399 = scmp.eq.s32.totalorder %s36, 1
    %p400 = por %p398, %p399
    %p402 = scmp.ne.s32.totalorder %s387, %s401
    %p403 = scmp.eq.s32.totalorder %s36, 0
    %p404 = por %p402, %p403
    %s406 = sadd.s32 %s405, 1
    %p409 = scmp.eq.s32.totalorder %s30, 1
    %p410 = scmp.ne.s32.totalorder %s405, %s407
    %p411 = scmp.eq.s32.totalorder %s30, 0
    %p412 = por %p410, %p411
    %p413 = scmp.ne.s32.totalorder %s405, %s407
    %p414 = scmp.eq.s32.totalorder %s35, 1
    %p415 = por %p413, %p414
    %p416 = scmp.ne.s32.totalorder %s407, %s408
    %p417 = scmp.eq.s32.totalorder %s35, 0
    %p418 = por %p416, %p417
    %p419 = scmp.ne.s32.totalorder %s407, %s408
    %p420 = scmp.eq.s32.totalorder %s36, 1
    %p421 = por %p419, %p420
    %p423 = scmp.ne.s32.totalorder %s408, %s422
    %p424 = scmp.eq.s32.totalorder %s36, 0
    %p425 = por %p423, %p424
    %s427 = sadd.s32 %s426, 1
    %p430 = scmp.eq.s32.totalorder %s30, 1
    %p431 = scmp.ne.s32.totalorder %s426, %s428
    %p432 = scmp.eq.s32.totalorder %s30, 0
    %p433 = por %p431, %p432
    %p434 = scmp.ne.s32.totalorder %s426, %s428
    %p435 = scmp.eq.s32.totalorder %s35, 1
    %p436 = por %p434, %p435
    %p437 = scmp.ne.s32.totalorder %s428, %s429
    %p438 = scmp.eq.s32.totalorder %s35, 0
    %p439 = por %p437, %p438
    %p440 = scmp.ne.s32.totalorder %s428, %s429
    %p441 = scmp.eq.s32.totalorder %s36, 1
    %p442 = por %p440, %p441
    %p444 = scmp.ne.s32.totalorder %s429, %s443
    %p445 = scmp.eq.s32.totalorder %s36, 0
    %p446 = por %p444, %p445
    %s448 = sadd.s32 %s447, 1
    %p451 = scmp.eq.s32.totalorder %s30, 1
    %p452 = scmp.ne.s32.totalorder %s447, %s449
    %p453 = scmp.eq.s32.totalorder %s30, 0
    %p454 = por %p452, %p453
    %p455 = scmp.ne.s32.totalorder %s447, %s449
    %p456 = scmp.eq.s32.totalorder %s35, 1
    %p457 = por %p455, %p456
    %p458 = scmp.ne.s32.totalorder %s449, %s450
    %p459 = scmp.eq.s32.totalorder %s35, 0
    %p460 = por %p458, %p459
    %p461 = scmp.ne.s32.totalorder %s449, %s450
    %p462 = scmp.eq.s32.totalorder %s36, 1
    %p463 = por %p461, %p462
    %p465 = scmp.ne.s32.totalorder %s450, %s464
    %p466 = scmp.eq.s32.totalorder %s36, 0
    %p467 = por %p465, %p466
    %s469 = sadd.s32 %s468, 1
    %p472 = scmp.eq.s32.totalorder %s30, 1
    %p473 = scmp.ne.s32.totalorder %s468, %s470
    %p474 = scmp.eq.s32.totalorder %s30, 0
    %p475 = por %p473, %p474
    %p476 = scmp.ne.s32.totalorder %s468, %s470
    %p477 = scmp.eq.s32.totalorder %s35, 1
    %p478 = por %p476, %p477
    %p479 = scmp.ne.s32.totalorder %s470, %s471
    %p480 = scmp.eq.s32.totalorder %s35, 0
    %p481 = por %p479, %p480
    %p482 = scmp.ne.s32.totalorder %s470, %s471
    %p483 = scmp.eq.s32.totalorder %s36, 1
    %p484 = por %p482, %p483
    %p486 = scmp.ne.s32.totalorder %s471, %s485
    %p487 = scmp.eq.s32.totalorder %s36, 0
    %p488 = por %p486, %p487
    %s490 = sadd.s32 %s489, 1
    %p493 = scmp.eq.s32.totalorder %s30, 1
    %p494 = scmp.ne.s32.totalorder %s489, %s491
    %p495 = scmp.eq.s32.totalorder %s30, 0
    %p496 = por %p494, %p495
    %p497 = scmp.ne.s32.totalorder %s489, %s491
    %p498 = scmp.eq.s32.totalorder %s35, 1
    %p499 = por %p497, %p498
    %p500 = scmp.ne.s32.totalorder %s491, %s492
    %p501 = scmp.eq.s32.totalorder %s35, 0
    %p502 = por %p500, %p501
    %p503 = scmp.ne.s32.totalorder %s491, %s492
    %p504 = scmp.eq.s32.totalorder %s36, 1
    %p505 = por %p503, %p504
    %p507 = scmp.ne.s32.totalorder %s492, %s506
    %p508 = scmp.eq.s32.totalorder %s36, 0
    %p509 = por %p507, %p508
    %s511 = sadd.s32 %s510, 1
    %p514 = scmp.eq.s32.totalorder %s30, 1
    %p515 = scmp.ne.s32.totalorder %s510, %s512
    %p516 = scmp.eq.s32.totalorder %s30, 0
    %p517 = por %p515, %p516
    %p518 = scmp.ne.s32.totalorder %s510, %s512
    %p519 = scmp.eq.s32.totalorder %s35, 1
    %p520 = por %p518, %p519
    %p521 = scmp.ne.s32.totalorder %s512, %s513
    %p522 = scmp.eq.s32.totalorder %s35, 0
    %p523 = por %p521, %p522
    %p524 = scmp.ne.s32.totalorder %s512, %s513
    %p525 = scmp.eq.s32.totalorder %s36, 1
    %p526 = por %p524, %p525
    %p528 = scmp.ne.s32.totalorder %s513, %s527
    %p529 = scmp.eq.s32.totalorder %s36, 0
    %p530 = por %p528, %p529
    %s532 = sadd.s32 %s531, 1
    %p535 = scmp.eq.s32.totalorder %s30, 1
    %p536 = scmp.ne.s32.totalorder %s531, %s533
    %p537 = scmp.eq.s32.totalorder %s30, 0
    %p538 = por %p536, %p537
    %p539 = scmp.ne.s32.totalorder %s531, %s533
    %p540 = scmp.eq.s32.totalorder %s35, 1
    %p541 = por %p539, %p540
    %p542 = scmp.ne.s32.totalorder %s533, %s534
    %p543 = scmp.eq.s32.totalorder %s35, 0
    %p544 = por %p542, %p543
    %p545 = scmp.ne.s32.totalorder %s533, %s534
    %p546 = scmp.eq.s32.totalorder %s36, 1
    %p547 = por %p545, %p546
    %p549 = scmp.ne.s32.totalorder %s534, %s548
    %p550 = scmp.eq.s32.totalorder %s36, 0
    %p551 = por %p549, %p550
    %s552 = ssub.s32 %s30, %s37
    %p553 = scmp.eq.s32.totalorder %s552, 0
    %s555 = sadd.s32 %s554, 1
    %s556 = scalar_select %p553, %s554, %s555
    %p559 = pneg %p553
    %p560 = scmp.eq.s32.totalorder %s30, 1
    %p561 = por %p559, %p560
    %p562 = scmp.ne.s32.totalorder %s554, %s557
    %p563 = scmp.eq.s32.totalorder %s30, 0
    %p564 = por %p562, %p563
    %p565 = scmp.ne.s32.totalorder %s554, %s557
    %p566 = scmp.eq.s32.totalorder %s35, 1
    %p567 = por %p565, %p566
    %p568 = scmp.ne.s32.totalorder %s557, %s558
    %p569 = scmp.eq.s32.totalorder %s35, 0
    %p570 = por %p568, %p569
    %p571 = scmp.ne.s32.totalorder %s557, %s558
    %p572 = scmp.eq.s32.totalorder %s36, 1
    %p573 = por %p571, %p572
    %p575 = scmp.ne.s32.totalorder %s558, %s574
    %p576 = scmp.eq.s32.totalorder %s36, 0
    %p577 = por %p575, %p576
    %p578 = scmp.le.s32.totalorder 1, %s30
    %p579 = scmp.lt.s32.totalorder %s30, 3
    %p580 = pnand %p578, %p579
    %p581 = pneg %p580
    // Predicated region
    $region9: #{bert_classifier_forward.1} parent=5 // pred_check
      _
    $region10: #{bert_classifier_forward.1} parent=5 // pred_check_branch
      %583 = sbr.rel (%p580) target = $region12
    $region11: #{bert_classifier_forward.1} parent=5 // pred_region
      %s584 = ssub.s32 %s30, 1
      // Predicated region
      $region13: #{bert_classifier_forward.1} parent=11 // pred_check
        %p585 = pneg %p103
      $region14: #{bert_classifier_forward.1} parent=11 // pred_check_branch
        %587 = sbr.rel (%p585) target = $region16
      $region15: #{bert_classifier_forward.1} parent=11 // pred_region
        _
      $region16: #{bert_classifier_forward.1} parent=11 // pred_fallthru
        _
      // Predicated region
      $region17: #{bert_classifier_forward.1} parent=11 // pred_check
        %p588 = pneg %p124
      $region18: #{bert_classifier_forward.1} parent=11 // pred_check_branch
        %590 = sbr.rel (%p588) target = $region20
      $region19: #{bert_classifier_forward.1} parent=11 // pred_region
        _
      $region20: #{bert_classifier_forward.1} parent=11 // pred_fallthru
        _
      // Predicated region
      $region21: #{bert_classifier_forward.1} parent=11 // pred_check
        %p591 = pneg %p145
      $region22: #{bert_classifier_forward.1} parent=11 // pred_check_branch
        %593 = sbr.rel (%p591) target = $region24
      $region23: #{bert_classifier_forward.1} parent=11 // pred_region
        _
      $region24: #{bert_classifier_forward.1} parent=11 // pred_fallthru
        _
      // Predicated region
      $region25: #{bert_classifier_forward.1} parent=11 // pred_check
        %p594 = pneg %p166
      $region26: #{bert_classifier_forward.1} parent=11 // pred_check_branch
        %596 = sbr.rel (%p594) target = $region28
      $region27: #{bert_classifier_forward.1} parent=11 // pred_region
        _
      $region28: #{bert_classifier_forward.1} parent=11 // pred_fallthru
        _
      // Predicated region
      $region29: #{bert_classifier_forward.1} parent=11 // pred_check
        %p597 = pneg %p187
      $region30: #{bert_classifier_forward.1} parent=11 // pred_check_branch
        %599 = sbr.rel (%p597) target = $region32
      $region31: #{bert_classifier_forward.1} parent=11 // pred_region
        _
      $region32: #{bert_classifier_forward.1} parent=11 // pred_fallthru
        _
      // Predicated region
      $region33: #{bert_classifier_forward.1} parent=11 // pred_check
        %p600 = pneg %p208
      $region34: #{bert_classifier_forward.1} parent=11 // pred_check_branch
        %602 = sbr.rel (%p600) target = $region36
      $region35: #{bert_classifier_forward.1} parent=11 // pred_region
        _
      $region36: #{bert_classifier_forward.1} parent=11 // pred_fallthru
        _
      // Predicated region
      $region37: #{bert_classifier_forward.1} parent=11 // pred_check
        %p603 = pneg %p229
      $region38: #{bert_classifier_forward.1} parent=11 // pred_check_branch
        %605 = sbr.rel (%p603) target = $region40
      $region39: #{bert_classifier_forward.1} parent=11 // pred_region
        _
      $region40: #{bert_classifier_forward.1} parent=11 // pred_fallthru
        _
      // Predicated region
      $region41: #{bert_classifier_forward.1} parent=11 // pred_check
        %p606 = pneg %p250
      $region42: #{bert_classifier_forward.1} parent=11 // pred_check_branch
        %608 = sbr.rel (%p606) target = $region44
      $region43: #{bert_classifier_forward.1} parent=11 // pred_region
        _
      $region44: #{bert_classifier_forward.1} parent=11 // pred_fallthru
        _
      // Predicated region
      $region45: #{bert_classifier_forward.1} parent=11 // pred_check
        %p609 = pneg %p271
      $region46: #{bert_classifier_forward.1} parent=11 // pred_check_branch
        %611 = sbr.rel (%p609) target = $region48
      $region47: #{bert_classifier_forward.1} parent=11 // pred_region
        _
      $region48: #{bert_classifier_forward.1} parent=11 // pred_fallthru
        _
      // Predicated region
      $region49: #{bert_classifier_forward.1} parent=11 // pred_check
        %p612 = pneg %p292
      $region50: #{bert_classifier_forward.1} parent=11 // pred_check_branch
        %614 = sbr.rel (%p612) target = $region52
      $region51: #{bert_classifier_forward.1} parent=11 // pred_region
        _
      $region52: #{bert_classifier_forward.1} parent=11 // pred_fallthru
        _
      // Predicated region
      $region53: #{bert_classifier_forward.1} parent=11 // pred_check
        %p615 = pneg %p313
      $region54: #{bert_classifier_forward.1} parent=11 // pred_check_branch
        %617 = sbr.rel (%p615) target = $region56
      $region55: #{bert_classifier_forward.1} parent=11 // pred_region
        _
      $region56: #{bert_classifier_forward.1} parent=11 // pred_fallthru
        _
      // Predicated region
      $region57: #{bert_classifier_forward.1} parent=11 // pred_check
        %p618 = pneg %p334
      $region58: #{bert_classifier_forward.1} parent=11 // pred_check_branch
        %620 = sbr.rel (%p618) target = $region60
      $region59: #{bert_classifier_forward.1} parent=11 // pred_region
        _
      $region60: #{bert_classifier_forward.1} parent=11 // pred_fallthru
        _
      // Predicated region
      $region61: #{bert_classifier_forward.1} parent=11 // pred_check
        %p621 = pneg %p355
      $region62: #{bert_classifier_forward.1} parent=11 // pred_check_branch
        %623 = sbr.rel (%p621) target = $region64
      $region63: #{bert_classifier_forward.1} parent=11 // pred_region
        _
      $region64: #{bert_classifier_forward.1} parent=11 // pred_fallthru
        _
      // Predicated region
      $region65: #{bert_classifier_forward.1} parent=11 // pred_check
        %p624 = pneg %p376
      $region66: #{bert_classifier_forward.1} parent=11 // pred_check_branch
        %626 = sbr.rel (%p624) target = $region68
      $region67: #{bert_classifier_forward.1} parent=11 // pred_region
        _
      $region68: #{bert_classifier_forward.1} parent=11 // pred_fallthru
        _
      // Predicated region
      $region69: #{bert_classifier_forward.1} parent=11 // pred_check
        %p627 = pneg %p397
      $region70: #{bert_classifier_forward.1} parent=11 // pred_check_branch
        %629 = sbr.rel (%p627) target = $region72
      $region71: #{bert_classifier_forward.1} parent=11 // pred_region
        _
      $region72: #{bert_classifier_forward.1} parent=11 // pred_fallthru
        _
      // Predicated region
      $region73: #{bert_classifier_forward.1} parent=11 // pred_check
        %p630 = pneg %p418
      $region74: #{bert_classifier_forward.1} parent=11 // pred_check_branch
        %632 = sbr.rel (%p630) target = $region76
      $region75: #{bert_classifier_forward.1} parent=11 // pred_region
        _
      $region76: #{bert_classifier_forward.1} parent=11 // pred_fallthru
        _
      // Predicated region
      $region77: #{bert_classifier_forward.1} parent=11 // pred_check
        %p633 = pneg %p439
      $region78: #{bert_classifier_forward.1} parent=11 // pred_check_branch
        %635 = sbr.rel (%p633) target = $region80
      $region79: #{bert_classifier_forward.1} parent=11 // pred_region
        _
      $region80: #{bert_classifier_forward.1} parent=11 // pred_fallthru
        _
      // Predicated region
      $region81: #{bert_classifier_forward.1} parent=11 // pred_check
        %p636 = pneg %p460
      $region82: #{bert_classifier_forward.1} parent=11 // pred_check_branch
        %638 = sbr.rel (%p636) target = $region84
      $region83: #{bert_classifier_forward.1} parent=11 // pred_region
        _
      $region84: #{bert_classifier_forward.1} parent=11 // pred_fallthru
        _
      // Predicated region
      $region85: #{bert_classifier_forward.1} parent=11 // pred_check
        %p639 = pneg %p481
      $region86: #{bert_classifier_forward.1} parent=11 // pred_check_branch
        %641 = sbr.rel (%p639) target = $region88
      $region87: #{bert_classifier_forward.1} parent=11 // pred_region
        _
      $region88: #{bert_classifier_forward.1} parent=11 // pred_fallthru
        _
      // Predicated region
      $region89: #{bert_classifier_forward.1} parent=11 // pred_check
        %p642 = pneg %p502
      $region90: #{bert_classifier_forward.1} parent=11 // pred_check_branch
        %644 = sbr.rel (%p642) target = $region92
      $region91: #{bert_classifier_forward.1} parent=11 // pred_region
        _
      $region92: #{bert_classifier_forward.1} parent=11 // pred_fallthru
        _
      // Predicated region
      $region93: #{bert_classifier_forward.1} parent=11 // pred_check
        %p645 = pneg %p523
      $region94: #{bert_classifier_forward.1} parent=11 // pred_check_branch
        %647 = sbr.rel (%p645) target = $region96
      $region95: #{bert_classifier_forward.1} parent=11 // pred_region
        _
      $region96: #{bert_classifier_forward.1} parent=11 // pred_fallthru
        _
      // Predicated region
      $region97: #{bert_classifier_forward.1} parent=11 // pred_check
        %p648 = pneg %p544
      $region98: #{bert_classifier_forward.1} parent=11 // pred_check_branch
        %650 = sbr.rel (%p648) target = $region100
      $region99: #{bert_classifier_forward.1} parent=11 // pred_region
        _
      $region100: #{bert_classifier_forward.1} parent=11 // pred_fallthru
        _
    $region12: #{bert_classifier_forward.1} parent=5 // pred_fallthru
      _
    %p651 = scmp.lt.s32.totalorder %s30, 2
    // Predicated region
    $region101: #{bert_classifier_forward.1} parent=5 // pred_check
      %p652 = pneg %p651
    $region102: #{bert_classifier_forward.1} parent=5 // pred_check_branch
      %654 = sbr.rel (%p652) target = $region104
    $region103: #{bert_classifier_forward.1} parent=5 // pred_region
      // Predicated region
      $region105: #{bert_classifier_forward.1} parent=103 // pred_check
        %p655 = pneg %p50
      $region106: #{bert_classifier_forward.1} parent=103 // pred_check_branch
        %657 = sbr.rel (%p655) target = $region108
      $region107: #{bert_classifier_forward.1} parent=103 // pred_region
        %p658 = scmp.lt.s32.totalorder %s30, 1
        %s659 = scalar_select %p658, %s30, 1
        %s660 = smul.addr %s659, 8
        %s661 = scalar_lea.vmem %s0, %s660
      $region108: #{bert_classifier_forward.1} parent=103 // pred_fallthru
        _
      // Predicated region
      $region109: #{bert_classifier_forward.1} parent=103 // pred_check
        %p662 = pneg %p76
      $region110: #{bert_classifier_forward.1} parent=103 // pred_check_branch
        %664 = sbr.rel (%p662) target = $region112
      $region111: #{bert_classifier_forward.1} parent=103 // pred_region
        %p665 = scmp.lt.s32.totalorder %s30, 1
        %s666 = scalar_select %p665, %s30, 1
        %s667 = scalar_lea.vmem %s1, %s666
      $region112: #{bert_classifier_forward.1} parent=103 // pred_fallthru
        _
    $region104: #{bert_classifier_forward.1} parent=5 // pred_fallthru
      _
    %p668 = scmp.le.s32.totalorder 1, %s30
    %p669 = scmp.lt.s32.totalorder %s30, 3
    %p670 = pnand %p668, %p669
    %p671 = pneg %p670
    // Predicated region
    $region113: #{bert_classifier_forward.1} parent=5 // pred_check
      _
    $region114: #{bert_classifier_forward.1} parent=5 // pred_check_branch
      %673 = sbr.rel (%p670) target = $region116
    $region115: #{bert_classifier_forward.1} parent=5 // pred_region
      %s674 = ssub.s32 %s30, 1
      %p675 = scmp.lt.s32.totalorder %s35, 1
      %s676 = scalar_select %p675, %s35, 1
      %s677 = smul.addr %s676, 8
      %s678 = scalar_lea.vmem %s0, %s677
      %p679 = pneg %p56
      %p680 = pneg %p53
      %p681 = scmp.lt.s32.totalorder %s35, 1
      %s682 = scalar_select %p681, %s35, 1
      %s683 = scalar_lea.vmem %s1, %s682
      %p684 = pneg %p82
      %p685 = pneg %p79
      %p686 = pneg %p103
      %p687 = pneg %p100
      %p688 = pneg %p124
      %p689 = pneg %p121
      %p690 = pneg %p145
      %p691 = pneg %p142
      %p692 = pneg %p166
      %p693 = pneg %p163
      %p694 = pneg %p187
      %p695 = pneg %p184
      %p696 = pneg %p208
      %p697 = pneg %p205
      %p698 = pneg %p229
      %p699 = pneg %p226
      %p700 = pneg %p250
      %p701 = pneg %p247
      %p702 = pneg %p271
      %p703 = pneg %p268
      %p704 = pneg %p292
      %p705 = pneg %p289
      %p706 = pneg %p313
      %p707 = pneg %p310
      %p708 = pneg %p334
      %p709 = pneg %p331
      %p710 = pneg %p355
      %p711 = pneg %p352
      %p712 = pneg %p376
      %p713 = pneg %p373
      %p714 = pneg %p397
      %p715 = pneg %p394
      %p716 = pneg %p418
      %p717 = pneg %p415
      %p718 = pneg %p439
      %p719 = pneg %p436
      %p720 = pneg %p460
      %p721 = pneg %p457
      %p722 = pneg %p481
      %p723 = pneg %p478
      %p724 = pneg %p502
      %p725 = pneg %p499
      %p726 = pneg %p523
      %p727 = pneg %p520
      %p728 = pneg %p544
      %p729 = pneg %p541
      %p730 = pneg %p570
      %p731 = pneg %p567
      %p732 = scmp.lt.s32.totalorder %s35, 1
      %s733 = scalar_select %p732, %s35, 1
      %s734 = smul.addr %s733, 8
      %s735 = scalar_lea.vmem %s24, %s734
      %p736 = scmp.lt.s32.totalorder %s35, 1
      %s737 = scalar_select %p736, %s35, 1
      %s738 = smul.addr %s737, 8
      %s739 = scalar_lea.vmem %s0, %s738
      %p740 = scmp.lt.s32.totalorder %s35, 1
      %s741 = scalar_select %p740, %s35, 1
      %s742 = scalar_lea.vmem %s1, %s741
      %p743 = scmp.lt.s32.totalorder %s35, 1
      %s744 = scalar_select %p743, %s35, 1
      %s745 = smul.addr %s744, 8
      %s746 = scalar_lea.vmem %s24, %s745
      %v747 = vld [vmem:[%s739] sm:$0xff]
      %v748 = vld [vmem:[%s2] sm:$0x1]
      %v749 = vld [vmem:[%s3] sm:$0x1]
      %vm750 = vcmask 261120
      %v751 = vsel %vm750, %v747, 0.0
      %752 = vadd.xlane.f32.xlu0 %v751
      %v753 = vpop.xlane.xlu0 %752
      %v754 = vrcp.pop 32.0
      %v755 = vmul.f32 %v753, %v754
      %v756 = vsub.f32 %v747, %v755
      %v757 = vmul.f32 %v756, %v756
      %v758 = vsel %vm750, %v757, 0.0
      %759 = vadd.xlane.f32.xlu0 %v758
      %v760 = vpop.xlane.xlu0 %759
      %v761 = vmul.f32 %v760, %v754
      %v762 = vadd.f32 %v761, 1e-12
      %v763 = vrsqrt.pop %v762
      %v764 = vmul.f32 %v756, %v763
      %v766 = vlaneseq
      %v767 = vshrl.u32 %v766, 7
      %v768 = vsub.s32 0, %v767
      %v769 = vrot.slane %v748, %v768
      %v771 = vmul.f32 %v764, %v769
      %v773 = vlaneseq
      %v774 = vshrl.u32 %v773, 7
      %v775 = vsub.s32 0, %v774
      %v776 = vrot.slane %v749, %v775
      %v778 = vadd.f32 %v771, %v776
      %v779 = vld [vmem:[%s742] sm:$0x1]
      %v780 = vsub.f32 %v779, 1.0
      %v781 = vmul.f32 %v780, 10000.0
      %v782 = vld [vmem:[%s4] sm:$0xff]
      %v783 = vld [vmem:[%s4 + $0x8] sm:$0xff]
      %v784 = vld [vmem:[%s4 + $0x10] sm:$0xff]
      %v785 = vld [vmem:[%s4 + $0x18] sm:$0xff]
      %v786 = vld [vmem:[%s5] sm:$0x1]
      %v788 = vlaneseq
      %v789 = vshrl.u32 %v788, 7
      %v790 = vsub.s32 0, %v789
      %v791 = vrot.slane %v786, %v790
      %v794 = vsel %vm750, %v778, 0
      %796 = vmatprep.subr.mxu0 0.0
      %797 = vmatpush1.msra.mxu0 %v782
      %798 = vmatprep.subr.mxu0 0.0
      %799 = vmatpush1.msra.mxu0 %v783
      %800 = vmatprep.subr.mxu0 0.0
      %801 = vmatpush1.msra.mxu0 %v784
      %802 = vmatprep.subr.mxu0 0.0
      %803 = vmatpush1.msra.mxu0 %v785
      %804 = vmatprep.subr.mxu0 0.0
      %805 = vmatpush1.msra.mxu0 0.0
      %806 = vmatprep.subr.mxu0 0.0
      %807 = vmatpush1.msra.mxu0 0.0
      %808 = vmatprep.subr.mxu0 0.0
      %809 = vmatpush1.msra.mxu0 0.0
      %810 = vmatprep.subr.mxu0 0.0
      %811 = vmatpush1.msra.mxu0 0.0
      %812 = vmatprep.subr.mxu0 0.0
      %813 = vmatpush1.msra.mxu0 0.0
      %814 = vmatprep.subr.mxu0 0.0
      %815 = vmatpush1.msra.mxu0 0.0
      %816 = vmatprep.subr.mxu0 0.0
      %817 = vmatpush1.msra.mxu0 0.0
      %818 = vmatprep.subr.mxu0 0.0
      %819 = vmatpush1.msra.mxu0 0.0
      %820 = vmatprep.subr.mxu0 0.0
      %821 = vmatpush1.msra.mxu0 0.0
      %822 = vmatprep.subr.mxu0 0.0
      %823 = vmatpush1.msra.mxu0 0.0
      %824 = vmatprep.subr.mxu0 0.0
      %825 = vmatpush1.msra.mxu0 0.0
      %826 = vmatprep.subr.mxu0 0.0
      %827 = vmatpush1.msra.mxu0 0.0
      %828 = vmatprep.subr.mxu0 0.0
      %829 = vmatpush1.msra.mxu0 0.0
      %830 = vmatprep.subr.mxu0 0.0
      %831 = vmatpush1.msra.mxu0 0.0
      %832 = vmatprep.subr.mxu0 0.0
      %833 = vmatpush1.msra.mxu0 0.0
      %834 = vmatprep.subr.mxu0 0.0
      %835 = vmatpush1.msra.mxu0 0.0
      %836 = vmatprep.subr.mxu0 0.0
      %837 = vmatpush1.msra.mxu0 0.0
      %838 = vmatprep.subr.mxu0 0.0
      %839 = vmatpush1.msra.mxu0 0.0
      %840 = vmatprep.subr.mxu0 0.0
      %841 = vmatpush1.msra.mxu0 0.0
      %842 = vmatprep.subr.mxu0 0.0
      %843 = vmatpush1.msra.mxu0 0.0
      %844 = vmatprep.subr.mxu0 0.0
      %845 = vmatpush1.msra.mxu0 0.0
      %846 = vmatprep.subr.mxu0 0.0
      %847 = vmatpush1.msra.mxu0 0.0
      %848 = vmatprep.subr.mxu0 0.0
      %849 = vmatpush1.msra.mxu0 0.0
      %850 = vmatprep.subr.mxu0 0.0
      %851 = vmatpush1.msra.mxu0 0.0
      %852 = vmatprep.subr.mxu0 0.0
      %853 = vmatpush1.msra.mxu0 0.0
      %854 = vmatprep.subr.mxu0 0.0
      %855 = vmatpush1.msra.mxu0 0.0
      %856 = vmatprep.subr.mxu0 0.0
      %857 = vmatpush1.msra.mxu0 0.0
      %858 = vmatprep.subr.mxu0 0.0
      %859 = vmatpush1.msra.mxu0 0.0
      %860 = vmatprep.mubr.f32.mxu0 0.0
      %861 = vmatmul.mubr.f32.gmra.mrb[0].mxu0 %v794
      %v862 = vpop.f32.mrb[0].mxu0
      %v863 = vadd.f32 %v791, %v862
      %v864 = vpop.f32.mrb[0].mxu0
      %865 = vdwg.mxu0
      %v866 = vmul.f32 %v863, 0.35355338
      %v867 = vld [vmem:[%s6] sm:$0xff]
      %v868 = vld [vmem:[%s6 + $0x8] sm:$0xff]
      %v869 = vld [vmem:[%s6 + $0x10] sm:$0xff]
      %v870 = vld [vmem:[%s6 + $0x18] sm:$0xff]
      %v871 = vld [vmem:[%s7] sm:$0x1]
      %v873 = vlaneseq
      %v874 = vshrl.u32 %v873, 7
      %v875 = vsub.s32 0, %v874
      %v876 = vrot.slane %v871, %v875
      %878 = vmatprep.subr.mxu0 0.0
      %879 = vmatpush1.msra.mxu0 %v867
      %880 = vmatprep.subr.mxu0 0.0
      %881 = vmatpush1.msra.mxu0 %v868
      %882 = vmatprep.subr.mxu0 0.0
      %883 = vmatpush1.msra.mxu0 %v869
      %884 = vmatprep.subr.mxu0 0.0
      %885 = vmatpush1.msra.mxu0 %v870
      %886 = vmatprep.subr.mxu0 0.0
      %887 = vmatpush1.msra.mxu0 0.0
      %888 = vmatprep.subr.mxu0 0.0
      %889 = vmatpush1.msra.mxu0 0.0
      %890 = vmatprep.subr.mxu0 0.0
      %891 = vmatpush1.msra.mxu0 0.0
      %892 = vmatprep.subr.mxu0 0.0
      %893 = vmatpush1.msra.mxu0 0.0
      %894 = vmatprep.subr.mxu0 0.0
      %895 = vmatpush1.msra.mxu0 0.0
      %896 = vmatprep.subr.mxu0 0.0
      %897 = vmatpush1.msra.mxu0 0.0
      %898 = vmatprep.subr.mxu0 0.0
      %899 = vmatpush1.msra.mxu0 0.0
      %900 = vmatprep.subr.mxu0 0.0
      %901 = vmatpush1.msra.mxu0 0.0
      %902 = vmatprep.subr.mxu0 0.0
      %903 = vmatpush1.msra.mxu0 0.0
      %904 = vmatprep.subr.mxu0 0.0
      %905 = vmatpush1.msra.mxu0 0.0
      %906 = vmatprep.subr.mxu0 0.0
      %907 = vmatpush1.msra.mxu0 0.0
      %908 = vmatprep.subr.mxu0 0.0
      %909 = vmatpush1.msra.mxu0 0.0
      %910 = vmatprep.subr.mxu0 0.0
      %911 = vmatpush1.msra.mxu0 0.0
      %912 = vmatprep.subr.mxu0 0.0
      %913 = vmatpush1.msra.mxu0 0.0
      %914 = vmatprep.subr.mxu0 0.0
      %915 = vmatpush1.msra.mxu0 0.0
      %916 = vmatprep.subr.mxu0 0.0
      %917 = vmatpush1.msra.mxu0 0.0
      %918 = vmatprep.subr.mxu0 0.0
      %919 = vmatpush1.msra.mxu0 0.0
      %920 = vmatprep.subr.mxu0 0.0
      %921 = vmatpush1.msra.mxu0 0.0
      %922 = vmatprep.subr.mxu0 0.0
      %923 = vmatpush1.msra.mxu0 0.0
      %924 = vmatprep.subr.mxu0 0.0
      %925 = vmatpush1.msra.mxu0 0.0
      %926 = vmatprep.subr.mxu0 0.0
      %927 = vmatpush1.msra.mxu0 0.0
      %928 = vmatprep.subr.mxu0 0.0
      %929 = vmatpush1.msra.mxu0 0.0
      %930 = vmatprep.subr.mxu0 0.0
      %931 = vmatpush1.msra.mxu0 0.0
      %932 = vmatprep.subr.mxu0 0.0
      %933 = vmatpush1.msra.mxu0 0.0
      %934 = vmatprep.subr.mxu0 0.0
      %935 = vmatpush1.msra.mxu0 0.0
      %936 = vmatprep.subr.mxu0 0.0
      %937 = vmatpush1.msra.mxu0 0.0
      %938 = vmatprep.subr.mxu0 0.0
      %939 = vmatpush1.msra.mxu0 0.0
      %940 = vmatprep.subr.mxu0 0.0
      %941 = vmatpush1.msra.mxu0 0.0
      %942 = vmatprep.mubr.f32.mxu0 0.0
      %943 = vmatmul.mubr.f32.gmra.mrb[0].mxu0 %v794
      %v944 = vpop.f32.mrb[0].mxu0
      %v945 = vadd.f32 %v876, %v944
      %v946 = vpop.f32.mrb[0].mxu0
      %947 = vdwg.mxu0
      %v948 = vld [vmem:[%s8] sm:$0xff]
      %v949 = vld [vmem:[%s8 + $0x8] sm:$0xff]
      %v950 = vld [vmem:[%s8 + $0x10] sm:$0xff]
      %v951 = vld [vmem:[%s8 + $0x18] sm:$0xff]
      %v952 = vld [vmem:[%s9] sm:$0x1]
      %v954 = vlaneseq
      %v955 = vshrl.u32 %v954, 7
      %v956 = vsub.s32 0, %v955
      %v957 = vrot.slane %v952, %v956
      %959 = vmatprep.subr.mxu0 0.0
      %960 = vmatpush1.msra.mxu0 %v948
      %961 = vmatprep.subr.mxu0 0.0
      %962 = vmatpush1.msra.mxu0 %v949
      %963 = vmatprep.subr.mxu0 0.0
      %964 = vmatpush1.msra.mxu0 %v950
      %965 = vmatprep.subr.mxu0 0.0
      %966 = vmatpush1.msra.mxu0 %v951
      %967 = vmatprep.subr.mxu0 0.0
      %968 = vmatpush1.msra.mxu0 0.0
      %969 = vmatprep.subr.mxu0 0.0
      %970 = vmatpush1.msra.mxu0 0.0
      %971 = vmatprep.subr.mxu0 0.0
      %972 = vmatpush1.msra.mxu0 0.0
      %973 = vmatprep.subr.mxu0 0.0
      %974 = vmatpush1.msra.mxu0 0.0
      %975 = vmatprep.subr.mxu0 0.0
      %976 = vmatpush1.msra.mxu0 0.0
      %977 = vmatprep.subr.mxu0 0.0
      %978 = vmatpush1.msra.mxu0 0.0
      %979 = vmatprep.subr.mxu0 0.0
      %980 = vmatpush1.msra.mxu0 0.0
      %981 = vmatprep.subr.mxu0 0.0
      %982 = vmatpush1.msra.mxu0 0.0
      %983 = vmatprep.subr.mxu0 0.0
      %984 = vmatpush1.msra.mxu0 0.0
      %985 = vmatprep.subr.mxu0 0.0
      %986 = vmatpush1.msra.mxu0 0.0
      %987 = vmatprep.subr.mxu0 0.0
      %988 = vmatpush1.msra.mxu0 0.0
      %989 = vmatprep.subr.mxu0 0.0
      %990 = vmatpush1.msra.mxu0 0.0
      %991 = vmatprep.subr.mxu0 0.0
      %992 = vmatpush1.msra.mxu0 0.0
      %993 = vmatprep.subr.mxu0 0.0
      %994 = vmatpush1.msra.mxu0 0.0
      %995 = vmatprep.subr.mxu0 0.0
      %996 = vmatpush1.msra.mxu0 0.0
      %997 = vmatprep.subr.mxu0 0.0
      %998 = vmatpush1.msra.mxu0 0.0
      %999 = vmatprep.subr.mxu0 0.0
      %1000 = vmatpush1.msra.mxu0 0.0
      %1001 = vmatprep.subr.mxu0 0.0
      %1002 = vmatpush1.msra.mxu0 0.0
      %1003 = vmatprep.subr.mxu0 0.0
      %1004 = vmatpush1.msra.mxu0 0.0
      %1005 = vmatprep.subr.mxu0 0.0
      %1006 = vmatpush1.msra.mxu0 0.0
      %1007 = vmatprep.subr.mxu0 0.0
      %1008 = vmatpush1.msra.mxu0 0.0
      %1009 = vmatprep.subr.mxu0 0.0
      %1010 = vmatpush1.msra.mxu0 0.0
      %1011 = vmatprep.subr.mxu0 0.0
      %1012 = vmatpush1.msra.mxu0 0.0
      %1013 = vmatprep.subr.mxu0 0.0
      %1014 = vmatpush1.msra.mxu0 0.0
      %1015 = vmatprep.subr.mxu0 0.0
      %1016 = vmatpush1.msra.mxu0 0.0
      %1017 = vmatprep.subr.mxu0 0.0
      %1018 = vmatpush1.msra.mxu0 0.0
      %1019 = vmatprep.subr.mxu0 0.0
      %1020 = vmatpush1.msra.mxu0 0.0
      %1021 = vmatprep.subr.mxu0 0.0
      %1022 = vmatpush1.msra.mxu0 0.0
      %1023 = vmatprep.mubr.f32.mxu0 0.0
      %1024 = vmatmul.mubr.f32.gmra.mrb[0].mxu0 %v794
      %v1025 = vpop.f32.mrb[0].mxu0
      %v1026 = vadd.f32 %v957, %v1025
      %v1027 = vpop.f32.mrb[0].mxu0
      %1028 = vdwg.mxu0
      %v1030 = vlaneseq
      %v1031 = vshrl.u32 %v1030, 7
      %v1032 = vsub.s32 0, %v1031
      %v1033 = vrot.slane %v781, %v1032
      %vm1035 = vcmask 64512
      %v1037 = vsel %vm1035, %v866, 0
      %v1040 = vsel %vm1035, %v945, 0
      %1042 = vmatprep.subr.mxu0 0.0
      %1043 = vmatpush1.xpose.msra.mxu0 %v1040
      %1044 = vmatprep.subr.mxu0 0.0
      %1045 = vmatpush1.xpose.msra.mxu0 0.0
      %1046 = vmatprep.subr.mxu0 0.0
      %1047 = vmatpush1.xpose.msra.mxu0 0.0
      %1048 = vmatprep.subr.mxu0 0.0
      %1049 = vmatpush1.xpose.msra.mxu0 0.0
      %1050 = vmatprep.subr.mxu0 0.0
      %1051 = vmatpush1.xpose.msra.mxu0 0.0
      %1052 = vmatprep.subr.mxu0 0.0
      %1053 = vmatpush1.xpose.msra.mxu0 0.0
      %1054 = vmatprep.subr.mxu0 0.0
      %1055 = vmatpush1.xpose.msra.mxu0 0.0
      %1056 = vmatprep.subr.mxu0 0.0
      %1057 = vmatpush1.xpose.msra.mxu0 0.0
      %1058 = vmatprep.subr.mxu0 0.0
      %1059 = vmatpush1.xpose.msra.mxu0 0.0
      %1060 = vmatprep.subr.mxu0 0.0
      %1061 = vmatpush1.xpose.msra.mxu0 0.0
      %1062 = vmatprep.subr.mxu0 0.0
      %1063 = vmatpush1.xpose.msra.mxu0 0.0
      %1064 = vmatprep.subr.mxu0 0.0
      %1065 = vmatpush1.xpose.msra.mxu0 0.0
      %1066 = vmatprep.subr.mxu0 0.0
      %1067 = vmatpush1.xpose.msra.mxu0 0.0
      %1068 = vmatprep.subr.mxu0 0.0
      %1069 = vmatpush1.xpose.msra.mxu0 0.0
      %1070 = vmatprep.subr.mxu0 0.0
      %1071 = vmatpush1.xpose.msra.mxu0 0.0
      %1072 = vmatprep.subr.mxu0 0.0
      %1073 = vmatpush1.xpose.msra.mxu0 0.0
      %1074 = vmatprep.subr.mxu0 0.0
      %1075 = vmatpush1.xpose.msra.mxu0 0.0
      %1076 = vmatprep.subr.mxu0 0.0
      %1077 = vmatpush1.xpose.msra.mxu0 0.0
      %1078 = vmatprep.subr.mxu0 0.0
      %1079 = vmatpush1.xpose.msra.mxu0 0.0
      %1080 = vmatprep.subr.mxu0 0.0
      %1081 = vmatpush1.xpose.msra.mxu0 0.0
      %1082 = vmatprep.subr.mxu0 0.0
      %1083 = vmatpush1.xpose.msra.mxu0 0.0
      %1084 = vmatprep.subr.mxu0 0.0
      %1085 = vmatpush1.xpose.msra.mxu0 0.0
      %1086 = vmatprep.subr.mxu0 0.0
      %1087 = vmatpush1.xpose.msra.mxu0 0.0
      %1088 = vmatprep.subr.mxu0 0.0
      %1089 = vmatpush1.xpose.msra.mxu0 0.0
      %1090 = vmatprep.subr.mxu0 0.0
      %1091 = vmatpush1.xpose.msra.mxu0 0.0
      %1092 = vmatprep.subr.mxu0 0.0
      %1093 = vmatpush1.xpose.msra.mxu0 0.0
      %1094 = vmatprep.subr.mxu0 0.0
      %1095 = vmatpush1.xpose.msra.mxu0 0.0
      %1096 = vmatprep.subr.mxu0 0.0
      %1097 = vmatpush1.xpose.msra.mxu0 0.0
      %1098 = vmatprep.subr.mxu0 0.0
      %1099 = vmatpush1.xpose.msra.mxu0 0.0
      %1100 = vmatprep.subr.mxu0 0.0
      %1101 = vmatpush1.xpose.msra.mxu0 0.0
      %1102 = vmatprep.subr.mxu0 0.0
      %1103 = vmatpush1.xpose.msra.mxu0 0.0
      %1104 = vmatprep.subr.mxu0 0.0
      %1105 = vmatpush1.xpose.msra.mxu0 0.0
      %1106 = vmatprep.mubr.f32.mxu0 0.0
      %1107 = vmatmul.mubr.f32.gmra.mrb[0].mxu0 %v1037
      %v1108 = vpop.f32.mrb[0].mxu0
      %v1109 = vadd.f32 %v1033, %v1108
      %v1110 = vpop.f32.mrb[0].mxu0
      %1111 = vdwg.mxu0
      %v1112 = vsel %vm1035, %v1109, -inf
      %1113 = vmax.xlane.f32.xlu0 %v1112
      %v1114 = vpop.xlane.xlu0 %1113
      %v1115 = vsub.f32 %v1109, %v1114
      %v1116 = vmul.f32 %v1115, 1.442695
      %v1117 = vpow.pop %v1116
      %v1118 = vsel %vm1035, %v1117, 0.0
      %1119 = vadd.xlane.f32.xlu0 %v1118
      %v1120 = vpop.xlane.xlu0 %1119
      %v1121 = vrcp.pop %v1120
      %v1122 = vmul.f32 %v1117, %v1121
      %v1124 = vsel %vm1035, %v1122, 0
      %1126 = vmatprep.subr.mxu0 0.0
      %1127 = vmatpush1.msra.mxu0 %v1026
      %1128 = vmatprep.subr.mxu0 0.0
      %1129 = vmatpush1.msra.mxu0 0.0
      %1130 = vmatprep.subr.mxu0 0.0
      %1131 = vmatpush1.msra.mxu0 0.0
      %1132 = vmatprep.subr.mxu0 0.0
      %1133 = vmatpush1.msra.mxu0 0.0
      %1134 = vmatprep.subr.mxu0 0.0
      %1135 = vmatpush1.msra.mxu0 0.0
      %1136 = vmatprep.subr.mxu0 0.0
      %1137 = vmatpush1.msra.mxu0 0.0
      %1138 = vmatprep.subr.mxu0 0.0
      %1139 = vmatpush1.msra.mxu0 0.0
      %1140 = vmatprep.subr.mxu0 0.0
      %1141 = vmatpush1.msra.mxu0 0.0
      %1142 = vmatprep.subr.mxu0 0.0
      %1143 = vmatpush1.msra.mxu0 0.0
      %1144 = vmatprep.subr.mxu0 0.0
      %1145 = vmatpush1.msra.mxu0 0.0
      %1146 = vmatprep.subr.mxu0 0.0
      %1147 = vmatpush1.msra.mxu0 0.0
      %1148 = vmatprep.subr.mxu0 0.0
      %1149 = vmatpush1.msra.mxu0 0.0
      %1150 = vmatprep.subr.mxu0 0.0
      %1151 = vmatpush1.msra.mxu0 0.0
      %1152 = vmatprep.subr.mxu0 0.0
      %1153 = vmatpush1.msra.mxu0 0.0
      %1154 = vmatprep.subr.mxu0 0.0
      %1155 = vmatpush1.msra.mxu0 0.0
      %1156 = vmatprep.subr.mxu0 0.0
      %1157 = vmatpush1.msra.mxu0 0.0
      %1158 = vmatprep.subr.mxu0 0.0
      %1159 = vmatpush1.msra.mxu0 0.0
      %1160 = vmatprep.subr.mxu0 0.0
      %1161 = vmatpush1.msra.mxu0 0.0
      %1162 = vmatprep.subr.mxu0 0.0
      %1163 = vmatpush1.msra.mxu0 0.0
      %1164 = vmatprep.subr.mxu0 0.0
      %1165 = vmatpush1.msra.mxu0 0.0
      %1166 = vmatprep.subr.mxu0 0.0
      %1167 = vmatpush1.msra.mxu0 0.0
      %1168 = vmatprep.subr.mxu0 0.0
      %1169 = vmatpush1.msra.mxu0 0.0
      %1170 = vmatprep.subr.mxu0 0.0
      %1171 = vmatpush1.msra.mxu0 0.0
      %1172 = vmatprep.subr.mxu0 0.0
      %1173 = vmatpush1.msra.mxu0 0.0
      %1174 = vmatprep.subr.mxu0 0.0
      %1175 = vmatpush1.msra.mxu0 0.0
      %1176 = vmatprep.subr.mxu0 0.0
      %1177 = vmatpush1.msra.mxu0 0.0
      %1178 = vmatprep.subr.mxu0 0.0
      %1179 = vmatpush1.msra.mxu0 0.0
      %1180 = vmatprep.subr.mxu0 0.0
      %1181 = vmatpush1.msra.mxu0 0.0
      %1182 = vmatprep.subr.mxu0 0.0
      %1183 = vmatpush1.msra.mxu0 0.0
      %1184 = vmatprep.subr.mxu0 0.0
      %1185 = vmatpush1.msra.mxu0 0.0
      %1186 = vmatprep.subr.mxu0 0.0
      %1187 = vmatpush1.msra.mxu0 0.0
      %1188 = vmatprep.subr.mxu0 0.0
      %1189 = vmatpush1.msra.mxu0 0.0
      %1190 = vmatprep.mubr.f32.mxu0 0.0
      %1191 = vmatmul.mubr.f32.gmra.mrb[0].mxu0 %v1124
      %v1192 = vpop.f32.mrb[0].mxu0
      %v1193 = vadd.f32 0.0, %v1192
      %v1194 = vpop.f32.mrb[0].mxu0
      %1195 = vdwg.mxu0
      %v1196 = vld [vmem:[%s10] sm:$0xff]
      %s1197 = scalar_lea.vmem %s4, 32
      %v1198 = vld [vmem:[%s1197] sm:$0xff]
      %v1199 = vld [vmem:[%s1197 + $0x8] sm:$0xff]
      %v1200 = vld [vmem:[%s1197 + $0x10] sm:$0xff]
      %v1201 = vld [vmem:[%s1197 + $0x18] sm:$0xff]
      %s1202 = scalar_lea.vmem %s5, 1
      %v1203 = vld [vmem:[%s1202] sm:$0x1]
      %v1205 = vlaneseq
      %v1206 = vshrl.u32 %v1205, 7
      %v1207 = vsub.s32 0, %v1206
      %v1208 = vrot.slane %v1203, %v1207
      %1210 = vmatprep.subr.mxu0 0.0
      %1211 = vmatpush1.msra.mxu0 %v1198
      %1212 = vmatprep.subr.mxu0 0.0
      %1213 = vmatpush1.msra.mxu0 %v1199
      %1214 = vmatprep.subr.mxu0 0.0
      %1215 = vmatpush1.msra.mxu0 %v1200
      %1216 = vmatprep.subr.mxu0 0.0
      %1217 = vmatpush1.msra.mxu0 %v1201
      %1218 = vmatprep.subr.mxu0 0.0
      %1219 = vmatpush1.msra.mxu0 0.0
      %1220 = vmatprep.subr.mxu0 0.0
      %1221 = vmatpush1.msra.mxu0 0.0
      %1222 = vmatprep.subr.mxu0 0.0
      %1223 = vmatpush1.msra.mxu0 0.0
      %1224 = vmatprep.subr.mxu0 0.0
      %1225 = vmatpush1.msra.mxu0 0.0
      %1226 = vmatprep.subr.mxu0 0.0
      %1227 = vmatpush1.msra.mxu0 0.0
      %1228 = vmatprep.subr.mxu0 0.0
      %1229 = vmatpush1.msra.mxu0 0.0
      %1230 = vmatprep.subr.mxu0 0.0
      %1231 = vmatpush1.msra.mxu0 0.0
      %1232 = vmatprep.subr.mxu0 0.0
      %1233 = vmatpush1.msra.mxu0 0.0
      %1234 = vmatprep.subr.mxu0 0.0
      %1235 = vmatpush1.msra.mxu0 0.0
      %1236 = vmatprep.subr.mxu0 0.0
      %1237 = vmatpush1.msra.mxu0 0.0
      %1238 = vmatprep.subr.mxu0 0.0
      %1239 = vmatpush1.msra.mxu0 0.0
      %1240 = vmatprep.subr.mxu0 0.0
      %1241 = vmatpush1.msra.mxu0 0.0
      %1242 = vmatprep.subr.mxu0 0.0
      %1243 = vmatpush1.msra.mxu0 0.0
      %1244 = vmatprep.subr.mxu0 0.0
      %1245 = vmatpush1.msra.mxu0 0.0
      %1246 = vmatprep.subr.mxu0 0.0
      %1247 = vmatpush1.msra.mxu0 0.0
      %1248 = vmatprep.subr.mxu0 0.0
      %1249 = vmatpush1.msra.mxu0 0.0
      %1250 = vmatprep.subr.mxu0 0.0
      %1251 = vmatpush1.msra.mxu0 0.0
      %1252 = vmatprep.subr.mxu0 0.0
      %1253 = vmatpush1.msra.mxu0 0.0
      %1254 = vmatprep.subr.mxu0 0.0
      %1255 = vmatpush1.msra.mxu0 0.0
      %1256 = vmatprep.subr.mxu0 0.0
      %1257 = vmatpush1.msra.mxu0 0.0
      %1258 = vmatprep.subr.mxu0 0.0
      %1259 = vmatpush1.msra.mxu0 0.0
      %1260 = vmatprep.subr.mxu0 0.0
      %1261 = vmatpush1.msra.mxu0 0.0
      %1262 = vmatprep.subr.mxu0 0.0
      %1263 = vmatpush1.msra.mxu0 0.0
      %1264 = vmatprep.subr.mxu0 0.0
      %1265 = vmatpush1.msra.mxu0 0.0
      %1266 = vmatprep.subr.mxu0 0.0
      %1267 = vmatpush1.msra.mxu0 0.0
      %1268 = vmatprep.subr.mxu0 0.0
      %1269 = vmatpush1.msra.mxu0 0.0
      %1270 = vmatprep.subr.mxu0 0.0
      %1271 = vmatpush1.msra.mxu0 0.0
      %1272 = vmatprep.subr.mxu0 0.0
      %1273 = vmatpush1.msra.mxu0 0.0
      %1274 = vmatprep.mubr.f32.mxu0 0.0
      %1275 = vmatmul.mubr.f32.gmra.mrb[0].mxu0 %v794
      %v1276 = vpop.f32.mrb[0].mxu0
      %v1277 = vadd.f32 %v1208, %v1276
      %v1278 = vpop.f32.mrb[0].mxu0
      %1279 = vdwg.mxu0
      %v1280 = vmul.f32 %v1277, 0.35355338
      %s1281 = scalar_lea.vmem %s6, 32
      %v1282 = vld [vmem:[%s1281] sm:$0xff]
      %v1283 = vld [vmem:[%s1281 + $0x8] sm:$0xff]
      %v1284 = vld [vmem:[%s1281 + $0x10] sm:$0xff]
      %v1285 = vld [vmem:[%s1281 + $0x18] sm:$0xff]
      %s1286 = scalar_lea.vmem %s7, 1
      %v1287 = vld [vmem:[%s1286] sm:$0x1]
      %v1289 = vlaneseq
      %v1290 = vshrl.u32 %v1289, 7
      %v1291 = vsub.s32 0, %v1290
      %v1292 = vrot.slane %v1287, %v1291
      %1294 = vmatprep.subr.mxu0 0.0
      %1295 = vmatpush1.msra.mxu0 %v1282
      %1296 = vmatprep.subr.mxu0 0.0
      %1297 = vmatpush1.msra.mxu0 %v1283
      %1298 = vmatprep.subr.mxu0 0.0
      %1299 = vmatpush1.msra.mxu0 %v1284
      %1300 = vmatprep.subr.mxu0 0.0
      %1301 = vmatpush1.msra.mxu0 %v1285
      %1302 = vmatprep.subr.mxu0 0.0
      %1303 = vmatpush1.msra.mxu0 0.0
      %1304 = vmatprep.subr.mxu0 0.0
      %1305 = vmatpush1.msra.mxu0 0.0
      %1306 = vmatprep.subr.mxu0 0.0
      %1307 = vmatpush1.msra.mxu0 0.0
      %1308 = vmatprep.subr.mxu0 0.0
      %1309 = vmatpush1.msra.mxu0 0.0
      %1310 = vmatprep.subr.mxu0 0.0
      %1311 = vmatpush1.msra.mxu0 0.0
      %1312 = vmatprep.subr.mxu0 0.0
      %1313 = vmatpush1.msra.mxu0 0.0
      %1314 = vmatprep.subr.mxu0 0.0
      %1315 = vmatpush1.msra.mxu0 0.0
      %1316 = vmatprep.subr.mxu0 0.0
      %1317 = vmatpush1.msra.mxu0 0.0
      %1318 = vmatprep.subr.mxu0 0.0
      %1319 = vmatpush1.msra.mxu0 0.0
      %1320 = vmatprep.subr.mxu0 0.0
      %1321 = vmatpush1.msra.mxu0 0.0
      %1322 = vmatprep.subr.mxu0 0.0
      %1323 = vmatpush1.msra.mxu0 0.0
      %1324 = vmatprep.subr.mxu0 0.0
      %1325 = vmatpush1.msra.mxu0 0.0
      %1326 = vmatprep.subr.mxu0 0.0
      %1327 = vmatpush1.msra.mxu0 0.0
      %1328 = vmatprep.subr.mxu0 0.0
      %1329 = vmatpush1.msra.mxu0 0.0
      %1330 = vmatprep.subr.mxu0 0.0
      %1331 = vmatpush1.msra.mxu0 0.0
      %1332 = vmatprep.subr.mxu0 0.0
      %1333 = vmatpush1.msra.mxu0 0.0
      %1334 = vmatprep.subr.mxu0 0.0
      %1335 = vmatpush1.msra.mxu0 0.0
      %1336 = vmatprep.subr.mxu0 0.0
      %1337 = vmatpush1.msra.mxu0 0.0
      %1338 = vmatprep.subr.mxu0 0.0
      %1339 = vmatpush1.msra.mxu0 0.0
      %1340 = vmatprep.subr.mxu0 0.0
      %1341 = vmatpush1.msra.mxu0 0.0
      %1342 = vmatprep.subr.mxu0 0.0
      %1343 = vmatpush1.msra.mxu0 0.0
      %1344 = vmatprep.subr.mxu0 0.0
      %1345 = vmatpush1.msra.mxu0 0.0
      %1346 = vmatprep.subr.mxu0 0.0
      %1347 = vmatpush1.msra.mxu0 0.0
      %1348 = vmatprep.subr.mxu0 0.0
      %1349 = vmatpush1.msra.mxu0 0.0
      %1350 = vmatprep.subr.mxu0 0.0
      %1351 = vmatpush1.msra.mxu0 0.0
      %1352 = vmatprep.subr.mxu0 0.0
      %1353 = vmatpush1.msra.mxu0 0.0
      %1354 = vmatprep.subr.mxu0 0.0
      %1355 = vmatpush1.msra.mxu0 0.0
      %1356 = vmatprep.subr.mxu0 0.0
      %1357 = vmatpush1.msra.mxu0 0.0
      %1358 = vmatprep.mubr.f32.mxu0 0.0
      %1359 = vmatmul.mubr.f32.gmra.mrb[0].mxu0 %v794
      %v1360 = vpop.f32.mrb[0].mxu0
      %v1361 = vadd.f32 %v1292, %v1360
      %v1362 = vpop.f32.mrb[0].mxu0
      %1363 = vdwg.mxu0
      %s1364 = scalar_lea.vmem %s8, 32
      %v1365 = vld [vmem:[%s1364] sm:$0xff]
      %v1366 = vld [vmem:[%s1364 + $0x8] sm:$0xff]
      %v1367 = vld [vmem:[%s1364 + $0x10] sm:$0xff]
      %v1368 = vld [vmem:[%s1364 + $0x18] sm:$0xff]
      %s1369 = scalar_lea.vmem %s9, 1
      %v1370 = vld [vmem:[%s1369] sm:$0x1]
      %v1372 = vlaneseq
      %v1373 = vshrl.u32 %v1372, 7
      %v1374 = vsub.s32 0, %v1373
      %v1375 = vrot.slane %v1370, %v1374
      %1377 = vmatprep.subr.mxu0 0.0
      %1378 = vmatpush1.msra.mxu0 %v1365
      %1379 = vmatprep.subr.mxu0 0.0
      %1380 = vmatpush1.msra.mxu0 %v1366
      %1381 = vmatprep.subr.mxu0 0.0
      %1382 = vmatpush1.msra.mxu0 %v1367
      %1383 = vmatprep.subr.mxu0 0.0
      %1384 = vmatpush1.msra.mxu0 %v1368
      %1385 = vmatprep.subr.mxu0 0.0
      %1386 = vmatpush1.msra.mxu0 0.0
      %1387 = vmatprep.subr.mxu0 0.0
      %1388 = vmatpush1.msra.mxu0 0.0
      %1389 = vmatprep.subr.mxu0 0.0
      %1390 = vmatpush1.msra.mxu0 0.0
      %1391 = vmatprep.subr.mxu0 0.0
      %1392 = vmatpush1.msra.mxu0 0.0
      %1393 = vmatprep.subr.mxu0 0.0
      %1394 = vmatpush1.msra.mxu0 0.0
      %1395 = vmatprep.subr.mxu0 0.0
      %1396 = vmatpush1.msra.mxu0 0.0
      %1397 = vmatprep.subr.mxu0 0.0
      %1398 = vmatpush1.msra.mxu0 0.0
      %1399 = vmatprep.subr.mxu0 0.0
      %1400 = vmatpush1.msra.mxu0 0.0
      %1401 = vmatprep.subr.mxu0 0.0
      %1402 = vmatpush1.msra.mxu0 0.0
      %1403 = vmatprep.subr.mxu0 0.0
      %1404 = vmatpush1.msra.mxu0 0.0
      %1405 = vmatprep.subr.mxu0 0.0
      %1406 = vmatpush1.msra.mxu0 0.0
      %1407 = vmatprep.subr.mxu0 0.0
      %1408 = vmatpush1.msra.mxu0 0.0
      %1409 = vmatprep.subr.mxu0 0.0
      %1410 = vmatpush1.msra.mxu0 0.0
      %1411 = vmatprep.subr.mxu0 0.0
      %1412 = vmatpush1.msra.mxu0 0.0
      %1413 = vmatprep.subr.mxu0 0.0
      %1414 = vmatpush1.msra.mxu0 0.0
      %1415 = vmatprep.subr.mxu0 0.0
      %1416 = vmatpush1.msra.mxu0 0.0
      %1417 = vmatprep.subr.mxu0 0.0
      %1418 = vmatpush1.msra.mxu0 0.0
      %1419 = vmatprep.subr.mxu0 0.0
      %1420 = vmatpush1.msra.mxu0 0.0
      %1421 = vmatprep.subr.mxu0 0.0
      %1422 = vmatpush1.msra.mxu0 0.0
      %1423 = vmatprep.subr.mxu0 0.0
      %1424 = vmatpush1.msra.mxu0 0.0
      %1425 = vmatprep.subr.mxu0 0.0
      %1426 = vmatpush1.msra.mxu0 0.0
      %1427 = vmatprep.subr.mxu0 0.0
      %1428 = vmatpush1.msra.mxu0 0.0
      %1429 = vmatprep.subr.mxu0 0.0
      %1430 = vmatpush1.msra.mxu0 0.0
      %1431 = vmatprep.subr.mxu0 0.0
      %1432 = vmatpush1.msra.mxu0 0.0
      %1433 = vmatprep.subr.mxu0 0.0
      %1434 = vmatpush1.msra.mxu0 0.0
      %1435 = vmatprep.subr.mxu0 0.0
      %1436 = vmatpush1.msra.mxu0 0.0
      %1437 = vmatprep.subr.mxu0 0.0
      %1438 = vmatpush1.msra.mxu0 0.0
      %1439 = vmatprep.subr.mxu0 0.0
      %1440 = vmatpush1.msra.mxu0 0.0
      %1441 = vmatprep.mubr.f32.mxu0 0.0
      %1442 = vmatmul.mubr.f32.gmra.mrb[0].mxu0 %v794
      %v1443 = vpop.f32.mrb[0].mxu0
      %v1444 = vadd.f32 %v1375, %v1443
      %v1445 = vpop.f32.mrb[0].mxu0
      %1446 = vdwg.mxu0
      %v1448 = vsel %vm1035, %v1280, 0
      %v1451 = vsel %vm1035, %v1361, 0
      %1453 = vmatprep.subr.mxu0 0.0
      %1454 = vmatpush1.xpose.msra.mxu0 %v1451
      %1455 = vmatprep.subr.mxu0 0.0
      %1456 = vmatpush1.xpose.msra.mxu0 0.0
      %1457 = vmatprep.subr.mxu0 0.0
      %1458 = vmatpush1.xpose.msra.mxu0 0.0
      %1459 = vmatprep.subr.mxu0 0.0
      %1460 = vmatpush1.xpose.msra.mxu0 0.0
      %1461 = vmatprep.subr.mxu0 0.0
      %1462 = vmatpush1.xpose.msra.mxu0 0.0
      %1463 = vmatprep.subr.mxu0 0.0
      %1464 = vmatpush1.xpose.msra.mxu0 0.0
      %1465 = vmatprep.subr.mxu0 0.0
      %1466 = vmatpush1.xpose.msra.mxu0 0.0
      %1467 = vmatprep.subr.mxu0 0.0
      %1468 = vmatpush1.xpose.msra.mxu0 0.0
      %1469 = vmatprep.subr.mxu0 0.0
      %1470 = vmatpush1.xpose.msra.mxu0 0.0
      %1471 = vmatprep.subr.mxu0 0.0
      %1472 = vmatpush1.xpose.msra.mxu0 0.0
      %1473 = vmatprep.subr.mxu0 0.0
      %1474 = vmatpush1.xpose.msra.mxu0 0.0
      %1475 = vmatprep.subr.mxu0 0.0
      %1476 = vmatpush1.xpose.msra.mxu0 0.0
      %1477 = vmatprep.subr.mxu0 0.0
      %1478 = vmatpush1.xpose.msra.mxu0 0.0
      %1479 = vmatprep.subr.mxu0 0.0
      %1480 = vmatpush1.xpose.msra.mxu0 0.0
      %1481 = vmatprep.subr.mxu0 0.0
      %1482 = vmatpush1.xpose.msra.mxu0 0.0
      %1483 = vmatprep.subr.mxu0 0.0
      %1484 = vmatpush1.xpose.msra.mxu0 0.0
      %1485 = vmatprep.subr.mxu0 0.0
      %1486 = vmatpush1.xpose.msra.mxu0 0.0
      %1487 = vmatprep.subr.mxu0 0.0
      %1488 = vmatpush1.xpose.msra.mxu0 0.0
      %1489 = vmatprep.subr.mxu0 0.0
      %1490 = vmatpush1.xpose.msra.mxu0 0.0
      %1491 = vmatprep.subr.mxu0 0.0
      %1492 = vmatpush1.xpose.msra.mxu0 0.0
      %1493 = vmatprep.subr.mxu0 0.0
      %1494 = vmatpush1.xpose.msra.mxu0 0.0
      %1495 = vmatprep.subr.mxu0 0.0
      %1496 = vmatpush1.xpose.msra.mxu0 0.0
      %1497 = vmatprep.subr.mxu0 0.0
      %1498 = vmatpush1.xpose.msra.mxu0 0.0
      %1499 = vmatprep.subr.mxu0 0.0
      %1500 = vmatpush1.xpose.msra.mxu0 0.0
      %1501 = vmatprep.subr.mxu0 0.0
      %1502 = vmatpush1.xpose.msra.mxu0 0.0
      %1503 = vmatprep.subr.mxu0 0.0
      %1504 = vmatpush1.xpose.msra.mxu0 0.0
      %1505 = vmatprep.subr.mxu0 0.0
      %1506 = vmatpush1.xpose.msra.mxu0 0.0
      %1507 = vmatprep.subr.mxu0 0.0
      %1508 = vmatpush1.xpose.msra.mxu0 0.0
      %1509 = vmatprep.subr.mxu0 0.0
      %1510 = vmatpush1.xpose.msra.mxu0 0.0
      %1511 = vmatprep.subr.mxu0 0.0
      %1512 = vmatpush1.xpose.msra.mxu0 0.0
      %1513 = vmatprep.subr.mxu0 0.0
      %1514 = vmatpush1.xpose.msra.mxu0 0.0
      %1515 = vmatprep.subr.mxu0 0.0
      %1516 = vmatpush1.xpose.msra.mxu0 0.0
      %1517 = vmatprep.mubr.f32.mxu0 0.0
      %1518 = vmatmul.mubr.f32.gmra.mrb[0].mxu0 %v1448
      %v1519 = vpop.f32.mrb[0].mxu0
      %v1520 = vadd.f32 %v1033, %v1519
      %v1521 = vpop.f32.mrb[0].mxu0
      %1522 = vdwg.mxu0
      %v1523 = vsel %vm1035, %v1520, -inf
      %1524 = vmax.xlane.f32.xlu0 %v1523
      %v1525 = vpop.xlane.xlu0 %1524
      %v1526 = vsub.f32 %v1520, %v1525
      %v1527 = vmul.f32 %v1526, 1.442695
      %v1528 = vpow.pop %v1527
      %v1529 = vsel %vm1035, %v1528, 0.0
      %1530 = vadd.xlane.f32.xlu0 %v1529
      %v1531 = vpop.xlane.xlu0 %1530
      %v1532 = vrcp.pop %v1531
      %v1533 = vmul.f32 %v1528, %v1532
      %v1535 = vsel %vm1035, %v1533, 0
      %1537 = vmatprep.subr.mxu0 0.0
      %1538 = vmatpush1.msra.mxu0 %v1444
      %1539 = vmatprep.subr.mxu0 0.0
      %1540 = vmatpush1.msra.mxu0 0.0
      %1541 = vmatprep.subr.mxu0 0.0
      %1542 = vmatpush1.msra.mxu0 0.0
      %1543 = vmatprep.subr.mxu0 0.0
      %1544 = vmatpush1.msra.mxu0 0.0
      %1545 = vmatprep.subr.mxu0 0.0
      %1546 = vmatpush1.msra.mxu0 0.0
      %1547 = vmatprep.subr.mxu0 0.0
      %1548 = vmatpush1.msra.mxu0 0.0
      %1549 = vmatprep.subr.mxu0 0.0
      %1550 = vmatpush1.msra.mxu0 0.0
      %1551 = vmatprep.subr.mxu0 0.0
      %1552 = vmatpush1.msra.mxu0 0.0
      %1553 = vmatprep.subr.mxu0 0.0
      %1554 = vmatpush1.msra.mxu0 0.0
      %1555 = vmatprep.subr.mxu0 0.0
      %1556 = vmatpush1.msra.mxu0 0.0
      %1557 = vmatprep.subr.mxu0 0.0
      %1558 = vmatpush1.msra.mxu0 0.0
      %1559 = vmatprep.subr.mxu0 0.0
      %1560 = vmatpush1.msra.mxu0 0.0
      %1561 = vmatprep.subr.mxu0 0.0
      %1562 = vmatpush1.msra.mxu0 0.0
      %1563 = vmatprep.subr.mxu0 0.0
      %1564 = vmatpush1.msra.mxu0 0.0
      %1565 = vmatprep.subr.mxu0 0.0
      %1566 = vmatpush1.msra.mxu0 0.0
      %1567 = vmatprep.subr.mxu0 0.0
      %1568 = vmatpush1.msra.mxu0 0.0
      %1569 = vmatprep.subr.mxu0 0.0
      %1570 = vmatpush1.msra.mxu0 0.0
      %1571 = vmatprep.subr.mxu0 0.0
      %1572 = vmatpush1.msra.mxu0 0.0
      %1573 = vmatprep.subr.mxu0 0.0
      %1574 = vmatpush1.msra.mxu0 0.0
      %1575 = vmatprep.subr.mxu0 0.0
      %1576 = vmatpush1.msra.mxu0 0.0
      %1577 = vmatprep.subr.mxu0 0.0
      %1578 = vmatpush1.msra.mxu0 0.0
      %1579 = vmatprep.subr.mxu0 0.0
      %1580 = vmatpush1.msra.mxu0 0.0
      %1581 = vmatprep.subr.mxu0 0.0
      %1582 = vmatpush1.msra.mxu0 0.0
      %1583 = vmatprep.subr.mxu0 0.0
      %1584 = vmatpush1.msra.mxu0 0.0
      %1585 = vmatprep.subr.mxu0 0.0
      %1586 = vmatpush1.msra.mxu0 0.0
      %1587 = vmatprep.subr.mxu0 0.0
      %1588 = vmatpush1.msra.mxu0 0.0
      %1589 = vmatprep.subr.mxu0 0.0
      %1590 = vmatpush1.msra.mxu0 0.0
      %1591 = vmatprep.subr.mxu0 0.0
      %1592 = vmatpush1.msra.mxu0 0.0
      %1593 = vmatprep.subr.mxu0 0.0
      %1594 = vmatpush1.msra.mxu0 0.0
      %1595 = vmatprep.subr.mxu0 0.0
      %1596 = vmatpush1.msra.mxu0 0.0
      %1597 = vmatprep.subr.mxu0 0.0
      %1598 = vmatpush1.msra.mxu0 0.0
      %1599 = vmatprep.subr.mxu0 0.0
      %1600 = vmatpush1.msra.mxu0 0.0
      %1601 = vmatprep.mubr.f32.mxu0 0.0
      %1602 = vmatmul.mubr.f32.gmra.mrb[0].mxu0 %v1535
      %v1603 = vpop.f32.mrb[0].mxu0
      %v1604 = vadd.f32 0.0, %v1603
      %v1605 = vpop.f32.mrb[0].mxu0
      %1606 = vdwg.mxu0
      %s1607 = scalar_lea.vmem %s10, 8
      %v1608 = vld [vmem:[%s1607] sm:$0xff]
      %v1610 = vsel %vm1035, %v1604, 0
      %1612 = vmatprep.subr.mxu0 0.0
      %1613 = vmatpush1.msra.mxu0 %v1608
      %1614 = vmatprep.subr.mxu0 0.0
      %1615 = vmatpush1.msra.mxu0 0.0
      %1616 = vmatprep.subr.mxu0 0.0
      %1617 = vmatpush1.msra.mxu0 0.0
      %1618 = vmatprep.subr.mxu0 0.0
      %1619 = vmatpush1.msra.mxu0 0.0
      %1620 = vmatprep.subr.mxu0 0.0
      %1621 = vmatpush1.msra.mxu0 0.0
      %1622 = vmatprep.subr.mxu0 0.0
      %1623 = vmatpush1.msra.mxu0 0.0
      %1624 = vmatprep.subr.mxu0 0.0
      %1625 = vmatpush1.msra.mxu0 0.0
      %1626 = vmatprep.subr.mxu0 0.0
      %1627 = vmatpush1.msra.mxu0 0.0
      %1628 = vmatprep.subr.mxu0 0.0
      %1629 = vmatpush1.msra.mxu0 0.0
      %1630 = vmatprep.subr.mxu0 0.0
      %1631 = vmatpush1.msra.mxu0 0.0
      %1632 = vmatprep.subr.mxu0 0.0
      %1633 = vmatpush1.msra.mxu0 0.0
      %1634 = vmatprep.subr.mxu0 0.0
      %1635 = vmatpush1.msra.mxu0 0.0
      %1636 = vmatprep.subr.mxu0 0.0
      %1637 = vmatpush1.msra.mxu0 0.0
      %1638 = vmatprep.subr.mxu0 0.0
      %1639 = vmatpush1.msra.mxu0 0.0
      %1640 = vmatprep.subr.mxu0 0.0
      %1641 = vmatpush1.msra.mxu0 0.0
      %1642 = vmatprep.subr.mxu0 0.0
      %1643 = vmatpush1.msra.mxu0 0.0
      %1644 = vmatprep.subr.mxu0 0.0
      %1645 = vmatpush1.msra.mxu0 0.0
      %1646 = vmatprep.subr.mxu0 0.0
      %1647 = vmatpush1.msra.mxu0 0.0
      %1648 = vmatprep.subr.mxu0 0.0
      %1649 = vmatpush1.msra.mxu0 0.0
      %1650 = vmatprep.subr.mxu0 0.0
      %1651 = vmatpush1.msra.mxu0 0.0
      %1652 = vmatprep.subr.mxu0 0.0
      %1653 = vmatpush1.msra.mxu0 0.0
      %1654 = vmatprep.subr.mxu0 0.0
      %1655 = vmatpush1.msra.mxu0 0.0
      %1656 = vmatprep.subr.mxu0 0.0
      %1657 = vmatpush1.msra.mxu0 0.0
      %1658 = vmatprep.subr.mxu0 0.0
      %1659 = vmatpush1.msra.mxu0 0.0
      %1660 = vmatprep.subr.mxu0 0.0
      %1661 = vmatpush1.msra.mxu0 0.0
      %1662 = vmatprep.subr.mxu0 0.0
      %1663 = vmatpush1.msra.mxu0 0.0
      %1664 = vmatprep.subr.mxu0 0.0
      %1665 = vmatpush1.msra.mxu0 0.0
      %1666 = vmatprep.subr.mxu0 0.0
      %1667 = vmatpush1.msra.mxu0 0.0
      %1668 = vmatprep.subr.mxu0 0.0
      %1669 = vmatpush1.msra.mxu0 0.0
      %1670 = vmatprep.subr.mxu0 0.0
      %1671 = vmatpush1.msra.mxu0 0.0
      %1672 = vmatprep.subr.mxu0 0.0
      %1673 = vmatpush1.msra.mxu0 0.0
      %1674 = vmatprep.subr.mxu0 0.0
      %1675 = vmatpush1.msra.mxu0 0.0
      %1676 = vmatprep.mubr.f32.mxu0 0.0
      %1677 = vmatmul.mubr.f32.gmra.mrb[0].mxu0 %v1610
      %v1678 = vpop.f32.mrb[0].mxu0
      %v1679 = vadd.f32 0.0, %v1678
      %v1680 = vpop.f32.mrb[0].mxu0
      %1681 = vdwg.mxu0
      %v1683 = vsel %vm1035, %v1193, 0
      %1685 = vmatprep.subr.mxu0 0.0
      %1686 = vmatpush1.msra.mxu0 %v1196
      %1687 = vmatprep.subr.mxu0 0.0
      %1688 = vmatpush1.msra.mxu0 0.0
      %1689 = vmatprep.subr.mxu0 0.0
      %1690 = vmatpush1.msra.mxu0 0.0
      %1691 = vmatprep.subr.mxu0 0.0
      %1692 = vmatpush1.msra.mxu0 0.0
      %1693 = vmatprep.subr.mxu0 0.0
      %1694 = vmatpush1.msra.mxu0 0.0
      %1695 = vmatprep.subr.mxu0 0.0
      %1696 = vmatpush1.msra.mxu0 0.0
      %1697 = vmatprep.subr.mxu0 0.0
      %1698 = vmatpush1.msra.mxu0 0.0
      %1699 = vmatprep.subr.mxu0 0.0
      %1700 = vmatpush1.msra.mxu0 0.0
      %1701 = vmatprep.subr.mxu0 0.0
      %1702 = vmatpush1.msra.mxu0 0.0
      %1703 = vmatprep.subr.mxu0 0.0
      %1704 = vmatpush1.msra.mxu0 0.0
      %1705 = vmatprep.subr.mxu0 0.0
      %1706 = vmatpush1.msra.mxu0 0.0
      %1707 = vmatprep.subr.mxu0 0.0
      %1708 = vmatpush1.msra.mxu0 0.0
      %1709 = vmatprep.subr.mxu0 0.0
      %1710 = vmatpush1.msra.mxu0 0.0
      %1711 = vmatprep.subr.mxu0 0.0
      %1712 = vmatpush1.msra.mxu0 0.0
      %1713 = vmatprep.subr.mxu0 0.0
      %1714 = vmatpush1.msra.mxu0 0.0
      %1715 = vmatprep.subr.mxu0 0.0
      %1716 = vmatpush1.msra.mxu0 0.0
      %1717 = vmatprep.subr.mxu0 0.0
      %1718 = vmatpush1.msra.mxu0 0.0
      %1719 = vmatprep.subr.mxu0 0.0
      %1720 = vmatpush1.msra.mxu0 0.0
      %1721 = vmatprep.subr.mxu0 0.0
      %1722 = vmatpush1.msra.mxu0 0.0
      %1723 = vmatprep.subr.mxu0 0.0
      %1724 = vmatpush1.msra.mxu0 0.0
      %1725 = vmatprep.subr.mxu0 0.0
      %1726 = vmatpush1.msra.mxu0 0.0
      %1727 = vmatprep.subr.mxu0 0.0
      %1728 = vmatpush1.msra.mxu0 0.0
      %1729 = vmatprep.subr.mxu0 0.0
      %1730 = vmatpush1.msra.mxu0 0.0
      %1731 = vmatprep.subr.mxu0 0.0
      %1732 = vmatpush1.msra.mxu0 0.0
      %1733 = vmatprep.subr.mxu0 0.0
      %1734 = vmatpush1.msra.mxu0 0.0
      %1735 = vmatprep.subr.mxu0 0.0
      %1736 = vmatpush1.msra.mxu0 0.0
      %1737 = vmatprep.subr.mxu0 0.0
      %1738 = vmatpush1.msra.mxu0 0.0
      %1739 = vmatprep.subr.mxu0 0.0
      %1740 = vmatpush1.msra.mxu0 0.0
      %1741 = vmatprep.subr.mxu0 0.0
      %1742 = vmatpush1.msra.mxu0 0.0
      %1743 = vmatprep.subr.mxu0 0.0
      %1744 = vmatpush1.msra.mxu0 0.0
      %1745 = vmatprep.subr.mxu0 0.0
      %1746 = vmatpush1.msra.mxu0 0.0
      %1747 = vmatprep.subr.mxu0 0.0
      %1748 = vmatpush1.msra.mxu0 0.0
      %1749 = vmatprep.mubr.f32.mxu0 0.0
      %1750 = vmatmul.mubr.f32.gmra.mrb[0].mxu0 %v1683
      %v1751 = vpop.f32.mrb[0].mxu0
      %v1752 = vadd.f32 %v1679, %v1751
      %v1753 = vpop.f32.mrb[0].mxu0
      %1754 = vdwg.mxu0
      %s1755 = scalar_lea.vmem %s4, 64
      %v1756 = vld [vmem:[%s1755] sm:$0xff]
      %v1757 = vld [vmem:[%s1755 + $0x8] sm:$0xff]
      %v1758 = vld [vmem:[%s1755 + $0x10] sm:$0xff]
      %v1759 = vld [vmem:[%s1755 + $0x18] sm:$0xff]
      %s1760 = scalar_lea.vmem %s5, 2
      %v1761 = vld [vmem:[%s1760] sm:$0x1]
      %v1763 = vlaneseq
      %v1764 = vshrl.u32 %v1763, 7
      %v1765 = vsub.s32 0, %v1764
      %v1766 = vrot.slane %v1761, %v1765
      %1768 = vmatprep.subr.mxu0 0.0
      %1769 = vmatpush1.msra.mxu0 %v1756
      %1770 = vmatprep.subr.mxu0 0.0
      %1771 = vmatpush1.msra.mxu0 %v1757
      %1772 = vmatprep.subr.mxu0 0.0
      %1773 = vmatpush1.msra.mxu0 %v1758
      %1774 = vmatprep.subr.mxu0 0.0
      %1775 = vmatpush1.msra.mxu0 %v1759
      %1776 = vmatprep.subr.mxu0 0.0
      %1777 = vmatpush1.msra.mxu0 0.0
      %1778 = vmatprep.subr.mxu0 0.0
      %1779 = vmatpush1.msra.mxu0 0.0
      %1780 = vmatprep.subr.mxu0 0.0
      %1781 = vmatpush1.msra.mxu0 0.0
      %1782 = vmatprep.subr.mxu0 0.0
      %1783 = vmatpush1.msra.mxu0 0.0
      %1784 = vmatprep.subr.mxu0 0.0
      %1785 = vmatpush1.msra.mxu0 0.0
      %1786 = vmatprep.subr.mxu0 0.0
      %1787 = vmatpush1.msra.mxu0 0.0
      %1788 = vmatprep.subr.mxu0 0.0
      %1789 = vmatpush1.msra.mxu0 0.0
      %1790 = vmatprep.subr.mxu0 0.0
      %1791 = vmatpush1.msra.mxu0 0.0
      %1792 = vmatprep.subr.mxu0 0.0
      %1793 = vmatpush1.msra.mxu0 0.0
      %1794 = vmatprep.subr.mxu0 0.0
      %1795 = vmatpush1.msra.mxu0 0.0
      %1796 = vmatprep.subr.mxu0 0.0
      %1797 = vmatpush1.msra.mxu0 0.0
      %1798 = vmatprep.subr.mxu0 0.0
      %1799 = vmatpush1.msra.mxu0 0.0
      %1800 = vmatprep.subr.mxu0 0.0
      %1801 = vmatpush1.msra.mxu0 0.0
      %1802 = vmatprep.subr.mxu0 0.0
      %1803 = vmatpush1.msra.mxu0 0.0
      %1804 = vmatprep.subr.mxu0 0.0
      %1805 = vmatpush1.msra.mxu0 0.0
      %1806 = vmatprep.subr.mxu0 0.0
      %1807 = vmatpush1.msra.mxu0 0.0
      %1808 = vmatprep.subr.mxu0 0.0
      %1809 = vmatpush1.msra.mxu0 0.0
      %1810 = vmatprep.subr.mxu0 0.0
      %1811 = vmatpush1.msra.mxu0 0.0
      %1812 = vmatprep.subr.mxu0 0.0
      %1813 = vmatpush1.msra.mxu0 0.0
      %1814 = vmatprep.subr.mxu0 0.0
      %1815 = vmatpush1.msra.mxu0 0.0
      %1816 = vmatprep.subr.mxu0 0.0
      %1817 = vmatpush1.msra.mxu0 0.0
      %1818 = vmatprep.subr.mxu0 0.0
      %1819 = vmatpush1.msra.mxu0 0.0
      %1820 = vmatprep.subr.mxu0 0.0
      %1821 = vmatpush1.msra.mxu0 0.0
      %1822 = vmatprep.subr.mxu0 0.0
      %1823 = vmatpush1.msra.mxu0 0.0
      %1824 = vmatprep.subr.mxu0 0.0
      %1825 = vmatpush1.msra.mxu0 0.0
      %1826 = vmatprep.subr.mxu0 0.0
      %1827 = vmatpush1.msra.mxu0 0.0
      %1828 = vmatprep.subr.mxu0 0.0
      %1829 = vmatpush1.msra.mxu0 0.0
      %1830 = vmatprep.subr.mxu0 0.0
      %1831 = vmatpush1.msra.mxu0 0.0
      %1832 = vmatprep.mubr.f32.mxu0 0.0
      %1833 = vmatmul.mubr.f32.gmra.mrb[0].mxu0 %v794
      %v1834 = vpop.f32.mrb[0].mxu0
      %v1835 = vadd.f32 %v1766, %v1834
      %v1836 = vpop.f32.mrb[0].mxu0
      %1837 = vdwg.mxu0
      %v1838 = vmul.f32 %v1835, 0.35355338
      %s1839 = scalar_lea.vmem %s6, 64
      %v1840 = vld [vmem:[%s1839] sm:$0xff]
      %v1841 = vld [vmem:[%s1839 + $0x8] sm:$0xff]
      %v1842 = vld [vmem:[%s1839 + $0x10] sm:$0xff]
      %v1843 = vld [vmem:[%s1839 + $0x18] sm:$0xff]
      %s1844 = scalar_lea.vmem %s7, 2
      %v1845 = vld [vmem:[%s1844] sm:$0x1]
      %v1847 = vlaneseq
      %v1848 = vshrl.u32 %v1847, 7
      %v1849 = vsub.s32 0, %v1848
      %v1850 = vrot.slane %v1845, %v1849
      %1852 = vmatprep.subr.mxu0 0.0
      %1853 = vmatpush1.msra.mxu0 %v1840
      %1854 = vmatprep.subr.mxu0 0.0
      %1855 = vmatpush1.msra.mxu0 %v1841
      %1856 = vmatprep.subr.mxu0 0.0
      %1857 = vmatpush1.msra.mxu0 %v1842
      %1858 = vmatprep.subr.mxu0 0.0
      %1859 = vmatpush1.msra.mxu0 %v1843
      %1860 = vmatprep.subr.mxu0 0.0
      %1861 = vmatpush1.msra.mxu0 0.0
      %1862 = vmatprep.subr.mxu0 0.0
      %1863 = vmatpush1.msra.mxu0 0.0
      %1864 = vmatprep.subr.mxu0 0.0
      %1865 = vmatpush1.msra.mxu0 0.0
      %1866 = vmatprep.subr.mxu0 0.0
      %1867 = vmatpush1.msra.mxu0 0.0
      %1868 = vmatprep.subr.mxu0 0.0
      %1869 = vmatpush1.msra.mxu0 0.0
      %1870 = vmatprep.subr.mxu0 0.0
      %1871 = vmatpush1.msra.mxu0 0.0
      %1872 = vmatprep.subr.mxu0 0.0
      %1873 = vmatpush1.msra.mxu0 0.0
      %1874 = vmatprep.subr.mxu0 0.0
      %1875 = vmatpush1.msra.mxu0 0.0
      %1876 = vmatprep.subr.mxu0 0.0
      %1877 = vmatpush1.msra.mxu0 0.0
      %1878 = vmatprep.subr.mxu0 0.0
      %1879 = vmatpush1.msra.mxu0 0.0
      %1880 = vmatprep.subr.mxu0 0.0
      %1881 = vmatpush1.msra.mxu0 0.0
      %1882 = vmatprep.subr.mxu0 0.0
      %1883 = vmatpush1.msra.mxu0 0.0
      %1884 = vmatprep.subr.mxu0 0.0
      %1885 = vmatpush1.msra.mxu0 0.0
      %1886 = vmatprep.subr.mxu0 0.0
      %1887 = vmatpush1.msra.mxu0 0.0
      %1888 = vmatprep.subr.mxu0 0.0
      %1889 = vmatpush1.msra.mxu0 0.0
      %1890 = vmatprep.subr.mxu0 0.0
      %1891 = vmatpush1.msra.mxu0 0.0
      %1892 = vmatprep.subr.mxu0 0.0
      %1893 = vmatpush1.msra.mxu0 0.0
      %1894 = vmatprep.subr.mxu0 0.0
      %1895 = vmatpush1.msra.mxu0 0.0
      %1896 = vmatprep.subr.mxu0 0.0
      %1897 = vmatpush1.msra.mxu0 0.0
      %1898 = vmatprep.subr.mxu0 0.0
      %1899 = vmatpush1.msra.mxu0 0.0
      %1900 = vmatprep.subr.mxu0 0.0
      %1901 = vmatpush1.msra.mxu0 0.0
      %1902 = vmatprep.subr.mxu0 0.0
      %1903 = vmatpush1.msra.mxu0 0.0
      %1904 = vmatprep.subr.mxu0 0.0
      %1905 = vmatpush1.msra.mxu0 0.0
      %1906 = vmatprep.subr.mxu0 0.0
      %1907 = vmatpush1.msra.mxu0 0.0
      %1908 = vmatprep.subr.mxu0 0.0
      %1909 = vmatpush1.msra.mxu0 0.0
      %1910 = vmatprep.subr.mxu0 0.0
      %1911 = vmatpush1.msra.mxu0 0.0
      %1912 = vmatprep.subr.mxu0 0.0
      %1913 = vmatpush1.msra.mxu0 0.0
      %1914 = vmatprep.subr.mxu0 0.0
      %1915 = vmatpush1.msra.mxu0 0.0
      %1916 = vmatprep.mubr.f32.mxu0 0.0
      %1917 = vmatmul.mubr.f32.gmra.mrb[0].mxu0 %v794
      %v1918 = vpop.f32.mrb[0].mxu0
      %v1919 = vadd.f32 %v1850, %v1918
      %v1920 = vpop.f32.mrb[0].mxu0
      %1921 = vdwg.mxu0
      %s1922 = scalar_lea.vmem %s8, 64
      %v1923 = vld [vmem:[%s1922] sm:$0xff]
      %v1924 = vld [vmem:[%s1922 + $0x8] sm:$0xff]
      %v1925 = vld [vmem:[%s1922 + $0x10] sm:$0xff]
      %v1926 = vld [vmem:[%s1922 + $0x18] sm:$0xff]
      %s1927 = scalar_lea.vmem %s9, 2
      %v1928 = vld [vmem:[%s1927] sm:$0x1]
      %v1930 = vlaneseq
      %v1931 = vshrl.u32 %v1930, 7
      %v1932 = vsub.s32 0, %v1931
      %v1933 = vrot.slane %v1928, %v1932
      %1935 = vmatprep.subr.mxu0 0.0
      %1936 = vmatpush1.msra.mxu0 %v1923
      %1937 = vmatprep.subr.mxu0 0.0
      %1938 = vmatpush1.msra.mxu0 %v1924
      %1939 = vmatprep.subr.mxu0 0.0
      %1940 = vmatpush1.msra.mxu0 %v1925
      %1941 = vmatprep.subr.mxu0 0.0
      %1942 = vmatpush1.msra.mxu0 %v1926
      %1943 = vmatprep.subr.mxu0 0.0
      %1944 = vmatpush1.msra.mxu0 0.0
      %1945 = vmatprep.subr.mxu0 0.0
      %1946 = vmatpush1.msra.mxu0 0.0
      %1947 = vmatprep.subr.mxu0 0.0
      %1948 = vmatpush1.msra.mxu0 0.0
      %1949 = vmatprep.subr.mxu0 0.0
      %1950 = vmatpush1.msra.mxu0 0.0
      %1951 = vmatprep.subr.mxu0 0.0
      %1952 = vmatpush1.msra.mxu0 0.0
      %1953 = vmatprep.subr.mxu0 0.0
      %1954 = vmatpush1.msra.mxu0 0.0
      %1955 = vmatprep.subr.mxu0 0.0
      %1956 = vmatpush1.msra.mxu0 0.0
      %1957 = vmatprep.subr.mxu0 0.0
      %1958 = vmatpush1.msra.mxu0 0.0
      %1959 = vmatprep.subr.mxu0 0.0
      %1960 = vmatpush1.msra.mxu0 0.0
      %1961 = vmatprep.subr.mxu0 0.0
      %1962 = vmatpush1.msra.mxu0 0.0
      %1963 = vmatprep.subr.mxu0 0.0
      %1964 = vmatpush1.msra.mxu0 0.0
      %1965 = vmatprep.subr.mxu0 0.0
      %1966 = vmatpush1.msra.mxu0 0.0
      %1967 = vmatprep.subr.mxu0 0.0
      %1968 = vmatpush1.msra.mxu0 0.0
      %1969 = vmatprep.subr.mxu0 0.0
      %1970 = vmatpush1.msra.mxu0 0.0
      %1971 = vmatprep.subr.mxu0 0.0
      %1972 = vmatpush1.msra.mxu0 0.0
      %1973 = vmatprep.subr.mxu0 0.0
      %1974 = vmatpush1.msra.mxu0 0.0
      %1975 = vmatprep.subr.mxu0 0.0
      %1976 = vmatpush1.msra.mxu0 0.0
      %1977 = vmatprep.subr.mxu0 0.0
      %1978 = vmatpush1.msra.mxu0 0.0
      %1979 = vmatprep.subr.mxu0 0.0
      %1980 = vmatpush1.msra.mxu0 0.0
      %1981 = vmatprep.subr.mxu0 0.0
      %1982 = vmatpush1.msra.mxu0 0.0
      %1983 = vmatprep.subr.mxu0 0.0
      %1984 = vmatpush1.msra.mxu0 0.0
      %1985 = vmatprep.subr.mxu0 0.0
      %1986 = vmatpush1.msra.mxu0 0.0
      %1987 = vmatprep.subr.mxu0 0.0
      %1988 = vmatpush1.msra.mxu0 0.0
      %1989 = vmatprep.subr.mxu0 0.0
      %1990 = vmatpush1.msra.mxu0 0.0
      %1991 = vmatprep.subr.mxu0 0.0
      %1992 = vmatpush1.msra.mxu0 0.0
      %1993 = vmatprep.subr.mxu0 0.0
      %1994 = vmatpush1.msra.mxu0 0.0
      %1995 = vmatprep.subr.mxu0 0.0
      %1996 = vmatpush1.msra.mxu0 0.0
      %1997 = vmatprep.subr.mxu0 0.0
      %1998 = vmatpush1.msra.mxu0 0.0
      %1999 = vmatprep.mubr.f32.mxu0 0.0
      %2000 = vmatmul.mubr.f32.gmra.mrb[0].mxu0 %v794
      %v2001 = vpop.f32.mrb[0].mxu0
      %v2002 = vadd.f32 %v1933, %v2001
      %v2003 = vpop.f32.mrb[0].mxu0
      %2004 = vdwg.mxu0
      %v2006 = vsel %vm1035, %v1838, 0
      %v2009 = vsel %vm1035, %v1919, 0
      %2011 = vmatprep.subr.mxu0 0.0
      %2012 = vmatpush1.xpose.msra.mxu0 %v2009
      %2013 = vmatprep.subr.mxu0 0.0
      %2014 = vmatpush1.xpose.msra.mxu0 0.0
      %2015 = vmatprep.subr.mxu0 0.0
      %2016 = vmatpush1.xpose.msra.mxu0 0.0
      %2017 = vmatprep.subr.mxu0 0.0
      %2018 = vmatpush1.xpose.msra.mxu0 0.0
      %2019 = vmatprep.subr.mxu0 0.0
      %2020 = vmatpush1.xpose.msra.mxu0 0.0
      %2021 = vmatprep.subr.mxu0 0.0
      %2022 = vmatpush1.xpose.msra.mxu0 0.0
      %2023 = vmatprep.subr.mxu0 0.0
      %2024 = vmatpush1.xpose.msra.mxu0 0.0
      %2025 = vmatprep.subr.mxu0 0.0
      %2026 = vmatpush1.xpose.msra.mxu0 0.0
      %2027 = vmatprep.subr.mxu0 0.0
      %2028 = vmatpush1.xpose.msra.mxu0 0.0
      %2029 = vmatprep.subr.mxu0 0.0
      %2030 = vmatpush1.xpose.msra.mxu0 0.0
      %2031 = vmatprep.subr.mxu0 0.0
      %2032 = vmatpush1.xpose.msra.mxu0 0.0
      %2033 = vmatprep.subr.mxu0 0.0
      %2034 = vmatpush1.xpose.msra.mxu0 0.0
      %2035 = vmatprep.subr.mxu0 0.0
      %2036 = vmatpush1.xpose.msra.mxu0 0.0
      %2037 = vmatprep.subr.mxu0 0.0
      %2038 = vmatpush1.xpose.msra.mxu0 0.0
      %2039 = vmatprep.subr.mxu0 0.0
      %2040 = vmatpush1.xpose.msra.mxu0 0.0
      %2041 = vmatprep.subr.mxu0 0.0
      %2042 = vmatpush1.xpose.msra.mxu0 0.0
      %2043 = vmatprep.subr.mxu0 0.0
      %2044 = vmatpush1.xpose.msra.mxu0 0.0
      %2045 = vmatprep.subr.mxu0 0.0
      %2046 = vmatpush1.xpose.msra.mxu0 0.0
      %2047 = vmatprep.subr.mxu0 0.0
      %2048 = vmatpush1.xpose.msra.mxu0 0.0
      %2049 = vmatprep.subr.mxu0 0.0
      %2050 = vmatpush1.xpose.msra.mxu0 0.0
      %2051 = vmatprep.subr.mxu0 0.0
      %2052 = vmatpush1.xpose.msra.mxu0 0.0
      %2053 = vmatprep.subr.mxu0 0.0
      %2054 = vmatpush1.xpose.msra.mxu0 0.0
      %2055 = vmatprep.subr.mxu0 0.0
      %2056 = vmatpush1.xpose.msra.mxu0 0.0
      %2057 = vmatprep.subr.mxu0 0.0
      %2058 = vmatpush1.xpose.msra.mxu0 0.0
      %2059 = vmatprep.subr.mxu0 0.0
      %2060 = vmatpush1.xpose.msra.mxu0 0.0
      %2061 = vmatprep.subr.mxu0 0.0
      %2062 = vmatpush1.xpose.msra.mxu0 0.0
      %2063 = vmatprep.subr.mxu0 0.0
      %2064 = vmatpush1.xpose.msra.mxu0 0.0
      %2065 = vmatprep.subr.mxu0 0.0
      %2066 = vmatpush1.xpose.msra.mxu0 0.0
      %2067 = vmatprep.subr.mxu0 0.0
      %2068 = vmatpush1.xpose.msra.mxu0 0.0
      %2069 = vmatprep.subr.mxu0 0.0
      %2070 = vmatpush1.xpose.msra.mxu0 0.0
      %2071 = vmatprep.subr.mxu0 0.0
      %2072 = vmatpush1.xpose.msra.mxu0 0.0
      %2073 = vmatprep.subr.mxu0 0.0
      %2074 = vmatpush1.xpose.msra.mxu0 0.0
      %2075 = vmatprep.mubr.f32.mxu0 0.0
      %2076 = vmatmul.mubr.f32.gmra.mrb[0].mxu0 %v2006
      %v2077 = vpop.f32.mrb[0].mxu0
      %v2078 = vadd.f32 %v1033, %v2077
      %v2079 = vpop.f32.mrb[0].mxu0
      %2080 = vdwg.mxu0
      %v2081 = vsel %vm1035, %v2078, -inf
      %2082 = vmax.xlane.f32.xlu0 %v2081
      %v2083 = vpop.xlane.xlu0 %2082
      %v2084 = vsub.f32 %v2078, %v2083
      %v2085 = vmul.f32 %v2084, 1.442695
      %v2086 = vpow.pop %v2085
      %v2087 = vsel %vm1035, %v2086, 0.0
      %2088 = vadd.xlane.f32.xlu0 %v2087
      %v2089 = vpop.xlane.xlu0 %2088
      %v2090 = vrcp.pop %v2089
      %v2091 = vmul.f32 %v2086, %v2090
      %v2093 = vsel %vm1035, %v2091, 0
      %2095 = vmatprep.subr.mxu0 0.0
      %2096 = vmatpush1.msra.mxu0 %v2002
      %2097 = vmatprep.subr.mxu0 0.0
      %2098 = vmatpush1.msra.mxu0 0.0
      %2099 = vmatprep.subr.mxu0 0.0
      %2100 = vmatpush1.msra.mxu0 0.0
      %2101 = vmatprep.subr.mxu0 0.0
      %2102 = vmatpush1.msra.mxu0 0.0
      %2103 = vmatprep.subr.mxu0 0.0
      %2104 = vmatpush1.msra.mxu0 0.0
      %2105 = vmatprep.subr.mxu0 0.0
      %2106 = vmatpush1.msra.mxu0 0.0
      %2107 = vmatprep.subr.mxu0 0.0
      %2108 = vmatpush1.msra.mxu0 0.0
      %2109 = vmatprep.subr.mxu0 0.0
      %2110 = vmatpush1.msra.mxu0 0.0
      %2111 = vmatprep.subr.mxu0 0.0
      %2112 = vmatpush1.msra.mxu0 0.0
      %2113 = vmatprep.subr.mxu0 0.0
      %2114 = vmatpush1.msra.mxu0 0.0
      %2115 = vmatprep.subr.mxu0 0.0
      %2116 = vmatpush1.msra.mxu0 0.0
      %2117 = vmatprep.subr.mxu0 0.0
      %2118 = vmatpush1.msra.mxu0 0.0
      %2119 = vmatprep.subr.mxu0 0.0
      %2120 = vmatpush1.msra.mxu0 0.0
      %2121 = vmatprep.subr.mxu0 0.0
      %2122 = vmatpush1.msra.mxu0 0.0
      %2123 = vmatprep.subr.mxu0 0.0
      %2124 = vmatpush1.msra.mxu0 0.0
      %2125 = vmatprep.subr.mxu0 0.0
      %2126 = vmatpush1.msra.mxu0 0.0
      %2127 = vmatprep.subr.mxu0 0.0
      %2128 = vmatpush1.msra.mxu0 0.0
      %2129 = vmatprep.subr.mxu0 0.0
      %2130 = vmatpush1.msra.mxu0 0.0
      %2131 = vmatprep.subr.mxu0 0.0
      %2132 = vmatpush1.msra.mxu0 0.0
      %2133 = vmatprep.subr.mxu0 0.0
      %2134 = vmatpush1.msra.mxu0 0.0
      %2135 = vmatprep.subr.mxu0 0.0
      %2136 = vmatpush1.msra.mxu0 0.0
      %2137 = vmatprep.subr.mxu0 0.0
      %2138 = vmatpush1.msra.mxu0 0.0
      %2139 = vmatprep.subr.mxu0 0.0
      %2140 = vmatpush1.msra.mxu0 0.0
      %2141 = vmatprep.subr.mxu0 0.0
      %2142 = vmatpush1.msra.mxu0 0.0
      %2143 = vmatprep.subr.mxu0 0.0
      %2144 = vmatpush1.msra.mxu0 0.0
      %2145 = vmatprep.subr.mxu0 0.0
      %2146 = vmatpush1.msra.mxu0 0.0
      %2147 = vmatprep.subr.mxu0 0.0
      %2148 = vmatpush1.msra.mxu0 0.0
      %2149 = vmatprep.subr.mxu0 0.0
      %2150 = vmatpush1.msra.mxu0 0.0
      %2151 = vmatprep.subr.mxu0 0.0
      %2152 = vmatpush1.msra.mxu0 0.0
      %2153 = vmatprep.subr.mxu0 0.0
      %2154 = vmatpush1.msra.mxu0 0.0
      %2155 = vmatprep.subr.mxu0 0.0
      %2156 = vmatpush1.msra.mxu0 0.0
      %2157 = vmatprep.subr.mxu0 0.0
      %2158 = vmatpush1.msra.mxu0 0.0
      %2159 = vmatprep.mubr.f32.mxu0 0.0
      %2160 = vmatmul.mubr.f32.gmra.mrb[0].mxu0 %v2093
      %v2161 = vpop.f32.mrb[0].mxu0
      %v2162 = vadd.f32 0.0, %v2161
      %v2163 = vpop.f32.mrb[0].mxu0
      %2164 = vdwg.mxu0
      %s2165 = scalar_lea.vmem %s10, 16
      %v2166 = vld [vmem:[%s2165] sm:$0xff]
      %v2168 = vsel %vm1035, %v2162, 0
      %2170 = vmatprep.subr.mxu0 0.0
      %2171 = vmatpush1.msra.mxu0 %v2166
      %2172 = vmatprep.subr.mxu0 0.0
      %2173 = vmatpush1.msra.mxu0 0.0
      %2174 = vmatprep.subr.mxu0 0.0
      %2175 = vmatpush1.msra.mxu0 0.0
      %2176 = vmatprep.subr.mxu0 0.0
      %2177 = vmatpush1.msra.mxu0 0.0
      %2178 = vmatprep.subr.mxu0 0.0
      %2179 = vmatpush1.msra.mxu0 0.0
      %2180 = vmatprep.subr.mxu0 0.0
      %2181 = vmatpush1.msra.mxu0 0.0
      %2182 = vmatprep.subr.mxu0 0.0
      %2183 = vmatpush1.msra.mxu0 0.0
      %2184 = vmatprep.subr.mxu0 0.0
      %2185 = vmatpush1.msra.mxu0 0.0
      %2186 = vmatprep.subr.mxu0 0.0
      %2187 = vmatpush1.msra.mxu0 0.0
      %2188 = vmatprep.subr.mxu0 0.0
      %2189 = vmatpush1.msra.mxu0 0.0
      %2190 = vmatprep.subr.mxu0 0.0
      %2191 = vmatpush1.msra.mxu0 0.0
      %2192 = vmatprep.subr.mxu0 0.0
      %2193 = vmatpush1.msra.mxu0 0.0
      %2194 = vmatprep.subr.mxu0 0.0
      %2195 = vmatpush1.msra.mxu0 0.0
      %2196 = vmatprep.subr.mxu0 0.0
      %2197 = vmatpush1.msra.mxu0 0.0
      %2198 = vmatprep.subr.mxu0 0.0
      %2199 = vmatpush1.msra.mxu0 0.0
      %2200 = vmatprep.subr.mxu0 0.0
      %2201 = vmatpush1.msra.mxu0 0.0
      %2202 = vmatprep.subr.mxu0 0.0
      %2203 = vmatpush1.msra.mxu0 0.0
      %2204 = vmatprep.subr.mxu0 0.0
      %2205 = vmatpush1.msra.mxu0 0.0
      %2206 = vmatprep.subr.mxu0 0.0
      %2207 = vmatpush1.msra.mxu0 0.0
      %2208 = vmatprep.subr.mxu0 0.0
      %2209 = vmatpush1.msra.mxu0 0.0
      %2210 = vmatprep.subr.mxu0 0.0
      %2211 = vmatpush1.msra.mxu0 0.0
      %2212 = vmatprep.subr.mxu0 0.0
      %2213 = vmatpush1.msra.mxu0 0.0
      %2214 = vmatprep.subr.mxu0 0.0
      %2215 = vmatpush1.msra.mxu0 0.0
      %2216 = vmatprep.subr.mxu0 0.0
      %2217 = vmatpush1.msra.mxu0 0.0
      %2218 = vmatprep.subr.mxu0 0.0
      %2219 = vmatpush1.msra.mxu0 0.0
      %2220 = vmatprep.subr.mxu0 0.0
      %2221 = vmatpush1.msra.mxu0 0.0
      %2222 = vmatprep.subr.mxu0 0.0
      %2223 = vmatpush1.msra.mxu0 0.0
      %2224 = vmatprep.subr.mxu0 0.0
      %2225 = vmatpush1.msra.mxu0 0.0
      %2226 = vmatprep.subr.mxu0 0.0
      %2227 = vmatpush1.msra.mxu0 0.0
      %2228 = vmatprep.subr.mxu0 0.0
      %2229 = vmatpush1.msra.mxu0 0.0
      %2230 = vmatprep.subr.mxu0 0.0
      %2231 = vmatpush1.msra.mxu0 0.0
      %2232 = vmatprep.subr.mxu0 0.0
      %2233 = vmatpush1.msra.mxu0 0.0
      %2234 = vmatprep.mubr.f32.mxu0 0.0
      %2235 = vmatmul.mubr.f32.gmra.mrb[0].mxu0 %v2168
      %v2236 = vpop.f32.mrb[0].mxu0
      %v2237 = vadd.f32 0.0, %v2236
      %v2238 = vpop.f32.mrb[0].mxu0
      %2239 = vdwg.mxu0
      %v2240 = vadd.f32 %v1752, %v2237
      %s2241 = scalar_lea.vmem %s4, 96
      %v2242 = vld [vmem:[%s2241] sm:$0xff]
      %v2243 = vld [vmem:[%s2241 + $0x8] sm:$0xff]
      %v2244 = vld [vmem:[%s2241 + $0x10] sm:$0xff]
      %v2245 = vld [vmem:[%s2241 + $0x18] sm:$0xff]
      %s2246 = scalar_lea.vmem %s5, 3
      %v2247 = vld [vmem:[%s2246] sm:$0x1]
      %v2249 = vlaneseq
      %v2250 = vshrl.u32 %v2249, 7
      %v2251 = vsub.s32 0, %v2250
      %v2252 = vrot.slane %v2247, %v2251
      %2254 = vmatprep.subr.mxu0 0.0
      %2255 = vmatpush1.msra.mxu0 %v2242
      %2256 = vmatprep.subr.mxu0 0.0
      %2257 = vmatpush1.msra.mxu0 %v2243
      %2258 = vmatprep.subr.mxu0 0.0
      %2259 = vmatpush1.msra.mxu0 %v2244
      %2260 = vmatprep.subr.mxu0 0.0
      %2261 = vmatpush1.msra.mxu0 %v2245
      %2262 = vmatprep.subr.mxu0 0.0
      %2263 = vmatpush1.msra.mxu0 0.0
      %2264 = vmatprep.subr.mxu0 0.0
      %2265 = vmatpush1.msra.mxu0 0.0
      %2266 = vmatprep.subr.mxu0 0.0
      %2267 = vmatpush1.msra.mxu0 0.0
      %2268 = vmatprep.subr.mxu0 0.0
      %2269 = vmatpush1.msra.mxu0 0.0
      %2270 = vmatprep.subr.mxu0 0.0
      %2271 = vmatpush1.msra.mxu0 0.0
      %2272 = vmatprep.subr.mxu0 0.0
      %2273 = vmatpush1.msra.mxu0 0.0
      %2274 = vmatprep.subr.mxu0 0.0
      %2275 = vmatpush1.msra.mxu0 0.0
      %2276 = vmatprep.subr.mxu0 0.0
      %2277 = vmatpush1.msra.mxu0 0.0
      %2278 = vmatprep.subr.mxu0 0.0
      %2279 = vmatpush1.msra.mxu0 0.0
      %2280 = vmatprep.subr.mxu0 0.0
      %2281 = vmatpush1.msra.mxu0 0.0
      %2282 = vmatprep.subr.mxu0 0.0
      %2283 = vmatpush1.msra.mxu0 0.0
      %2284 = vmatprep.subr.mxu0 0.0
      %2285 = vmatpush1.msra.mxu0 0.0
      %2286 = vmatprep.subr.mxu0 0.0
      %2287 = vmatpush1.msra.mxu0 0.0
      %2288 = vmatprep.subr.mxu0 0.0
      %2289 = vmatpush1.msra.mxu0 0.0
      %2290 = vmatprep.subr.mxu0 0.0
      %2291 = vmatpush1.msra.mxu0 0.0
      %2292 = vmatprep.subr.mxu0 0.0
      %2293 = vmatpush1.msra.mxu0 0.0
      %2294 = vmatprep.subr.mxu0 0.0
      %2295 = vmatpush1.msra.mxu0 0.0
      %2296 = vmatprep.subr.mxu0 0.0
      %2297 = vmatpush1.msra.mxu0 0.0
      %2298 = vmatprep.subr.mxu0 0.0
      %2299 = vmatpush1.msra.mxu0 0.0
      %2300 = vmatprep.subr.mxu0 0.0
      %2301 = vmatpush1.msra.mxu0 0.0
      %2302 = vmatprep.subr.mxu0 0.0
      %2303 = vmatpush1.msra.mxu0 0.0
      %2304 = vmatprep.subr.mxu0 0.0
      %2305 = vmatpush1.msra.mxu0 0.0
      %2306 = vmatprep.subr.mxu0 0.0
      %2307 = vmatpush1.msra.mxu0 0.0
      %2308 = vmatprep.subr.mxu0 0.0
      %2309 = vmatpush1.msra.mxu0 0.0
      %2310 = vmatprep.subr.mxu0 0.0
      %2311 = vmatpush1.msra.mxu0 0.0
      %2312 = vmatprep.subr.mxu0 0.0
      %2313 = vmatpush1.msra.mxu0 0.0
      %2314 = vmatprep.subr.mxu0 0.0
      %2315 = vmatpush1.msra.mxu0 0.0
      %2316 = vmatprep.subr.mxu0 0.0
      %2317 = vmatpush1.msra.mxu0 0.0
      %2318 = vmatprep.mubr.f32.mxu0 0.0
      %2319 = vmatmul.mubr.f32.gmra.mrb[0].mxu0 %v794
      %v2320 = vpop.f32.mrb[0].mxu0
      %v2321 = vadd.f32 %v2252, %v2320
      %v2322 = vpop.f32.mrb[0].mxu0
      %2323 = vdwg.mxu0
      %v2324 = vmul.f32 %v2321, 0.35355338
      %s2325 = scalar_lea.vmem %s6, 96
      %v2326 = vld [vmem:[%s2325] sm:$0xff]
      %v2327 = vld [vmem:[%s2325 + $0x8] sm:$0xff]
      %v2328 = vld [vmem:[%s2325 + $0x10] sm:$0xff]
      %v2329 = vld [vmem:[%s2325 + $0x18] sm:$0xff]
      %s2330 = scalar_lea.vmem %s7, 3
      %v2331 = vld [vmem:[%s2330] sm:$0x1]
      %v2333 = vlaneseq
      %v2334 = vshrl.u32 %v2333, 7
      %v2335 = vsub.s32 0, %v2334
      %v2336 = vrot.slane %v2331, %v2335
      %2338 = vmatprep.subr.mxu0 0.0
      %2339 = vmatpush1.msra.mxu0 %v2326
      %2340 = vmatprep.subr.mxu0 0.0
      %2341 = vmatpush1.msra.mxu0 %v2327
      %2342 = vmatprep.subr.mxu0 0.0
      %2343 = vmatpush1.msra.mxu0 %v2328
      %2344 = vmatprep.subr.mxu0 0.0
      %2345 = vmatpush1.msra.mxu0 %v2329
      %2346 = vmatprep.subr.mxu0 0.0
      %2347 = vmatpush1.msra.mxu0 0.0
      %2348 = vmatprep.subr.mxu0 0.0
      %2349 = vmatpush1.msra.mxu0 0.0
      %2350 = vmatprep.subr.mxu0 0.0
      %2351 = vmatpush1.msra.mxu0 0.0
      %2352 = vmatprep.subr.mxu0 0.0
      %2353 = vmatpush1.msra.mxu0 0.0
      %2354 = vmatprep.subr.mxu0 0.0
      %2355 = vmatpush1.msra.mxu0 0.0
      %2356 = vmatprep.subr.mxu0 0.0
      %2357 = vmatpush1.msra.mxu0 0.0
      %2358 = vmatprep.subr.mxu0 0.0
      %2359 = vmatpush1.msra.mxu0 0.0
      %2360 = vmatprep.subr.mxu0 0.0
      %2361 = vmatpush1.msra.mxu0 0.0
      %2362 = vmatprep.subr.mxu0 0.0
      %2363 = vmatpush1.msra.mxu0 0.0
      %2364 = vmatprep.subr.mxu0 0.0
      %2365 = vmatpush1.msra.mxu0 0.0
      %2366 = vmatprep.subr.mxu0 0.0
      %2367 = vmatpush1.msra.mxu0 0.0
      %2368 = vmatprep.subr.mxu0 0.0
      %2369 = vmatpush1.msra.mxu0 0.0
      %2370 = vmatprep.subr.mxu0 0.0
      %2371 = vmatpush1.msra.mxu0 0.0
      %2372 = vmatprep.subr.mxu0 0.0
      %2373 = vmatpush1.msra.mxu0 0.0
      %2374 = vmatprep.subr.mxu0 0.0
      %2375 = vmatpush1.msra.mxu0 0.0
      %2376 = vmatprep.subr.mxu0 0.0
      %2377 = vmatpush1.msra.mxu0 0.0
      %2378 = vmatprep.subr.mxu0 0.0
      %2379 = vmatpush1.msra.mxu0 0.0
      %2380 = vmatprep.subr.mxu0 0.0
      %2381 = vmatpush1.msra.mxu0 0.0
      %2382 = vmatprep.subr.mxu0 0.0
      %2383 = vmatpush1.msra.mxu0 0.0
      %2384 = vmatprep.subr.mxu0 0.0
      %2385 = vmatpush1.msra.mxu0 0.0
      %2386 = vmatprep.subr.mxu0 0.0
      %2387 = vmatpush1.msra.mxu0 0.0
      %2388 = vmatprep.subr.mxu0 0.0
      %2389 = vmatpush1.msra.mxu0 0.0
      %2390 = vmatprep.subr.mxu0 0.0
      %2391 = vmatpush1.msra.mxu0 0.0
      %2392 = vmatprep.subr.mxu0 0.0
      %2393 = vmatpush1.msra.mxu0 0.0
      %2394 = vmatprep.subr.mxu0 0.0
      %2395 = vmatpush1.msra.mxu0 0.0
      %2396 = vmatprep.subr.mxu0 0.0
      %2397 = vmatpush1.msra.mxu0 0.0
      %2398 = vmatprep.subr.mxu0 0.0
      %2399 = vmatpush1.msra.mxu0 0.0
      %2400 = vmatprep.subr.mxu0 0.0
      %2401 = vmatpush1.msra.mxu0 0.0
      %2402 = vmatprep.mubr.f32.mxu0 0.0
      %2403 = vmatmul.mubr.f32.gmra.mrb[0].mxu0 %v794
      %v2404 = vpop.f32.mrb[0].mxu0
      %v2405 = vadd.f32 %v2336, %v2404
      %v2406 = vpop.f32.mrb[0].mxu0
      %2407 = vdwg.mxu0
      %s2408 = scalar_lea.vmem %s8, 96
      %v2409 = vld [vmem:[%s2408] sm:$0xff]
      %v2410 = vld [vmem:[%s2408 + $0x8] sm:$0xff]
      %v2411 = vld [vmem:[%s2408 + $0x10] sm:$0xff]
      %v2412 = vld [vmem:[%s2408 + $0x18] sm:$0xff]
      %s2413 = scalar_lea.vmem %s9, 3
      %v2414 = vld [vmem:[%s2413] sm:$0x1]
      %v2416 = vlaneseq
      %v2417 = vshrl.u32 %v2416, 7
      %v2418 = vsub.s32 0, %v2417
      %v2419 = vrot.slane %v2414, %v2418
      %2421 = vmatprep.subr.mxu0 0.0
      %2422 = vmatpush1.msra.mxu0 %v2409
      %2423 = vmatprep.subr.mxu0 0.0
      %2424 = vmatpush1.msra.mxu0 %v2410
      %2425 = vmatprep.subr.mxu0 0.0
      %2426 = vmatpush1.msra.mxu0 %v2411
      %2427 = vmatprep.subr.mxu0 0.0
      %2428 = vmatpush1.msra.mxu0 %v2412
      %2429 = vmatprep.subr.mxu0 0.0
      %2430 = vmatpush1.msra.mxu0 0.0
      %2431 = vmatprep.subr.mxu0 0.0
      %2432 = vmatpush1.msra.mxu0 0.0
      %2433 = vmatprep.subr.mxu0 0.0
      %2434 = vmatpush1.msra.mxu0 0.0
      %2435 = vmatprep.subr.mxu0 0.0
      %2436 = vmatpush1.msra.mxu0 0.0
      %2437 = vmatprep.subr.mxu0 0.0
      %2438 = vmatpush1.msra.mxu0 0.0
      %2439 = vmatprep.subr.mxu0 0.0
      %2440 = vmatpush1.msra.mxu0 0.0
      %2441 = vmatprep.subr.mxu0 0.0
      %2442 = vmatpush1.msra.mxu0 0.0
      %2443 = vmatprep.subr.mxu0 0.0
      %2444 = vmatpush1.msra.mxu0 0.0
      %2445 = vmatprep.subr.mxu0 0.0
      %2446 = vmatpush1.msra.mxu0 0.0
      %2447 = vmatprep.subr.mxu0 0.0
      %2448 = vmatpush1.msra.mxu0 0.0
      %2449 = vmatprep.subr.mxu0 0.0
      %2450 = vmatpush1.msra.mxu0 0.0
      %2451 = vmatprep.subr.mxu0 0.0
      %2452 = vmatpush1.msra.mxu0 0.0
      %2453 = vmatprep.subr.mxu0 0.0
      %2454 = vmatpush1.msra.mxu0 0.0
      %2455 = vmatprep.subr.mxu0 0.0
      %2456 = vmatpush1.msra.mxu0 0.0
      %2457 = vmatprep.subr.mxu0 0.0
      %2458 = vmatpush1.msra.mxu0 0.0
      %2459 = vmatprep.subr.mxu0 0.0
      %2460 = vmatpush1.msra.mxu0 0.0
      %2461 = vmatprep.subr.mxu0 0.0
      %2462 = vmatpush1.msra.mxu0 0.0
      %2463 = vmatprep.subr.mxu0 0.0
      %2464 = vmatpush1.msra.mxu0 0.0
      %2465 = vmatprep.subr.mxu0 0.0
      %2466 = vmatpush1.msra.mxu0 0.0
      %2467 = vmatprep.subr.mxu0 0.0
      %2468 = vmatpush1.msra.mxu0 0.0
      %2469 = vmatprep.subr.mxu0 0.0
      %2470 = vmatpush1.msra.mxu0 0.0
      %2471 = vmatprep.subr.mxu0 0.0
      %2472 = vmatpush1.msra.mxu0 0.0
      %2473 = vmatprep.subr.mxu0 0.0
      %2474 = vmatpush1.msra.mxu0 0.0
      %2475 = vmatprep.subr.mxu0 0.0
      %2476 = vmatpush1.msra.mxu0 0.0
      %2477 = vmatprep.subr.mxu0 0.0
      %2478 = vmatpush1.msra.mxu0 0.0
      %2479 = vmatprep.subr.mxu0 0.0
      %2480 = vmatpush1.msra.mxu0 0.0
      %2481 = vmatprep.subr.mxu0 0.0
      %2482 = vmatpush1.msra.mxu0 0.0
      %2483 = vmatprep.subr.mxu0 0.0
      %2484 = vmatpush1.msra.mxu0 0.0
      %2485 = vmatprep.mubr.f32.mxu0 0.0
      %2486 = vmatmul.mubr.f32.gmra.mrb[0].mxu0 %v794
      %v2487 = vpop.f32.mrb[0].mxu0
      %v2488 = vadd.f32 %v2419, %v2487
      %v2489 = vpop.f32.mrb[0].mxu0
      %2490 = vdwg.mxu0
      %v2492 = vsel %vm1035, %v2324, 0
      %v2495 = vsel %vm1035, %v2405, 0
      %2497 = vmatprep.subr.mxu0 0.0
      %2498 = vmatpush1.xpose.msra.mxu0 %v2495
      %2499 = vmatprep.subr.mxu0 0.0
      %2500 = vmatpush1.xpose.msra.mxu0 0.0
      %2501 = vmatprep.subr.mxu0 0.0
      %2502 = vmatpush1.xpose.msra.mxu0 0.0
      %2503 = vmatprep.subr.mxu0 0.0
      %2504 = vmatpush1.xpose.msra.mxu0 0.0
      %2505 = vmatprep.subr.mxu0 0.0
      %2506 = vmatpush1.xpose.msra.mxu0 0.0
      %2507 = vmatprep.subr.mxu0 0.0
      %2508 = vmatpush1.xpose.msra.mxu0 0.0
      %2509 = vmatprep.subr.mxu0 0.0
      %2510 = vmatpush1.xpose.msra.mxu0 0.0
      %2511 = vmatprep.subr.mxu0 0.0
      %2512 = vmatpush1.xpose.msra.mxu0 0.0
      %2513 = vmatprep.subr.mxu0 0.0
      %2514 = vmatpush1.xpose.msra.mxu0 0.0
      %2515 = vmatprep.subr.mxu0 0.0
      %2516 = vmatpush1.xpose.msra.mxu0 0.0
      %2517 = vmatprep.subr.mxu0 0.0
      %2518 = vmatpush1.xpose.msra.mxu0 0.0
      %2519 = vmatprep.subr.mxu0 0.0
      %2520 = vmatpush1.xpose.msra.mxu0 0.0
      %2521 = vmatprep.subr.mxu0 0.0
      %2522 = vmatpush1.xpose.msra.mxu0 0.0
      %2523 = vmatprep.subr.mxu0 0.0
      %2524 = vmatpush1.xpose.msra.mxu0 0.0
      %2525 = vmatprep.subr.mxu0 0.0
      %2526 = vmatpush1.xpose.msra.mxu0 0.0
      %2527 = vmatprep.subr.mxu0 0.0
      %2528 = vmatpush1.xpose.msra.mxu0 0.0
      %2529 = vmatprep.subr.mxu0 0.0
      %2530 = vmatpush1.xpose.msra.mxu0 0.0
      %2531 = vmatprep.subr.mxu0 0.0
      %2532 = vmatpush1.xpose.msra.mxu0 0.0
      %2533 = vmatprep.subr.mxu0 0.0
      %2534 = vmatpush1.xpose.msra.mxu0 0.0
      %2535 = vmatprep.subr.mxu0 0.0
      %2536 = vmatpush1.xpose.msra.mxu0 0.0
      %2537 = vmatprep.subr.mxu0 0.0
      %2538 = vmatpush1.xpose.msra.mxu0 0.0
      %2539 = vmatprep.subr.mxu0 0.0
      %2540 = vmatpush1.xpose.msra.mxu0 0.0
      %2541 = vmatprep.subr.mxu0 0.0
      %2542 = vmatpush1.xpose.msra.mxu0 0.0
      %2543 = vmatprep.subr.mxu0 0.0
      %2544 = vmatpush1.xpose.msra.mxu0 0.0
      %2545 = vmatprep.subr.mxu0 0.0
      %2546 = vmatpush1.xpose.msra.mxu0 0.0
      %2547 = vmatprep.subr.mxu0 0.0
      %2548 = vmatpush1.xpose.msra.mxu0 0.0
      %2549 = vmatprep.subr.mxu0 0.0
      %2550 = vmatpush1.xpose.msra.mxu0 0.0
      %2551 = vmatprep.subr.mxu0 0.0
      %2552 = vmatpush1.xpose.msra.mxu0 0.0
      %2553 = vmatprep.subr.mxu0 0.0
      %2554 = vmatpush1.xpose.msra.mxu0 0.0
      %2555 = vmatprep.subr.mxu0 0.0
      %2556 = vmatpush1.xpose.msra.mxu0 0.0
      %2557 = vmatprep.subr.mxu0 0.0
      %2558 = vmatpush1.xpose.msra.mxu0 0.0
      %2559 = vmatprep.subr.mxu0 0.0
      %2560 = vmatpush1.xpose.msra.mxu0 0.0
      %2561 = vmatprep.mubr.f32.mxu0 0.0
      %2562 = vmatmul.mubr.f32.gmra.mrb[0].mxu0 %v2492
      %v2563 = vpop.f32.mrb[0].mxu0
      %v2564 = vadd.f32 %v1033, %v2563
      %v2565 = vpop.f32.mrb[0].mxu0
      %2566 = vdwg.mxu0
      %v2567 = vsel %vm1035, %v2564, -inf
      %2568 = vmax.xlane.f32.xlu0 %v2567
      %v2569 = vpop.xlane.xlu0 %2568
      %v2570 = vsub.f32 %v2564, %v2569
      %v2571 = vmul.f32 %v2570, 1.442695
      %v2572 = vpow.pop %v2571
      %v2573 = vsel %vm1035, %v2572, 0.0
      %2574 = vadd.xlane.f32.xlu0 %v2573
      %v2575 = vpop.xlane.xlu0 %2574
      %v2576 = vrcp.pop %v2575
      %v2577 = vmul.f32 %v2572, %v2576
      %v2579 = vsel %vm1035, %v2577, 0
      %2581 = vmatprep.subr.mxu0 0.0
      %2582 = vmatpush1.msra.mxu0 %v2488
      %2583 = vmatprep.subr.mxu0 0.0
      %2584 = vmatpush1.msra.mxu0 0.0
      %2585 = vmatprep.subr.mxu0 0.0
      %2586 = vmatpush1.msra.mxu0 0.0
      %2587 = vmatprep.subr.mxu0 0.0
      %2588 = vmatpush1.msra.mxu0 0.0
      %2589 = vmatprep.subr.mxu0 0.0
      %2590 = vmatpush1.msra.mxu0 0.0
      %2591 = vmatprep.subr.mxu0 0.0
      %2592 = vmatpush1.msra.mxu0 0.0
      %2593 = vmatprep.subr.mxu0 0.0
      %2594 = vmatpush1.msra.mxu0 0.0
      %2595 = vmatprep.subr.mxu0 0.0
      %2596 = vmatpush1.msra.mxu0 0.0
      %2597 = vmatprep.subr.mxu0 0.0
      %2598 = vmatpush1.msra.mxu0 0.0
      %2599 = vmatprep.subr.mxu0 0.0
      %2600 = vmatpush1.msra.mxu0 0.0
      %2601 = vmatprep.subr.mxu0 0.0
      %2602 = vmatpush1.msra.mxu0 0.0
      %2603 = vmatprep.subr.mxu0 0.0
      %2604 = vmatpush1.msra.mxu0 0.0
      %2605 = vmatprep.subr.mxu0 0.0
      %2606 = vmatpush1.msra.mxu0 0.0
      %2607 = vmatprep.subr.mxu0 0.0
      %2608 = vmatpush1.msra.mxu0 0.0
      %2609 = vmatprep.subr.mxu0 0.0
      %2610 = vmatpush1.msra.mxu0 0.0
      %2611 = vmatprep.subr.mxu0 0.0
      %2612 = vmatpush1.msra.mxu0 0.0
      %2613 = vmatprep.subr.mxu0 0.0
      %2614 = vmatpush1.msra.mxu0 0.0
      %2615 = vmatprep.subr.mxu0 0.0
      %2616 = vmatpush1.msra.mxu0 0.0
      %2617 = vmatprep.subr.mxu0 0.0
      %2618 = vmatpush1.msra.mxu0 0.0
      %2619 = vmatprep.subr.mxu0 0.0
      %2620 = vmatpush1.msra.mxu0 0.0
      %2621 = vmatprep.subr.mxu0 0.0
      %2622 = vmatpush1.msra.mxu0 0.0
      %2623 = vmatprep.subr.mxu0 0.0
      %2624 = vmatpush1.msra.mxu0 0.0
      %2625 = vmatprep.subr.mxu0 0.0
      %2626 = vmatpush1.msra.mxu0 0.0
      %2627 = vmatprep.subr.mxu0 0.0
      %2628 = vmatpush1.msra.mxu0 0.0
      %2629 = vmatprep.subr.mxu0 0.0
      %2630 = vmatpush1.msra.mxu0 0.0
      %2631 = vmatprep.subr.mxu0 0.0
      %2632 = vmatpush1.msra.mxu0 0.0
      %2633 = vmatprep.subr.mxu0 0.0
      %2634 = vmatpush1.msra.mxu0 0.0
      %2635 = vmatprep.subr.mxu0 0.0
      %2636 = vmatpush1.msra.mxu0 0.0
      %2637 = vmatprep.subr.mxu0 0.0
      %2638 = vmatpush1.msra.mxu0 0.0
      %2639 = vmatprep.subr.mxu0 0.0
      %2640 = vmatpush1.msra.mxu0 0.0
      %2641 = vmatprep.subr.mxu0 0.0
      %2642 = vmatpush1.msra.mxu0 0.0
      %2643 = vmatprep.subr.mxu0 0.0
      %2644 = vmatpush1.msra.mxu0 0.0
      %2645 = vmatprep.mubr.f32.mxu0 0.0
      %2646 = vmatmul.mubr.f32.gmra.mrb[0].mxu0 %v2579
      %v2647 = vpop.f32.mrb[0].mxu0
      %v2648 = vadd.f32 0.0, %v2647
      %v2649 = vpop.f32.mrb[0].mxu0
      %2650 = vdwg.mxu0
      %s2651 = scalar_lea.vmem %s10, 24
      %v2652 = vld [vmem:[%s2651] sm:$0xff]
      %v2654 = vsel %vm1035, %v2648, 0
      %2656 = vmatprep.subr.mxu0 0.0
      %2657 = vmatpush1.msra.mxu0 %v2652
      %2658 = vmatprep.subr.mxu0 0.0
      %2659 = vmatpush1.msra.mxu0 0.0
      %2660 = vmatprep.subr.mxu0 0.0
      %2661 = vmatpush1.msra.mxu0 0.0
      %2662 = vmatprep.subr.mxu0 0.0
      %2663 = vmatpush1.msra.mxu0 0.0
      %2664 = vmatprep.subr.mxu0 0.0
      %2665 = vmatpush1.msra.mxu0 0.0
      %2666 = vmatprep.subr.mxu0 0.0
      %2667 = vmatpush1.msra.mxu0 0.0
      %2668 = vmatprep.subr.mxu0 0.0
      %2669 = vmatpush1.msra.mxu0 0.0
      %2670 = vmatprep.subr.mxu0 0.0
      %2671 = vmatpush1.msra.mxu0 0.0
      %2672 = vmatprep.subr.mxu0 0.0
      %2673 = vmatpush1.msra.mxu0 0.0
      %2674 = vmatprep.subr.mxu0 0.0
      %2675 = vmatpush1.msra.mxu0 0.0
      %2676 = vmatprep.subr.mxu0 0.0
      %2677 = vmatpush1.msra.mxu0 0.0
      %2678 = vmatprep.subr.mxu0 0.0
      %2679 = vmatpush1.msra.mxu0 0.0
      %2680 = vmatprep.subr.mxu0 0.0
      %2681 = vmatpush1.msra.mxu0 0.0
      %2682 = vmatprep.subr.mxu0 0.0
      %2683 = vmatpush1.msra.mxu0 0.0
      %2684 = vmatprep.subr.mxu0 0.0
      %2685 = vmatpush1.msra.mxu0 0.0
      %2686 = vmatprep.subr.mxu0 0.0
      %2687 = vmatpush1.msra.mxu0 0.0
      %2688 = vmatprep.subr.mxu0 0.0
      %2689 = vmatpush1.msra.mxu0 0.0
      %2690 = vmatprep.subr.mxu0 0.0
      %2691 = vmatpush1.msra.mxu0 0.0
      %2692 = vmatprep.subr.mxu0 0.0
      %2693 = vmatpush1.msra.mxu0 0.0
      %2694 = vmatprep.subr.mxu0 0.0
      %2695 = vmatpush1.msra.mxu0 0.0
      %2696 = vmatprep.subr.mxu0 0.0
      %2697 = vmatpush1.msra.mxu0 0.0
      %2698 = vmatprep.subr.mxu0 0.0
      %2699 = vmatpush1.msra.mxu0 0.0
      %2700 = vmatprep.subr.mxu0 0.0
      %2701 = vmatpush1.msra.mxu0 0.0
      %2702 = vmatprep.subr.mxu0 0.0
      %2703 = vmatpush1.msra.mxu0 0.0
      %2704 = vmatprep.subr.mxu0 0.0
      %2705 = vmatpush1.msra.mxu0 0.0
      %2706 = vmatprep.subr.mxu0 0.0
      %2707 = vmatpush1.msra.mxu0 0.0
      %2708 = vmatprep.subr.mxu0 0.0
      %2709 = vmatpush1.msra.mxu0 0.0
      %2710 = vmatprep.subr.mxu0 0.0
      %2711 = vmatpush1.msra.mxu0 0.0
      %2712 = vmatprep.subr.mxu0 0.0
      %2713 = vmatpush1.msra.mxu0 0.0
      %2714 = vmatprep.subr.mxu0 0.0
      %2715 = vmatpush1.msra.mxu0 0.0
      %2716 = vmatprep.subr.mxu0 0.0
      %2717 = vmatpush1.msra.mxu0 0.0
      %2718 = vmatprep.subr.mxu0 0.0
      %2719 = vmatpush1.msra.mxu0 0.0
      %2720 = vmatprep.mubr.f32.mxu0 0.0
      %2721 = vmatmul.mubr.f32.gmra.mrb[0].mxu0 %v2654
      %v2722 = vpop.f32.mrb[0].mxu0
      %v2723 = vadd.f32 0.0, %v2722
      %v2724 = vpop.f32.mrb[0].mxu0
      %2725 = vdwg.mxu0
      %v2726 = vadd.f32 %v2240, %v2723
      %v2727 = vld [vmem:[%s11] sm:$0x1]
      %v2729 = vlaneseq
      %v2730 = vshrl.u32 %v2729, 7
      %v2731 = vsub.s32 0, %v2730
      %v2732 = vrot.slane %v2727, %v2731
      %v2734 = vadd.f32 %v2726, %v2732
      %v2735 = vadd.f32 %v2734, %v778
      %v2736 = vld [vmem:[%s12] sm:$0x1]
      %v2737 = vld [vmem:[%s13] sm:$0x1]
      %v2738 = vsel %vm750, %v2735, 0.0
      %2739 = vadd.xlane.f32.xlu0 %v2738
      %v2740 = vpop.xlane.xlu0 %2739
      %v2741 = vmul.f32 %v2740, %v754
      %v2742 = vsub.f32 %v2735, %v2741
      %v2743 = vmul.f32 %v2742, %v2742
      %v2744 = vsel %vm750, %v2743, 0.0
      %2745 = vadd.xlane.f32.xlu0 %v2744
      %v2746 = vpop.xlane.xlu0 %2745
      %v2747 = vmul.f32 %v2746, %v754
      %v2748 = vadd.f32 %v2747, 1e-12
      %v2749 = vrsqrt.pop %v2748
      %v2750 = vmul.f32 %v2742, %v2749
      %v2752 = vlaneseq
      %v2753 = vshrl.u32 %v2752, 7
      %v2754 = vsub.s32 0, %v2753
      %v2755 = vrot.slane %v2736, %v2754
      %v2757 = vmul.f32 %v2750, %v2755
      %v2759 = vlaneseq
      %v2760 = vshrl.u32 %v2759, 7
      %v2761 = vsub.s32 0, %v2760
      %v2762 = vrot.slane %v2737, %v2761
      %v2764 = vadd.f32 %v2757, %v2762
      %v2765 = vld [vmem:[%s14] sm:$0xff]
      %v2766 = vld [vmem:[%s14 + $0x8] sm:$0xff]
      %v2767 = vld [vmem:[%s14 + $0x10] sm:$0xff]
      %v2768 = vld [vmem:[%s14 + $0x18] sm:$0xff]
      %v2769 = vld [vmem:[%s15] sm:$0x1]
      %v2771 = vlaneseq
      %v2772 = vshrl.u32 %v2771, 7
      %v2773 = vsub.s32 0, %v2772
      %v2774 = vrot.slane %v2769, %v2773
      %v2777 = vsel %vm750, %v2764, 0
      %2779 = vmatprep.subr.mxu0 0.0
      %2780 = vmatpush1.msra.mxu0 %v2765
      %2781 = vmatprep.subr.mxu0 0.0
      %2782 = vmatpush1.msra.mxu0 %v2766
      %2783 = vmatprep.subr.mxu0 0.0
      %2784 = vmatpush1.msra.mxu0 %v2767
      %2785 = vmatprep.subr.mxu0 0.0
      %2786 = vmatpush1.msra.mxu0 %v2768
      %2787 = vmatprep.subr.mxu0 0.0
      %2788 = vmatpush1.msra.mxu0 0.0
      %2789 = vmatprep.subr.mxu0 0.0
      %2790 = vmatpush1.msra.mxu0 0.0
      %2791 = vmatprep.subr.mxu0 0.0
      %2792 = vmatpush1.msra.mxu0 0.0
      %2793 = vmatprep.subr.mxu0 0.0
      %2794 = vmatpush1.msra.mxu0 0.0
      %2795 = vmatprep.subr.mxu0 0.0
      %2796 = vmatpush1.msra.mxu0 0.0
      %2797 = vmatprep.subr.mxu0 0.0
      %2798 = vmatpush1.msra.mxu0 0.0
      %2799 = vmatprep.subr.mxu0 0.0
      %2800 = vmatpush1.msra.mxu0 0.0
      %2801 = vmatprep.subr.mxu0 0.0
      %2802 = vmatpush1.msra.mxu0 0.0
      %2803 = vmatprep.subr.mxu0 0.0
      %2804 = vmatpush1.msra.mxu0 0.0
      %2805 = vmatprep.subr.mxu0 0.0
      %2806 = vmatpush1.msra.mxu0 0.0
      %2807 = vmatprep.subr.mxu0 0.0
      %2808 = vmatpush1.msra.mxu0 0.0
      %2809 = vmatprep.subr.mxu0 0.0
      %2810 = vmatpush1.msra.mxu0 0.0
      %2811 = vmatprep.subr.mxu0 0.0
      %2812 = vmatpush1.msra.mxu0 0.0
      %2813 = vmatprep.subr.mxu0 0.0
      %2814 = vmatpush1.msra.mxu0 0.0
      %2815 = vmatprep.subr.mxu0 0.0
      %2816 = vmatpush1.msra.mxu0 0.0
      %2817 = vmatprep.subr.mxu0 0.0
      %2818 = vmatpush1.msra.mxu0 0.0
      %2819 = vmatprep.subr.mxu0 0.0
      %2820 = vmatpush1.msra.mxu0 0.0
      %2821 = vmatprep.subr.mxu0 0.0
      %2822 = vmatpush1.msra.mxu0 0.0
      %2823 = vmatprep.subr.mxu0 0.0
      %2824 = vmatpush1.msra.mxu0 0.0
      %2825 = vmatprep.subr.mxu0 0.0
      %2826 = vmatpush1.msra.mxu0 0.0
      %2827 = vmatprep.subr.mxu0 0.0
      %2828 = vmatpush1.msra.mxu0 0.0
      %2829 = vmatprep.subr.mxu0 0.0
      %2830 = vmatpush1.msra.mxu0 0.0
      %2831 = vmatprep.subr.mxu0 0.0
      %2832 = vmatpush1.msra.mxu0 0.0
      %2833 = vmatprep.subr.mxu0 0.0
      %2834 = vmatpush1.msra.mxu0 0.0
      %2835 = vmatprep.subr.mxu0 0.0
      %2836 = vmatpush1.msra.mxu0 0.0
      %2837 = vmatprep.subr.mxu0 0.0
      %2838 = vmatpush1.msra.mxu0 0.0
      %2839 = vmatprep.subr.mxu0 0.0
      %2840 = vmatpush1.msra.mxu0 0.0
      %2841 = vmatprep.subr.mxu0 0.0
      %2842 = vmatpush1.msra.mxu0 0.0
      %2843 = vmatprep.mubr.f32.mxu0 0.0
      %2844 = vmatmul.mubr.f32.gmra.mrb[0].mxu0 %v2777
      %v2845 = vpop.f32.mrb[0].mxu0
      %v2846 = vadd.f32 %v2774, %v2845
      %v2847 = vpop.f32.mrb[0].mxu0
      %2848 = vdwg.mxu0
      %v2849 = vmul.f32 %v2846, 0.5
      %v2850 = vmul.f32 %v2846, 0.044715
      %v2851 = vmul.f32 %v2850, %v2846
      %v2852 = vmul.f32 %v2851, %v2846
      %v2853 = vadd.f32 %v2846, %v2852
      %v2854 = vmul.f32 %v2853, 0.7978846
      %v2855 = vtanh.pop %v2854
      %v2856 = vadd.f32 %v2855, 1.0
      %v2857 = vmul.f32 %v2849, %v2856
      %v2858 = vld [vmem:[%s16] sm:$0xff]
      %v2859 = vld [vmem:[%s16 + $0x8] sm:$0xff]
      %v2860 = vld [vmem:[%s16 + $0x10] sm:$0xff]
      %v2861 = vld [vmem:[%s16 + $0x18] sm:$0xff]
      %v2862 = vld [vmem:[%s16 + $0x20] sm:$0xff]
      %v2863 = vld [vmem:[%s16 + $0x28] sm:$0xff]
      %v2864 = vld [vmem:[%s16 + $0x30] sm:$0xff]
      %v2865 = vld [vmem:[%s16 + $0x38] sm:$0xff]
      %v2866 = vld [vmem:[%s17] sm:$0x1]
      %v2868 = vlaneseq
      %v2869 = vshrl.u32 %v2868, 7
      %v2870 = vsub.s32 0, %v2869
      %v2871 = vrot.slane %v2866, %v2870
      %vm2873 = vcmask 523264
      %v2875 = vsel %vm2873, %v2857, 0
      %2877 = vmatprep.subr.mxu0 0.0
      %2878 = vmatpush1.msra.mxu0 %v2858
      %2879 = vmatprep.subr.mxu0 0.0
      %2880 = vmatpush1.msra.mxu0 %v2859
      %2881 = vmatprep.subr.mxu0 0.0
      %2882 = vmatpush1.msra.mxu0 %v2860
      %2883 = vmatprep.subr.mxu0 0.0
      %2884 = vmatpush1.msra.mxu0 %v2861
      %2885 = vmatprep.subr.mxu0 0.0
      %2886 = vmatpush1.msra.mxu0 %v2862
      %2887 = vmatprep.subr.mxu0 0.0
      %2888 = vmatpush1.msra.mxu0 %v2863
      %2889 = vmatprep.subr.mxu0 0.0
      %2890 = vmatpush1.msra.mxu0 %v2864
      %2891 = vmatprep.subr.mxu0 0.0
      %2892 = vmatpush1.msra.mxu0 %v2865
      %2893 = vmatprep.subr.mxu0 0.0
      %2894 = vmatpush1.msra.mxu0 0.0
      %2895 = vmatprep.subr.mxu0 0.0
      %2896 = vmatpush1.msra.mxu0 0.0
      %2897 = vmatprep.subr.mxu0 0.0
      %2898 = vmatpush1.msra.mxu0 0.0
      %2899 = vmatprep.subr.mxu0 0.0
      %2900 = vmatpush1.msra.mxu0 0.0
      %2901 = vmatprep.subr.mxu0 0.0
      %2902 = vmatpush1.msra.mxu0 0.0
      %2903 = vmatprep.subr.mxu0 0.0
      %2904 = vmatpush1.msra.mxu0 0.0
      %2905 = vmatprep.subr.mxu0 0.0
      %2906 = vmatpush1.msra.mxu0 0.0
      %2907 = vmatprep.subr.mxu0 0.0
      %2908 = vmatpush1.msra.mxu0 0.0
      %2909 = vmatprep.subr.mxu0 0.0
      %2910 = vmatpush1.msra.mxu0 0.0
      %2911 = vmatprep.subr.mxu0 0.0
      %2912 = vmatpush1.msra.mxu0 0.0
      %2913 = vmatprep.subr.mxu0 0.0
      %2914 = vmatpush1.msra.mxu0 0.0
      %2915 = vmatprep.subr.mxu0 0.0
      %2916 = vmatpush1.msra.mxu0 0.0
      %2917 = vmatprep.subr.mxu0 0.0
      %2918 = vmatpush1.msra.mxu0 0.0
      %2919 = vmatprep.subr.mxu0 0.0
      %2920 = vmatpush1.msra.mxu0 0.0
      %2921 = vmatprep.subr.mxu0 0.0
      %2922 = vmatpush1.msra.mxu0 0.0
      %2923 = vmatprep.subr.mxu0 0.0
      %2924 = vmatpush1.msra.mxu0 0.0
      %2925 = vmatprep.subr.mxu0 0.0
      %2926 = vmatpush1.msra.mxu0 0.0
      %2927 = vmatprep.subr.mxu0 0.0
      %2928 = vmatpush1.msra.mxu0 0.0
      %2929 = vmatprep.subr.mxu0 0.0
      %2930 = vmatpush1.msra.mxu0 0.0
      %2931 = vmatprep.subr.mxu0 0.0
      %2932 = vmatpush1.msra.mxu0 0.0
      %2933 = vmatprep.subr.mxu0 0.0
      %2934 = vmatpush1.msra.mxu0 0.0
      %2935 = vmatprep.subr.mxu0 0.0
      %2936 = vmatpush1.msra.mxu0 0.0
      %2937 = vmatprep.subr.mxu0 0.0
      %2938 = vmatpush1.msra.mxu0 0.0
      %2939 = vmatprep.subr.mxu0 0.0
      %2940 = vmatpush1.msra.mxu0 0.0
      %2941 = vmatprep.mubr.f32.mxu0 0.0
      %2942 = vmatmul.mubr.f32.gmra.mrb[0].mxu0 %v2875
      %v2943 = vpop.f32.mrb[0].mxu0
      %v2944 = vadd.f32 %v2871, %v2943
      %v2945 = vpop.f32.mrb[0].mxu0
      %2946 = vdwg.mxu0
      %v2947 = vadd.f32 %v2944, %v2764
      %v2948 = vld [vmem:[%s18] sm:$0x1]
      %v2949 = vld [vmem:[%s19] sm:$0x1]
      %v2950 = vsel %vm750, %v2947, 0.0
      %2951 = vadd.xlane.f32.xlu0 %v2950
      %v2952 = vpop.xlane.xlu0 %2951
      %v2953 = vmul.f32 %v2952, %v754
      %v2954 = vsub.f32 %v2947, %v2953
      %v2955 = vmul.f32 %v2954, %v2954
      %v2956 = vsel %vm750, %v2955, 0.0
      %2957 = vadd.xlane.f32.xlu0 %v2956
      %v2958 = vpop.xlane.xlu0 %2957
      %v2959 = vmul.f32 %v2958, %v754
      %v2960 = vadd.f32 %v2959, 1e-12
      %v2961 = vrsqrt.pop %v2960
      %v2962 = vmul.f32 %v2954, %v2961
      %v2964 = vlaneseq
      %v2965 = vshrl.u32 %v2964, 7
      %v2966 = vsub.s32 0, %v2965
      %v2967 = vrot.slane %v2948, %v2966
      %v2969 = vmul.f32 %v2962, %v2967
      %v2971 = vlaneseq
      %v2972 = vshrl.u32 %v2971, 7
      %v2973 = vsub.s32 0, %v2972
      %v2974 = vrot.slane %v2949, %v2973
      %v2976 = vadd.f32 %v2969, %v2974
      %s2977 = scalar_lea.vmem %s4, 128
      %v2978 = vld [vmem:[%s2977] sm:$0xff]
      %v2979 = vld [vmem:[%s2977 + $0x8] sm:$0xff]
      %v2980 = vld [vmem:[%s2977 + $0x10] sm:$0xff]
      %v2981 = vld [vmem:[%s2977 + $0x18] sm:$0xff]
      %s2982 = scalar_lea.vmem %s5, 4
      %v2983 = vld [vmem:[%s2982] sm:$0x1]
      %v2985 = vlaneseq
      %v2986 = vshrl.u32 %v2985, 7
      %v2987 = vsub.s32 0, %v2986
      %v2988 = vrot.slane %v2983, %v2987
      %v2991 = vsel %vm750, %v2976, 0
      %2993 = vmatprep.subr.mxu0 0.0
      %2994 = vmatpush1.msra.mxu0 %v2978
      %2995 = vmatprep.subr.mxu0 0.0
      %2996 = vmatpush1.msra.mxu0 %v2979
      %2997 = vmatprep.subr.mxu0 0.0
      %2998 = vmatpush1.msra.mxu0 %v2980
      %2999 = vmatprep.subr.mxu0 0.0
      %3000 = vmatpush1.msra.mxu0 %v2981
      %3001 = vmatprep.subr.mxu0 0.0
      %3002 = vmatpush1.msra.mxu0 0.0
      %3003 = vmatprep.subr.mxu0 0.0
      %3004 = vmatpush1.msra.mxu0 0.0
      %3005 = vmatprep.subr.mxu0 0.0
      %3006 = vmatpush1.msra.mxu0 0.0
      %3007 = vmatprep.subr.mxu0 0.0
      %3008 = vmatpush1.msra.mxu0 0.0
      %3009 = vmatprep.subr.mxu0 0.0
      %3010 = vmatpush1.msra.mxu0 0.0
      %3011 = vmatprep.subr.mxu0 0.0
      %3012 = vmatpush1.msra.mxu0 0.0
      %3013 = vmatprep.subr.mxu0 0.0
      %3014 = vmatpush1.msra.mxu0 0.0
      %3015 = vmatprep.subr.mxu0 0.0
      %3016 = vmatpush1.msra.mxu0 0.0
      %3017 = vmatprep.subr.mxu0 0.0
      %3018 = vmatpush1.msra.mxu0 0.0
      %3019 = vmatprep.subr.mxu0 0.0
      %3020 = vmatpush1.msra.mxu0 0.0
      %3021 = vmatprep.subr.mxu0 0.0
      %3022 = vmatpush1.msra.mxu0 0.0
      %3023 = vmatprep.subr.mxu0 0.0
      %3024 = vmatpush1.msra.mxu0 0.0
      %3025 = vmatprep.subr.mxu0 0.0
      %3026 = vmatpush1.msra.mxu0 0.0
      %3027 = vmatprep.subr.mxu0 0.0
      %3028 = vmatpush1.msra.mxu0 0.0
      %3029 = vmatprep.subr.mxu0 0.0
      %3030 = vmatpush1.msra.mxu0 0.0
      %3031 = vmatprep.subr.mxu0 0.0
      %3032 = vmatpush1.msra.mxu0 0.0
      %3033 = vmatprep.subr.mxu0 0.0
      %3034 = vmatpush1.msra.mxu0 0.0
      %3035 = vmatprep.subr.mxu0 0.0
      %3036 = vmatpush1.msra.mxu0 0.0
      %3037 = vmatprep.subr.mxu0 0.0
      %3038 = vmatpush1.msra.mxu0 0.0
      %3039 = vmatprep.subr.mxu0 0.0
      %3040 = vmatpush1.msra.mxu0 0.0
      %3041 = vmatprep.subr.mxu0 0.0
      %3042 = vmatpush1.msra.mxu0 0.0
      %3043 = vmatprep.subr.mxu0 0.0
      %3044 = vmatpush1.msra.mxu0 0.0
      %3045 = vmatprep.subr.mxu0 0.0
      %3046 = vmatpush1.msra.mxu0 0.0
      %3047 = vmatprep.subr.mxu0 0.0
      %3048 = vmatpush1.msra.mxu0 0.0
      %3049 = vmatprep.subr.mxu0 0.0
      %3050 = vmatpush1.msra.mxu0 0.0
      %3051 = vmatprep.subr.mxu0 0.0
      %3052 = vmatpush1.msra.mxu0 0.0
      %3053 = vmatprep.subr.mxu0 0.0
      %3054 = vmatpush1.msra.mxu0 0.0
      %3055 = vmatprep.subr.mxu0 0.0
      %3056 = vmatpush1.msra.mxu0 0.0
      %3057 = vmatprep.mubr.f32.mxu0 0.0
      %3058 = vmatmul.mubr.f32.gmra.mrb[0].mxu0 %v2991
      %v3059 = vpop.f32.mrb[0].mxu0
      %v3060 = vadd.f32 %v2988, %v3059
      %v3061 = vpop.f32.mrb[0].mxu0
      %3062 = vdwg.mxu0
      %v3063 = vmul.f32 %v3060, 0.35355338
      %s3064 = scalar_lea.vmem %s6, 128
      %v3065 = vld [vmem:[%s3064] sm:$0xff]
      %v3066 = vld [vmem:[%s3064 + $0x8] sm:$0xff]
      %v3067 = vld [vmem:[%s3064 + $0x10] sm:$0xff]
      %v3068 = vld [vmem:[%s3064 + $0x18] sm:$0xff]
      %s3069 = scalar_lea.vmem %s7, 4
      %v3070 = vld [vmem:[%s3069] sm:$0x1]
      %v3072 = vlaneseq
      %v3073 = vshrl.u32 %v3072, 7
      %v3074 = vsub.s32 0, %v3073
      %v3075 = vrot.slane %v3070, %v3074
      %3077 = vmatprep.subr.mxu0 0.0
      %3078 = vmatpush1.msra.mxu0 %v3065
      %3079 = vmatprep.subr.mxu0 0.0
      %3080 = vmatpush1.msra.mxu0 %v3066
      %3081 = vmatprep.subr.mxu0 0.0
      %3082 = vmatpush1.msra.mxu0 %v3067
      %3083 = vmatprep.subr.mxu0 0.0
      %3084 = vmatpush1.msra.mxu0 %v3068
      %3085 = vmatprep.subr.mxu0 0.0
      %3086 = vmatpush1.msra.mxu0 0.0
      %3087 = vmatprep.subr.mxu0 0.0
      %3088 = vmatpush1.msra.mxu0 0.0
      %3089 = vmatprep.subr.mxu0 0.0
      %3090 = vmatpush1.msra.mxu0 0.0
      %3091 = vmatprep.subr.mxu0 0.0
      %3092 = vmatpush1.msra.mxu0 0.0
      %3093 = vmatprep.subr.mxu0 0.0
      %3094 = vmatpush1.msra.mxu0 0.0
      %3095 = vmatprep.subr.mxu0 0.0
      %3096 = vmatpush1.msra.mxu0 0.0
      %3097 = vmatprep.subr.mxu0 0.0
      %3098 = vmatpush1.msra.mxu0 0.0
      %3099 = vmatprep.subr.mxu0 0.0
      %3100 = vmatpush1.msra.mxu0 0.0
      %3101 = vmatprep.subr.mxu0 0.0
      %3102 = vmatpush1.msra.mxu0 0.0
      %3103 = vmatprep.subr.mxu0 0.0
      %3104 = vmatpush1.msra.mxu0 0.0
      %3105 = vmatprep.subr.mxu0 0.0
      %3106 = vmatpush1.msra.mxu0 0.0
      %3107 = vmatprep.subr.mxu0 0.0
      %3108 = vmatpush1.msra.mxu0 0.0
      %3109 = vmatprep.subr.mxu0 0.0
      %3110 = vmatpush1.msra.mxu0 0.0
      %3111 = vmatprep.subr.mxu0 0.0
      %3112 = vmatpush1.msra.mxu0 0.0
      %3113 = vmatprep.subr.mxu0 0.0
      %3114 = vmatpush1.msra.mxu0 0.0
      %3115 = vmatprep.subr.mxu0 0.0
      %3116 = vmatpush1.msra.mxu0 0.0
      %3117 = vmatprep.subr.mxu0 0.0
      %3118 = vmatpush1.msra.mxu0 0.0
      %3119 = vmatprep.subr.mxu0 0.0
      %3120 = vmatpush1.msra.mxu0 0.0
      %3121 = vmatprep.subr.mxu0 0.0
      %3122 = vmatpush1.msra.mxu0 0.0
      %3123 = vmatprep.subr.mxu0 0.0
      %3124 = vmatpush1.msra.mxu0 0.0
      %3125 = vmatprep.subr.mxu0 0.0
      %3126 = vmatpush1.msra.mxu0 0.0
      %3127 = vmatprep.subr.mxu0 0.0
      %3128 = vmatpush1.msra.mxu0 0.0
      %3129 = vmatprep.subr.mxu0 0.0
      %3130 = vmatpush1.msra.mxu0 0.0
      %3131 = vmatprep.subr.mxu0 0.0
      %3132 = vmatpush1.msra.mxu0 0.0
      %3133 = vmatprep.subr.mxu0 0.0
      %3134 = vmatpush1.msra.mxu0 0.0
      %3135 = vmatprep.subr.mxu0 0.0
      %3136 = vmatpush1.msra.mxu0 0.0
      %3137 = vmatprep.subr.mxu0 0.0
      %3138 = vmatpush1.msra.mxu0 0.0
      %3139 = vmatprep.subr.mxu0 0.0
      %3140 = vmatpush1.msra.mxu0 0.0
      %3141 = vmatprep.mubr.f32.mxu0 0.0
      %3142 = vmatmul.mubr.f32.gmra.mrb[0].mxu0 %v2991
      %v3143 = vpop.f32.mrb[0].mxu0
      %v3144 = vadd.f32 %v3075, %v3143
      %v3145 = vpop.f32.mrb[0].mxu0
      %3146 = vdwg.mxu0
      %s3147 = scalar_lea.vmem %s8, 128
      %v3148 = vld [vmem:[%s3147] sm:$0xff]
      %v3149 = vld [vmem:[%s3147 + $0x8] sm:$0xff]
      %v3150 = vld [vmem:[%s3147 + $0x10] sm:$0xff]
      %v3151 = vld [vmem:[%s3147 + $0x18] sm:$0xff]
      %s3152 = scalar_lea.vmem %s9, 4
      %v3153 = vld [vmem:[%s3152] sm:$0x1]
      %v3155 = vlaneseq
      %v3156 = vshrl.u32 %v3155, 7
      %v3157 = vsub.s32 0, %v3156
      %v3158 = vrot.slane %v3153, %v3157
      %3160 = vmatprep.subr.mxu0 0.0
      %3161 = vmatpush1.msra.mxu0 %v3148
      %3162 = vmatprep.subr.mxu0 0.0
      %3163 = vmatpush1.msra.mxu0 %v3149
      %3164 = vmatprep.subr.mxu0 0.0
      %3165 = vmatpush1.msra.mxu0 %v3150
      %3166 = vmatprep.subr.mxu0 0.0
      %3167 = vmatpush1.msra.mxu0 %v3151
      %3168 = vmatprep.subr.mxu0 0.0
      %3169 = vmatpush1.msra.mxu0 0.0
      %3170 = vmatprep.subr.mxu0 0.0
      %3171 = vmatpush1.msra.mxu0 0.0
      %3172 = vmatprep.subr.mxu0 0.0
      %3173 = vmatpush1.msra.mxu0 0.0
      %3174 = vmatprep.subr.mxu0 0.0
      %3175 = vmatpush1.msra.mxu0 0.0
      %3176 = vmatprep.subr.mxu0 0.0
      %3177 = vmatpush1.msra.mxu0 0.0
      %3178 = vmatprep.subr.mxu0 0.0
      %3179 = vmatpush1.msra.mxu0 0.0
      %3180 = vmatprep.subr.mxu0 0.0
      %3181 = vmatpush1.msra.mxu0 0.0
      %3182 = vmatprep.subr.mxu0 0.0
      %3183 = vmatpush1.msra.mxu0 0.0
      %3184 = vmatprep.subr.mxu0 0.0
      %3185 = vmatpush1.msra.mxu0 0.0
      %3186 = vmatprep.subr.mxu0 0.0
      %3187 = vmatpush1.msra.mxu0 0.0
      %3188 = vmatprep.subr.mxu0 0.0
      %3189 = vmatpush1.msra.mxu0 0.0
      %3190 = vmatprep.subr.mxu0 0.0
      %3191 = vmatpush1.msra.mxu0 0.0
      %3192 = vmatprep.subr.mxu0 0.0
      %3193 = vmatpush1.msra.mxu0 0.0
      %3194 = vmatprep.subr.mxu0 0.0
      %3195 = vmatpush1.msra.mxu0 0.0
      %3196 = vmatprep.subr.mxu0 0.0
      %3197 = vmatpush1.msra.mxu0 0.0
      %3198 = vmatprep.subr.mxu0 0.0
      %3199 = vmatpush1.msra.mxu0 0.0
      %3200 = vmatprep.subr.mxu0 0.0
      %3201 = vmatpush1.msra.mxu0 0.0
      %3202 = vmatprep.subr.mxu0 0.0
      %3203 = vmatpush1.msra.mxu0 0.0
      %3204 = vmatprep.subr.mxu0 0.0
      %3205 = vmatpush1.msra.mxu0 0.0
      %3206 = vmatprep.subr.mxu0 0.0
      %3207 = vmatpush1.msra.mxu0 0.0
      %3208 = vmatprep.subr.mxu0 0.0
      %3209 = vmatpush1.msra.mxu0 0.0
      %3210 = vmatprep.subr.mxu0 0.0
      %3211 = vmatpush1.msra.mxu0 0.0
      %3212 = vmatprep.subr.mxu0 0.0
      %3213 = vmatpush1.msra.mxu0 0.0
      %3214 = vmatprep.subr.mxu0 0.0
      %3215 = vmatpush1.msra.mxu0 0.0
      %3216 = vmatprep.subr.mxu0 0.0
      %3217 = vmatpush1.msra.mxu0 0.0
      %3218 = vmatprep.subr.mxu0 0.0
      %3219 = vmatpush1.msra.mxu0 0.0
      %3220 = vmatprep.subr.mxu0 0.0
      %3221 = vmatpush1.msra.mxu0 0.0
      %3222 = vmatprep.subr.mxu0 0.0
      %3223 = vmatpush1.msra.mxu0 0.0
      %3224 = vmatprep.mubr.f32.mxu0 0.0
      %3225 = vmatmul.mubr.f32.gmra.mrb[0].mxu0 %v2991
      %v3226 = vpop.f32.mrb[0].mxu0
      %v3227 = vadd.f32 %v3158, %v3226
      %v3228 = vpop.f32.mrb[0].mxu0
      %3229 = vdwg.mxu0
      %v3231 = vsel %vm1035, %v3063, 0
      %v3234 = vsel %vm1035, %v3144, 0
      %3236 = vmatprep.subr.mxu0 0.0
      %3237 = vmatpush1.xpose.msra.mxu0 %v3234
      %3238 = vmatprep.subr.mxu0 0.0
      %3239 = vmatpush1.xpose.msra.mxu0 0.0
      %3240 = vmatprep.subr.mxu0 0.0
      %3241 = vmatpush1.xpose.msra.mxu0 0.0
      %3242 = vmatprep.subr.mxu0 0.0
      %3243 = vmatpush1.xpose.msra.mxu0 0.0
      %3244 = vmatprep.subr.mxu0 0.0
      %3245 = vmatpush1.xpose.msra.mxu0 0.0
      %3246 = vmatprep.subr.mxu0 0.0
      %3247 = vmatpush1.xpose.msra.mxu0 0.0
      %3248 = vmatprep.subr.mxu0 0.0
      %3249 = vmatpush1.xpose.msra.mxu0 0.0
      %3250 = vmatprep.subr.mxu0 0.0
      %3251 = vmatpush1.xpose.msra.mxu0 0.0
      %3252 = vmatprep.subr.mxu0 0.0
      %3253 = vmatpush1.xpose.msra.mxu0 0.0
      %3254 = vmatprep.subr.mxu0 0.0
      %3255 = vmatpush1.xpose.msra.mxu0 0.0
      %3256 = vmatprep.subr.mxu0 0.0
      %3257 = vmatpush1.xpose.msra.mxu0 0.0
      %3258 = vmatprep.subr.mxu0 0.0
      %3259 = vmatpush1.xpose.msra.mxu0 0.0
      %3260 = vmatprep.subr.mxu0 0.0
      %3261 = vmatpush1.xpose.msra.mxu0 0.0
      %3262 = vmatprep.subr.mxu0 0.0
      %3263 = vmatpush1.xpose.msra.mxu0 0.0
      %3264 = vmatprep.subr.mxu0 0.0
      %3265 = vmatpush1.xpose.msra.mxu0 0.0
      %3266 = vmatprep.subr.mxu0 0.0
      %3267 = vmatpush1.xpose.msra.mxu0 0.0
      %3268 = vmatprep.subr.mxu0 0.0
      %3269 = vmatpush1.xpose.msra.mxu0 0.0
      %3270 = vmatprep.subr.mxu0 0.0
      %3271 = vmatpush1.xpose.msra.mxu0 0.0
      %3272 = vmatprep.subr.mxu0 0.0
      %3273 = vmatpush1.xpose.msra.mxu0 0.0
      %3274 = vmatprep.subr.mxu0 0.0
      %3275 = vmatpush1.xpose.msra.mxu0 0.0
      %3276 = vmatprep.subr.mxu0 0.0
      %3277 = vmatpush1.xpose.msra.mxu0 0.0
      %3278 = vmatprep.subr.mxu0 0.0
      %3279 = vmatpush1.xpose.msra.mxu0 0.0
      %3280 = vmatprep.subr.mxu0 0.0
      %3281 = vmatpush1.xpose.msra.mxu0 0.0
      %3282 = vmatprep.subr.mxu0 0.0
      %3283 = vmatpush1.xpose.msra.mxu0 0.0
      %3284 = vmatprep.subr.mxu0 0.0
      %3285 = vmatpush1.xpose.msra.mxu0 0.0
      %3286 = vmatprep.subr.mxu0 0.0
      %3287 = vmatpush1.xpose.msra.mxu0 0.0
      %3288 = vmatprep.subr.mxu0 0.0
      %3289 = vmatpush1.xpose.msra.mxu0 0.0
      %3290 = vmatprep.subr.mxu0 0.0
      %3291 = vmatpush1.xpose.msra.mxu0 0.0
      %3292 = vmatprep.subr.mxu0 0.0
      %3293 = vmatpush1.xpose.msra.mxu0 0.0
      %3294 = vmatprep.subr.mxu0 0.0
      %3295 = vmatpush1.xpose.msra.mxu0 0.0
      %3296 = vmatprep.subr.mxu0 0.0
      %3297 = vmatpush1.xpose.msra.mxu0 0.0
      %3298 = vmatprep.subr.mxu0 0.0
      %3299 = vmatpush1.xpose.msra.mxu0 0.0
      %3300 = vmatprep.mubr.f32.mxu0 0.0
      %3301 = vmatmul.mubr.f32.gmra.mrb[0].mxu0 %v3231
      %v3302 = vpop.f32.mrb[0].mxu0
      %v3303 = vadd.f32 %v1033, %v3302
      %v3304 = vpop.f32.mrb[0].mxu0
      %3305 = vdwg.mxu0
      %v3306 = vsel %vm1035, %v3303, -inf
      %3307 = vmax.xlane.f32.xlu0 %v3306
      %v3308 = vpop.xlane.xlu0 %3307
      %v3309 = vsub.f32 %v3303, %v3308
      %v3310 = vmul.f32 %v3309, 1.442695
      %v3311 = vpow.pop %v3310
      %v3312 = vsel %vm1035, %v3311, 0.0
      %3313 = vadd.xlane.f32.xlu0 %v3312
      %v3314 = vpop.xlane.xlu0 %3313
      %v3315 = vrcp.pop %v3314
      %v3316 = vmul.f32 %v3311, %v3315
      %v3318 = vsel %vm1035, %v3316, 0
      %3320 = vmatprep.subr.mxu0 0.0
      %3321 = vmatpush1.msra.mxu0 %v3227
      %3322 = vmatprep.subr.mxu0 0.0
      %3323 = vmatpush1.msra.mxu0 0.0
      %3324 = vmatprep.subr.mxu0 0.0
      %3325 = vmatpush1.msra.mxu0 0.0
      %3326 = vmatprep.subr.mxu0 0.0
      %3327 = vmatpush1.msra.mxu0 0.0
      %3328 = vmatprep.subr.mxu0 0.0
      %3329 = vmatpush1.msra.mxu0 0.0
      %3330 = vmatprep.subr.mxu0 0.0
      %3331 = vmatpush1.msra.mxu0 0.0
      %3332 = vmatprep.subr.mxu0 0.0
      %3333 = vmatpush1.msra.mxu0 0.0
      %3334 = vmatprep.subr.mxu0 0.0
      %3335 = vmatpush1.msra.mxu0 0.0
      %3336 = vmatprep.subr.mxu0 0.0
      %3337 = vmatpush1.msra.mxu0 0.0
      %3338 = vmatprep.subr.mxu0 0.0
      %3339 = vmatpush1.msra.mxu0 0.0
      %3340 = vmatprep.subr.mxu0 0.0
      %3341 = vmatpush1.msra.mxu0 0.0
      %3342 = vmatprep.subr.mxu0 0.0
      %3343 = vmatpush1.msra.mxu0 0.0
      %3344 = vmatprep.subr.mxu0 0.0
      %3345 = vmatpush1.msra.mxu0 0.0
      %3346 = vmatprep.subr.mxu0 0.0
      %3347 = vmatpush1.msra.mxu0 0.0
      %3348 = vmatprep.subr.mxu0 0.0
      %3349 = vmatpush1.msra.mxu0 0.0
      %3350 = vmatprep.subr.mxu0 0.0
      %3351 = vmatpush1.msra.mxu0 0.0
      %3352 = vmatprep.subr.mxu0 0.0
      %3353 = vmatpush1.msra.mxu0 0.0
      %3354 = vmatprep.subr.mxu0 0.0
      %3355 = vmatpush1.msra.mxu0 0.0
      %3356 = vmatprep.subr.mxu0 0.0
      %3357 = vmatpush1.msra.mxu0 0.0
      %3358 = vmatprep.subr.mxu0 0.0
      %3359 = vmatpush1.msra.mxu0 0.0
      %3360 = vmatprep.subr.mxu0 0.0
      %3361 = vmatpush1.msra.mxu0 0.0
      %3362 = vmatprep.subr.mxu0 0.0
      %3363 = vmatpush1.msra.mxu0 0.0
      %3364 = vmatprep.subr.mxu0 0.0
      %3365 = vmatpush1.msra.mxu0 0.0
      %3366 = vmatprep.subr.mxu0 0.0
      %3367 = vmatpush1.msra.mxu0 0.0
      %3368 = vmatprep.subr.mxu0 0.0
      %3369 = vmatpush1.msra.mxu0 0.0
      %3370 = vmatprep.subr.mxu0 0.0
      %3371 = vmatpush1.msra.mxu0 0.0
      %3372 = vmatprep.subr.mxu0 0.0
      %3373 = vmatpush1.msra.mxu0 0.0
      %3374 = vmatprep.subr.mxu0 0.0
      %3375 = vmatpush1.msra.mxu0 0.0
      %3376 = vmatprep.subr.mxu0 0.0
      %3377 = vmatpush1.msra.mxu0 0.0
      %3378 = vmatprep.subr.mxu0 0.0
      %3379 = vmatpush1.msra.mxu0 0.0
      %3380 = vmatprep.subr.mxu0 0.0
      %3381 = vmatpush1.msra.mxu0 0.0
      %3382 = vmatprep.subr.mxu0 0.0
      %3383 = vmatpush1.msra.mxu0 0.0
      %3384 = vmatprep.mubr.f32.mxu0 0.0
      %3385 = vmatmul.mubr.f32.gmra.mrb[0].mxu0 %v3318
      %v3386 = vpop.f32.mrb[0].mxu0
      %v3387 = vadd.f32 0.0, %v3386
      %v3388 = vpop.f32.mrb[0].mxu0
      %3389 = vdwg.mxu0
      %s3390 = scalar_lea.vmem %s10, 32
      %v3391 = vld [vmem:[%s3390] sm:$0xff]
      %s3392 = scalar_lea.vmem %s4, 160
      %v3393 = vld [vmem:[%s3392] sm:$0xff]
      %v3394 = vld [vmem:[%s3392 + $0x8] sm:$0xff]
      %v3395 = vld [vmem:[%s3392 + $0x10] sm:$0xff]
      %v3396 = vld [vmem:[%s3392 + $0x18] sm:$0xff]
      %s3397 = scalar_lea.vmem %s5, 5
      %v3398 = vld [vmem:[%s3397] sm:$0x1]
      %v3400 = vlaneseq
      %v3401 = vshrl.u32 %v3400, 7
      %v3402 = vsub.s32 0, %v3401
      %v3403 = vrot.slane %v3398, %v3402
      %3405 = vmatprep.subr.mxu0 0.0
      %3406 = vmatpush1.msra.mxu0 %v3393
      %3407 = vmatprep.subr.mxu0 0.0
      %3408 = vmatpush1.msra.mxu0 %v3394
      %3409 = vmatprep.subr.mxu0 0.0
      %3410 = vmatpush1.msra.mxu0 %v3395
      %3411 = vmatprep.subr.mxu0 0.0
      %3412 = vmatpush1.msra.mxu0 %v3396
      %3413 = vmatprep.subr.mxu0 0.0
      %3414 = vmatpush1.msra.mxu0 0.0
      %3415 = vmatprep.subr.mxu0 0.0
      %3416 = vmatpush1.msra.mxu0 0.0
      %3417 = vmatprep.subr.mxu0 0.0
      %3418 = vmatpush1.msra.mxu0 0.0
      %3419 = vmatprep.subr.mxu0 0.0
      %3420 = vmatpush1.msra.mxu0 0.0
      %3421 = vmatprep.subr.mxu0 0.0
      %3422 = vmatpush1.msra.mxu0 0.0
      %3423 = vmatprep.subr.mxu0 0.0
      %3424 = vmatpush1.msra.mxu0 0.0
      %3425 = vmatprep.subr.mxu0 0.0
      %3426 = vmatpush1.msra.mxu0 0.0
      %3427 = vmatprep.subr.mxu0 0.0
      %3428 = vmatpush1.msra.mxu0 0.0
      %3429 = vmatprep.subr.mxu0 0.0
      %3430 = vmatpush1.msra.mxu0 0.0
      %3431 = vmatprep.subr.mxu0 0.0
      %3432 = vmatpush1.msra.mxu0 0.0
      %3433 = vmatprep.subr.mxu0 0.0
      %3434 = vmatpush1.msra.mxu0 0.0
      %3435 = vmatprep.subr.mxu0 0.0
      %3436 = vmatpush1.msra.mxu0 0.0
      %3437 = vmatprep.subr.mxu0 0.0
      %3438 = vmatpush1.msra.mxu0 0.0
      %3439 = vmatprep.subr.mxu0 0.0
      %3440 = vmatpush1.msra.mxu0 0.0
      %3441 = vmatprep.subr.mxu0 0.0
      %3442 = vmatpush1.msra.mxu0 0.0
      %3443 = vmatprep.subr.mxu0 0.0
      %3444 = vmatpush1.msra.mxu0 0.0
      %3445 = vmatprep.subr.mxu0 0.0
      %3446 = vmatpush1.msra.mxu0 0.0
      %3447 = vmatprep.subr.mxu0 0.0
      %3448 = vmatpush1.msra.mxu0 0.0
      %3449 = vmatprep.subr.mxu0 0.0
      %3450 = vmatpush1.msra.mxu0 0.0
      %3451 = vmatprep.subr.mxu0 0.0
      %3452 = vmatpush1.msra.mxu0 0.0
      %3453 = vmatprep.subr.mxu0 0.0
      %3454 = vmatpush1.msra.mxu0 0.0
      %3455 = vmatprep.subr.mxu0 0.0
      %3456 = vmatpush1.msra.mxu0 0.0
      %3457 = vmatprep.subr.mxu0 0.0
      %3458 = vmatpush1.msra.mxu0 0.0
      %3459 = vmatprep.subr.mxu0 0.0
      %3460 = vmatpush1.msra.mxu0 0.0
      %3461 = vmatprep.subr.mxu0 0.0
      %3462 = vmatpush1.msra.mxu0 0.0
      %3463 = vmatprep.subr.mxu0 0.0
      %3464 = vmatpush1.msra.mxu0 0.0
      %3465 = vmatprep.subr.mxu0 0.0
      %3466 = vmatpush1.msra.mxu0 0.0
      %3467 = vmatprep.subr.mxu0 0.0
      %3468 = vmatpush1.msra.mxu0 0.0
      %3469 = vmatprep.mubr.f32.mxu0 0.0
      %3470 = vmatmul.mubr.f32.gmra.mrb[0].mxu0 %v2991
      %v3471 = vpop.f32.mrb[0].mxu0
      %v3472 = vadd.f32 %v3403, %v3471
      %v3473 = vpop.f32.mrb[0].mxu0
      %3474 = vdwg.mxu0
      %v3475 = vmul.f32 %v3472, 0.35355338
      %s3476 = scalar_lea.vmem %s6, 160
      %v3477 = vld [vmem:[%s3476] sm:$0xff]
      %v3478 = vld [vmem:[%s3476 + $0x8] sm:$0xff]
      %v3479 = vld [vmem:[%s3476 + $0x10] sm:$0xff]
      %v3480 = vld [vmem:[%s3476 + $0x18] sm:$0xff]
      %s3481 = scalar_lea.vmem %s7, 5
      %v3482 = vld [vmem:[%s3481] sm:$0x1]
      %v3484 = vlaneseq
      %v3485 = vshrl.u32 %v3484, 7
      %v3486 = vsub.s32 0, %v3485
      %v3487 = vrot.slane %v3482, %v3486
      %3489 = vmatprep.subr.mxu0 0.0
      %3490 = vmatpush1.msra.mxu0 %v3477
      %3491 = vmatprep.subr.mxu0 0.0
      %3492 = vmatpush1.msra.mxu0 %v3478
      %3493 = vmatprep.subr.mxu0 0.0
      %3494 = vmatpush1.msra.mxu0 %v3479
      %3495 = vmatprep.subr.mxu0 0.0
      %3496 = vmatpush1.msra.mxu0 %v3480
      %3497 = vmatprep.subr.mxu0 0.0
      %3498 = vmatpush1.msra.mxu0 0.0
      %3499 = vmatprep.subr.mxu0 0.0
      %3500 = vmatpush1.msra.mxu0 0.0
      %3501 = vmatprep.subr.mxu0 0.0
      %3502 = vmatpush1.msra.mxu0 0.0
      %3503 = vmatprep.subr.mxu0 0.0
      %3504 = vmatpush1.msra.mxu0 0.0
      %3505 = vmatprep.subr.mxu0 0.0
      %3506 = vmatpush1.msra.mxu0 0.0
      %3507 = vmatprep.subr.mxu0 0.0
      %3508 = vmatpush1.msra.mxu0 0.0
      %3509 = vmatprep.subr.mxu0 0.0
      %3510 = vmatpush1.msra.mxu0 0.0
      %3511 = vmatprep.subr.mxu0 0.0
      %3512 = vmatpush1.msra.mxu0 0.0
      %3513 = vmatprep.subr.mxu0 0.0
      %3514 = vmatpush1.msra.mxu0 0.0
      %3515 = vmatprep.subr.mxu0 0.0
      %3516 = vmatpush1.msra.mxu0 0.0
      %3517 = vmatprep.subr.mxu0 0.0
      %3518 = vmatpush1.msra.mxu0 0.0
      %3519 = vmatprep.subr.mxu0 0.0
      %3520 = vmatpush1.msra.mxu0 0.0
      %3521 = vmatprep.subr.mxu0 0.0
      %3522 = vmatpush1.msra.mxu0 0.0
      %3523 = vmatprep.subr.mxu0 0.0
      %3524 = vmatpush1.msra.mxu0 0.0
      %3525 = vmatprep.subr.mxu0 0.0
      %3526 = vmatpush1.msra.mxu0 0.0
      %3527 = vmatprep.subr.mxu0 0.0
      %3528 = vmatpush1.msra.mxu0 0.0
      %3529 = vmatprep.subr.mxu0 0.0
      %3530 = vmatpush1.msra.mxu0 0.0
      %3531 = vmatprep.subr.mxu0 0.0
      %3532 = vmatpush1.msra.mxu0 0.0
      %3533 = vmatprep.subr.mxu0 0.0
      %3534 = vmatpush1.msra.mxu0 0.0
      %3535 = vmatprep.subr.mxu0 0.0
      %3536 = vmatpush1.msra.mxu0 0.0
      %3537 = vmatprep.subr.mxu0 0.0
      %3538 = vmatpush1.msra.mxu0 0.0
      %3539 = vmatprep.subr.mxu0 0.0
      %3540 = vmatpush1.msra.mxu0 0.0
      %3541 = vmatprep.subr.mxu0 0.0
      %3542 = vmatpush1.msra.mxu0 0.0
      %3543 = vmatprep.subr.mxu0 0.0
      %3544 = vmatpush1.msra.mxu0 0.0
      %3545 = vmatprep.subr.mxu0 0.0
      %3546 = vmatpush1.msra.mxu0 0.0
      %3547 = vmatprep.subr.mxu0 0.0
      %3548 = vmatpush1.msra.mxu0 0.0
      %3549 = vmatprep.subr.mxu0 0.0
      %3550 = vmatpush1.msra.mxu0 0.0
      %3551 = vmatprep.subr.mxu0 0.0
      %3552 = vmatpush1.msra.mxu0 0.0
      %3553 = vmatprep.mubr.f32.mxu0 0.0
      %3554 = vmatmul.mubr.f32.gmra.mrb[0].mxu0 %v2991
      %v3555 = vpop.f32.mrb[0].mxu0
      %v3556 = vadd.f32 %v3487, %v3555
      %v3557 = vpop.f32.mrb[0].mxu0
      %3558 = vdwg.mxu0
      %s3559 = scalar_lea.vmem %s8, 160
      %v3560 = vld [vmem:[%s3559] sm:$0xff]
      %v3561 = vld [vmem:[%s3559 + $0x8] sm:$0xff]
      %v3562 = vld [vmem:[%s3559 + $0x10] sm:$0xff]
      %v3563 = vld [vmem:[%s3559 + $0x18] sm:$0xff]
      %s3564 = scalar_lea.vmem %s9, 5
      %v3565 = vld [vmem:[%s3564] sm:$0x1]
      %v3567 = vlaneseq
      %v3568 = vshrl.u32 %v3567, 7
      %v3569 = vsub.s32 0, %v3568
      %v3570 = vrot.slane %v3565, %v3569
      %3572 = vmatprep.subr.mxu0 0.0
      %3573 = vmatpush1.msra.mxu0 %v3560
      %3574 = vmatprep.subr.mxu0 0.0
      %3575 = vmatpush1.msra.mxu0 %v3561
      %3576 = vmatprep.subr.mxu0 0.0
      %3577 = vmatpush1.msra.mxu0 %v3562
      %3578 = vmatprep.subr.mxu0 0.0
      %3579 = vmatpush1.msra.mxu0 %v3563
      %3580 = vmatprep.subr.mxu0 0.0
      %3581 = vmatpush1.msra.mxu0 0.0
      %3582 = vmatprep.subr.mxu0 0.0
      %3583 = vmatpush1.msra.mxu0 0.0
      %3584 = vmatprep.subr.mxu0 0.0
      %3585 = vmatpush1.msra.mxu0 0.0
      %3586 = vmatprep.subr.mxu0 0.0
      %3587 = vmatpush1.msra.mxu0 0.0
      %3588 = vmatprep.subr.mxu0 0.0
      %3589 = vmatpush1.msra.mxu0 0.0
      %3590 = vmatprep.subr.mxu0 0.0
      %3591 = vmatpush1.msra.mxu0 0.0
      %3592 = vmatprep.subr.mxu0 0.0
      %3593 = vmatpush1.msra.mxu0 0.0
      %3594 = vmatprep.subr.mxu0 0.0
      %3595 = vmatpush1.msra.mxu0 0.0
      %3596 = vmatprep.subr.mxu0 0.0
      %3597 = vmatpush1.msra.mxu0 0.0
      %3598 = vmatprep.subr.mxu0 0.0
      %3599 = vmatpush1.msra.mxu0 0.0
      %3600 = vmatprep.subr.mxu0 0.0
      %3601 = vmatpush1.msra.mxu0 0.0
      %3602 = vmatprep.subr.mxu0 0.0
      %3603 = vmatpush1.msra.mxu0 0.0
      %3604 = vmatprep.subr.mxu0 0.0
      %3605 = vmatpush1.msra.mxu0 0.0
      %3606 = vmatprep.subr.mxu0 0.0
      %3607 = vmatpush1.msra.mxu0 0.0
      %3608 = vmatprep.subr.mxu0 0.0
      %3609 = vmatpush1.msra.mxu0 0.0
      %3610 = vmatprep.subr.mxu0 0.0
      %3611 = vmatpush1.msra.mxu0 0.0
      %3612 = vmatprep.subr.mxu0 0.0
      %3613 = vmatpush1.msra.mxu0 0.0
      %3614 = vmatprep.subr.mxu0 0.0
      %3615 = vmatpush1.msra.mxu0 0.0
      %3616 = vmatprep.subr.mxu0 0.0
      %3617 = vmatpush1.msra.mxu0 0.0
      %3618 = vmatprep.subr.mxu0 0.0
      %3619 = vmatpush1.msra.mxu0 0.0
      %3620 = vmatprep.subr.mxu0 0.0
      %3621 = vmatpush1.msra.mxu0 0.0
      %3622 = vmatprep.subr.mxu0 0.0
      %3623 = vmatpush1.msra.mxu0 0.0
      %3624 = vmatprep.subr.mxu0 0.0
      %3625 = vmatpush1.msra.mxu0 0.0
      %3626 = vmatprep.subr.mxu0 0.0
      %3627 = vmatpush1.msra.mxu0 0.0
      %3628 = vmatprep.subr.mxu0 0.0
      %3629 = vmatpush1.msra.mxu0 0.0
      %3630 = vmatprep.subr.mxu0 0.0
      %3631 = vmatpush1.msra.mxu0 0.0
      %3632 = vmatprep.subr.mxu0 0.0
      %3633 = vmatpush1.msra.mxu0 0.0
      %3634 = vmatprep.subr.mxu0 0.0
      %3635 = vmatpush1.msra.mxu0 0.0
      %3636 = vmatprep.mubr.f32.mxu0 0.0
      %3637 = vmatmul.mubr.f32.gmra.mrb[0].mxu0 %v2991
      %v3638 = vpop.f32.mrb[0].mxu0
      %v3639 = vadd.f32 %v3570, %v3638
      %v3640 = vpop.f32.mrb[0].mxu0
      %3641 = vdwg.mxu0
      %v3643 = vsel %vm1035, %v3475, 0
      %v3646 = vsel %vm1035, %v3556, 0
      %3648 = vmatprep.subr.mxu0 0.0
      %3649 = vmatpush1.xpose.msra.mxu0 %v3646
      %3650 = vmatprep.subr.mxu0 0.0
      %3651 = vmatpush1.xpose.msra.mxu0 0.0
      %3652 = vmatprep.subr.mxu0 0.0
      %3653 = vmatpush1.xpose.msra.mxu0 0.0
      %3654 = vmatprep.subr.mxu0 0.0
      %3655 = vmatpush1.xpose.msra.mxu0 0.0
      %3656 = vmatprep.subr.mxu0 0.0
      %3657 = vmatpush1.xpose.msra.mxu0 0.0
      %3658 = vmatprep.subr.mxu0 0.0
      %3659 = vmatpush1.xpose.msra.mxu0 0.0
      %3660 = vmatprep.subr.mxu0 0.0
      %3661 = vmatpush1.xpose.msra.mxu0 0.0
      %3662 = vmatprep.subr.mxu0 0.0
      %3663 = vmatpush1.xpose.msra.mxu0 0.0
      %3664 = vmatprep.subr.mxu0 0.0
      %3665 = vmatpush1.xpose.msra.mxu0 0.0
      %3666 = vmatprep.subr.mxu0 0.0
      %3667 = vmatpush1.xpose.msra.mxu0 0.0
      %3668 = vmatprep.subr.mxu0 0.0
      %3669 = vmatpush1.xpose.msra.mxu0 0.0
      %3670 = vmatprep.subr.mxu0 0.0
      %3671 = vmatpush1.xpose.msra.mxu0 0.0
      %3672 = vmatprep.subr.mxu0 0.0
      %3673 = vmatpush1.xpose.msra.mxu0 0.0
      %3674 = vmatprep.subr.mxu0 0.0
      %3675 = vmatpush1.xpose.msra.mxu0 0.0
      %3676 = vmatprep.subr.mxu0 0.0
      %3677 = vmatpush1.xpose.msra.mxu0 0.0
      %3678 = vmatprep.subr.mxu0 0.0
      %3679 = vmatpush1.xpose.msra.mxu0 0.0
      %3680 = vmatprep.subr.mxu0 0.0
      %3681 = vmatpush1.xpose.msra.mxu0 0.0
      %3682 = vmatprep.subr.mxu0 0.0
      %3683 = vmatpush1.xpose.msra.mxu0 0.0
      %3684 = vmatprep.subr.mxu0 0.0
      %3685 = vmatpush1.xpose.msra.mxu0 0.0
      %3686 = vmatprep.subr.mxu0 0.0
      %3687 = vmatpush1.xpose.msra.mxu0 0.0
      %3688 = vmatprep.subr.mxu0 0.0
      %3689 = vmatpush1.xpose.msra.mxu0 0.0
      %3690 = vmatprep.subr.mxu0 0.0
      %3691 = vmatpush1.xpose.msra.mxu0 0.0
      %3692 = vmatprep.subr.mxu0 0.0
      %3693 = vmatpush1.xpose.msra.mxu0 0.0
      %3694 = vmatprep.subr.mxu0 0.0
      %3695 = vmatpush1.xpose.msra.mxu0 0.0
      %3696 = vmatprep.subr.mxu0 0.0
      %3697 = vmatpush1.xpose.msra.mxu0 0.0
      %3698 = vmatprep.subr.mxu0 0.0
      %3699 = vmatpush1.xpose.msra.mxu0 0.0
      %3700 = vmatprep.subr.mxu0 0.0
      %3701 = vmatpush1.xpose.msra.mxu0 0.0
      %3702 = vmatprep.subr.mxu0 0.0
      %3703 = vmatpush1.xpose.msra.mxu0 0.0
      %3704 = vmatprep.subr.mxu0 0.0
      %3705 = vmatpush1.xpose.msra.mxu0 0.0
      %3706 = vmatprep.subr.mxu0 0.0
      %3707 = vmatpush1.xpose.msra.mxu0 0.0
      %3708 = vmatprep.subr.mxu0 0.0
      %3709 = vmatpush1.xpose.msra.mxu0 0.0
      %3710 = vmatprep.subr.mxu0 0.0
      %3711 = vmatpush1.xpose.msra.mxu0 0.0
      %3712 = vmatprep.mubr.f32.mxu0 0.0
      %3713 = vmatmul.mubr.f32.gmra.mrb[0].mxu0 %v3643
      %v3714 = vpop.f32.mrb[0].mxu0
      %v3715 = vadd.f32 %v1033, %v3714
      %v3716 = vpop.f32.mrb[0].mxu0
      %3717 = vdwg.mxu0
      %v3718 = vsel %vm1035, %v3715, -inf
      %3719 = vmax.xlane.f32.xlu0 %v3718
      %v3720 = vpop.xlane.xlu0 %3719
      %v3721 = vsub.f32 %v3715, %v3720
      %v3722 = vmul.f32 %v3721, 1.442695
      %v3723 = vpow.pop %v3722
      %v3724 = vsel %vm1035, %v3723, 0.0
      %3725 = vadd.xlane.f32.xlu0 %v3724
      %v3726 = vpop.xlane.xlu0 %3725
      %v3727 = vrcp.pop %v3726
      %v3728 = vmul.f32 %v3723, %v3727
      %v3730 = vsel %vm1035, %v3728, 0
      %3732 = vmatprep.subr.mxu0 0.0
      %3733 = vmatpush1.msra.mxu0 %v3639
      %3734 = vmatprep.subr.mxu0 0.0
      %3735 = vmatpush1.msra.mxu0 0.0
      %3736 = vmatprep.subr.mxu0 0.0
      %3737 = vmatpush1.msra.mxu0 0.0
      %3738 = vmatprep.subr.mxu0 0.0
      %3739 = vmatpush1.msra.mxu0 0.0
      %3740 = vmatprep.subr.mxu0 0.0
      %3741 = vmatpush1.msra.mxu0 0.0
      %3742 = vmatprep.subr.mxu0 0.0
      %3743 = vmatpush1.msra.mxu0 0.0
      %3744 = vmatprep.subr.mxu0 0.0
      %3745 = vmatpush1.msra.mxu0 0.0
      %3746 = vmatprep.subr.mxu0 0.0
      %3747 = vmatpush1.msra.mxu0 0.0
      %3748 = vmatprep.subr.mxu0 0.0
      %3749 = vmatpush1.msra.mxu0 0.0
      %3750 = vmatprep.subr.mxu0 0.0
      %3751 = vmatpush1.msra.mxu0 0.0
      %3752 = vmatprep.subr.mxu0 0.0
      %3753 = vmatpush1.msra.mxu0 0.0
      %3754 = vmatprep.subr.mxu0 0.0
      %3755 = vmatpush1.msra.mxu0 0.0
      %3756 = vmatprep.subr.mxu0 0.0
      %3757 = vmatpush1.msra.mxu0 0.0
      %3758 = vmatprep.subr.mxu0 0.0
      %3759 = vmatpush1.msra.mxu0 0.0
      %3760 = vmatprep.subr.mxu0 0.0
      %3761 = vmatpush1.msra.mxu0 0.0
      %3762 = vmatprep.subr.mxu0 0.0
      %3763 = vmatpush1.msra.mxu0 0.0
      %3764 = vmatprep.subr.mxu0 0.0
      %3765 = vmatpush1.msra.mxu0 0.0
      %3766 = vmatprep.subr.mxu0 0.0
      %3767 = vmatpush1.msra.mxu0 0.0
      %3768 = vmatprep.subr.mxu0 0.0
      %3769 = vmatpush1.msra.mxu0 0.0
      %3770 = vmatprep.subr.mxu0 0.0
      %3771 = vmatpush1.msra.mxu0 0.0
      %3772 = vmatprep.subr.mxu0 0.0
      %3773 = vmatpush1.msra.mxu0 0.0
      %3774 = vmatprep.subr.mxu0 0.0
      %3775 = vmatpush1.msra.mxu0 0.0
      %3776 = vmatprep.subr.mxu0 0.0
      %3777 = vmatpush1.msra.mxu0 0.0
      %3778 = vmatprep.subr.mxu0 0.0
      %3779 = vmatpush1.msra.mxu0 0.0
      %3780 = vmatprep.subr.mxu0 0.0
      %3781 = vmatpush1.msra.mxu0 0.0
      %3782 = vmatprep.subr.mxu0 0.0
      %3783 = vmatpush1.msra.mxu0 0.0
      %3784 = vmatprep.subr.mxu0 0.0
      %3785 = vmatpush1.msra.mxu0 0.0
      %3786 = vmatprep.subr.mxu0 0.0
      %3787 = vmatpush1.msra.mxu0 0.0
      %3788 = vmatprep.subr.mxu0 0.0
      %3789 = vmatpush1.msra.mxu0 0.0
      %3790 = vmatprep.subr.mxu0 0.0
      %3791 = vmatpush1.msra.mxu0 0.0
      %3792 = vmatprep.subr.mxu0 0.0
      %3793 = vmatpush1.msra.mxu0 0.0
      %3794 = vmatprep.subr.mxu0 0.0
      %3795 = vmatpush1.msra.mxu0 0.0
      %3796 = vmatprep.mubr.f32.mxu0 0.0
      %3797 = vmatmul.mubr.f32.gmra.mrb[0].mxu0 %v3730
      %v3798 = vpop.f32.mrb[0].mxu0
      %v3799 = vadd.f32 0.0, %v3798
      %v3800 = vpop.f32.mrb[0].mxu0
      %3801 = vdwg.mxu0
      %s3802 = scalar_lea.vmem %s10, 40
      %v3803 = vld [vmem:[%s3802] sm:$0xff]
      %v3805 = vsel %vm1035, %v3799, 0
      %3807 = vmatprep.subr.mxu0 0.0
      %3808 = vmatpush1.msra.mxu0 %v3803
      %3809 = vmatprep.subr.mxu0 0.0
      %3810 = vmatpush1.msra.mxu0 0.0
      %3811 = vmatprep.subr.mxu0 0.0
      %3812 = vmatpush1.msra.mxu0 0.0
      %3813 = vmatprep.subr.mxu0 0.0
      %3814 = vmatpush1.msra.mxu0 0.0
      %3815 = vmatprep.subr.mxu0 0.0
      %3816 = vmatpush1.msra.mxu0 0.0
      %3817 = vmatprep.subr.mxu0 0.0
      %3818 = vmatpush1.msra.mxu0 0.0
      %3819 = vmatprep.subr.mxu0 0.0
      %3820 = vmatpush1.msra.mxu0 0.0
      %3821 = vmatprep.subr.mxu0 0.0
      %3822 = vmatpush1.msra.mxu0 0.0
      %3823 = vmatprep.subr.mxu0 0.0
      %3824 = vmatpush1.msra.mxu0 0.0
      %3825 = vmatprep.subr.mxu0 0.0
      %3826 = vmatpush1.msra.mxu0 0.0
      %3827 = vmatprep.subr.mxu0 0.0
      %3828 = vmatpush1.msra.mxu0 0.0
      %3829 = vmatprep.subr.mxu0 0.0
      %3830 = vmatpush1.msra.mxu0 0.0
      %3831 = vmatprep.subr.mxu0 0.0
      %3832 = vmatpush1.msra.mxu0 0.0
      %3833 = vmatprep.subr.mxu0 0.0
      %3834 = vmatpush1.msra.mxu0 0.0
      %3835 = vmatprep.subr.mxu0 0.0
      %3836 = vmatpush1.msra.mxu0 0.0
      %3837 = vmatprep.subr.mxu0 0.0
      %3838 = vmatpush1.msra.mxu0 0.0
      %3839 = vmatprep.subr.mxu0 0.0
      %3840 = vmatpush1.msra.mxu0 0.0
      %3841 = vmatprep.subr.mxu0 0.0
      %3842 = vmatpush1.msra.mxu0 0.0
      %3843 = vmatprep.subr.mxu0 0.0
      %3844 = vmatpush1.msra.mxu0 0.0
      %3845 = vmatprep.subr.mxu0 0.0
      %3846 = vmatpush1.msra.mxu0 0.0
      %3847 = vmatprep.subr.mxu0 0.0
      %3848 = vmatpush1.msra.mxu0 0.0
      %3849 = vmatprep.subr.mxu0 0.0
      %3850 = vmatpush1.msra.mxu0 0.0
      %3851 = vmatprep.subr.mxu0 0.0
      %3852 = vmatpush1.msra.mxu0 0.0
      %3853 = vmatprep.subr.mxu0 0.0
      %3854 = vmatpush1.msra.mxu0 0.0
      %3855 = vmatprep.subr.mxu0 0.0
      %3856 = vmatpush1.msra.mxu0 0.0
      %3857 = vmatprep.subr.mxu0 0.0
      %3858 = vmatpush1.msra.mxu0 0.0
      %3859 = vmatprep.subr.mxu0 0.0
      %3860 = vmatpush1.msra.mxu0 0.0
      %3861 = vmatprep.subr.mxu0 0.0
      %3862 = vmatpush1.msra.mxu0 0.0
      %3863 = vmatprep.subr.mxu0 0.0
      %3864 = vmatpush1.msra.mxu0 0.0
      %3865 = vmatprep.subr.mxu0 0.0
      %3866 = vmatpush1.msra.mxu0 0.0
      %3867 = vmatprep.subr.mxu0 0.0
      %3868 = vmatpush1.msra.mxu0 0.0
      %3869 = vmatprep.subr.mxu0 0.0
      %3870 = vmatpush1.msra.mxu0 0.0
      %3871 = vmatprep.mubr.f32.mxu0 0.0
      %3872 = vmatmul.mubr.f32.gmra.mrb[0].mxu0 %v3805
      %v3873 = vpop.f32.mrb[0].mxu0
      %v3874 = vadd.f32 0.0, %v3873
      %v3875 = vpop.f32.mrb[0].mxu0
      %3876 = vdwg.mxu0
      %v3878 = vsel %vm1035, %v3387, 0
      %3880 = vmatprep.subr.mxu0 0.0
      %3881 = vmatpush1.msra.mxu0 %v3391
      %3882 = vmatprep.subr.mxu0 0.0
      %3883 = vmatpush1.msra.mxu0 0.0
      %3884 = vmatprep.subr.mxu0 0.0
      %3885 = vmatpush1.msra.mxu0 0.0
      %3886 = vmatprep.subr.mxu0 0.0
      %3887 = vmatpush1.msra.mxu0 0.0
      %3888 = vmatprep.subr.mxu0 0.0
      %3889 = vmatpush1.msra.mxu0 0.0
      %3890 = vmatprep.subr.mxu0 0.0
      %3891 = vmatpush1.msra.mxu0 0.0
      %3892 = vmatprep.subr.mxu0 0.0
      %3893 = vmatpush1.msra.mxu0 0.0
      %3894 = vmatprep.subr.mxu0 0.0
      %3895 = vmatpush1.msra.mxu0 0.0
      %3896 = vmatprep.subr.mxu0 0.0
      %3897 = vmatpush1.msra.mxu0 0.0
      %3898 = vmatprep.subr.mxu0 0.0
      %3899 = vmatpush1.msra.mxu0 0.0
      %3900 = vmatprep.subr.mxu0 0.0
      %3901 = vmatpush1.msra.mxu0 0.0
      %3902 = vmatprep.subr.mxu0 0.0
      %3903 = vmatpush1.msra.mxu0 0.0
      %3904 = vmatprep.subr.mxu0 0.0
      %3905 = vmatpush1.msra.mxu0 0.0
      %3906 = vmatprep.subr.mxu0 0.0
      %3907 = vmatpush1.msra.mxu0 0.0
      %3908 = vmatprep.subr.mxu0 0.0
      %3909 = vmatpush1.msra.mxu0 0.0
      %3910 = vmatprep.subr.mxu0 0.0
      %3911 = vmatpush1.msra.mxu0 0.0
      %3912 = vmatprep.subr.mxu0 0.0
      %3913 = vmatpush1.msra.mxu0 0.0
      %3914 = vmatprep.subr.mxu0 0.0
      %3915 = vmatpush1.msra.mxu0 0.0
      %3916 = vmatprep.subr.mxu0 0.0
      %3917 = vmatpush1.msra.mxu0 0.0
      %3918 = vmatprep.subr.mxu0 0.0
      %3919 = vmatpush1.msra.mxu0 0.0
      %3920 = vmatprep.subr.mxu0 0.0
      %3921 = vmatpush1.msra.mxu0 0.0
      %3922 = vmatprep.subr.mxu0 0.0
      %3923 = vmatpush1.msra.mxu0 0.0
      %3924 = vmatprep.subr.mxu0 0.0
      %3925 = vmatpush1.msra.mxu0 0.0
      %3926 = vmatprep.subr.mxu0 0.0
      %3927 = vmatpush1.msra.mxu0 0.0
      %3928 = vmatprep.subr.mxu0 0.0
      %3929 = vmatpush1.msra.mxu0 0.0
      %3930 = vmatprep.subr.mxu0 0.0
      %3931 = vmatpush1.msra.mxu0 0.0
      %3932 = vmatprep.subr.mxu0 0.0
      %3933 = vmatpush1.msra.mxu0 0.0
      %3934 = vmatprep.subr.mxu0 0.0
      %3935 = vmatpush1.msra.mxu0 0.0
      %3936 = vmatprep.subr.mxu0 0.0
      %3937 = vmatpush1.msra.mxu0 0.0
      %3938 = vmatprep.subr.mxu0 0.0
      %3939 = vmatpush1.msra.mxu0 0.0
      %3940 = vmatprep.subr.mxu0 0.0
      %3941 = vmatpush1.msra.mxu0 0.0
      %3942 = vmatprep.subr.mxu0 0.0
      %3943 = vmatpush1.msra.mxu0 0.0
      %3944 = vmatprep.mubr.f32.mxu0 0.0
      %3945 = vmatmul.mubr.f32.gmra.mrb[0].mxu0 %v3878
      %v3946 = vpop.f32.mrb[0].mxu0
      %v3947 = vadd.f32 %v3874, %v3946
      %v3948 = vpop.f32.mrb[0].mxu0
      %3949 = vdwg.mxu0
      %s3950 = scalar_lea.vmem %s4, 192
      %v3951 = vld [vmem:[%s3950] sm:$0xff]
      %v3952 = vld [vmem:[%s3950 + $0x8] sm:$0xff]
      %v3953 = vld [vmem:[%s3950 + $0x10] sm:$0xff]
      %v3954 = vld [vmem:[%s3950 + $0x18] sm:$0xff]
      %s3955 = scalar_lea.vmem %s5, 6
      %v3956 = vld [vmem:[%s3955] sm:$0x1]
      %v3958 = vlaneseq
      %v3959 = vshrl.u32 %v3958, 7
      %v3960 = vsub.s32 0, %v3959
      %v3961 = vrot.slane %v3956, %v3960
      %3963 = vmatprep.subr.mxu0 0.0
      %3964 = vmatpush1.msra.mxu0 %v3951
      %3965 = vmatprep.subr.mxu0 0.0
      %3966 = vmatpush1.msra.mxu0 %v3952
      %3967 = vmatprep.subr.mxu0 0.0
      %3968 = vmatpush1.msra.mxu0 %v3953
      %3969 = vmatprep.subr.mxu0 0.0
      %3970 = vmatpush1.msra.mxu0 %v3954
      %3971 = vmatprep.subr.mxu0 0.0
      %3972 = vmatpush1.msra.mxu0 0.0
      %3973 = vmatprep.subr.mxu0 0.0
      %3974 = vmatpush1.msra.mxu0 0.0
      %3975 = vmatprep.subr.mxu0 0.0
      %3976 = vmatpush1.msra.mxu0 0.0
      %3977 = vmatprep.subr.mxu0 0.0
      %3978 = vmatpush1.msra.mxu0 0.0
      %3979 = vmatprep.subr.mxu0 0.0
      %3980 = vmatpush1.msra.mxu0 0.0
      %3981 = vmatprep.subr.mxu0 0.0
      %3982 = vmatpush1.msra.mxu0 0.0
      %3983 = vmatprep.subr.mxu0 0.0
      %3984 = vmatpush1.msra.mxu0 0.0
      %3985 = vmatprep.subr.mxu0 0.0
      %3986 = vmatpush1.msra.mxu0 0.0
      %3987 = vmatprep.subr.mxu0 0.0
      %3988 = vmatpush1.msra.mxu0 0.0
      %3989 = vmatprep.subr.mxu0 0.0
      %3990 = vmatpush1.msra.mxu0 0.0
      %3991 = vmatprep.subr.mxu0 0.0
      %3992 = vmatpush1.msra.mxu0 0.0
      %3993 = vmatprep.subr.mxu0 0.0
      %3994 = vmatpush1.msra.mxu0 0.0
      %3995 = vmatprep.subr.mxu0 0.0
      %3996 = vmatpush1.msra.mxu0 0.0
      %3997 = vmatprep.subr.mxu0 0.0
      %3998 = vmatpush1.msra.mxu0 0.0
      %3999 = vmatprep.subr.mxu0 0.0
      %4000 = vmatpush1.msra.mxu0 0.0
      %4001 = vmatprep.subr.mxu0 0.0
      %4002 = vmatpush1.msra.mxu0 0.0
      %4003 = vmatprep.subr.mxu0 0.0
      %4004 = vmatpush1.msra.mxu0 0.0
      %4005 = vmatprep.subr.mxu0 0.0
      %4006 = vmatpush1.msra.mxu0 0.0
      %4007 = vmatprep.subr.mxu0 0.0
      %4008 = vmatpush1.msra.mxu0 0.0
      %4009 = vmatprep.subr.mxu0 0.0
      %4010 = vmatpush1.msra.mxu0 0.0
      %4011 = vmatprep.subr.mxu0 0.0
      %4012 = vmatpush1.msra.mxu0 0.0
      %4013 = vmatprep.subr.mxu0 0.0
      %4014 = vmatpush1.msra.mxu0 0.0
      %4015 = vmatprep.subr.mxu0 0.0
      %4016 = vmatpush1.msra.mxu0 0.0
      %4017 = vmatprep.subr.mxu0 0.0
      %4018 = vmatpush1.msra.mxu0 0.0
      %4019 = vmatprep.subr.mxu0 0.0
      %4020 = vmatpush1.msra.mxu0 0.0
      %4021 = vmatprep.subr.mxu0 0.0
      %4022 = vmatpush1.msra.mxu0 0.0
      %4023 = vmatprep.subr.mxu0 0.0
      %4024 = vmatpush1.msra.mxu0 0.0
      %4025 = vmatprep.subr.mxu0 0.0
      %4026 = vmatpush1.msra.mxu0 0.0
      %4027 = vmatprep.mubr.f32.mxu0 0.0
      %4028 = vmatmul.mubr.f32.gmra.mrb[0].mxu0 %v2991
      %v4029 = vpop.f32.mrb[0].mxu0
      %v4030 = vadd.f32 %v3961, %v4029
      %v4031 = vpop.f32.mrb[0].mxu0
      %4032 = vdwg.mxu0
      %v4033 = vmul.f32 %v4030, 0.35355338
      %s4034 = scalar_lea.vmem %s6, 192
      %v4035 = vld [vmem:[%s4034] sm:$0xff]
      %v4036 = vld [vmem:[%s4034 + $0x8] sm:$0xff]
      %v4037 = vld [vmem:[%s4034 + $0x10] sm:$0xff]
      %v4038 = vld [vmem:[%s4034 + $0x18] sm:$0xff]
      %s4039 = scalar_lea.vmem %s7, 6
      %v4040 = vld [vmem:[%s4039] sm:$0x1]
      %v4042 = vlaneseq
      %v4043 = vshrl.u32 %v4042, 7
      %v4044 = vsub.s32 0, %v4043
      %v4045 = vrot.slane %v4040, %v4044
      %4047 = vmatprep.subr.mxu0 0.0
      %4048 = vmatpush1.msra.mxu0 %v4035
      %4049 = vmatprep.subr.mxu0 0.0
      %4050 = vmatpush1.msra.mxu0 %v4036
      %4051 = vmatprep.subr.mxu0 0.0
      %4052 = vmatpush1.msra.mxu0 %v4037
      %4053 = vmatprep.subr.mxu0 0.0
      %4054 = vmatpush1.msra.mxu0 %v4038
      %4055 = vmatprep.subr.mxu0 0.0
      %4056 = vmatpush1.msra.mxu0 0.0
      %4057 = vmatprep.subr.mxu0 0.0
      %4058 = vmatpush1.msra.mxu0 0.0
      %4059 = vmatprep.subr.mxu0 0.0
      %4060 = vmatpush1.msra.mxu0 0.0
      %4061 = vmatprep.subr.mxu0 0.0
      %4062 = vmatpush1.msra.mxu0 0.0
      %4063 = vmatprep.subr.mxu0 0.0
      %4064 = vmatpush1.msra.mxu0 0.0
      %4065 = vmatprep.subr.mxu0 0.0
      %4066 = vmatpush1.msra.mxu0 0.0
      %4067 = vmatprep.subr.mxu0 0.0
      %4068 = vmatpush1.msra.mxu0 0.0
      %4069 = vmatprep.subr.mxu0 0.0
      %4070 = vmatpush1.msra.mxu0 0.0
      %4071 = vmatprep.subr.mxu0 0.0
      %4072 = vmatpush1.msra.mxu0 0.0
      %4073 = vmatprep.subr.mxu0 0.0
      %4074 = vmatpush1.msra.mxu0 0.0
      %4075 = vmatprep.subr.mxu0 0.0
      %4076 = vmatpush1.msra.mxu0 0.0
      %4077 = vmatprep.subr.mxu0 0.0
      %4078 = vmatpush1.msra.mxu0 0.0
      %4079 = vmatprep.subr.mxu0 0.0
      %4080 = vmatpush1.msra.mxu0 0.0
      %4081 = vmatprep.subr.mxu0 0.0
      %4082 = vmatpush1.msra.mxu0 0.0
      %4083 = vmatprep.subr.mxu0 0.0
      %4084 = vmatpush1.msra.mxu0 0.0
      %4085 = vmatprep.subr.mxu0 0.0
      %4086 = vmatpush1.msra.mxu0 0.0
      %4087 = vmatprep.subr.mxu0 0.0
      %4088 = vmatpush1.msra.mxu0 0.0
      %4089 = vmatprep.subr.mxu0 0.0
      %4090 = vmatpush1.msra.mxu0 0.0
      %4091 = vmatprep.subr.mxu0 0.0
      %4092 = vmatpush1.msra.mxu0 0.0
      %4093 = vmatprep.subr.mxu0 0.0
      %4094 = vmatpush1.msra.mxu0 0.0
      %4095 = vmatprep.subr.mxu0 0.0
      %4096 = vmatpush1.msra.mxu0 0.0
      %4097 = vmatprep.subr.mxu0 0.0
      %4098 = vmatpush1.msra.mxu0 0.0
      %4099 = vmatprep.subr.mxu0 0.0
      %4100 = vmatpush1.msra.mxu0 0.0
      %4101 = vmatprep.subr.mxu0 0.0
      %4102 = vmatpush1.msra.mxu0 0.0
      %4103 = vmatprep.subr.mxu0 0.0
      %4104 = vmatpush1.msra.mxu0 0.0
      %4105 = vmatprep.subr.mxu0 0.0
      %4106 = vmatpush1.msra.mxu0 0.0
      %4107 = vmatprep.subr.mxu0 0.0
      %4108 = vmatpush1.msra.mxu0 0.0
      %4109 = vmatprep.subr.mxu0 0.0
      %4110 = vmatpush1.msra.mxu0 0.0
      %4111 = vmatprep.mubr.f32.mxu0 0.0
      %4112 = vmatmul.mubr.f32.gmra.mrb[0].mxu0 %v2991
      %v4113 = vpop.f32.mrb[0].mxu0
      %v4114 = vadd.f32 %v4045, %v4113
      %v4115 = vpop.f32.mrb[0].mxu0
      %4116 = vdwg.mxu0
      %s4117 = scalar_lea.vmem %s8, 192
      %v4118 = vld [vmem:[%s4117] sm:$0xff]
      %v4119 = vld [vmem:[%s4117 + $0x8] sm:$0xff]
      %v4120 = vld [vmem:[%s4117 + $0x10] sm:$0xff]
      %v4121 = vld [vmem:[%s4117 + $0x18] sm:$0xff]
      %s4122 = scalar_lea.vmem %s9, 6
      %v4123 = vld [vmem:[%s4122] sm:$0x1]
      %v4125 = vlaneseq
      %v4126 = vshrl.u32 %v4125, 7
      %v4127 = vsub.s32 0, %v4126
      %v4128 = vrot.slane %v4123, %v4127
      %4130 = vmatprep.subr.mxu0 0.0
      %4131 = vmatpush1.msra.mxu0 %v4118
      %4132 = vmatprep.subr.mxu0 0.0
      %4133 = vmatpush1.msra.mxu0 %v4119
      %4134 = vmatprep.subr.mxu0 0.0
      %4135 = vmatpush1.msra.mxu0 %v4120
      %4136 = vmatprep.subr.mxu0 0.0
      %4137 = vmatpush1.msra.mxu0 %v4121
      %4138 = vmatprep.subr.mxu0 0.0
      %4139 = vmatpush1.msra.mxu0 0.0
      %4140 = vmatprep.subr.mxu0 0.0
      %4141 = vmatpush1.msra.mxu0 0.0
      %4142 = vmatprep.subr.mxu0 0.0
      %4143 = vmatpush1.msra.mxu0 0.0
      %4144 = vmatprep.subr.mxu0 0.0
      %4145 = vmatpush1.msra.mxu0 0.0
      %4146 = vmatprep.subr.mxu0 0.0
      %4147 = vmatpush1.msra.mxu0 0.0
      %4148 = vmatprep.subr.mxu0 0.0
      %4149 = vmatpush1.msra.mxu0 0.0
      %4150 = vmatprep.subr.mxu0 0.0
      %4151 = vmatpush1.msra.mxu0 0.0
      %4152 = vmatprep.subr.mxu0 0.0
      %4153 = vmatpush1.msra.mxu0 0.0
      %4154 = vmatprep.subr.mxu0 0.0
      %4155 = vmatpush1.msra.mxu0 0.0
      %4156 = vmatprep.subr.mxu0 0.0
      %4157 = vmatpush1.msra.mxu0 0.0
      %4158 = vmatprep.subr.mxu0 0.0
      %4159 = vmatpush1.msra.mxu0 0.0
      %4160 = vmatprep.subr.mxu0 0.0
      %4161 = vmatpush1.msra.mxu0 0.0
      %4162 = vmatprep.subr.mxu0 0.0
      %4163 = vmatpush1.msra.mxu0 0.0
      %4164 = vmatprep.subr.mxu0 0.0
      %4165 = vmatpush1.msra.mxu0 0.0
      %4166 = vmatprep.subr.mxu0 0.0
      %4167 = vmatpush1.msra.mxu0 0.0
      %4168 = vmatprep.subr.mxu0 0.0
      %4169 = vmatpush1.msra.mxu0 0.0
      %4170 = vmatprep.subr.mxu0 0.0
      %4171 = vmatpush1.msra.mxu0 0.0
      %4172 = vmatprep.subr.mxu0 0.0
      %4173 = vmatpush1.msra.mxu0 0.0
      %4174 = vmatprep.subr.mxu0 0.0
      %4175 = vmatpush1.msra.mxu0 0.0
      %4176 = vmatprep.subr.mxu0 0.0
      %4177 = vmatpush1.msra.mxu0 0.0
      %4178 = vmatprep.subr.mxu0 0.0
      %4179 = vmatpush1.msra.mxu0 0.0
      %4180 = vmatprep.subr.mxu0 0.0
      %4181 = vmatpush1.msra.mxu0 0.0
      %4182 = vmatprep.subr.mxu0 0.0
      %4183 = vmatpush1.msra.mxu0 0.0
      %4184 = vmatprep.subr.mxu0 0.0
      %4185 = vmatpush1.msra.mxu0 0.0
      %4186 = vmatprep.subr.mxu0 0.0
      %4187 = vmatpush1.msra.mxu0 0.0
      %4188 = vmatprep.subr.mxu0 0.0
      %4189 = vmatpush1.msra.mxu0 0.0
      %4190 = vmatprep.subr.mxu0 0.0
      %4191 = vmatpush1.msra.mxu0 0.0
      %4192 = vmatprep.subr.mxu0 0.0
      %4193 = vmatpush1.msra.mxu0 0.0
      %4194 = vmatprep.mubr.f32.mxu0 0.0
      %4195 = vmatmul.mubr.f32.gmra.mrb[0].mxu0 %v2991
      %v4196 = vpop.f32.mrb[0].mxu0
      %v4197 = vadd.f32 %v4128, %v4196
      %v4198 = vpop.f32.mrb[0].mxu0
      %4199 = vdwg.mxu0
      %v4201 = vsel %vm1035, %v4033, 0
      %v4204 = vsel %vm1035, %v4114, 0
      %4206 = vmatprep.subr.mxu0 0.0
      %4207 = vmatpush1.xpose.msra.mxu0 %v4204
      %4208 = vmatprep.subr.mxu0 0.0
      %4209 = vmatpush1.xpose.msra.mxu0 0.0
      %4210 = vmatprep.subr.mxu0 0.0
      %4211 = vmatpush1.xpose.msra.mxu0 0.0
      %4212 = vmatprep.subr.mxu0 0.0
      %4213 = vmatpush1.xpose.msra.mxu0 0.0
      %4214 = vmatprep.subr.mxu0 0.0
      %4215 = vmatpush1.xpose.msra.mxu0 0.0
      %4216 = vmatprep.subr.mxu0 0.0
      %4217 = vmatpush1.xpose.msra.mxu0 0.0
      %4218 = vmatprep.subr.mxu0 0.0
      %4219 = vmatpush1.xpose.msra.mxu0 0.0
      %4220 = vmatprep.subr.mxu0 0.0
      %4221 = vmatpush1.xpose.msra.mxu0 0.0
      %4222 = vmatprep.subr.mxu0 0.0
      %4223 = vmatpush1.xpose.msra.mxu0 0.0
      %4224 = vmatprep.subr.mxu0 0.0
      %4225 = vmatpush1.xpose.msra.mxu0 0.0
      %4226 = vmatprep.subr.mxu0 0.0
      %4227 = vmatpush1.xpose.msra.mxu0 0.0
      %4228 = vmatprep.subr.mxu0 0.0
      %4229 = vmatpush1.xpose.msra.mxu0 0.0
      %4230 = vmatprep.subr.mxu0 0.0
      %4231 = vmatpush1.xpose.msra.mxu0 0.0
      %4232 = vmatprep.subr.mxu0 0.0
      %4233 = vmatpush1.xpose.msra.mxu0 0.0
      %4234 = vmatprep.subr.mxu0 0.0
      %4235 = vmatpush1.xpose.msra.mxu0 0.0
      %4236 = vmatprep.subr.mxu0 0.0
      %4237 = vmatpush1.xpose.msra.mxu0 0.0
      %4238 = vmatprep.subr.mxu0 0.0
      %4239 = vmatpush1.xpose.msra.mxu0 0.0
      %4240 = vmatprep.subr.mxu0 0.0
      %4241 = vmatpush1.xpose.msra.mxu0 0.0
      %4242 = vmatprep.subr.mxu0 0.0
      %4243 = vmatpush1.xpose.msra.mxu0 0.0
      %4244 = vmatprep.subr.mxu0 0.0
      %4245 = vmatpush1.xpose.msra.mxu0 0.0
      %4246 = vmatprep.subr.mxu0 0.0
      %4247 = vmatpush1.xpose.msra.mxu0 0.0
      %4248 = vmatprep.subr.mxu0 0.0
      %4249 = vmatpush1.xpose.msra.mxu0 0.0
      %4250 = vmatprep.subr.mxu0 0.0
      %4251 = vmatpush1.xpose.msra.mxu0 0.0
      %4252 = vmatprep.subr.mxu0 0.0
      %4253 = vmatpush1.xpose.msra.mxu0 0.0
      %4254 = vmatprep.subr.mxu0 0.0
      %4255 = vmatpush1.xpose.msra.mxu0 0.0
      %4256 = vmatprep.subr.mxu0 0.0
      %4257 = vmatpush1.xpose.msra.mxu0 0.0
      %4258 = vmatprep.subr.mxu0 0.0
      %4259 = vmatpush1.xpose.msra.mxu0 0.0
      %4260 = vmatprep.subr.mxu0 0.0
      %4261 = vmatpush1.xpose.msra.mxu0 0.0
      %4262 = vmatprep.subr.mxu0 0.0
      %4263 = vmatpush1.xpose.msra.mxu0 0.0
      %4264 = vmatprep.subr.mxu0 0.0
      %4265 = vmatpush1.xpose.msra.mxu0 0.0
      %4266 = vmatprep.subr.mxu0 0.0
      %4267 = vmatpush1.xpose.msra.mxu0 0.0
      %4268 = vmatprep.subr.mxu0 0.0
      %4269 = vmatpush1.xpose.msra.mxu0 0.0
      %4270 = vmatprep.mubr.f32.mxu0 0.0
      %4271 = vmatmul.mubr.f32.gmra.mrb[0].mxu0 %v4201
      %v4272 = vpop.f32.mrb[0].mxu0
      %v4273 = vadd.f32 %v1033, %v4272
      %v4274 = vpop.f32.mrb[0].mxu0
      %4275 = vdwg.mxu0
      %v4276 = vsel %vm1035, %v4273, -inf
      %4277 = vmax.xlane.f32.xlu0 %v4276
      %v4278 = vpop.xlane.xlu0 %4277
      %v4279 = vsub.f32 %v4273, %v4278
      %v4280 = vmul.f32 %v4279, 1.442695
      %v4281 = vpow.pop %v4280
      %v4282 = vsel %vm1035, %v4281, 0.0
      %4283 = vadd.xlane.f32.xlu0 %v4282
      %v4284 = vpop.xlane.xlu0 %4283
      %v4285 = vrcp.pop %v4284
      %v4286 = vmul.f32 %v4281, %v4285
      %v4288 = vsel %vm1035, %v4286, 0
      %4290 = vmatprep.subr.mxu0 0.0
      %4291 = vmatpush1.msra.mxu0 %v4197
      %4292 = vmatprep.subr.mxu0 0.0
      %4293 = vmatpush1.msra.mxu0 0.0
      %4294 = vmatprep.subr.mxu0 0.0
      %4295 = vmatpush1.msra.mxu0 0.0
      %4296 = vmatprep.subr.mxu0 0.0
      %4297 = vmatpush1.msra.mxu0 0.0
      %4298 = vmatprep.subr.mxu0 0.0
      %4299 = vmatpush1.msra.mxu0 0.0
      %4300 = vmatprep.subr.mxu0 0.0
      %4301 = vmatpush1.msra.mxu0 0.0
      %4302 = vmatprep.subr.mxu0 0.0
      %4303 = vmatpush1.msra.mxu0 0.0
      %4304 = vmatprep.subr.mxu0 0.0
      %4305 = vmatpush1.msra.mxu0 0.0
      %4306 = vmatprep.subr.mxu0 0.0
      %4307 = vmatpush1.msra.mxu0 0.0
      %4308 = vmatprep.subr.mxu0 0.0
      %4309 = vmatpush1.msra.mxu0 0.0
      %4310 = vmatprep.subr.mxu0 0.0
      %4311 = vmatpush1.msra.mxu0 0.0
      %4312 = vmatprep.subr.mxu0 0.0
      %4313 = vmatpush1.msra.mxu0 0.0
      %4314 = vmatprep.subr.mxu0 0.0
      %4315 = vmatpush1.msra.mxu0 0.0
      %4316 = vmatprep.subr.mxu0 0.0
      %4317 = vmatpush1.msra.mxu0 0.0
      %4318 = vmatprep.subr.mxu0 0.0
      %4319 = vmatpush1.msra.mxu0 0.0
      %4320 = vmatprep.subr.mxu0 0.0
      %4321 = vmatpush1.msra.mxu0 0.0
      %4322 = vmatprep.subr.mxu0 0.0
      %4323 = vmatpush1.msra.mxu0 0.0
      %4324 = vmatprep.subr.mxu0 0.0
      %4325 = vmatpush1.msra.mxu0 0.0
      %4326 = vmatprep.subr.mxu0 0.0
      %4327 = vmatpush1.msra.mxu0 0.0
      %4328 = vmatprep.subr.mxu0 0.0
      %4329 = vmatpush1.msra.mxu0 0.0
      %4330 = vmatprep.subr.mxu0 0.0
      %4331 = vmatpush1.msra.mxu0 0.0
      %4332 = vmatprep.subr.mxu0 0.0
      %4333 = vmatpush1.msra.mxu0 0.0
      %4334 = vmatprep.subr.mxu0 0.0
      %4335 = vmatpush1.msra.mxu0 0.0
      %4336 = vmatprep.subr.mxu0 0.0
      %4337 = vmatpush1.msra.mxu0 0.0
      %4338 = vmatprep.subr.mxu0 0.0
      %4339 = vmatpush1.msra.mxu0 0.0
      %4340 = vmatprep.subr.mxu0 0.0
      %4341 = vmatpush1.msra.mxu0 0.0
      %4342 = vmatprep.subr.mxu0 0.0
      %4343 = vmatpush1.msra.mxu0 0.0
      %4344 = vmatprep.subr.mxu0 0.0
      %4345 = vmatpush1.msra.mxu0 0.0
      %4346 = vmatprep.subr.mxu0 0.0
      %4347 = vmatpush1.msra.mxu0 0.0
      %4348 = vmatprep.subr.mxu0 0.0
      %4349 = vmatpush1.msra.mxu0 0.0
      %4350 = vmatprep.subr.mxu0 0.0
      %4351 = vmatpush1.msra.mxu0 0.0
      %4352 = vmatprep.subr.mxu0 0.0
      %4353 = vmatpush1.msra.mxu0 0.0
      %4354 = vmatprep.mubr.f32.mxu0 0.0
      %4355 = vmatmul.mubr.f32.gmra.mrb[0].mxu0 %v4288
      %v4356 = vpop.f32.mrb[0].mxu0
      %v4357 = vadd.f32 0.0, %v4356
      %v4358 = vpop.f32.mrb[0].mxu0
      %4359 = vdwg.mxu0
      %s4360 = scalar_lea.vmem %s10, 48
      %v4361 = vld [vmem:[%s4360] sm:$0xff]
      %v4363 = vsel %vm1035, %v4357, 0
      %4365 = vmatprep.subr.mxu0 0.0
      %4366 = vmatpush1.msra.mxu0 %v4361
      %4367 = vmatprep.subr.mxu0 0.0
      %4368 = vmatpush1.msra.mxu0 0.0
      %4369 = vmatprep.subr.mxu0 0.0
      %4370 = vmatpush1.msra.mxu0 0.0
      %4371 = vmatprep.subr.mxu0 0.0
      %4372 = vmatpush1.msra.mxu0 0.0
      %4373 = vmatprep.subr.mxu0 0.0
      %4374 = vmatpush1.msra.mxu0 0.0
      %4375 = vmatprep.subr.mxu0 0.0
      %4376 = vmatpush1.msra.mxu0 0.0
      %4377 = vmatprep.subr.mxu0 0.0
      %4378 = vmatpush1.msra.mxu0 0.0
      %4379 = vmatprep.subr.mxu0 0.0
      %4380 = vmatpush1.msra.mxu0 0.0
      %4381 = vmatprep.subr.mxu0 0.0
      %4382 = vmatpush1.msra.mxu0 0.0
      %4383 = vmatprep.subr.mxu0 0.0
      %4384 = vmatpush1.msra.mxu0 0.0
      %4385 = vmatprep.subr.mxu0 0.0
      %4386 = vmatpush1.msra.mxu0 0.0
      %4387 = vmatprep.subr.mxu0 0.0
      %4388 = vmatpush1.msra.mxu0 0.0
      %4389 = vmatprep.subr.mxu0 0.0
      %4390 = vmatpush1.msra.mxu0 0.0
      %4391 = vmatprep.subr.mxu0 0.0
      %4392 = vmatpush1.msra.mxu0 0.0
      %4393 = vmatprep.subr.mxu0 0.0
      %4394 = vmatpush1.msra.mxu0 0.0
      %4395 = vmatprep.subr.mxu0 0.0
      %4396 = vmatpush1.msra.mxu0 0.0
      %4397 = vmatprep.subr.mxu0 0.0
      %4398 = vmatpush1.msra.mxu0 0.0
      %4399 = vmatprep.subr.mxu0 0.0
      %4400 = vmatpush1.msra.mxu0 0.0
      %4401 = vmatprep.subr.mxu0 0.0
      %4402 = vmatpush1.msra.mxu0 0.0
      %4403 = vmatprep.subr.mxu0 0.0
      %4404 = vmatpush1.msra.mxu0 0.0
      %4405 = vmatprep.subr.mxu0 0.0
      %4406 = vmatpush1.msra.mxu0 0.0
      %4407 = vmatprep.subr.mxu0 0.0
      %4408 = vmatpush1.msra.mxu0 0.0
      %4409 = vmatprep.subr.mxu0 0.0
      %4410 = vmatpush1.msra.mxu0 0.0
      %4411 = vmatprep.subr.mxu0 0.0
      %4412 = vmatpush1.msra.mxu0 0.0
      %4413 = vmatprep.subr.mxu0 0.0
      %4414 = vmatpush1.msra.mxu0 0.0
      %4415 = vmatprep.subr.mxu0 0.0
      %4416 = vmatpush1.msra.mxu0 0.0
      %4417 = vmatprep.subr.mxu0 0.0
      %4418 = vmatpush1.msra.mxu0 0.0
      %4419 = vmatprep.subr.mxu0 0.0
      %4420 = vmatpush1.msra.mxu0 0.0
      %4421 = vmatprep.subr.mxu0 0.0
      %4422 = vmatpush1.msra.mxu0 0.0
      %4423 = vmatprep.subr.mxu0 0.0
      %4424 = vmatpush1.msra.mxu0 0.0
      %4425 = vmatprep.subr.mxu0 0.0
      %4426 = vmatpush1.msra.mxu0 0.0
      %4427 = vmatprep.subr.mxu0 0.0
      %4428 = vmatpush1.msra.mxu0 0.0
      %4429 = vmatprep.mubr.f32.mxu0 0.0
      %4430 = vmatmul.mubr.f32.gmra.mrb[0].mxu0 %v4363
      %v4431 = vpop.f32.mrb[0].mxu0
      %v4432 = vadd.f32 0.0, %v4431
      %v4433 = vpop.f32.mrb[0].mxu0
      %4434 = vdwg.mxu0
      %v4435 = vadd.f32 %v3947, %v4432
      %s4436 = scalar_lea.vmem %s4, 224
      %v4437 = vld [vmem:[%s4436] sm:$0xff]
      %v4438 = vld [vmem:[%s4436 + $0x8] sm:$0xff]
      %v4439 = vld [vmem:[%s4436 + $0x10] sm:$0xff]
      %v4440 = vld [vmem:[%s4436 + $0x18] sm:$0xff]
      %s4441 = scalar_lea.vmem %s5, 7
      %v4442 = vld [vmem:[%s4441] sm:$0x1]
      %v4444 = vlaneseq
      %v4445 = vshrl.u32 %v4444, 7
      %v4446 = vsub.s32 0, %v4445
      %v4447 = vrot.slane %v4442, %v4446
      %4449 = vmatprep.subr.mxu0 0.0
      %4450 = vmatpush1.msra.mxu0 %v4437
      %4451 = vmatprep.subr.mxu0 0.0
      %4452 = vmatpush1.msra.mxu0 %v4438
      %4453 = vmatprep.subr.mxu0 0.0
      %4454 = vmatpush1.msra.mxu0 %v4439
      %4455 = vmatprep.subr.mxu0 0.0
      %4456 = vmatpush1.msra.mxu0 %v4440
      %4457 = vmatprep.subr.mxu0 0.0
      %4458 = vmatpush1.msra.mxu0 0.0
      %4459 = vmatprep.subr.mxu0 0.0
      %4460 = vmatpush1.msra.mxu0 0.0
      %4461 = vmatprep.subr.mxu0 0.0
      %4462 = vmatpush1.msra.mxu0 0.0
      %4463 = vmatprep.subr.mxu0 0.0
      %4464 = vmatpush1.msra.mxu0 0.0
      %4465 = vmatprep.subr.mxu0 0.0
      %4466 = vmatpush1.msra.mxu0 0.0
      %4467 = vmatprep.subr.mxu0 0.0
      %4468 = vmatpush1.msra.mxu0 0.0
      %4469 = vmatprep.subr.mxu0 0.0
      %4470 = vmatpush1.msra.mxu0 0.0
      %4471 = vmatprep.subr.mxu0 0.0
      %4472 = vmatpush1.msra.mxu0 0.0
      %4473 = vmatprep.subr.mxu0 0.0
      %4474 = vmatpush1.msra.mxu0 0.0
      %4475 = vmatprep.subr.mxu0 0.0
      %4476 = vmatpush1.msra.mxu0 0.0
      %4477 = vmatprep.subr.mxu0 0.0
      %4478 = vmatpush1.msra.mxu0 0.0
      %4479 = vmatprep.subr.mxu0 0.0
      %4480 = vmatpush1.msra.mxu0 0.0
      %4481 = vmatprep.subr.mxu0 0.0
      %4482 = vmatpush1.msra.mxu0 0.0
      %4483 = vmatprep.subr.mxu0 0.0
      %4484 = vmatpush1.msra.mxu0 0.0
      %4485 = vmatprep.subr.mxu0 0.0
      %4486 = vmatpush1.msra.mxu0 0.0
      %4487 = vmatprep.subr.mxu0 0.0
      %4488 = vmatpush1.msra.mxu0 0.0
      %4489 = vmatprep.subr.mxu0 0.0
      %4490 = vmatpush1.msra.mxu0 0.0
      %4491 = vmatprep.subr.mxu0 0.0
      %4492 = vmatpush1.msra.mxu0 0.0
      %4493 = vmatprep.subr.mxu0 0.0
      %4494 = vmatpush1.msra.mxu0 0.0
      %4495 = vmatprep.subr.mxu0 0.0
      %4496 = vmatpush1.msra.mxu0 0.0
      %4497 = vmatprep.subr.mxu0 0.0
      %4498 = vmatpush1.msra.mxu0 0.0
      %4499 = vmatprep.subr.mxu0 0.0
      %4500 = vmatpush1.msra.mxu0 0.0
      %4501 = vmatprep.subr.mxu0 0.0
      %4502 = vmatpush1.msra.mxu0 0.0
      %4503 = vmatprep.subr.mxu0 0.0
      %4504 = vmatpush1.msra.mxu0 0.0
      %4505 = vmatprep.subr.mxu0 0.0
      %4506 = vmatpush1.msra.mxu0 0.0
      %4507 = vmatprep.subr.mxu0 0.0
      %4508 = vmatpush1.msra.mxu0 0.0
      %4509 = vmatprep.subr.mxu0 0.0
      %4510 = vmatpush1.msra.mxu0 0.0
      %4511 = vmatprep.subr.mxu0 0.0
      %4512 = vmatpush1.msra.mxu0 0.0
      %4513 = vmatprep.mubr.f32.mxu0 0.0
      %4514 = vmatmul.mubr.f32.gmra.mrb[0].mxu0 %v2991
      %v4515 = vpop.f32.mrb[0].mxu0
      %v4516 = vadd.f32 %v4447, %v4515
      %v4517 = vpop.f32.mrb[0].mxu0
      %4518 = vdwg.mxu0
      %v4519 = vmul.f32 %v4516, 0.35355338
      %s4520 = scalar_lea.vmem %s6, 224
      %v4521 = vld [vmem:[%s4520] sm:$0xff]
      %v4522 = vld [vmem:[%s4520 + $0x8] sm:$0xff]
      %v4523 = vld [vmem:[%s4520 + $0x10] sm:$0xff]
      %v4524 = vld [vmem:[%s4520 + $0x18] sm:$0xff]
      %s4525 = scalar_lea.vmem %s7, 7
      %v4526 = vld [vmem:[%s4525] sm:$0x1]
      %v4528 = vlaneseq
      %v4529 = vshrl.u32 %v4528, 7
      %v4530 = vsub.s32 0, %v4529
      %v4531 = vrot.slane %v4526, %v4530
      %4533 = vmatprep.subr.mxu0 0.0
      %4534 = vmatpush1.msra.mxu0 %v4521
      %4535 = vmatprep.subr.mxu0 0.0
      %4536 = vmatpush1.msra.mxu0 %v4522
      %4537 = vmatprep.subr.mxu0 0.0
      %4538 = vmatpush1.msra.mxu0 %v4523
      %4539 = vmatprep.subr.mxu0 0.0
      %4540 = vmatpush1.msra.mxu0 %v4524
      %4541 = vmatprep.subr.mxu0 0.0
      %4542 = vmatpush1.msra.mxu0 0.0
      %4543 = vmatprep.subr.mxu0 0.0
      %4544 = vmatpush1.msra.mxu0 0.0
      %4545 = vmatprep.subr.mxu0 0.0
      %4546 = vmatpush1.msra.mxu0 0.0
      %4547 = vmatprep.subr.mxu0 0.0
      %4548 = vmatpush1.msra.mxu0 0.0
      %4549 = vmatprep.subr.mxu0 0.0
      %4550 = vmatpush1.msra.mxu0 0.0
      %4551 = vmatprep.subr.mxu0 0.0
      %4552 = vmatpush1.msra.mxu0 0.0
      %4553 = vmatprep.subr.mxu0 0.0
      %4554 = vmatpush1.msra.mxu0 0.0
      %4555 = vmatprep.subr.mxu0 0.0
      %4556 = vmatpush1.msra.mxu0 0.0
      %4557 = vmatprep.subr.mxu0 0.0
      %4558 = vmatpush1.msra.mxu0 0.0
      %4559 = vmatprep.subr.mxu0 0.0
      %4560 = vmatpush1.msra.mxu0 0.0
      %4561 = vmatprep.subr.mxu0 0.0
      %4562 = vmatpush1.msra.mxu0 0.0
      %4563 = vmatprep.subr.mxu0 0.0
      %4564 = vmatpush1.msra.mxu0 0.0
      %4565 = vmatprep.subr.mxu0 0.0
      %4566 = vmatpush1.msra.mxu0 0.0
      %4567 = vmatprep.subr.mxu0 0.0
      %4568 = vmatpush1.msra.mxu0 0.0
      %4569 = vmatprep.subr.mxu0 0.0
      %4570 = vmatpush1.msra.mxu0 0.0
      %4571 = vmatprep.subr.mxu0 0.0
      %4572 = vmatpush1.msra.mxu0 0.0
      %4573 = vmatprep.subr.mxu0 0.0
      %4574 = vmatpush1.msra.mxu0 0.0
      %4575 = vmatprep.subr.mxu0 0.0
      %4576 = vmatpush1.msra.mxu0 0.0
      %4577 = vmatprep.subr.mxu0 0.0
      %4578 = vmatpush1.msra.mxu0 0.0
      %4579 = vmatprep.subr.mxu0 0.0
      %4580 = vmatpush1.msra.mxu0 0.0
      %4581 = vmatprep.subr.mxu0 0.0
      %4582 = vmatpush1.msra.mxu0 0.0
      %4583 = vmatprep.subr.mxu0 0.0
      %4584 = vmatpush1.msra.mxu0 0.0
      %4585 = vmatprep.subr.mxu0 0.0
      %4586 = vmatpush1.msra.mxu0 0.0
      %4587 = vmatprep.subr.mxu0 0.0
      %4588 = vmatpush1.msra.mxu0 0.0
      %4589 = vmatprep.subr.mxu0 0.0
      %4590 = vmatpush1.msra.mxu0 0.0
      %4591 = vmatprep.subr.mxu0 0.0
      %4592 = vmatpush1.msra.mxu0 0.0
      %4593 = vmatprep.subr.mxu0 0.0
      %4594 = vmatpush1.msra.mxu0 0.0
      %4595 = vmatprep.subr.mxu0 0.0
      %4596 = vmatpush1.msra.mxu0 0.0
      %4597 = vmatprep.mubr.f32.mxu0 0.0
      %4598 = vmatmul.mubr.f32.gmra.mrb[0].mxu0 %v2991
      %v4599 = vpop.f32.mrb[0].mxu0
      %v4600 = vadd.f32 %v4531, %v4599
      %v4601 = vpop.f32.mrb[0].mxu0
      %4602 = vdwg.mxu0
      %s4603 = scalar_lea.vmem %s8, 224
      %v4604 = vld [vmem:[%s4603] sm:$0xff]
      %v4605 = vld [vmem:[%s4603 + $0x8] sm:$0xff]
      %v4606 = vld [vmem:[%s4603 + $0x10] sm:$0xff]
      %v4607 = vld [vmem:[%s4603 + $0x18] sm:$0xff]
      %s4608 = scalar_lea.vmem %s9, 7
      %v4609 = vld [vmem:[%s4608] sm:$0x1]
      %v4611 = vlaneseq
      %v4612 = vshrl.u32 %v4611, 7
      %v4613 = vsub.s32 0, %v4612
      %v4614 = vrot.slane %v4609, %v4613
      %4616 = vmatprep.subr.mxu0 0.0
      %4617 = vmatpush1.msra.mxu0 %v4604
      %4618 = vmatprep.subr.mxu0 0.0
      %4619 = vmatpush1.msra.mxu0 %v4605
      %4620 = vmatprep.subr.mxu0 0.0
      %4621 = vmatpush1.msra.mxu0 %v4606
      %4622 = vmatprep.subr.mxu0 0.0
      %4623 = vmatpush1.msra.mxu0 %v4607
      %4624 = vmatprep.subr.mxu0 0.0
      %4625 = vmatpush1.msra.mxu0 0.0
      %4626 = vmatprep.subr.mxu0 0.0
      %4627 = vmatpush1.msra.mxu0 0.0
      %4628 = vmatprep.subr.mxu0 0.0
      %4629 = vmatpush1.msra.mxu0 0.0
      %4630 = vmatprep.subr.mxu0 0.0
      %4631 = vmatpush1.msra.mxu0 0.0
      %4632 = vmatprep.subr.mxu0 0.0
      %4633 = vmatpush1.msra.mxu0 0.0
      %4634 = vmatprep.subr.mxu0 0.0
      %4635 = vmatpush1.msra.mxu0 0.0
      %4636 = vmatprep.subr.mxu0 0.0
      %4637 = vmatpush1.msra.mxu0 0.0
      %4638 = vmatprep.subr.mxu0 0.0
      %4639 = vmatpush1.msra.mxu0 0.0
      %4640 = vmatprep.subr.mxu0 0.0
      %4641 = vmatpush1.msra.mxu0 0.0
      %4642 = vmatprep.subr.mxu0 0.0
      %4643 = vmatpush1.msra.mxu0 0.0
      %4644 = vmatprep.subr.mxu0 0.0
      %4645 = vmatpush1.msra.mxu0 0.0
      %4646 = vmatprep.subr.mxu0 0.0
      %4647 = vmatpush1.msra.mxu0 0.0
      %4648 = vmatprep.subr.mxu0 0.0
      %4649 = vmatpush1.msra.mxu0 0.0
      %4650 = vmatprep.subr.mxu0 0.0
      %4651 = vmatpush1.msra.mxu0 0.0
      %4652 = vmatprep.subr.mxu0 0.0
      %4653 = vmatpush1.msra.mxu0 0.0
      %4654 = vmatprep.subr.mxu0 0.0
      %4655 = vmatpush1.msra.mxu0 0.0
      %4656 = vmatprep.subr.mxu0 0.0
      %4657 = vmatpush1.msra.mxu0 0.0
      %4658 = vmatprep.subr.mxu0 0.0
      %4659 = vmatpush1.msra.mxu0 0.0
      %4660 = vmatprep.subr.mxu0 0.0
      %4661 = vmatpush1.msra.mxu0 0.0
      %4662 = vmatprep.subr.mxu0 0.0
      %4663 = vmatpush1.msra.mxu0 0.0
      %4664 = vmatprep.subr.mxu0 0.0
      %4665 = vmatpush1.msra.mxu0 0.0
      %4666 = vmatprep.subr.mxu0 0.0
      %4667 = vmatpush1.msra.mxu0 0.0
      %4668 = vmatprep.subr.mxu0 0.0
      %4669 = vmatpush1.msra.mxu0 0.0
      %4670 = vmatprep.subr.mxu0 0.0
      %4671 = vmatpush1.msra.mxu0 0.0
      %4672 = vmatprep.subr.mxu0 0.0
      %4673 = vmatpush1.msra.mxu0 0.0
      %4674 = vmatprep.subr.mxu0 0.0
      %4675 = vmatpush1.msra.mxu0 0.0
      %4676 = vmatprep.subr.mxu0 0.0
      %4677 = vmatpush1.msra.mxu0 0.0
      %4678 = vmatprep.subr.mxu0 0.0
      %4679 = vmatpush1.msra.mxu0 0.0
      %4680 = vmatprep.mubr.f32.mxu0 0.0
      %4681 = vmatmul.mubr.f32.gmra.mrb[0].mxu0 %v2991
      %v4682 = vpop.f32.mrb[0].mxu0
      %v4683 = vadd.f32 %v4614, %v4682
      %v4684 = vpop.f32.mrb[0].mxu0
      %4685 = vdwg.mxu0
      %v4687 = vsel %vm1035, %v4519, 0
      %v4690 = vsel %vm1035, %v4600, 0
      %4692 = vmatprep.subr.mxu0 0.0
      %4693 = vmatpush1.xpose.msra.mxu0 %v4690
      %4694 = vmatprep.subr.mxu0 0.0
      %4695 = vmatpush1.xpose.msra.mxu0 0.0
      %4696 = vmatprep.subr.mxu0 0.0
      %4697 = vmatpush1.xpose.msra.mxu0 0.0
      %4698 = vmatprep.subr.mxu0 0.0
      %4699 = vmatpush1.xpose.msra.mxu0 0.0
      %4700 = vmatprep.subr.mxu0 0.0
      %4701 = vmatpush1.xpose.msra.mxu0 0.0
      %4702 = vmatprep.subr.mxu0 0.0
      %4703 = vmatpush1.xpose.msra.mxu0 0.0
      %4704 = vmatprep.subr.mxu0 0.0
      %4705 = vmatpush1.xpose.msra.mxu0 0.0
      %4706 = vmatprep.subr.mxu0 0.0
      %4707 = vmatpush1.xpose.msra.mxu0 0.0
      %4708 = vmatprep.subr.mxu0 0.0
      %4709 = vmatpush1.xpose.msra.mxu0 0.0
      %4710 = vmatprep.subr.mxu0 0.0
      %4711 = vmatpush1.xpose.msra.mxu0 0.0
      %4712 = vmatprep.subr.mxu0 0.0
      %4713 = vmatpush1.xpose.msra.mxu0 0.0
      %4714 = vmatprep.subr.mxu0 0.0
      %4715 = vmatpush1.xpose.msra.mxu0 0.0
      %4716 = vmatprep.subr.mxu0 0.0
      %4717 = vmatpush1.xpose.msra.mxu0 0.0
      %4718 = vmatprep.subr.mxu0 0.0
      %4719 = vmatpush1.xpose.msra.mxu0 0.0
      %4720 = vmatprep.subr.mxu0 0.0
      %4721 = vmatpush1.xpose.msra.mxu0 0.0
      %4722 = vmatprep.subr.mxu0 0.0
      %4723 = vmatpush1.xpose.msra.mxu0 0.0
      %4724 = vmatprep.subr.mxu0 0.0
      %4725 = vmatpush1.xpose.msra.mxu0 0.0
      %4726 = vmatprep.subr.mxu0 0.0
      %4727 = vmatpush1.xpose.msra.mxu0 0.0
      %4728 = vmatprep.subr.mxu0 0.0
      %4729 = vmatpush1.xpose.msra.mxu0 0.0
      %4730 = vmatprep.subr.mxu0 0.0
      %4731 = vmatpush1.xpose.msra.mxu0 0.0
      %4732 = vmatprep.subr.mxu0 0.0
      %4733 = vmatpush1.xpose.msra.mxu0 0.0
      %4734 = vmatprep.subr.mxu0 0.0
      %4735 = vmatpush1.xpose.msra.mxu0 0.0
      %4736 = vmatprep.subr.mxu0 0.0
      %4737 = vmatpush1.xpose.msra.mxu0 0.0
      %4738 = vmatprep.subr.mxu0 0.0
      %4739 = vmatpush1.xpose.msra.mxu0 0.0
      %4740 = vmatprep.subr.mxu0 0.0
      %4741 = vmatpush1.xpose.msra.mxu0 0.0
      %4742 = vmatprep.subr.mxu0 0.0
      %4743 = vmatpush1.xpose.msra.mxu0 0.0
      %4744 = vmatprep.subr.mxu0 0.0
      %4745 = vmatpush1.xpose.msra.mxu0 0.0
      %4746 = vmatprep.subr.mxu0 0.0
      %4747 = vmatpush1.xpose.msra.mxu0 0.0
      %4748 = vmatprep.subr.mxu0 0.0
      %4749 = vmatpush1.xpose.msra.mxu0 0.0
      %4750 = vmatprep.subr.mxu0 0.0
      %4751 = vmatpush1.xpose.msra.mxu0 0.0
      %4752 = vmatprep.subr.mxu0 0.0
      %4753 = vmatpush1.xpose.msra.mxu0 0.0
      %4754 = vmatprep.subr.mxu0 0.0
      %4755 = vmatpush1.xpose.msra.mxu0 0.0
      %4756 = vmatprep.mubr.f32.mxu0 0.0
      %4757 = vmatmul.mubr.f32.gmra.mrb[0].mxu0 %v4687
      %v4758 = vpop.f32.mrb[0].mxu0
      %v4759 = vadd.f32 %v1033, %v4758
      %v4760 = vpop.f32.mrb[0].mxu0
      %4761 = vdwg.mxu0
      %v4762 = vsel %vm1035, %v4759, -inf
      %4763 = vmax.xlane.f32.xlu0 %v4762
      %v4764 = vpop.xlane.xlu0 %4763
      %v4765 = vsub.f32 %v4759, %v4764
      %v4766 = vmul.f32 %v4765, 1.442695
      %v4767 = vpow.pop %v4766
      %v4768 = vsel %vm1035, %v4767, 0.0
      %4769 = vadd.xlane.f32.xlu0 %v4768
      %v4770 = vpop.xlane.xlu0 %4769
      %v4771 = vrcp.pop %v4770
      %v4772 = vmul.f32 %v4767, %v4771
      %v4774 = vsel %vm1035, %v4772, 0
      %4776 = vmatprep.subr.mxu0 0.0
      %4777 = vmatpush1.msra.mxu0 %v4683
      %4778 = vmatprep.subr.mxu0 0.0
      %4779 = vmatpush1.msra.mxu0 0.0
      %4780 = vmatprep.subr.mxu0 0.0
      %4781 = vmatpush1.msra.mxu0 0.0
      %4782 = vmatprep.subr.mxu0 0.0
      %4783 = vmatpush1.msra.mxu0 0.0
      %4784 = vmatprep.subr.mxu0 0.0
      %4785 = vmatpush1.msra.mxu0 0.0
      %4786 = vmatprep.subr.mxu0 0.0
      %4787 = vmatpush1.msra.mxu0 0.0
      %4788 = vmatprep.subr.mxu0 0.0
      %4789 = vmatpush1.msra.mxu0 0.0
      %4790 = vmatprep.subr.mxu0 0.0
      %4791 = vmatpush1.msra.mxu0 0.0
      %4792 = vmatprep.subr.mxu0 0.0
      %4793 = vmatpush1.msra.mxu0 0.0
      %4794 = vmatprep.subr.mxu0 0.0
      %4795 = vmatpush1.msra.mxu0 0.0
      %4796 = vmatprep.subr.mxu0 0.0
      %4797 = vmatpush1.msra.mxu0 0.0
      %4798 = vmatprep.subr.mxu0 0.0
      %4799 = vmatpush1.msra.mxu0 0.0
      %4800 = vmatprep.subr.mxu0 0.0
      %4801 = vmatpush1.msra.mxu0 0.0
      %4802 = vmatprep.subr.mxu0 0.0
      %4803 = vmatpush1.msra.mxu0 0.0
      %4804 = vmatprep.subr.mxu0 0.0
      %4805 = vmatpush1.msra.mxu0 0.0
      %4806 = vmatprep.subr.mxu0 0.0
      %4807 = vmatpush1.msra.mxu0 0.0
      %4808 = vmatprep.subr.mxu0 0.0
      %4809 = vmatpush1.msra.mxu0 0.0
      %4810 = vmatprep.subr.mxu0 0.0
      %4811 = vmatpush1.msra.mxu0 0.0
      %4812 = vmatprep.subr.mxu0 0.0
      %4813 = vmatpush1.msra.mxu0 0.0
      %4814 = vmatprep.subr.mxu0 0.0
      %4815 = vmatpush1.msra.mxu0 0.0
      %4816 = vmatprep.subr.mxu0 0.0
      %4817 = vmatpush1.msra.mxu0 0.0
      %4818 = vmatprep.subr.mxu0 0.0
      %4819 = vmatpush1.msra.mxu0 0.0
      %4820 = vmatprep.subr.mxu0 0.0
      %4821 = vmatpush1.msra.mxu0 0.0
      %4822 = vmatprep.subr.mxu0 0.0
      %4823 = vmatpush1.msra.mxu0 0.0
      %4824 = vmatprep.subr.mxu0 0.0
      %4825 = vmatpush1.msra.mxu0 0.0
      %4826 = vmatprep.subr.mxu0 0.0
      %4827 = vmatpush1.msra.mxu0 0.0
      %4828 = vmatprep.subr.mxu0 0.0
      %4829 = vmatpush1.msra.mxu0 0.0
      %4830 = vmatprep.subr.mxu0 0.0
      %4831 = vmatpush1.msra.mxu0 0.0
      %4832 = vmatprep.subr.mxu0 0.0
      %4833 = vmatpush1.msra.mxu0 0.0
      %4834 = vmatprep.subr.mxu0 0.0
      %4835 = vmatpush1.msra.mxu0 0.0
      %4836 = vmatprep.subr.mxu0 0.0
      %4837 = vmatpush1.msra.mxu0 0.0
      %4838 = vmatprep.subr.mxu0 0.0
      %4839 = vmatpush1.msra.mxu0 0.0
      %4840 = vmatprep.mubr.f32.mxu0 0.0
      %4841 = vmatmul.mubr.f32.gmra.mrb[0].mxu0 %v4774
      %v4842 = vpop.f32.mrb[0].mxu0
      %v4843 = vadd.f32 0.0, %v4842
      %v4844 = vpop.f32.mrb[0].mxu0
      %4845 = vdwg.mxu0
      %s4846 = scalar_lea.vmem %s10, 56
      %v4847 = vld [vmem:[%s4846] sm:$0xff]
      %v4849 = vsel %vm1035, %v4843, 0
      %4851 = vmatprep.subr.mxu0 0.0
      %4852 = vmatpush1.msra.mxu0 %v4847
      %4853 = vmatprep.subr.mxu0 0.0
      %4854 = vmatpush1.msra.mxu0 0.0
      %4855 = vmatprep.subr.mxu0 0.0
      %4856 = vmatpush1.msra.mxu0 0.0
      %4857 = vmatprep.subr.mxu0 0.0
      %4858 = vmatpush1.msra.mxu0 0.0
      %4859 = vmatprep.subr.mxu0 0.0
      %4860 = vmatpush1.msra.mxu0 0.0
      %4861 = vmatprep.subr.mxu0 0.0
      %4862 = vmatpush1.msra.mxu0 0.0
      %4863 = vmatprep.subr.mxu0 0.0
      %4864 = vmatpush1.msra.mxu0 0.0
      %4865 = vmatprep.subr.mxu0 0.0
      %4866 = vmatpush1.msra.mxu0 0.0
      %4867 = vmatprep.subr.mxu0 0.0
      %4868 = vmatpush1.msra.mxu0 0.0
      %4869 = vmatprep.subr.mxu0 0.0
      %4870 = vmatpush1.msra.mxu0 0.0
      %4871 = vmatprep.subr.mxu0 0.0
      %4872 = vmatpush1.msra.mxu0 0.0
      %4873 = vmatprep.subr.mxu0 0.0
      %4874 = vmatpush1.msra.mxu0 0.0
      %4875 = vmatprep.subr.mxu0 0.0
      %4876 = vmatpush1.msra.mxu0 0.0
      %4877 = vmatprep.subr.mxu0 0.0
      %4878 = vmatpush1.msra.mxu0 0.0
      %4879 = vmatprep.subr.mxu0 0.0
      %4880 = vmatpush1.msra.mxu0 0.0
      %4881 = vmatprep.subr.mxu0 0.0
      %4882 = vmatpush1.msra.mxu0 0.0
      %4883 = vmatprep.subr.mxu0 0.0
      %4884 = vmatpush1.msra.mxu0 0.0
      %4885 = vmatprep.subr.mxu0 0.0
      %4886 = vmatpush1.msra.mxu0 0.0
      %4887 = vmatprep.subr.mxu0 0.0
      %4888 = vmatpush1.msra.mxu0 0.0
      %4889 = vmatprep.subr.mxu0 0.0
      %4890 = vmatpush1.msra.mxu0 0.0
      %4891 = vmatprep.subr.mxu0 0.0
      %4892 = vmatpush1.msra.mxu0 0.0
      %4893 = vmatprep.subr.mxu0 0.0
      %4894 = vmatpush1.msra.mxu0 0.0
      %4895 = vmatprep.subr.mxu0 0.0
      %4896 = vmatpush1.msra.mxu0 0.0
      %4897 = vmatprep.subr.mxu0 0.0
      %4898 = vmatpush1.msra.mxu0 0.0
      %4899 = vmatprep.subr.mxu0 0.0
      %4900 = vmatpush1.msra.mxu0 0.0
      %4901 = vmatprep.subr.mxu0 0.0
      %4902 = vmatpush1.msra.mxu0 0.0
      %4903 = vmatprep.subr.mxu0 0.0
      %4904 = vmatpush1.msra.mxu0 0.0
      %4905 = vmatprep.subr.mxu0 0.0
      %4906 = vmatpush1.msra.mxu0 0.0
      %4907 = vmatprep.subr.mxu0 0.0
      %4908 = vmatpush1.msra.mxu0 0.0
      %4909 = vmatprep.subr.mxu0 0.0
      %4910 = vmatpush1.msra.mxu0 0.0
      %4911 = vmatprep.subr.mxu0 0.0
      %4912 = vmatpush1.msra.mxu0 0.0
      %4913 = vmatprep.subr.mxu0 0.0
      %4914 = vmatpush1.msra.mxu0 0.0
      %4915 = vmatprep.mubr.f32.mxu0 0.0
      %4916 = vmatmul.mubr.f32.gmra.mrb[0].mxu0 %v4849
      %v4917 = vpop.f32.mrb[0].mxu0
      %v4918 = vadd.f32 0.0, %v4917
      %v4919 = vpop.f32.mrb[0].mxu0
      %4920 = vdwg.mxu0
      %v4921 = vadd.f32 %v4435, %v4918
      %s4922 = scalar_lea.vmem %s11, 1
      %v4923 = vld [vmem:[%s4922] sm:$0x1]
      %v4925 = vlaneseq
      %v4926 = vshrl.u32 %v4925, 7
      %v4927 = vsub.s32 0, %v4926
      %v4928 = vrot.slane %v4923, %v4927
      %v4930 = vadd.f32 %v4921, %v4928
      %v4931 = vadd.f32 %v4930, %v2976
      %s4932 = scalar_lea.vmem %s12, 1
      %v4933 = vld [vmem:[%s4932] sm:$0x1]
      %s4934 = scalar_lea.vmem %s13, 1
      %v4935 = vld [vmem:[%s4934] sm:$0x1]
      %v4936 = vsel %vm750, %v4931, 0.0
      %4937 = vadd.xlane.f32.xlu0 %v4936
      %v4938 = vpop.xlane.xlu0 %4937
      %v4939 = vmul.f32 %v4938, %v754
      %v4940 = vsub.f32 %v4931, %v4939
      %v4941 = vmul.f32 %v4940, %v4940
      %v4942 = vsel %vm750, %v4941, 0.0
      %4943 = vadd.xlane.f32.xlu0 %v4942
      %v4944 = vpop.xlane.xlu0 %4943
      %v4945 = vmul.f32 %v4944, %v754
      %v4946 = vadd.f32 %v4945, 1e-12
      %v4947 = vrsqrt.pop %v4946
      %v4948 = vmul.f32 %v4940, %v4947
      %v4950 = vlaneseq
      %v4951 = vshrl.u32 %v4950, 7
      %v4952 = vsub.s32 0, %v4951
      %v4953 = vrot.slane %v4933, %v4952
      %v4955 = vmul.f32 %v4948, %v4953
      %v4957 = vlaneseq
      %v4958 = vshrl.u32 %v4957, 7
      %v4959 = vsub.s32 0, %v4958
      %v4960 = vrot.slane %v4935, %v4959
      %v4962 = vadd.f32 %v4955, %v4960
      %s4963 = scalar_lea.vmem %s14, 32
      %v4964 = vld [vmem:[%s4963] sm:$0xff]
      %v4965 = vld [vmem:[%s4963 + $0x8] sm:$0xff]
      %v4966 = vld [vmem:[%s4963 + $0x10] sm:$0xff]
      %v4967 = vld [vmem:[%s4963 + $0x18] sm:$0xff]
      %s4968 = scalar_lea.vmem %s15, 1
      %v4969 = vld [vmem:[%s4968] sm:$0x1]
      %v4971 = vlaneseq
      %v4972 = vshrl.u32 %v4971, 7
      %v4973 = vsub.s32 0, %v4972
      %v4974 = vrot.slane %v4969, %v4973
      %v4977 = vsel %vm750, %v4962, 0
      %4979 = vmatprep.subr.mxu0 0.0
      %4980 = vmatpush1.msra.mxu0 %v4964
      %4981 = vmatprep.subr.mxu0 0.0
      %4982 = vmatpush1.msra.mxu0 %v4965
      %4983 = vmatprep.subr.mxu0 0.0
      %4984 = vmatpush1.msra.mxu0 %v4966
      %4985 = vmatprep.subr.mxu0 0.0
      %4986 = vmatpush1.msra.mxu0 %v4967
      %4987 = vmatprep.subr.mxu0 0.0
      %4988 = vmatpush1.msra.mxu0 0.0
      %4989 = vmatprep.subr.mxu0 0.0
      %4990 = vmatpush1.msra.mxu0 0.0
      %4991 = vmatprep.subr.mxu0 0.0
      %4992 = vmatpush1.msra.mxu0 0.0
      %4993 = vmatprep.subr.mxu0 0.0
      %4994 = vmatpush1.msra.mxu0 0.0
      %4995 = vmatprep.subr.mxu0 0.0
      %4996 = vmatpush1.msra.mxu0 0.0
      %4997 = vmatprep.subr.mxu0 0.0
      %4998 = vmatpush1.msra.mxu0 0.0
      %4999 = vmatprep.subr.mxu0 0.0
      %5000 = vmatpush1.msra.mxu0 0.0
      %5001 = vmatprep.subr.mxu0 0.0
      %5002 = vmatpush1.msra.mxu0 0.0
      %5003 = vmatprep.subr.mxu0 0.0
      %5004 = vmatpush1.msra.mxu0 0.0
      %5005 = vmatprep.subr.mxu0 0.0
      %5006 = vmatpush1.msra.mxu0 0.0
      %5007 = vmatprep.subr.mxu0 0.0
      %5008 = vmatpush1.msra.mxu0 0.0
      %5009 = vmatprep.subr.mxu0 0.0
      %5010 = vmatpush1.msra.mxu0 0.0
      %5011 = vmatprep.subr.mxu0 0.0
      %5012 = vmatpush1.msra.mxu0 0.0
      %5013 = vmatprep.subr.mxu0 0.0
      %5014 = vmatpush1.msra.mxu0 0.0
      %5015 = vmatprep.subr.mxu0 0.0
      %5016 = vmatpush1.msra.mxu0 0.0
      %5017 = vmatprep.subr.mxu0 0.0
      %5018 = vmatpush1.msra.mxu0 0.0
      %5019 = vmatprep.subr.mxu0 0.0
      %5020 = vmatpush1.msra.mxu0 0.0
      %5021 = vmatprep.subr.mxu0 0.0
      %5022 = vmatpush1.msra.mxu0 0.0
      %5023 = vmatprep.subr.mxu0 0.0
      %5024 = vmatpush1.msra.mxu0 0.0
      %5025 = vmatprep.subr.mxu0 0.0
      %5026 = vmatpush1.msra.mxu0 0.0
      %5027 = vmatprep.subr.mxu0 0.0
      %5028 = vmatpush1.msra.mxu0 0.0
      %5029 = vmatprep.subr.mxu0 0.0
      %5030 = vmatpush1.msra.mxu0 0.0
      %5031 = vmatprep.subr.mxu0 0.0
      %5032 = vmatpush1.msra.mxu0 0.0
      %5033 = vmatprep.subr.mxu0 0.0
      %5034 = vmatpush1.msra.mxu0 0.0
      %5035 = vmatprep.subr.mxu0 0.0
      %5036 = vmatpush1.msra.mxu0 0.0
      %5037 = vmatprep.subr.mxu0 0.0
      %5038 = vmatpush1.msra.mxu0 0.0
      %5039 = vmatprep.subr.mxu0 0.0
      %5040 = vmatpush1.msra.mxu0 0.0
      %5041 = vmatprep.subr.mxu0 0.0
      %5042 = vmatpush1.msra.mxu0 0.0
      %5043 = vmatprep.mubr.f32.mxu0 0.0
      %5044 = vmatmul.mubr.f32.gmra.mrb[0].mxu0 %v4977
      %v5045 = vpop.f32.mrb[0].mxu0
      %v5046 = vadd.f32 %v4974, %v5045
      %v5047 = vpop.f32.mrb[0].mxu0
      %5048 = vdwg.mxu0
      %v5049 = vmul.f32 %v5046, 0.5
      %v5050 = vmul.f32 %v5046, 0.044715
      %v5051 = vmul.f32 %v5050, %v5046
      %v5052 = vmul.f32 %v5051, %v5046
      %v5053 = vadd.f32 %v5046, %v5052
      %v5054 = vmul.f32 %v5053, 0.7978846
      %v5055 = vtanh.pop %v5054
      %v5056 = vadd.f32 %v5055, 1.0
      %v5057 = vmul.f32 %v5049, %v5056
      %s5058 = scalar_lea.vmem %s16, 64
      %v5059 = vld [vmem:[%s5058] sm:$0xff]
      %v5060 = vld [vmem:[%s5058 + $0x8] sm:$0xff]
      %v5061 = vld [vmem:[%s5058 + $0x10] sm:$0xff]
      %v5062 = vld [vmem:[%s5058 + $0x18] sm:$0xff]
      %v5063 = vld [vmem:[%s5058 + $0x20] sm:$0xff]
      %v5064 = vld [vmem:[%s5058 + $0x28] sm:$0xff]
      %v5065 = vld [vmem:[%s5058 + $0x30] sm:$0xff]
      %v5066 = vld [vmem:[%s5058 + $0x38] sm:$0xff]
      %s5067 = scalar_lea.vmem %s17, 1
      %v5068 = vld [vmem:[%s5067] sm:$0x1]
      %v5070 = vlaneseq
      %v5071 = vshrl.u32 %v5070, 7
      %v5072 = vsub.s32 0, %v5071
      %v5073 = vrot.slane %v5068, %v5072
      %v5076 = vsel %vm2873, %v5057, 0
      %5078 = vmatprep.subr.mxu0 0.0
      %5079 = vmatpush1.msra.mxu0 %v5059
      %5080 = vmatprep.subr.mxu0 0.0
      %5081 = vmatpush1.msra.mxu0 %v5060
      %5082 = vmatprep.subr.mxu0 0.0
      %5083 = vmatpush1.msra.mxu0 %v5061
      %5084 = vmatprep.subr.mxu0 0.0
      %5085 = vmatpush1.msra.mxu0 %v5062
      %5086 = vmatprep.subr.mxu0 0.0
      %5087 = vmatpush1.msra.mxu0 %v5063
      %5088 = vmatprep.subr.mxu0 0.0
      %5089 = vmatpush1.msra.mxu0 %v5064
      %5090 = vmatprep.subr.mxu0 0.0
      %5091 = vmatpush1.msra.mxu0 %v5065
      %5092 = vmatprep.subr.mxu0 0.0
      %5093 = vmatpush1.msra.mxu0 %v5066
      %5094 = vmatprep.subr.mxu0 0.0
      %5095 = vmatpush1.msra.mxu0 0.0
      %5096 = vmatprep.subr.mxu0 0.0
      %5097 = vmatpush1.msra.mxu0 0.0
      %5098 = vmatprep.subr.mxu0 0.0
      %5099 = vmatpush1.msra.mxu0 0.0
      %5100 = vmatprep.subr.mxu0 0.0
      %5101 = vmatpush1.msra.mxu0 0.0
      %5102 = vmatprep.subr.mxu0 0.0
      %5103 = vmatpush1.msra.mxu0 0.0
      %5104 = vmatprep.subr.mxu0 0.0
      %5105 = vmatpush1.msra.mxu0 0.0
      %5106 = vmatprep.subr.mxu0 0.0
      %5107 = vmatpush1.msra.mxu0 0.0
      %5108 = vmatprep.subr.mxu0 0.0
      %5109 = vmatpush1.msra.mxu0 0.0
      %5110 = vmatprep.subr.mxu0 0.0
      %5111 = vmatpush1.msra.mxu0 0.0
      %5112 = vmatprep.subr.mxu0 0.0
      %5113 = vmatpush1.msra.mxu0 0.0
      %5114 = vmatprep.subr.mxu0 0.0
      %5115 = vmatpush1.msra.mxu0 0.0
      %5116 = vmatprep.subr.mxu0 0.0
      %5117 = vmatpush1.msra.mxu0 0.0
      %5118 = vmatprep.subr.mxu0 0.0
      %5119 = vmatpush1.msra.mxu0 0.0
      %5120 = vmatprep.subr.mxu0 0.0
      %5121 = vmatpush1.msra.mxu0 0.0
      %5122 = vmatprep.subr.mxu0 0.0
      %5123 = vmatpush1.msra.mxu0 0.0
      %5124 = vmatprep.subr.mxu0 0.0
      %5125 = vmatpush1.msra.mxu0 0.0
      %5126 = vmatprep.subr.mxu0 0.0
      %5127 = vmatpush1.msra.mxu0 0.0
      %5128 = vmatprep.subr.mxu0 0.0
      %5129 = vmatpush1.msra.mxu0 0.0
      %5130 = vmatprep.subr.mxu0 0.0
      %5131 = vmatpush1.msra.mxu0 0.0
      %5132 = vmatprep.subr.mxu0 0.0
      %5133 = vmatpush1.msra.mxu0 0.0
      %5134 = vmatprep.subr.mxu0 0.0
      %5135 = vmatpush1.msra.mxu0 0.0
      %5136 = vmatprep.subr.mxu0 0.0
      %5137 = vmatpush1.msra.mxu0 0.0
      %5138 = vmatprep.subr.mxu0 0.0
      %5139 = vmatpush1.msra.mxu0 0.0
      %5140 = vmatprep.subr.mxu0 0.0
      %5141 = vmatpush1.msra.mxu0 0.0
      %5142 = vmatprep.mubr.f32.mxu0 0.0
      %5143 = vmatmul.mubr.f32.gmra.mrb[0].mxu0 %v5076
      %v5144 = vpop.f32.mrb[0].mxu0
      %v5145 = vadd.f32 %v5073, %v5144
      %v5146 = vpop.f32.mrb[0].mxu0
      %5147 = vdwg.mxu0
      %v5148 = vadd.f32 %v5145, %v4962
      %s5149 = scalar_lea.vmem %s18, 1
      %v5150 = vld [vmem:[%s5149] sm:$0x1]
      %s5151 = scalar_lea.vmem %s19, 1
      %v5152 = vld [vmem:[%s5151] sm:$0x1]
      %v5153 = vsel %vm750, %v5148, 0.0
      %5154 = vadd.xlane.f32.xlu0 %v5153
      %v5155 = vpop.xlane.xlu0 %5154
      %v5156 = vmul.f32 %v5155, %v754
      %v5157 = vsub.f32 %v5148, %v5156
      %v5158 = vmul.f32 %v5157, %v5157
      %v5159 = vsel %vm750, %v5158, 0.0
      %5160 = vadd.xlane.f32.xlu0 %v5159
      %v5161 = vpop.xlane.xlu0 %5160
      %v5162 = vmul.f32 %v5161, %v754
      %v5163 = vadd.f32 %v5162, 1e-12
      %v5164 = vrsqrt.pop %v5163
      %v5165 = vmul.f32 %v5157, %v5164
      %v5167 = vlaneseq
      %v5168 = vshrl.u32 %v5167, 7
      %v5169 = vsub.s32 0, %v5168
      %v5170 = vrot.slane %v5150, %v5169
      %v5172 = vmul.f32 %v5165, %v5170
      %v5174 = vlaneseq
      %v5175 = vshrl.u32 %v5174, 7
      %v5176 = vsub.s32 0, %v5175
      %v5177 = vrot.slane %v5152, %v5176
      %v5179 = vadd.f32 %v5172, %v5177
      %v5180 = vld [vmem:[%s20] sm:$0xff]
      %v5181 = vld [vmem:[%s20 + $0x8] sm:$0xff]
      %v5182 = vld [vmem:[%s20 + $0x10] sm:$0xff]
      %v5183 = vld [vmem:[%s20 + $0x18] sm:$0xff]
      %v5184 = vld [vmem:[%s21] sm:$0x1]
      %v5186 = vsel %vm750, %v5179, 0
      %5188 = vmatprep.subr.mxu0 0.0
      %5189 = vmatpush1.msra.mxu0 %v5180
      %5190 = vmatprep.subr.mxu0 0.0
      %5191 = vmatpush1.msra.mxu0 %v5181
      %5192 = vmatprep.subr.mxu0 0.0
      %5193 = vmatpush1.msra.mxu0 %v5182
      %5194 = vmatprep.subr.mxu0 0.0
      %5195 = vmatpush1.msra.mxu0 %v5183
      %5196 = vmatprep.subr.mxu0 0.0
      %5197 = vmatpush1.msra.mxu0 0.0
      %5198 = vmatprep.subr.mxu0 0.0
      %5199 = vmatpush1.msra.mxu0 0.0
      %5200 = vmatprep.subr.mxu0 0.0
      %5201 = vmatpush1.msra.mxu0 0.0
      %5202 = vmatprep.subr.mxu0 0.0
      %5203 = vmatpush1.msra.mxu0 0.0
      %5204 = vmatprep.subr.mxu0 0.0
      %5205 = vmatpush1.msra.mxu0 0.0
      %5206 = vmatprep.subr.mxu0 0.0
      %5207 = vmatpush1.msra.mxu0 0.0
      %5208 = vmatprep.subr.mxu0 0.0
      %5209 = vmatpush1.msra.mxu0 0.0
      %5210 = vmatprep.subr.mxu0 0.0
      %5211 = vmatpush1.msra.mxu0 0.0
      %5212 = vmatprep.subr.mxu0 0.0
      %5213 = vmatpush1.msra.mxu0 0.0
      %5214 = vmatprep.subr.mxu0 0.0
      %5215 = vmatpush1.msra.mxu0 0.0
      %5216 = vmatprep.subr.mxu0 0.0
      %5217 = vmatpush1.msra.mxu0 0.0
      %5218 = vmatprep.subr.mxu0 0.0
      %5219 = vmatpush1.msra.mxu0 0.0
      %5220 = vmatprep.subr.mxu0 0.0
      %5221 = vmatpush1.msra.mxu0 0.0
      %5222 = vmatprep.subr.mxu0 0.0
      %5223 = vmatpush1.msra.mxu0 0.0
      %5224 = vmatprep.subr.mxu0 0.0
      %5225 = vmatpush1.msra.mxu0 0.0
      %5226 = vmatprep.subr.mxu0 0.0
      %5227 = vmatpush1.msra.mxu0 0.0
      %5228 = vmatprep.subr.mxu0 0.0
      %5229 = vmatpush1.msra.mxu0 0.0
      %5230 = vmatprep.subr.mxu0 0.0
      %5231 = vmatpush1.msra.mxu0 0.0
      %5232 = vmatprep.subr.mxu0 0.0
      %5233 = vmatpush1.msra.mxu0 0.0
      %5234 = vmatprep.subr.mxu0 0.0
      %5235 = vmatpush1.msra.mxu0 0.0
      %5236 = vmatprep.subr.mxu0 0.0
      %5237 = vmatpush1.msra.mxu0 0.0
      %5238 = vmatprep.subr.mxu0 0.0
      %5239 = vmatpush1.msra.mxu0 0.0
      %5240 = vmatprep.subr.mxu0 0.0
      %5241 = vmatpush1.msra.mxu0 0.0
      %5242 = vmatprep.subr.mxu0 0.0
      %5243 = vmatpush1.msra.mxu0 0.0
      %5244 = vmatprep.subr.mxu0 0.0
      %5245 = vmatpush1.msra.mxu0 0.0
      %5246 = vmatprep.subr.mxu0 0.0
      %5247 = vmatpush1.msra.mxu0 0.0
      %5248 = vmatprep.subr.mxu0 0.0
      %5249 = vmatpush1.msra.mxu0 0.0
      %5250 = vmatprep.subr.mxu0 0.0
      %5251 = vmatpush1.msra.mxu0 0.0
      %5252 = vmatprep.mubr.f32.mxu0 0.0
      %5253 = vmatmul.mubr.f32.gmra.mrb[0].mxu0 %v5186
      %v5254 = vpop.f32.mrb[0].mxu0
      %v5255 = vadd.f32 %v5184, %v5254
      %v5256 = vpop.f32.mrb[0].mxu0
      %5257 = vdwg.mxu0
      %v5258 = vtanh.pop %v5255
      %v5259 = vld [vmem:[%s22] sm:$0xff]
      %v5260 = vld [vmem:[%s22 + $0x8] sm:$0xff]
      %v5261 = vld [vmem:[%s22 + $0x10] sm:$0xff]
      %v5262 = vld [vmem:[%s22 + $0x18] sm:$0xff]
      %v5263 = vld [vmem:[%s23] sm:$0x1]
      %v5265 = vsel %vm750, %v5258, 0
      %5267 = vmatprep.subr.mxu0 0.0
      %5268 = vmatpush1.msra.mxu0 %v5259
      %5269 = vmatprep.subr.mxu0 0.0
      %5270 = vmatpush1.msra.mxu0 %v5260
      %5271 = vmatprep.subr.mxu0 0.0
      %5272 = vmatpush1.msra.mxu0 %v5261
      %5273 = vmatprep.subr.mxu0 0.0
      %5274 = vmatpush1.msra.mxu0 %v5262
      %5275 = vmatprep.subr.mxu0 0.0
      %5276 = vmatpush1.msra.mxu0 0.0
      %5277 = vmatprep.subr.mxu0 0.0
      %5278 = vmatpush1.msra.mxu0 0.0
      %5279 = vmatprep.subr.mxu0 0.0
      %5280 = vmatpush1.msra.mxu0 0.0
      %5281 = vmatprep.subr.mxu0 0.0
      %5282 = vmatpush1.msra.mxu0 0.0
      %5283 = vmatprep.subr.mxu0 0.0
      %5284 = vmatpush1.msra.mxu0 0.0
      %5285 = vmatprep.subr.mxu0 0.0
      %5286 = vmatpush1.msra.mxu0 0.0
      %5287 = vmatprep.subr.mxu0 0.0
      %5288 = vmatpush1.msra.mxu0 0.0
      %5289 = vmatprep.subr.mxu0 0.0
      %5290 = vmatpush1.msra.mxu0 0.0
      %5291 = vmatprep.subr.mxu0 0.0
      %5292 = vmatpush1.msra.mxu0 0.0
      %5293 = vmatprep.subr.mxu0 0.0
      %5294 = vmatpush1.msra.mxu0 0.0
      %5295 = vmatprep.subr.mxu0 0.0
      %5296 = vmatpush1.msra.mxu0 0.0
      %5297 = vmatprep.subr.mxu0 0.0
      %5298 = vmatpush1.msra.mxu0 0.0
      %5299 = vmatprep.subr.mxu0 0.0
      %5300 = vmatpush1.msra.mxu0 0.0
      %5301 = vmatprep.subr.mxu0 0.0
      %5302 = vmatpush1.msra.mxu0 0.0
      %5303 = vmatprep.subr.mxu0 0.0
      %5304 = vmatpush1.msra.mxu0 0.0
      %5305 = vmatprep.subr.mxu0 0.0
      %5306 = vmatpush1.msra.mxu0 0.0
      %5307 = vmatprep.subr.mxu0 0.0
      %5308 = vmatpush1.msra.mxu0 0.0
      %5309 = vmatprep.subr.mxu0 0.0
      %5310 = vmatpush1.msra.mxu0 0.0
      %5311 = vmatprep.subr.mxu0 0.0
      %5312 = vmatpush1.msra.mxu0 0.0
      %5313 = vmatprep.subr.mxu0 0.0
      %5314 = vmatpush1.msra.mxu0 0.0
      %5315 = vmatprep.subr.mxu0 0.0
      %5316 = vmatpush1.msra.mxu0 0.0
      %5317 = vmatprep.subr.mxu0 0.0
      %5318 = vmatpush1.msra.mxu0 0.0
      %5319 = vmatprep.subr.mxu0 0.0
      %5320 = vmatpush1.msra.mxu0 0.0
      %5321 = vmatprep.subr.mxu0 0.0
      %5322 = vmatpush1.msra.mxu0 0.0
      %5323 = vmatprep.subr.mxu0 0.0
      %5324 = vmatpush1.msra.mxu0 0.0
      %5325 = vmatprep.subr.mxu0 0.0
      %5326 = vmatpush1.msra.mxu0 0.0
      %5327 = vmatprep.subr.mxu0 0.0
      %5328 = vmatpush1.msra.mxu0 0.0
      %5329 = vmatprep.subr.mxu0 0.0
      %5330 = vmatpush1.msra.mxu0 0.0
      %5331 = vmatprep.mubr.f32.mxu0 0.0
      %5332 = vmatmul.mubr.f32.gmra.mrb[0].mxu0 %v5265
      %v5333 = vpop.f32.mrb[0].mxu0
      %v5334 = vadd.f32 %v5263, %v5333
      %v5335 = vpop.f32.mrb[0].mxu0
      %5336 = vdwg.mxu0
      %v5337 = vmax.f32 %v5334, 0.0
      %v5338 = vlaneseq
      %v5339 = vshrl.u32 %v5338, 7
      %v5340 = vsub.s32 0, %v5339
      %v5341 = vrot.slane %v5337, %v5340
      %5342 = vst [vmem:[%s746] sm:$0xff] %v5341
      %p5343 = scmp.lt.s32.totalorder %s35, 1
      %s5344 = scalar_select %p5343, %s35, 1
      %s5345 = smul.addr %s5344, 8
      %s5346 = scalar_lea.vmem %s24, %s5345
      // Predicated region
      $region117: #{bert_classifier_forward.1} parent=115 // pred_check
        %p5347 = pneg %p567
      $region118: #{bert_classifier_forward.1} parent=115 // pred_check_branch
        %5349 = sbr.rel (%p5347) target = $region120
      $region119: #{bert_classifier_forward.1} parent=115 // pred_region
        _
      $region120: #{bert_classifier_forward.1} parent=115 // pred_fallthru
        _
    $region116: #{bert_classifier_forward.1} parent=5 // pred_fallthru
      _
    %p5350 = scmp.le.s32.totalorder 2, %s30
    // Predicated region
    $region121: #{bert_classifier_forward.1} parent=5 // pred_check
      %p5351 = pneg %p5350
    $region122: #{bert_classifier_forward.1} parent=5 // pred_check_branch
      %5353 = sbr.rel (%p5351) target = $region124
    $region123: #{bert_classifier_forward.1} parent=5 // pred_region
      %s5354 = ssub.s32 %s30, 2
      // Predicated region
      $region125: #{bert_classifier_forward.1} parent=123 // pred_check
        %p5355 = pneg %p573
      $region126: #{bert_classifier_forward.1} parent=123 // pred_check_branch
        %5357 = sbr.rel (%p5355) target = $region128
      $region127: #{bert_classifier_forward.1} parent=123 // pred_region
        %p5358 = scmp.lt.s32.totalorder %s36, 1
        %s5359 = scalar_select %p5358, %s36, 1
        %s5360 = smul.addr %s5359, 8
        %s5361 = scalar_lea.vmem %s24, %s5360
      $region128: #{bert_classifier_forward.1} parent=123 // pred_fallthru
        _
    $region124: #{bert_classifier_forward.1} parent=5 // pred_fallthru
      _
  $region6: #{bert_classifier_forward.1} parent=0 // loop_footer
    %s34 = sadd.s32 1, %s30
  $region7: #{bert_classifier_forward.1} parent=0 // loop_footer_branch
    %29 = sbr.rel target = $region3
  $region8: #{bert_classifier_forward.1} parent=0 // loop_exit
    _

</llo_original>
